<compile_context>
chip_gen: v7x
topology: tpu7x:2x2x1
jax: 0.10.0
libtpu: 0.0.40
codegen_flags: <defaults>
</compile_context>

<pallas_src>
import functools

import jax
import jax.numpy as jnp
from jax.experimental import pallas as pl
from jax.experimental.pallas import tpu as pltpu

LANES = 128                      # output lane padding -> unmasked vector stores
VMEM_LIMIT = 32 * 1024 * 1024    # safe on v5e/v6e (128 MiB) and v7x (64 MiB)


def _round_up(x, m):
    return (x + m - 1) // m * m


def _cdiv(a, b):
    return (a + b - 1) // b


# ----------------------------------------------------------------------------
# Pallas kernel 1: fused 3x3 conv (9 shifted matmuls) + bias + ReLU
# ----------------------------------------------------------------------------
def _conv3x3_kernel(a_ref, w_ref, b_ref, o_ref, blk_ref, *, tm, halo, offsets):
    """One row tile of  out = relu(conv3x3(x) + b).

    a_ref  : (A_rows, Ck)   f32  full padded activation, pixel-row layout (resident)
    w_ref  : (9, Ck, 128)   bf16 per-tap weight matrices (resident)
    b_ref  : (1, 128)       f32  bias (lane padded)
    o_ref  : (tm, 128)      f32  output rows of this grid step
    blk_ref: (tm+halo, Ck)  f32  scratch: this tile's input rows + halo
    """
    r0 = pl.multiple_of(pl.program_id(0) * tm, 8)
    # One aligned dynamic-start copy; the 9 tap windows below are then purely
    # static (possibly sublane-unaligned) slices of this VMEM scratch block.
    blk_ref[...] = a_ref[pl.ds(r0, tm + halo), :]
    for t, off in enumerate(offsets):
        lhs = blk_ref[pl.ds(off, tm), :].astype(jnp.bfloat16)   # bf16 MXU operand
        contrib = jnp.dot(lhs, w_ref[t], preferred_element_type=jnp.float32)
        if t == 0:
            o_ref[...] = contrib
        else:
            o_ref[...] += contrib
    o_ref[...] = jnp.maximum(o_ref[...] + b_ref[...], 0.0)


def conv3x3_bias_relu(x_nhwc, w9, bias_row, *, cout, target_tm=256):
    """Fused 3x3 / stride-1 / pad-1 conv + bias + ReLU on NHWC input (f32)."""
    N, H, W, C = x_nhwc.shape
    ck = w9.shape[1]                       # channel lanes (C rounded up to 64)
    hp, wp = H + 2, W + 2

    # Zero-padded activation in pixel-row layout: row index (n*hp + h)*wp + w.
    xpad = jnp.pad(x_nhwc, ((0, 0), (1, 1), (1, 1), (0, ck - C)))
    rows_valid = N * hp * wp
    a2d = xpad.reshape(rows_valid, ck)

    # Tap t = dh*3+dw of output row r reads activation row r + dh*wp + dw.
    offsets = tuple(dh * wp + dw for dh in range(3) for dw in range(3))
    halo = _round_up(offsets[-1] + 1, 8)

    # >= 2 grid steps (v7x dual TC); modest tile keeps per-tap operands small.
    ngrid = max(2, _cdiv(rows_valid, target_tm))
    tm = _round_up(_cdiv(rows_valid, ngrid), 8)
    rows_comp = ngrid * tm
    a_rows = _round_up(rows_comp + halo, 8)
    a2d = jnp.pad(a2d, ((0, a_rows - rows_valid), (0, 0)))

    out = pl.pallas_call(
        functools.partial(_conv3x3_kernel, tm=tm, halo=halo, offsets=offsets),
        out_shape=jax.ShapeDtypeStruct((rows_comp, LANES), jnp.float32),
        grid=(ngrid,),
        in_specs=[
            pl.BlockSpec((a_rows, ck), lambda i: (0, 0)),       # whole activation, resident
            pl.BlockSpec((9, ck, LANES), lambda i: (0, 0, 0)),  # all 9 taps, resident
            pl.BlockSpec((1, LANES), lambda i: (0, 0)),
        ],
        out_specs=pl.BlockSpec((tm, LANES), lambda i: (i, 0)),
        scratch_shapes=[pltpu.VMEM((tm + halo, ck), jnp.float32)],
        compiler_params=pltpu.CompilerParams(
            dimension_semantics=("parallel",),
            vmem_limit_bytes=VMEM_LIMIT,
        ),
    )(a2d, w9, bias_row)

    # Drop the padded-border rows / padded lanes; back to NHWC.
    out = out[:rows_valid].reshape(N, hp, wp, LANES)[:, :H, :W, :cout]
    return out


# ----------------------------------------------------------------------------
# Pallas kernel 2: fused fc1 + ReLU + fc2  (fc1 N split across 2 parallel steps)
# ----------------------------------------------------------------------------
def _fc_kernel(x_ref, w1_ref, b1_ref, w2_ref, o_ref, h_ref):
    k = pl.program_id(1)

    @pl.when(k == 0)
    def _init():
        h_ref[...] = jnp.zeros_like(h_ref)

    h_ref[...] += jnp.dot(x_ref[...], w1_ref[...],
                          preferred_element_type=jnp.float32)

    @pl.when(k == pl.num_programs(1) - 1)
    def _finish():
        h = jnp.maximum(h_ref[...] + b1_ref[...], 0.0)
        o_ref[...] = jnp.dot(h.astype(jnp.bfloat16), w2_ref[...],
                             preferred_element_type=jnp.float32)


def fc_head(x, w1, b1_row, w2, b2_row, *, tk=512):
    """relu(x @ w1 + b1) @ w2   (b2 added outside on the tiny partial sum)."""
    n, kdim = x.shape
    nout = w1.shape[1]                     # 256
    assert kdim % tk == 0 and nout % 2 == 0
    mp = _round_up(max(n, 8), 8)
    xp = jnp.pad(x, ((0, mp - n), (0, 0))).astype(jnp.bfloat16)

    n_split = 2                            # both v7x TensorCores get a half
    tn = nout // n_split                   # 128
    nk = kdim // tk

    partials = pl.pallas_call(
        _fc_kernel,
        out_shape=jax.ShapeDtypeStruct((n_split, mp, LANES), jnp.float32),
        grid=(n_split, nk),
        in_specs=[
            pl.BlockSpec((mp, tk), lambda j, k: (0, k)),
            pl.BlockSpec((tk, tn), lambda j, k: (k, j)),
            pl.BlockSpec((1, tn), lambda j, k: (0, j)),
            pl.BlockSpec((tn, LANES), lambda j, k: (j, 0)),
        ],
        out_specs=pl.BlockSpec((None, mp, LANES), lambda j, k: (j, 0, 0)),
        scratch_shapes=[pltpu.VMEM((mp, tn), jnp.float32)],
        compiler_params=pltpu.CompilerParams(
            dimension_semantics=("parallel", "arbitrary"),
            vmem_limit_bytes=VMEM_LIMIT,
        ),
    )(xp, w1, b1_row, w2)

    logits = partials[0] + partials[1] + b2_row
    return logits[:n, :3]


# ----------------------------------------------------------------------------
# Plain-JAX glue (tiny tensors): 2x2 max pool, layout prep
# ----------------------------------------------------------------------------
def maxpool2x2(y):
    n, h, w, c = y.shape
    return jnp.max(y.reshape(n, h // 2, 2, w // 2, 2, c), axis=(2, 4))


# ----------------------------------------------------------------------------
# Full forward pass
# ----------------------------------------------------------------------------
def emotion_cnn_forward(x_nchw, kp):
    n = x_nchw.shape[0]
    x = jnp.transpose(x_nchw, (0, 2, 3, 1)).astype(jnp.float32)     # NHWC

    y = conv3x3_bias_relu(x, kp["cw1"], kp["cb1"], cout=32)         # (N,128,8,32)
    y = maxpool2x2(y)                                               # (N, 64,4,32)

    y = conv3x3_bias_relu(y, kp["cw2"], kp["cb2"], cout=64)         # (N, 64,4,64)
    y = maxpool2x2(y)                                               # (N, 32,2,64)

    # PyTorch x.view(-1, 64*32*2) flattens in NCHW order.
    flat = jnp.transpose(y, (0, 3, 1, 2)).reshape(n, 64 * 32 * 2)

    return fc_head(flat, kp["fw1"], kp["fb1"], kp["fw2"], kp["fb2"])


# ----------------------------------------------------------------------------
# Parameters: PyTorch layout -> one-time kernel layout (outside the jit)
# ----------------------------------------------------------------------------
def init_params(key):
    ks = jax.random.split(key, 8)
    s = 0.05
    return {
        "w1": jax.random.normal(ks[0], (32, 62, 3, 3), jnp.float32) * s,
        "b1": jax.random.normal(ks[1], (32,), jnp.float32) * s,
        "w2": jax.random.normal(ks[2], (64, 32, 3, 3), jnp.float32) * s,
        "b2": jax.random.normal(ks[3], (64,), jnp.float32) * s,
        "fw1": jax.random.normal(ks[4], (256, 64 * 32 * 2), jnp.float32) * s,
        "fb1": jax.random.normal(ks[5], (256,), jnp.float32) * s,
        "fw2": jax.random.normal(ks[6], (3, 256), jnp.float32) * s,
        "fb2": jax.random.normal(ks[7], (3,), jnp.float32) * s,
    }


def prepare_params(p):
    """One-time repack: per-tap conv weight matrices, pre-transposed fc weights,
    bf16 MXU operands, biases padded to 128 lanes."""
    def conv_w9(w):  # (Cout, Cin, 3, 3) -> (9, round64(Cin), 128) bf16
        cout, cin = w.shape[0], w.shape[1]
        ck = _round_up(cin, 64)
        w9 = jnp.transpose(w, (2, 3, 1, 0)).reshape(9, cin, cout)   # tap-major (dh,dw)
        w9 = jnp.pad(w9, ((0, 0), (0, ck - cin), (0, LANES - cout)))
        return w9.astype(jnp.bfloat16)

    def bias_row(b):
        return jnp.pad(b, (0, LANES - b.shape[0])).reshape(1, LANES).astype(jnp.float32)

    return {
        "cw1": conv_w9(p["w1"]), "cb1": bias_row(p["b1"]),
        "cw2": conv_w9(p["w2"]), "cb2": bias_row(p["b2"]),
        "fw1": p["fw1"].T.astype(jnp.bfloat16),                                 # (4096,256)
        "fb1": p["fb1"].reshape(1, 256).astype(jnp.float32),
        "fw2": jnp.pad(p["fw2"].T, ((0, 0), (0, LANES - 3))).astype(jnp.bfloat16),  # (256,128)
        "fb2": bias_row(p["fb2"]),
    }


if __name__ == "__main__":
    key = jax.random.PRNGKey(0)
    k_x, k_p = jax.random.split(key)

    # Input spatial size is forced by fc1's 64*32*2 flatten: (N, 62, 128, 8).
    x = jax.random.normal(k_x, (2, 62, 128, 8), jnp.float32)
    params = init_params(k_p)
    kparams = prepare_params(params)      # one-time weight repack, not per call

    fwd = jax.jit(emotion_cnn_forward)
    out = jax.block_until_ready(fwd(x, kparams))
    assert out.shape == (2, 3)
    print("KERNEL_OK")
</pallas_src>

<mosaic_0001>
module attributes {stable_mosaic.version = 11 : i64} {
  func.func @_conv3x3_kernel(%arg0: i32, %arg1: memref<2664x64xf32, #tpu.memory_space<vmem>>, %arg2: memref<9x64x128xbf16, #tpu.memory_space<vmem>>, %arg3: memref<1x128xf32, #tpu.memory_space<vmem>>, %arg4: memref<240x128xf32, #tpu.memory_space<vmem>>, %arg5: memref<264x64xf32, #tpu.memory_space<vmem>>) attributes {dimension_semantics = [#tpu.dimension_semantics<parallel>], iteration_bounds = array<i64: 11>, scalar_prefetch = 0 : i64, scratch_operands = 1 : i64, tpu.core_type = #tpu.core_type<tc>, window_params = [{pipeline_mode = #tpu.pipeline_mode<synchronous>, transform_indices = @transform_0, window_bounds = array<i64: 2664, 64>}, {pipeline_mode = #tpu.pipeline_mode<synchronous>, transform_indices = @transform_1, window_bounds = array<i64: 9, 64, 128>}, {pipeline_mode = #tpu.pipeline_mode<synchronous>, transform_indices = @transform_2, window_bounds = array<i64: 1, 128>}, {transform_indices = @transform_3, window_bounds = array<i64: 240, 128>}]} {
    %c240_i32 = arith.constant 240 : i32
    %0 = arith.muli %arg0, %c240_i32 : i32
    %1 = tpu.assume_multiple %0, 8 : i32
    %2 = arith.index_cast %1 : i32 to index
    %c0 = arith.constant 0 : index
    %3 = vector.load %arg1[%2, %c0] : memref<2664x64xf32, #tpu.memory_space<vmem>>, vector<264x64xf32>
    %c0_0 = arith.constant 0 : index
    %c0_1 = arith.constant 0 : index
    %4 = vector.load %arg5[%c0_0, %c0_1] : memref<264x64xf32, #tpu.memory_space<vmem>>, vector<264x64xf32>
    tpu.vector_store %arg5[%c0_0, %c0_1], %3 {strides = array<i32>} : memref<264x64xf32, #tpu.memory_space<vmem>>, vector<264x64xf32>,
    %c0_2 = arith.constant 0 : index
    %c0_3 = arith.constant 0 : index
    %5 = vector.load %arg5[%c0_2, %c0_3] : memref<264x64xf32, #tpu.memory_space<vmem>>, vector<240x64xf32>
    %6 = arith.truncf %5 : vector<240x64xf32> to vector<240x64xbf16>
    %c0_4 = arith.constant 0 : index
    %c0_5 = arith.constant 0 : index
    %c0_6 = arith.constant 0 : index
    %7 = vector.load %arg2[%c0_4, %c0_5, %c0_6] : memref<9x64x128xbf16, #tpu.memory_space<vmem>>, vector<1x64x128xbf16>
    %8 = vector.shape_cast %7 : vector<1x64x128xbf16> to vector<64x128xbf16>
    %cst = arith.constant dense<0.000000e+00> : vector<240x128xf32>
    %9 = tpu.matmul %6, %8, %cst {dimension_numbers = #tpu.dot_dimension_numbers<[1], [0], [0], [1], [0, 0, 1, 1], [], []>} : vector<240x64xbf16>, vector<64x128xbf16>, vector<240x128xf32> -> vector<240x128xf32>
    %c0_7 = arith.constant 0 : index
    %c0_8 = arith.constant 0 : index
    %10 = vector.load %arg4[%c0_7, %c0_8] : memref<240x128xf32, #tpu.memory_space<vmem>>, vector<240x128xf32>
    tpu.vector_store %arg4[%c0_7, %c0_8], %9 {strides = array<i32>} : memref<240x128xf32, #tpu.memory_space<vmem>>, vector<240x128xf32>,
    %c1 = arith.constant 1 : index
    %c0_9 = arith.constant 0 : index
    %11 = vector.load %arg5[%c1, %c0_9] : memref<264x64xf32, #tpu.memory_space<vmem>>, vector<240x64xf32>
    %12 = arith.truncf %11 : vector<240x64xf32> to vector<240x64xbf16>
    %c1_10 = arith.constant 1 : index
    %c0_11 = arith.constant 0 : index
    %c0_12 = arith.constant 0 : index
    %13 = vector.load %arg2[%c1_10, %c0_11, %c0_12] : memref<9x64x128xbf16, #tpu.memory_space<vmem>>, vector<1x64x128xbf16>
    %14 = vector.shape_cast %13 : vector<1x64x128xbf16> to vector<64x128xbf16>
    %cst_13 = arith.constant dense<0.000000e+00> : vector<240x128xf32>
    %15 = tpu.matmul %12, %14, %cst_13 {dimension_numbers = #tpu.dot_dimension_numbers<[1], [0], [0], [1], [0, 0, 1, 1], [], []>} : vector<240x64xbf16>, vector<64x128xbf16>, vector<240x128xf32> -> vector<240x128xf32>
    %c0_14 = arith.constant 0 : index
    %c0_15 = arith.constant 0 : index
    %16 = vector.load %arg4[%c0_14, %c0_15] : memref<240x128xf32, #tpu.memory_space<vmem>>, vector<240x128xf32>
    %17 = arith.addf %16, %15 : vector<240x128xf32>
    %c0_16 = arith.constant 0 : index
    %c0_17 = arith.constant 0 : index
    %18 = vector.load %arg4[%c0_16, %c0_17] : memref<240x128xf32, #tpu.memory_space<vmem>>, vector<240x128xf32>
    tpu.vector_store %arg4[%c0_16, %c0_17], %17 {strides = array<i32>} : memref<240x128xf32, #tpu.memory_space<vmem>>, vector<240x128xf32>,
    %c2 = arith.constant 2 : index
    %c0_18 = arith.constant 0 : index
    %19 = vector.load %arg5[%c2, %c0_18] : memref<264x64xf32, #tpu.memory_space<vmem>>, vector<240x64xf32>
    %20 = arith.truncf %19 : vector<240x64xf32> to vector<240x64xbf16>
    %c2_19 = arith.constant 2 : index
    %c0_20 = arith.constant 0 : index
    %c0_21 = arith.constant 0 : index
    %21 = vector.load %arg2[%c2_19, %c0_20, %c0_21] : memref<9x64x128xbf16, #tpu.memory_space<vmem>>, vector<1x64x128xbf16>
    %22 = vector.shape_cast %21 : vector<1x64x128xbf16> to vector<64x128xbf16>
    %cst_22 = arith.constant dense<0.000000e+00> : vector<240x128xf32>
    %23 = tpu.matmul %20, %22, %cst_22 {dimension_numbers = #tpu.dot_dimension_numbers<[1], [0], [0], [1], [0, 0, 1, 1], [], []>} : vector<240x64xbf16>, vector<64x128xbf16>, vector<240x128xf32> -> vector<240x128xf32>
    %c0_23 = arith.constant 0 : index
    %c0_24 = arith.constant 0 : index
    %24 = vector.load %arg4[%c0_23, %c0_24] : memref<240x128xf32, #tpu.memory_space<vmem>>, vector<240x128xf32>
    %25 = arith.addf %24, %23 : vector<240x128xf32>
    %c0_25 = arith.constant 0 : index
    %c0_26 = arith.constant 0 : index
    %26 = vector.load %arg4[%c0_25, %c0_26] : memref<240x128xf32, #tpu.memory_space<vmem>>, vector<240x128xf32>
    tpu.vector_store %arg4[%c0_25, %c0_26], %25 {strides = array<i32>} : memref<240x128xf32, #tpu.memory_space<vmem>>, vector<240x128xf32>,
    %c10 = arith.constant 10 : index
    %c0_27 = arith.constant 0 : index
    %27 = vector.load %arg5[%c10, %c0_27] : memref<264x64xf32, #tpu.memory_space<vmem>>, vector<240x64xf32>
    %28 = arith.truncf %27 : vector<240x64xf32> to vector<240x64xbf16>
    %c3 = arith.constant 3 : index
    %c0_28 = arith.constant 0 : index
    %c0_29 = arith.constant 0 : index
    %29 = vector.load %arg2[%c3, %c0_28, %c0_29] : memref<9x64x128xbf16, #tpu.memory_space<vmem>>, vector<1x64x128xbf16>
    %30 = vector.shape_cast %29 : vector<1x64x128xbf16> to vector<64x128xbf16>
    %cst_30 = arith.constant dense<0.000000e+00> : vector<240x128xf32>
    %31 = tpu.matmul %28, %30, %cst_30 {dimension_numbers = #tpu.dot_dimension_numbers<[1], [0], [0], [1], [0, 0, 1, 1], [], []>} : vector<240x64xbf16>, vector<64x128xbf16>, vector<240x128xf32> -> vector<240x128xf32>
    %c0_31 = arith.constant 0 : index
    %c0_32 = arith.constant 0 : index
    %32 = vector.load %arg4[%c0_31, %c0_32] : memref<240x128xf32, #tpu.memory_space<vmem>>, vector<240x128xf32>
    %33 = arith.addf %32, %31 : vector<240x128xf32>
    %c0_33 = arith.constant 0 : index
    %c0_34 = arith.constant 0 : index
    %34 = vector.load %arg4[%c0_33, %c0_34] : memref<240x128xf32, #tpu.memory_space<vmem>>, vector<240x128xf32>
    tpu.vector_store %arg4[%c0_33, %c0_34], %33 {strides = array<i32>} : memref<240x128xf32, #tpu.memory_space<vmem>>, vector<240x128xf32>,
    %c11 = arith.constant 11 : index
    %c0_35 = arith.constant 0 : index
    %35 = vector.load %arg5[%c11, %c0_35] : memref<264x64xf32, #tpu.memory_space<vmem>>, vector<240x64xf32>
    %36 = arith.truncf %35 : vector<240x64xf32> to vector<240x64xbf16>
    %c4 = arith.constant 4 : index
    %c0_36 = arith.constant 0 : index
    %c0_37 = arith.constant 0 : index
    %37 = vector.load %arg2[%c4, %c0_36, %c0_37] : memref<9x64x128xbf16, #tpu.memory_space<vmem>>, vector<1x64x128xbf16>
    %38 = vector.shape_cast %37 : vector<1x64x128xbf16> to vector<64x128xbf16>
    %cst_38 = arith.constant dense<0.000000e+00> : vector<240x128xf32>
    %39 = tpu.matmul %36, %38, %cst_38 {dimension_numbers = #tpu.dot_dimension_numbers<[1], [0], [0], [1], [0, 0, 1, 1], [], []>} : vector<240x64xbf16>, vector<64x128xbf16>, vector<240x128xf32> -> vector<240x128xf32>
    %c0_39 = arith.constant 0 : index
    %c0_40 = arith.constant 0 : index
    %40 = vector.load %arg4[%c0_39, %c0_40] : memref<240x128xf32, #tpu.memory_space<vmem>>, vector<240x128xf32>
    %41 = arith.addf %40, %39 : vector<240x128xf32>
    %c0_41 = arith.constant 0 : index
    %c0_42 = arith.constant 0 : index
    %42 = vector.load %arg4[%c0_41, %c0_42] : memref<240x128xf32, #tpu.memory_space<vmem>>, vector<240x128xf32>
    tpu.vector_store %arg4[%c0_41, %c0_42], %41 {strides = array<i32>} : memref<240x128xf32, #tpu.memory_space<vmem>>, vector<240x128xf32>,
    %c12 = arith.constant 12 : index
    %c0_43 = arith.constant 0 : index
    %43 = vector.load %arg5[%c12, %c0_43] : memref<264x64xf32, #tpu.memory_space<vmem>>, vector<240x64xf32>
    %44 = arith.truncf %43 : vector<240x64xf32> to vector<240x64xbf16>
    %c5 = arith.constant 5 : index
    %c0_44 = arith.constant 0 : index
    %c0_45 = arith.constant 0 : index
    %45 = vector.load %arg2[%c5, %c0_44, %c0_45] : memref<9x64x128xbf16, #tpu.memory_space<vmem>>, vector<1x64x128xbf16>
    %46 = vector.shape_cast %45 : vector<1x64x128xbf16> to vector<64x128xbf16>
    %cst_46 = arith.constant dense<0.000000e+00> : vector<240x128xf32>
    %47 = tpu.matmul %44, %46, %cst_46 {dimension_numbers = #tpu.dot_dimension_numbers<[1], [0], [0], [1], [0, 0, 1, 1], [], []>} : vector<240x64xbf16>, vector<64x128xbf16>, vector<240x128xf32> -> vector<240x128xf32>
    %c0_47 = arith.constant 0 : index
    %c0_48 = arith.constant 0 : index
    %48 = vector.load %arg4[%c0_47, %c0_48] : memref<240x128xf32, #tpu.memory_space<vmem>>, vector<240x128xf32>
    %49 = arith.addf %48, %47 : vector<240x128xf32>
    %c0_49 = arith.constant 0 : index
    %c0_50 = arith.constant 0 : index
    %50 = vector.load %arg4[%c0_49, %c0_50] : memref<240x128xf32, #tpu.memory_space<vmem>>, vector<240x128xf32>
    tpu.vector_store %arg4[%c0_49, %c0_50], %49 {strides = array<i32>} : memref<240x128xf32, #tpu.memory_space<vmem>>, vector<240x128xf32>,
    %c20 = arith.constant 20 : index
    %c0_51 = arith.constant 0 : index
    %51 = vector.load %arg5[%c20, %c0_51] : memref<264x64xf32, #tpu.memory_space<vmem>>, vector<240x64xf32>
    %52 = arith.truncf %51 : vector<240x64xf32> to vector<240x64xbf16>
    %c6 = arith.constant 6 : index
    %c0_52 = arith.constant 0 : index
    %c0_53 = arith.constant 0 : index
    %53 = vector.load %arg2[%c6, %c0_52, %c0_53] : memref<9x64x128xbf16, #tpu.memory_space<vmem>>, vector<1x64x128xbf16>
    %54 = vector.shape_cast %53 : vector<1x64x128xbf16> to vector<64x128xbf16>
    %cst_54 = arith.constant dense<0.000000e+00> : vector<240x128xf32>
    %55 = tpu.matmul %52, %54, %cst_54 {dimension_numbers = #tpu.dot_dimension_numbers<[1], [0], [0], [1], [0, 0, 1, 1], [], []>} : vector<240x64xbf16>, vector<64x128xbf16>, vector<240x128xf32> -> vector<240x128xf32>
    %c0_55 = arith.constant 0 : index
    %c0_56 = arith.constant 0 : index
    %56 = vector.load %arg4[%c0_55, %c0_56] : memref<240x128xf32, #tpu.memory_space<vmem>>, vector<240x128xf32>
    %57 = arith.addf %56, %55 : vector<240x128xf32>
    %c0_57 = arith.constant 0 : index
    %c0_58 = arith.constant 0 : index
    %58 = vector.load %arg4[%c0_57, %c0_58] : memref<240x128xf32, #tpu.memory_space<vmem>>, vector<240x128xf32>
    tpu.vector_store %arg4[%c0_57, %c0_58], %57 {strides = array<i32>} : memref<240x128xf32, #tpu.memory_space<vmem>>, vector<240x128xf32>,
    %c21 = arith.constant 21 : index
    %c0_59 = arith.constant 0 : index
    %59 = vector.load %arg5[%c21, %c0_59] : memref<264x64xf32, #tpu.memory_space<vmem>>, vector<240x64xf32>
    %60 = arith.truncf %59 : vector<240x64xf32> to vector<240x64xbf16>
    %c7 = arith.constant 7 : index
    %c0_60 = arith.constant 0 : index
    %c0_61 = arith.constant 0 : index
    %61 = vector.load %arg2[%c7, %c0_60, %c0_61] : memref<9x64x128xbf16, #tpu.memory_space<vmem>>, vector<1x64x128xbf16>
    %62 = vector.shape_cast %61 : vector<1x64x128xbf16> to vector<64x128xbf16>
    %cst_62 = arith.constant dense<0.000000e+00> : vector<240x128xf32>
    %63 = tpu.matmul %60, %62, %cst_62 {dimension_numbers = #tpu.dot_dimension_numbers<[1], [0], [0], [1], [0, 0, 1, 1], [], []>} : vector<240x64xbf16>, vector<64x128xbf16>, vector<240x128xf32> -> vector<240x128xf32>
    %c0_63 = arith.constant 0 : index
    %c0_64 = arith.constant 0 : index
    %64 = vector.load %arg4[%c0_63, %c0_64] : memref<240x128xf32, #tpu.memory_space<vmem>>, vector<240x128xf32>
    %65 = arith.addf %64, %63 : vector<240x128xf32>
    %c0_65 = arith.constant 0 : index
    %c0_66 = arith.constant 0 : index
    %66 = vector.load %arg4[%c0_65, %c0_66] : memref<240x128xf32, #tpu.memory_space<vmem>>, vector<240x128xf32>
    tpu.vector_store %arg4[%c0_65, %c0_66], %65 {strides = array<i32>} : memref<240x128xf32, #tpu.memory_space<vmem>>, vector<240x128xf32>,
    %c22 = arith.constant 22 : index
    %c0_67 = arith.constant 0 : index
    %67 = vector.load %arg5[%c22, %c0_67] : memref<264x64xf32, #tpu.memory_space<vmem>>, vector<240x64xf32>
    %68 = arith.truncf %67 : vector<240x64xf32> to vector<240x64xbf16>
    %c8 = arith.constant 8 : index
    %c0_68 = arith.constant 0 : index
    %c0_69 = arith.constant 0 : index
    %69 = vector.load %arg2[%c8, %c0_68, %c0_69] : memref<9x64x128xbf16, #tpu.memory_space<vmem>>, vector<1x64x128xbf16>
    %70 = vector.shape_cast %69 : vector<1x64x128xbf16> to vector<64x128xbf16>
    %cst_70 = arith.constant dense<0.000000e+00> : vector<240x128xf32>
    %71 = tpu.matmul %68, %70, %cst_70 {dimension_numbers = #tpu.dot_dimension_numbers<[1], [0], [0], [1], [0, 0, 1, 1], [], []>} : vector<240x64xbf16>, vector<64x128xbf16>, vector<240x128xf32> -> vector<240x128xf32>
    %c0_71 = arith.constant 0 : index
    %c0_72 = arith.constant 0 : index
    %72 = vector.load %arg4[%c0_71, %c0_72] : memref<240x128xf32, #tpu.memory_space<vmem>>, vector<240x128xf32>
    %73 = arith.addf %72, %71 : vector<240x128xf32>
    %c0_73 = arith.constant 0 : index
    %c0_74 = arith.constant 0 : index
    %74 = vector.load %arg4[%c0_73, %c0_74] : memref<240x128xf32, #tpu.memory_space<vmem>>, vector<240x128xf32>
    tpu.vector_store %arg4[%c0_73, %c0_74], %73 {strides = array<i32>} : memref<240x128xf32, #tpu.memory_space<vmem>>, vector<240x128xf32>,
    %c0_75 = arith.constant 0 : index
    %c0_76 = arith.constant 0 : index
    %75 = vector.load %arg4[%c0_75, %c0_76] : memref<240x128xf32, #tpu.memory_space<vmem>>, vector<240x128xf32>
    %c0_77 = arith.constant 0 : index
    %c0_78 = arith.constant 0 : index
    %76 = vector.load %arg3[%c0_77, %c0_78] : memref<1x128xf32, #tpu.memory_space<vmem>>, vector<1x128xf32>
    %77 = vector.broadcast %76 : vector<1x128xf32> to vector<240x128xf32>
    %78 = arith.addf %75, %77 : vector<240x128xf32>
    %cst_79 = arith.constant 0.000000e+00 : f32
    %79 = vector.broadcast %cst_79 : f32 to vector<240x128xf32>
    %80 = arith.maximumf %78, %79 : vector<240x128xf32>
    %c0_80 = arith.constant 0 : index
    %c0_81 = arith.constant 0 : index
    %81 = vector.load %arg4[%c0_80, %c0_81] : memref<240x128xf32, #tpu.memory_space<vmem>>, vector<240x128xf32>
    tpu.vector_store %arg4[%c0_80, %c0_81], %80 {strides = array<i32>} : memref<240x128xf32, #tpu.memory_space<vmem>>, vector<240x128xf32>,
    return
  }
  func.func @transform_0(%arg0: i32) -> (i32, i32) {
    %c0_i32 = arith.constant 0 : i32
    %c0_i32_0 = arith.constant 0 : i32
    %c0_i32_1 = arith.constant 0 : i32
    return %c0_i32, %c0_i32_0 : i32, i32
  }
  func.func @transform_1(%arg0: i32) -> (i32, i32, i32) {
    %c0_i32 = arith.constant 0 : i32
    %c0_i32_0 = arith.constant 0 : i32
    %c0_i32_1 = arith.constant 0 : i32
    %c0_i32_2 = arith.constant 0 : i32
    return %c0_i32, %c0_i32_0, %c0_i32_1 : i32, i32, i32
  }
  func.func @transform_2(%arg0: i32) -> (i32, i32) {
    %c0_i32 = arith.constant 0 : i32
    %c0_i32_0 = arith.constant 0 : i32
    %c0_i32_1 = arith.constant 0 : i32
    return %c0_i32, %c0_i32_0 : i32, i32
  }
  func.func @transform_3(%arg0: i32) -> (i32, i32) {
    %c0_i32 = arith.constant 0 : i32
    %c0_i32_0 = arith.constant 0 : i32
    return %arg0, %c0_i32 : i32, i32
  }
}

module attributes {stable_mosaic.version = 11 : i64} {
  func.func @_conv3x3_kernel(%arg0: i32, %arg1: memref<816x64xf32, #tpu.memory_space<vmem>>, %arg2: memref<9x64x128xbf16, #tpu.memory_space<vmem>>, %arg3: memref<1x128xf32, #tpu.memory_space<vmem>>, %arg4: memref<200x128xf32, #tpu.memory_space<vmem>>, %arg5: memref<216x64xf32, #tpu.memory_space<vmem>>) attributes {dimension_semantics = [#tpu.dimension_semantics<parallel>], iteration_bounds = array<i64: 4>, scalar_prefetch = 0 : i64, scratch_operands = 1 : i64, tpu.core_type = #tpu.core_type<tc>, window_params = [{pipeline_mode = #tpu.pipeline_mode<synchronous>, transform_indices = @transform_0, window_bounds = array<i64: 816, 64>}, {pipeline_mode = #tpu.pipeline_mode<synchronous>, transform_indices = @transform_1, window_bounds = array<i64: 9, 64, 128>}, {pipeline_mode = #tpu.pipeline_mode<synchronous>, transform_indices = @transform_2, window_bounds = array<i64: 1, 128>}, {transform_indices = @transform_3, window_bounds = array<i64: 200, 128>}]} {
    %c200_i32 = arith.constant 200 : i32
    %0 = arith.muli %arg0, %c200_i32 : i32
    %1 = tpu.assume_multiple %0, 8 : i32
    %2 = arith.index_cast %1 : i32 to index
    %c0 = arith.constant 0 : index
    %3 = vector.load %arg1[%2, %c0] : memref<816x64xf32, #tpu.memory_space<vmem>>, vector<216x64xf32>
    %c0_0 = arith.constant 0 : index
    %c0_1 = arith.constant 0 : index
    %4 = vector.load %arg5[%c0_0, %c0_1] : memref<216x64xf32, #tpu.memory_space<vmem>>, vector<216x64xf32>
    tpu.vector_store %arg5[%c0_0, %c0_1], %3 {strides = array<i32>} : memref<216x64xf32, #tpu.memory_space<vmem>>, vector<216x64xf32>,
    %c0_2 = arith.constant 0 : index
    %c0_3 = arith.constant 0 : index
    %5 = vector.load %arg5[%c0_2, %c0_3] : memref<216x64xf32, #tpu.memory_space<vmem>>, vector<200x64xf32>
    %6 = arith.truncf %5 : vector<200x64xf32> to vector<200x64xbf16>
    %c0_4 = arith.constant 0 : index
    %c0_5 = arith.constant 0 : index
    %c0_6 = arith.constant 0 : index
    %7 = vector.load %arg2[%c0_4, %c0_5, %c0_6] : memref<9x64x128xbf16, #tpu.memory_space<vmem>>, vector<1x64x128xbf16>
    %8 = vector.shape_cast %7 : vector<1x64x128xbf16> to vector<64x128xbf16>
    %cst = arith.constant dense<0.000000e+00> : vector<200x128xf32>
    %9 = tpu.matmul %6, %8, %cst {dimension_numbers = #tpu.dot_dimension_numbers<[1], [0], [0], [1], [0, 0, 1, 1], [], []>} : vector<200x64xbf16>, vector<64x128xbf16>, vector<200x128xf32> -> vector<200x128xf32>
    %c0_7 = arith.constant 0 : index
    %c0_8 = arith.constant 0 : index
    %10 = vector.load %arg4[%c0_7, %c0_8] : memref<200x128xf32, #tpu.memory_space<vmem>>, vector<200x128xf32>
    tpu.vector_store %arg4[%c0_7, %c0_8], %9 {strides = array<i32>} : memref<200x128xf32, #tpu.memory_space<vmem>>, vector<200x128xf32>,
    %c1 = arith.constant 1 : index
    %c0_9 = arith.constant 0 : index
    %11 = vector.load %arg5[%c1, %c0_9] : memref<216x64xf32, #tpu.memory_space<vmem>>, vector<200x64xf32>
    %12 = arith.truncf %11 : vector<200x64xf32> to vector<200x64xbf16>
    %c1_10 = arith.constant 1 : index
    %c0_11 = arith.constant 0 : index
    %c0_12 = arith.constant 0 : index
    %13 = vector.load %arg2[%c1_10, %c0_11, %c0_12] : memref<9x64x128xbf16, #tpu.memory_space<vmem>>, vector<1x64x128xbf16>
    %14 = vector.shape_cast %13 : vector<1x64x128xbf16> to vector<64x128xbf16>
    %cst_13 = arith.constant dense<0.000000e+00> : vector<200x128xf32>
    %15 = tpu.matmul %12, %14, %cst_13 {dimension_numbers = #tpu.dot_dimension_numbers<[1], [0], [0], [1], [0, 0, 1, 1], [], []>} : vector<200x64xbf16>, vector<64x128xbf16>, vector<200x128xf32> -> vector<200x128xf32>
    %c0_14 = arith.constant 0 : index
    %c0_15 = arith.constant 0 : index
    %16 = vector.load %arg4[%c0_14, %c0_15] : memref<200x128xf32, #tpu.memory_space<vmem>>, vector<200x128xf32>
    %17 = arith.addf %16, %15 : vector<200x128xf32>
    %c0_16 = arith.constant 0 : index
    %c0_17 = arith.constant 0 : index
    %18 = vector.load %arg4[%c0_16, %c0_17] : memref<200x128xf32, #tpu.memory_space<vmem>>, vector<200x128xf32>
    tpu.vector_store %arg4[%c0_16, %c0_17], %17 {strides = array<i32>} : memref<200x128xf32, #tpu.memory_space<vmem>>, vector<200x128xf32>,
    %c2 = arith.constant 2 : index
    %c0_18 = arith.constant 0 : index
    %19 = vector.load %arg5[%c2, %c0_18] : memref<216x64xf32, #tpu.memory_space<vmem>>, vector<200x64xf32>
    %20 = arith.truncf %19 : vector<200x64xf32> to vector<200x64xbf16>
    %c2_19 = arith.constant 2 : index
    %c0_20 = arith.constant 0 : index
    %c0_21 = arith.constant 0 : index
    %21 = vector.load %arg2[%c2_19, %c0_20, %c0_21] : memref<9x64x128xbf16, #tpu.memory_space<vmem>>, vector<1x64x128xbf16>
    %22 = vector.shape_cast %21 : vector<1x64x128xbf16> to vector<64x128xbf16>
    %cst_22 = arith.constant dense<0.000000e+00> : vector<200x128xf32>
    %23 = tpu.matmul %20, %22, %cst_22 {dimension_numbers = #tpu.dot_dimension_numbers<[1], [0], [0], [1], [0, 0, 1, 1], [], []>} : vector<200x64xbf16>, vector<64x128xbf16>, vector<200x128xf32> -> vector<200x128xf32>
    %c0_23 = arith.constant 0 : index
    %c0_24 = arith.constant 0 : index
    %24 = vector.load %arg4[%c0_23, %c0_24] : memref<200x128xf32, #tpu.memory_space<vmem>>, vector<200x128xf32>
    %25 = arith.addf %24, %23 : vector<200x128xf32>
    %c0_25 = arith.constant 0 : index
    %c0_26 = arith.constant 0 : index
    %26 = vector.load %arg4[%c0_25, %c0_26] : memref<200x128xf32, #tpu.memory_space<vmem>>, vector<200x128xf32>
    tpu.vector_store %arg4[%c0_25, %c0_26], %25 {strides = array<i32>} : memref<200x128xf32, #tpu.memory_space<vmem>>, vector<200x128xf32>,
    %c6 = arith.constant 6 : index
    %c0_27 = arith.constant 0 : index
    %27 = vector.load %arg5[%c6, %c0_27] : memref<216x64xf32, #tpu.memory_space<vmem>>, vector<200x64xf32>
    %28 = arith.truncf %27 : vector<200x64xf32> to vector<200x64xbf16>
    %c3 = arith.constant 3 : index
    %c0_28 = arith.constant 0 : index
    %c0_29 = arith.constant 0 : index
    %29 = vector.load %arg2[%c3, %c0_28, %c0_29] : memref<9x64x128xbf16, #tpu.memory_space<vmem>>, vector<1x64x128xbf16>
    %30 = vector.shape_cast %29 : vector<1x64x128xbf16> to vector<64x128xbf16>
    %cst_30 = arith.constant dense<0.000000e+00> : vector<200x128xf32>
    %31 = tpu.matmul %28, %30, %cst_30 {dimension_numbers = #tpu.dot_dimension_numbers<[1], [0], [0], [1], [0, 0, 1, 1], [], []>} : vector<200x64xbf16>, vector<64x128xbf16>, vector<200x128xf32> -> vector<200x128xf32>
    %c0_31 = arith.constant 0 : index
    %c0_32 = arith.constant 0 : index
    %32 = vector.load %arg4[%c0_31, %c0_32] : memref<200x128xf32, #tpu.memory_space<vmem>>, vector<200x128xf32>
    %33 = arith.addf %32, %31 : vector<200x128xf32>
    %c0_33 = arith.constant 0 : index
    %c0_34 = arith.constant 0 : index
    %34 = vector.load %arg4[%c0_33, %c0_34] : memref<200x128xf32, #tpu.memory_space<vmem>>, vector<200x128xf32>
    tpu.vector_store %arg4[%c0_33, %c0_34], %33 {strides = array<i32>} : memref<200x128xf32, #tpu.memory_space<vmem>>, vector<200x128xf32>,
    %c7 = arith.constant 7 : index
    %c0_35 = arith.constant 0 : index
    %35 = vector.load %arg5[%c7, %c0_35] : memref<216x64xf32, #tpu.memory_space<vmem>>, vector<200x64xf32>
    %36 = arith.truncf %35 : vector<200x64xf32> to vector<200x64xbf16>
    %c4 = arith.constant 4 : index
    %c0_36 = arith.constant 0 : index
    %c0_37 = arith.constant 0 : index
    %37 = vector.load %arg2[%c4, %c0_36, %c0_37] : memref<9x64x128xbf16, #tpu.memory_space<vmem>>, vector<1x64x128xbf16>
    %38 = vector.shape_cast %37 : vector<1x64x128xbf16> to vector<64x128xbf16>
    %cst_38 = arith.constant dense<0.000000e+00> : vector<200x128xf32>
    %39 = tpu.matmul %36, %38, %cst_38 {dimension_numbers = #tpu.dot_dimension_numbers<[1], [0], [0], [1], [0, 0, 1, 1], [], []>} : vector<200x64xbf16>, vector<64x128xbf16>, vector<200x128xf32> -> vector<200x128xf32>
    %c0_39 = arith.constant 0 : index
    %c0_40 = arith.constant 0 : index
    %40 = vector.load %arg4[%c0_39, %c0_40] : memref<200x128xf32, #tpu.memory_space<vmem>>, vector<200x128xf32>
    %41 = arith.addf %40, %39 : vector<200x128xf32>
    %c0_41 = arith.constant 0 : index
    %c0_42 = arith.constant 0 : index
    %42 = vector.load %arg4[%c0_41, %c0_42] : memref<200x128xf32, #tpu.memory_space<vmem>>, vector<200x128xf32>
    tpu.vector_store %arg4[%c0_41, %c0_42], %41 {strides = array<i32>} : memref<200x128xf32, #tpu.memory_space<vmem>>, vector<200x128xf32>,
    %c8 = arith.constant 8 : index
    %c0_43 = arith.constant 0 : index
    %43 = vector.load %arg5[%c8, %c0_43] : memref<216x64xf32, #tpu.memory_space<vmem>>, vector<200x64xf32>
    %44 = arith.truncf %43 : vector<200x64xf32> to vector<200x64xbf16>
    %c5 = arith.constant 5 : index
    %c0_44 = arith.constant 0 : index
    %c0_45 = arith.constant 0 : index
    %45 = vector.load %arg2[%c5, %c0_44, %c0_45] : memref<9x64x128xbf16, #tpu.memory_space<vmem>>, vector<1x64x128xbf16>
    %46 = vector.shape_cast %45 : vector<1x64x128xbf16> to vector<64x128xbf16>
    %cst_46 = arith.constant dense<0.000000e+00> : vector<200x128xf32>
    %47 = tpu.matmul %44, %46, %cst_46 {dimension_numbers = #tpu.dot_dimension_numbers<[1], [0], [0], [1], [0, 0, 1, 1], [], []>} : vector<200x64xbf16>, vector<64x128xbf16>, vector<200x128xf32> -> vector<200x128xf32>
    %c0_47 = arith.constant 0 : index
    %c0_48 = arith.constant 0 : index
    %48 = vector.load %arg4[%c0_47, %c0_48] : memref<200x128xf32, #tpu.memory_space<vmem>>, vector<200x128xf32>
    %49 = arith.addf %48, %47 : vector<200x128xf32>
    %c0_49 = arith.constant 0 : index
    %c0_50 = arith.constant 0 : index
    %50 = vector.load %arg4[%c0_49, %c0_50] : memref<200x128xf32, #tpu.memory_space<vmem>>, vector<200x128xf32>
    tpu.vector_store %arg4[%c0_49, %c0_50], %49 {strides = array<i32>} : memref<200x128xf32, #tpu.memory_space<vmem>>, vector<200x128xf32>,
    %c12 = arith.constant 12 : index
    %c0_51 = arith.constant 0 : index
    %51 = vector.load %arg5[%c12, %c0_51] : memref<216x64xf32, #tpu.memory_space<vmem>>, vector<200x64xf32>
    %52 = arith.truncf %51 : vector<200x64xf32> to vector<200x64xbf16>
    %c6_52 = arith.constant 6 : index
    %c0_53 = arith.constant 0 : index
    %c0_54 = arith.constant 0 : index
    %53 = vector.load %arg2[%c6_52, %c0_53, %c0_54] : memref<9x64x128xbf16, #tpu.memory_space<vmem>>, vector<1x64x128xbf16>
    %54 = vector.shape_cast %53 : vector<1x64x128xbf16> to vector<64x128xbf16>
    %cst_55 = arith.constant dense<0.000000e+00> : vector<200x128xf32>
    %55 = tpu.matmul %52, %54, %cst_55 {dimension_numbers = #tpu.dot_dimension_numbers<[1], [0], [0], [1], [0, 0, 1, 1], [], []>} : vector<200x64xbf16>, vector<64x128xbf16>, vector<200x128xf32> -> vector<200x128xf32>
    %c0_56 = arith.constant 0 : index
    %c0_57 = arith.constant 0 : index
    %56 = vector.load %arg4[%c0_56, %c0_57] : memref<200x128xf32, #tpu.memory_space<vmem>>, vector<200x128xf32>
    %57 = arith.addf %56, %55 : vector<200x128xf32>
    %c0_58 = arith.constant 0 : index
    %c0_59 = arith.constant 0 : index
    %58 = vector.load %arg4[%c0_58, %c0_59] : memref<200x128xf32, #tpu.memory_space<vmem>>, vector<200x128xf32>
    tpu.vector_store %arg4[%c0_58, %c0_59], %57 {strides = array<i32>} : memref<200x128xf32, #tpu.memory_space<vmem>>, vector<200x128xf32>,
    %c13 = arith.constant 13 : index
    %c0_60 = arith.constant 0 : index
    %59 = vector.load %arg5[%c13, %c0_60] : memref<216x64xf32, #tpu.memory_space<vmem>>, vector<200x64xf32>
    %60 = arith.truncf %59 : vector<200x64xf32> to vector<200x64xbf16>
    %c7_61 = arith.constant 7 : index
    %c0_62 = arith.constant 0 : index
    %c0_63 = arith.constant 0 : index
    %61 = vector.load %arg2[%c7_61, %c0_62, %c0_63] : memref<9x64x128xbf16, #tpu.memory_space<vmem>>, vector<1x64x128xbf16>
    %62 = vector.shape_cast %61 : vector<1x64x128xbf16> to vector<64x128xbf16>
    %cst_64 = arith.constant dense<0.000000e+00> : vector<200x128xf32>
    %63 = tpu.matmul %60, %62, %cst_64 {dimension_numbers = #tpu.dot_dimension_numbers<[1], [0], [0], [1], [0, 0, 1, 1], [], []>} : vector<200x64xbf16>, vector<64x128xbf16>, vector<200x128xf32> -> vector<200x128xf32>
    %c0_65 = arith.constant 0 : index
    %c0_66 = arith.constant 0 : index
    %64 = vector.load %arg4[%c0_65, %c0_66] : memref<200x128xf32, #tpu.memory_space<vmem>>, vector<200x128xf32>
    %65 = arith.addf %64, %63 : vector<200x128xf32>
    %c0_67 = arith.constant 0 : index
    %c0_68 = arith.constant 0 : index
    %66 = vector.load %arg4[%c0_67, %c0_68] : memref<200x128xf32, #tpu.memory_space<vmem>>, vector<200x128xf32>
    tpu.vector_store %arg4[%c0_67, %c0_68], %65 {strides = array<i32>} : memref<200x128xf32, #tpu.memory_space<vmem>>, vector<200x128xf32>,
    %c14 = arith.constant 14 : index
    %c0_69 = arith.constant 0 : index
    %67 = vector.load %arg5[%c14, %c0_69] : memref<216x64xf32, #tpu.memory_space<vmem>>, vector<200x64xf32>
    %68 = arith.truncf %67 : vector<200x64xf32> to vector<200x64xbf16>
    %c8_70 = arith.constant 8 : index
    %c0_71 = arith.constant 0 : index
    %c0_72 = arith.constant 0 : index
    %69 = vector.load %arg2[%c8_70, %c0_71, %c0_72] : memref<9x64x128xbf16, #tpu.memory_space<vmem>>, vector<1x64x128xbf16>
    %70 = vector.shape_cast %69 : vector<1x64x128xbf16> to vector<64x128xbf16>
    %cst_73 = arith.constant dense<0.000000e+00> : vector<200x128xf32>
    %71 = tpu.matmul %68, %70, %cst_73 {dimension_numbers = #tpu.dot_dimension_numbers<[1], [0], [0], [1], [0, 0, 1, 1], [], []>} : vector<200x64xbf16>, vector<64x128xbf16>, vector<200x128xf32> -> vector<200x128xf32>
    %c0_74 = arith.constant 0 : index
    %c0_75 = arith.constant 0 : index
    %72 = vector.load %arg4[%c0_74, %c0_75] : memref<200x128xf32, #tpu.memory_space<vmem>>, vector<200x128xf32>
    %73 = arith.addf %72, %71 : vector<200x128xf32>
    %c0_76 = arith.constant 0 : index
    %c0_77 = arith.constant 0 : index
    %74 = vector.load %arg4[%c0_76, %c0_77] : memref<200x128xf32, #tpu.memory_space<vmem>>, vector<200x128xf32>
    tpu.vector_store %arg4[%c0_76, %c0_77], %73 {strides = array<i32>} : memref<200x128xf32, #tpu.memory_space<vmem>>, vector<200x128xf32>,
    %c0_78 = arith.constant 0 : index
    %c0_79 = arith.constant 0 : index
    %75 = vector.load %arg4[%c0_78, %c0_79] : memref<200x128xf32, #tpu.memory_space<vmem>>, vector<200x128xf32>
    %c0_80 = arith.constant 0 : index
    %c0_81 = arith.constant 0 : index
    %76 = vector.load %arg3[%c0_80, %c0_81] : memref<1x128xf32, #tpu.memory_space<vmem>>, vector<1x128xf32>
    %77 = vector.broadcast %76 : vector<1x128xf32> to vector<200x128xf32>
    %78 = arith.addf %75, %77 : vector<200x128xf32>
    %cst_82 = arith.constant 0.000000e+00 : f32
    %79 = vector.broadcast %cst_82 : f32 to vector<200x128xf32>
    %80 = arith.maximumf %78, %79 : vector<200x128xf32>
    %c0_83 = arith.constant 0 : index
    %c0_84 = arith.constant 0 : index
    %81 = vector.load %arg4[%c0_83, %c0_84] : memref<200x128xf32, #tpu.memory_space<vmem>>, vector<200x128xf32>
    tpu.vector_store %arg4[%c0_83, %c0_84], %80 {strides = array<i32>} : memref<200x128xf32, #tpu.memory_space<vmem>>, vector<200x128xf32>,
    return
  }
  func.func @transform_0(%arg0: i32) -> (i32, i32) {
    %c0_i32 = arith.constant 0 : i32
    %c0_i32_0 = arith.constant 0 : i32
    %c0_i32_1 = arith.constant 0 : i32
    return %c0_i32, %c0_i32_0 : i32, i32
  }
  func.func @transform_1(%arg0: i32) -> (i32, i32, i32) {
    %c0_i32 = arith.constant 0 : i32
    %c0_i32_0 = arith.constant 0 : i32
    %c0_i32_1 = arith.constant 0 : i32
    %c0_i32_2 = arith.constant 0 : i32
    return %c0_i32, %c0_i32_0, %c0_i32_1 : i32, i32, i32
  }
  func.func @transform_2(%arg0: i32) -> (i32, i32) {
    %c0_i32 = arith.constant 0 : i32
    %c0_i32_0 = arith.constant 0 : i32
    %c0_i32_1 = arith.constant 0 : i32
    return %c0_i32, %c0_i32_0 : i32, i32
  }
  func.func @transform_3(%arg0: i32) -> (i32, i32) {
    %c0_i32 = arith.constant 0 : i32
    %c0_i32_0 = arith.constant 0 : i32
    return %arg0, %c0_i32 : i32, i32
  }
}

module attributes {stable_mosaic.version = 11 : i64} {
  func.func @_fc_kernel(%arg0: i32, %arg1: i32, %arg2: memref<8x512xbf16, #tpu.memory_space<vmem>>, %arg3: memref<512x128xbf16, #tpu.memory_space<vmem>>, %arg4: memref<1x128xf32, #tpu.memory_space<vmem>>, %arg5: memref<128x128xbf16, #tpu.memory_space<vmem>>, %arg6: memref<1x8x128xf32, #tpu.memory_space<vmem>>, %arg7: memref<8x128xf32, #tpu.memory_space<vmem>>) attributes {dimension_semantics = [#tpu.dimension_semantics<parallel>, #tpu.dimension_semantics<arbitrary>], iteration_bounds = array<i64: 2, 8>, scalar_prefetch = 0 : i64, scratch_operands = 1 : i64, tpu.core_type = #tpu.core_type<tc>, window_params = [{transform_indices = @transform_0, window_bounds = array<i64: 8, 512>}, {transform_indices = @transform_1, window_bounds = array<i64: 512, 128>}, {transform_indices = @transform_2, window_bounds = array<i64: 1, 128>}, {transform_indices = @transform_3, window_bounds = array<i64: 128, 128>}, {transform_indices = @transform_4, window_bounds = array<i64: 1, 8, 128>}]} {
    %c0_i32 = arith.constant 0 : i32
    %0 = arith.cmpi eq, %arg1, %c0_i32 : i32
    %1 = arith.extui %0 : i1 to i32
    %c0_i32_0 = arith.constant 0 : i32
    %2 = arith.cmpi ne, %1, %c0_i32_0 : i32
    scf.if %2 {
      %cst_9 = arith.constant 0.000000e+00 : f32
      %12 = vector.broadcast %cst_9 : f32 to vector<8x128xf32>
      %c0_10 = arith.constant 0 : index
      %c0_11 = arith.constant 0 : index
      %13 = vector.load %arg7[%c0_10, %c0_11] : memref<8x128xf32, #tpu.memory_space<vmem>>, vector<8x128xf32>
      tpu.vector_store %arg7[%c0_10, %c0_11], %12 {strides = array<i32>} : memref<8x128xf32, #tpu.memory_space<vmem>>, vector<8x128xf32>,
    } else {
    }
    %c0 = arith.constant 0 : index
    %c0_1 = arith.constant 0 : index
    %3 = vector.load %arg7[%c0, %c0_1] : memref<8x128xf32, #tpu.memory_space<vmem>>, vector<8x128xf32>
    %c0_2 = arith.constant 0 : index
    %c0_3 = arith.constant 0 : index
    %4 = vector.load %arg2[%c0_2, %c0_3] : memref<8x512xbf16, #tpu.memory_space<vmem>>, vector<8x512xbf16>
    %c0_4 = arith.constant 0 : index
    %c0_5 = arith.constant 0 : index
    %5 = vector.load %arg3[%c0_4, %c0_5] : memref<512x128xbf16, #tpu.memory_space<vmem>>, vector<512x128xbf16>
    %cst = arith.constant dense<0.000000e+00> : vector<8x128xf32>
    %6 = tpu.matmul %4, %5, %cst {dimension_numbers = #tpu.dot_dimension_numbers<[1], [0], [0], [1], [0, 0, 1, 1], [], []>} : vector<8x512xbf16>, vector<512x128xbf16>, vector<8x128xf32> -> vector<8x128xf32>
    %7 = arith.addf %3, %6 : vector<8x128xf32>
    %c0_6 = arith.constant 0 : index
    %c0_7 = arith.constant 0 : index
    %8 = vector.load %arg7[%c0_6, %c0_7] : memref<8x128xf32, #tpu.memory_space<vmem>>, vector<8x128xf32>
    tpu.vector_store %arg7[%c0_6, %c0_7], %7 {strides = array<i32>} : memref<8x128xf32, #tpu.memory_space<vmem>>, vector<8x128xf32>,
    %c7_i32 = arith.constant 7 : i32
    %9 = arith.cmpi eq, %arg1, %c7_i32 : i32
    %10 = arith.extui %9 : i1 to i32
    %c0_i32_8 = arith.constant 0 : i32
    %11 = arith.cmpi ne, %10, %c0_i32_8 : i32
    scf.if %11 {
      %c0_9 = arith.constant 0 : index
      %c0_10 = arith.constant 0 : index
      %12 = vector.load %arg7[%c0_9, %c0_10] : memref<8x128xf32, #tpu.memory_space<vmem>>, vector<8x128xf32>
      %c0_11 = arith.constant 0 : index
      %c0_12 = arith.constant 0 : index
      %13 = vector.load %arg4[%c0_11, %c0_12] : memref<1x128xf32, #tpu.memory_space<vmem>>, vector<1x128xf32>
      %14 = vector.broadcast %13 : vector<1x128xf32> to vector<8x128xf32>
      %15 = arith.addf %12, %14 : vector<8x128xf32>
      %cst_13 = arith.constant 0.000000e+00 : f32
      %16 = vector.broadcast %cst_13 : f32 to vector<8x128xf32>
      %17 = arith.maximumf %15, %16 : vector<8x128xf32>
      %18 = arith.truncf %17 : vector<8x128xf32> to vector<8x128xbf16>
      %c0_14 = arith.constant 0 : index
      %c0_15 = arith.constant 0 : index
      %19 = vector.load %arg5[%c0_14, %c0_15] : memref<128x128xbf16, #tpu.memory_space<vmem>>, vector<128x128xbf16>
      %cst_16 = arith.constant dense<0.000000e+00> : vector<8x128xf32>
      %20 = tpu.matmul %18, %19, %cst_16 {dimension_numbers = #tpu.dot_dimension_numbers<[1], [0], [0], [1], [0, 0, 1, 1], [], []>} : vector<8x128xbf16>, vector<128x128xbf16>, vector<8x128xf32> -> vector<8x128xf32>
      %c0_17 = arith.constant 0 : index
      %c0_18 = arith.constant 0 : index
      %c0_19 = arith.constant 0 : index
      %21 = vector.load %arg6[%c0_17, %c0_18, %c0_19] : memref<1x8x128xf32, #tpu.memory_space<vmem>>, vector<1x8x128xf32>
      %22 = vector.shape_cast %21 : vector<1x8x128xf32> to vector<8x128xf32>
      %23 = vector.shape_cast %20 : vector<8x128xf32> to vector<1x8x128xf32>
      tpu.vector_store %arg6[%c0_17, %c0_18, %c0_19], %23 {strides = array<i32>} : memref<1x8x128xf32, #tpu.memory_space<vmem>>, vector<1x8x128xf32>,
    } else {
    }
    return
  }
  func.func @transform_0(%arg0: i32, %arg1: i32) -> (i32, i32) {
    %c0_i32 = arith.constant 0 : i32
    %c0_i32_0 = arith.constant 0 : i32
    return %c0_i32, %arg1 : i32, i32
  }
  func.func @transform_1(%arg0: i32, %arg1: i32) -> (i32, i32) {
    %c0_i32 = arith.constant 0 : i32
    return %arg1, %arg0 : i32, i32
  }
  func.func @transform_2(%arg0: i32, %arg1: i32) -> (i32, i32) {
    %c0_i32 = arith.constant 0 : i32
    %c0_i32_0 = arith.constant 0 : i32
    return %c0_i32, %arg0 : i32, i32
  }
  func.func @transform_3(%arg0: i32, %arg1: i32) -> (i32, i32) {
    %c0_i32 = arith.constant 0 : i32
    %c0_i32_0 = arith.constant 0 : i32
    return %arg0, %c0_i32 : i32, i32
  }
  func.func @transform_4(%arg0: i32, %arg1: i32) -> (i32, i32, i32) {
    %c0_i32 = arith.constant 0 : i32
    %c0_i32_0 = arith.constant 0 : i32
    %c0_i32_1 = arith.constant 0 : i32
    return %arg0, %c0_i32, %c0_i32_0 : i32, i32, i32
  }
}

</mosaic_0001>

<llo_original>
// kernel: emotion_cnn_forward.3
$region0: #{emotion_cnn_forward.3}
  #allocation0 [shape = 'u32[]', space=smem, size = 0x4, offset = 0x4, fixed_abs, tag = 'smem constant byte address 0x4 - core index']
  #allocation1 [shape = 'u32[144,128]{1,0:T(1,128)}', space=vmem, size = 0x12000, scoped, tag = 'internal scratch']
  #allocation2 [shape = 'f32[264,64]{1,0:T(8,128)}', space=vmem, size = 0x21000, scoped, tag = 'scratch operand']
  %s0 = inlined_call_operand.vmem [shape: f32[2664,64], index: 0, kind: input, shape index: {}]
  %s1 = inlined_call_operand.vmem [shape: bf16[9,64,128], index: 1, kind: input, shape index: {}]
  %s2 = inlined_call_operand.vmem [shape: f32[1,128], index: 2, kind: input, shape index: {}]
  %s3 = inlined_call_operand.vmem [shape: f32[2640,128], index: 3, kind: output, shape index: {}]
  %s4 = sld [smem:[#allocation0]]
  $region45: #{emotion_cnn_forward.3} parent=0
    _
  %s6 = ssub.s32 1, %s4
  %s7 = scalar_select 0, %s6, %s4
  loop: start=0, step=1, limit=13
  $region2: #{emotion_cnn_forward.3} parent=0 // loop_pre_header
    _
  $region3: #{emotion_cnn_forward.3} parent=0 // loop_header
    %s9 = sphi 0, %s13
    %p10 = scmp.ge.s32.totalorder %s9, 13
    %s17 = sphi 0, %s17
    %s19 = sphi 0, %s17
    %s20 = sphi 0, %s19
    %s34 = sphi 0, %s20
    %s38 = sphi 0, %s38
    %s40 = sphi 0, %s38
    %s41 = sphi 0, %s40
    %s55 = sphi 0, %s41
    %s59 = sphi 0, %s59
    %s61 = sphi 0, %s59
    %s62 = sphi 0, %s61
    %s76 = sphi 0, %s62
    %s82 = sphi 0, %s84
    %s85 = sphi 0, %s82
    %s86 = sphi 0, %s85
    %s102 = sphi 0, %s86
  $region4: #{emotion_cnn_forward.3} parent=0 // loop_header_branch
    %12 = sbr.rel (%p10) target = $region8
  $region5: #{emotion_cnn_forward.3} parent=0 // loop_body
    %s14 = ssub.s32 %s9, 1
    %s15 = ssub.s32 %s9, 2
    %s16 = sadd.s32 %s9, 1
    %s18 = sadd.s32 %s17, 1
    %p21 = scmp.eq.s32.totalorder %s9, 10
    %p22 = scmp.ne.s32.totalorder %s17, %s19
    %p23 = scmp.eq.s32.totalorder %s9, 0
    %p24 = por %p22, %p23
    %p25 = scmp.ne.s32.totalorder %s17, %s19
    %p26 = scmp.eq.s32.totalorder %s14, 10
    %p27 = por %p25, %p26
    %p28 = scmp.ne.s32.totalorder %s19, %s20
    %p29 = scmp.eq.s32.totalorder %s14, 0
    %p30 = por %p28, %p29
    %p31 = scmp.ne.s32.totalorder %s19, %s20
    %p32 = scmp.eq.s32.totalorder %s15, 10
    %p33 = por %p31, %p32
    %p35 = scmp.ne.s32.totalorder %s20, %s34
    %p36 = scmp.eq.s32.totalorder %s15, 0
    %p37 = por %p35, %p36
    %s39 = sadd.s32 %s38, 1
    %p42 = scmp.eq.s32.totalorder %s9, 10
    %p43 = scmp.ne.s32.totalorder %s38, %s40
    %p44 = scmp.eq.s32.totalorder %s9, 0
    %p45 = por %p43, %p44
    %p46 = scmp.ne.s32.totalorder %s38, %s40
    %p47 = scmp.eq.s32.totalorder %s14, 10
    %p48 = por %p46, %p47
    %p49 = scmp.ne.s32.totalorder %s40, %s41
    %p50 = scmp.eq.s32.totalorder %s14, 0
    %p51 = por %p49, %p50
    %p52 = scmp.ne.s32.totalorder %s40, %s41
    %p53 = scmp.eq.s32.totalorder %s15, 10
    %p54 = por %p52, %p53
    %p56 = scmp.ne.s32.totalorder %s41, %s55
    %p57 = scmp.eq.s32.totalorder %s15, 0
    %p58 = por %p56, %p57
    %s60 = sadd.s32 %s59, 1
    %p63 = scmp.eq.s32.totalorder %s9, 10
    %p64 = scmp.ne.s32.totalorder %s59, %s61
    %p65 = scmp.eq.s32.totalorder %s9, 0
    %p66 = por %p64, %p65
    %p67 = scmp.ne.s32.totalorder %s59, %s61
    %p68 = scmp.eq.s32.totalorder %s14, 10
    %p69 = por %p67, %p68
    %p70 = scmp.ne.s32.totalorder %s61, %s62
    %p71 = scmp.eq.s32.totalorder %s14, 0
    %p72 = por %p70, %p71
    %p73 = scmp.ne.s32.totalorder %s61, %s62
    %p74 = scmp.eq.s32.totalorder %s15, 10
    %p75 = por %p73, %p74
    %p77 = scmp.ne.s32.totalorder %s62, %s76
    %p78 = scmp.eq.s32.totalorder %s15, 0
    %p79 = por %p77, %p78
    %s80 = ssub.s32 %s9, %s16
    %p81 = scmp.eq.s32.totalorder %s80, 0
    %s83 = sadd.s32 %s82, 1
    %s84 = scalar_select %p81, %s82, %s83
    %p87 = pneg %p81
    %p88 = scmp.eq.s32.totalorder %s9, 10
    %p89 = por %p87, %p88
    %p90 = scmp.ne.s32.totalorder %s82, %s85
    %p91 = scmp.eq.s32.totalorder %s9, 0
    %p92 = por %p90, %p91
    %p93 = scmp.ne.s32.totalorder %s82, %s85
    %p94 = scmp.eq.s32.totalorder %s14, 10
    %p95 = por %p93, %p94
    %p96 = scmp.ne.s32.totalorder %s85, %s86
    %p97 = scmp.eq.s32.totalorder %s14, 0
    %p98 = por %p96, %p97
    %p99 = scmp.ne.s32.totalorder %s85, %s86
    %p100 = scmp.eq.s32.totalorder %s15, 10
    %p101 = por %p99, %p100
    %p103 = scmp.ne.s32.totalorder %s86, %s102
    %p104 = scmp.eq.s32.totalorder %s15, 0
    %p105 = por %p103, %p104
    %p106 = scmp.le.s32.totalorder 1, %s9
    %p107 = scmp.lt.s32.totalorder %s9, 12
    %p108 = pnand %p106, %p107
    %p109 = pneg %p108
    // Predicated region
    $region9: #{emotion_cnn_forward.3} parent=5 // pred_check
      _
    $region10: #{emotion_cnn_forward.3} parent=5 // pred_check_branch
      %111 = sbr.rel (%p108) target = $region12
    $region11: #{emotion_cnn_forward.3} parent=5 // pred_region
      %s112 = ssub.s32 %s9, 1
      // Predicated region
      $region13: #{emotion_cnn_forward.3} parent=11 // pred_check
        %p113 = pneg %p30
      $region14: #{emotion_cnn_forward.3} parent=11 // pred_check_branch
        %115 = sbr.rel (%p113) target = $region16
      $region15: #{emotion_cnn_forward.3} parent=11 // pred_region
        _
      $region16: #{emotion_cnn_forward.3} parent=11 // pred_fallthru
        _
      // Predicated region
      $region17: #{emotion_cnn_forward.3} parent=11 // pred_check
        %p116 = pneg %p51
      $region18: #{emotion_cnn_forward.3} parent=11 // pred_check_branch
        %118 = sbr.rel (%p116) target = $region20
      $region19: #{emotion_cnn_forward.3} parent=11 // pred_region
        _
      $region20: #{emotion_cnn_forward.3} parent=11 // pred_fallthru
        _
      // Predicated region
      $region21: #{emotion_cnn_forward.3} parent=11 // pred_check
        %p119 = pneg %p72
      $region22: #{emotion_cnn_forward.3} parent=11 // pred_check_branch
        %121 = sbr.rel (%p119) target = $region24
      $region23: #{emotion_cnn_forward.3} parent=11 // pred_region
        _
      $region24: #{emotion_cnn_forward.3} parent=11 // pred_fallthru
        _
    $region12: #{emotion_cnn_forward.3} parent=5 // pred_fallthru
      _
    %p122 = scmp.lt.s32.totalorder %s9, 11
    // Predicated region
    $region25: #{emotion_cnn_forward.3} parent=5 // pred_check
      %p123 = pneg %p122
    $region26: #{emotion_cnn_forward.3} parent=5 // pred_check_branch
      %125 = sbr.rel (%p123) target = $region28
    $region27: #{emotion_cnn_forward.3} parent=5 // pred_region
      _
    $region28: #{emotion_cnn_forward.3} parent=5 // pred_fallthru
      _
    %p126 = scmp.le.s32.totalorder 1, %s9
    %p127 = scmp.lt.s32.totalorder %s9, 12
    %p128 = pnand %p126, %p127
    %p129 = pneg %p128
    // Predicated region
    $region29: #{emotion_cnn_forward.3} parent=5 // pred_check
      _
    $region30: #{emotion_cnn_forward.3} parent=5 // pred_check_branch
      %131 = sbr.rel (%p128) target = $region32
    $region31: #{emotion_cnn_forward.3} parent=5 // pred_region
      %s132 = ssub.s32 %s9, 1
      %p133 = pneg %p30
      %p134 = pneg %p27
      %p135 = pneg %p51
      %p136 = pneg %p48
      %p137 = pneg %p72
      %p138 = pneg %p69
      %p139 = pneg %p98
      %p140 = pneg %p95
      %s141 = smul.u32 30, %s14
      %p142 = scmp.lt.s32.totalorder %s141, 329
      %s143 = scalar_select %p142, %s141, 329
      %s144 = smul.addr %s143, 8
      %s145 = scalar_lea.vmem %s3, %s144
      %s146 = smul.u32 30, %s14
      %p147 = scmp.lt.s32.totalorder %s146, 329
      %s148 = scalar_select %p147, %s146, 329
      %s149 = smul.addr %s148, 8
      %s150 = scalar_lea.vmem %s3, %s149
      %s151 = smul.u32 30, %s14
      %s153 = smul.u32 %s14, 240
      %s154 = scalar_lea.vmem %s0, %s153
      %v155 = vld [vmem:[%s154] sm:$0xff]
      %v156 = vld [vmem:[%s154 + $0x8] sm:$0xff]
      %v157 = vld [vmem:[%s154 + $0x10] sm:$0xff]
      %v158 = vld [vmem:[%s154 + $0x18] sm:$0xff]
      %v159 = vld [vmem:[%s154 + $0x20] sm:$0xff]
      %v160 = vld [vmem:[%s154 + $0x28] sm:$0xff]
      %v161 = vld [vmem:[%s154 + $0x30] sm:$0xff]
      %v162 = vld [vmem:[%s154 + $0x38] sm:$0xff]
      %v163 = vld [vmem:[%s154 + $0x40] sm:$0xff]
      %v164 = vld [vmem:[%s154 + $0x48] sm:$0xff]
      %v165 = vld [vmem:[%s154 + $0x50] sm:$0xff]
      %v166 = vld [vmem:[%s154 + $0x58] sm:$0xff]
      %v167 = vld [vmem:[%s154 + $0x60] sm:$0xff]
      %v168 = vld [vmem:[%s154 + $0x68] sm:$0xff]
      %v169 = vld [vmem:[%s154 + $0x70] sm:$0xff]
      %v170 = vld [vmem:[%s154 + $0x78] sm:$0xff]
      %v171 = vld [vmem:[%s154 + $0x80] sm:$0xff]
      %v172 = vld [vmem:[%s154 + $0x88] sm:$0xff]
      %v173 = vld [vmem:[%s154 + $0x90] sm:$0xff]
      %v174 = vld [vmem:[%s154 + $0x98] sm:$0xff]
      %v175 = vld [vmem:[%s154 + $0xa0] sm:$0xff]
      %v176 = vld [vmem:[%s154 + $0xa8] sm:$0xff]
      %v177 = vld [vmem:[%s154 + $0xb0] sm:$0xff]
      %v178 = vld [vmem:[%s154 + $0xb8] sm:$0xff]
      %v179 = vld [vmem:[%s154 + $0xc0] sm:$0xff]
      %v180 = vld [vmem:[%s154 + $0xc8] sm:$0xff]
      %v181 = vld [vmem:[%s154 + $0xd0] sm:$0xff]
      %v182 = vld [vmem:[%s154 + $0xd8] sm:$0xff]
      %v183 = vld [vmem:[%s154 + $0xe0] sm:$0xff]
      %v184 = vld [vmem:[%s154 + $0xe8] sm:$0xff]
      %v185 = vld [vmem:[%s154 + $0xf0] sm:$0xff]
      %v186 = vld [vmem:[%s154 + $0xf8] sm:$0xff]
      %v187 = vld [vmem:[%s154 + $0x100] sm:$0xff]
      %vm188 = vcmask 523264
      %189 = vst.msk [vmem:[#allocation2] sm:$0xff] %vm188, %v155
      %190 = vst.msk [vmem:[#allocation2 + $0x8] sm:$0xff] %vm188, %v156
      %191 = vst.msk [vmem:[#allocation2 + $0x10] sm:$0xff] %vm188, %v157
      %192 = vst.msk [vmem:[#allocation2 + $0x18] sm:$0xff] %vm188, %v158
      %193 = vst.msk [vmem:[#allocation2 + $0x20] sm:$0xff] %vm188, %v159
      %194 = vst.msk [vmem:[#allocation2 + $0x28] sm:$0xff] %vm188, %v160
      %195 = vst.msk [vmem:[#allocation2 + $0x30] sm:$0xff] %vm188, %v161
      %196 = vst.msk [vmem:[#allocation2 + $0x38] sm:$0xff] %vm188, %v162
      %197 = vst.msk [vmem:[#allocation2 + $0x40] sm:$0xff] %vm188, %v163
      %198 = vst.msk [vmem:[#allocation2 + $0x48] sm:$0xff] %vm188, %v164
      %199 = vst.msk [vmem:[#allocation2 + $0x50] sm:$0xff] %vm188, %v165
      %200 = vst.msk [vmem:[#allocation2 + $0x58] sm:$0xff] %vm188, %v166
      %201 = vst.msk [vmem:[#allocation2 + $0x60] sm:$0xff] %vm188, %v167
      %202 = vst.msk [vmem:[#allocation2 + $0x68] sm:$0xff] %vm188, %v168
      %203 = vst.msk [vmem:[#allocation2 + $0x70] sm:$0xff] %vm188, %v169
      %204 = vst.msk [vmem:[#allocation2 + $0x78] sm:$0xff] %vm188, %v170
      %205 = vst.msk [vmem:[#allocation2 + $0x80] sm:$0xff] %vm188, %v171
      %206 = vst.msk [vmem:[#allocation2 + $0x88] sm:$0xff] %vm188, %v172
      %207 = vst.msk [vmem:[#allocation2 + $0x90] sm:$0xff] %vm188, %v173
      %208 = vst.msk [vmem:[#allocation2 + $0x98] sm:$0xff] %vm188, %v174
      %209 = vst.msk [vmem:[#allocation2 + $0xa0] sm:$0xff] %vm188, %v175
      %210 = vst.msk [vmem:[#allocation2 + $0xa8] sm:$0xff] %vm188, %v176
      %211 = vst.msk [vmem:[#allocation2 + $0xb0] sm:$0xff] %vm188, %v177
      %212 = vst.msk [vmem:[#allocation2 + $0xb8] sm:$0xff] %vm188, %v178
      %213 = vst.msk [vmem:[#allocation2 + $0xc0] sm:$0xff] %vm188, %v179
      %214 = vst.msk [vmem:[#allocation2 + $0xc8] sm:$0xff] %vm188, %v180
      %215 = vst.msk [vmem:[#allocation2 + $0xd0] sm:$0xff] %vm188, %v181
      %216 = vst.msk [vmem:[#allocation2 + $0xd8] sm:$0xff] %vm188, %v182
      %217 = vst.msk [vmem:[#allocation2 + $0xe0] sm:$0xff] %vm188, %v183
      %218 = vst.msk [vmem:[#allocation2 + $0xe8] sm:$0xff] %vm188, %v184
      %219 = vst.msk [vmem:[#allocation2 + $0xf0] sm:$0xff] %vm188, %v185
      %220 = vst.msk [vmem:[#allocation2 + $0xf8] sm:$0xff] %vm188, %v186
      %221 = vst.msk [vmem:[#allocation2 + $0x100] sm:$0xff] %vm188, %v187
      %v222 = vld [vmem:[#allocation2] sm:$0xff]
      %v223 = vld [vmem:[#allocation2 + $0x8] sm:$0xff]
      %v224 = vld [vmem:[#allocation2 + $0x10] sm:$0xff]
      %v225 = vld [vmem:[#allocation2 + $0x18] sm:$0xff]
      %v226 = vld [vmem:[#allocation2 + $0x20] sm:$0xff]
      %v227 = vld [vmem:[#allocation2 + $0x28] sm:$0xff]
      %v228 = vld [vmem:[#allocation2 + $0x30] sm:$0xff]
      %v229 = vld [vmem:[#allocation2 + $0x38] sm:$0xff]
      %v230 = vld [vmem:[#allocation2 + $0x40] sm:$0xff]
      %v231 = vld [vmem:[#allocation2 + $0x48] sm:$0xff]
      %v232 = vld [vmem:[#allocation2 + $0x50] sm:$0xff]
      %v233 = vld [vmem:[#allocation2 + $0x58] sm:$0xff]
      %v234 = vld [vmem:[#allocation2 + $0x60] sm:$0xff]
      %v235 = vld [vmem:[#allocation2 + $0x68] sm:$0xff]
      %v236 = vld [vmem:[#allocation2 + $0x70] sm:$0xff]
      %v237 = vld [vmem:[#allocation2 + $0x78] sm:$0xff]
      %v238 = vld [vmem:[#allocation2 + $0x80] sm:$0xff]
      %v239 = vld [vmem:[#allocation2 + $0x88] sm:$0xff]
      %v240 = vld [vmem:[#allocation2 + $0x90] sm:$0xff]
      %v241 = vld [vmem:[#allocation2 + $0x98] sm:$0xff]
      %v242 = vld [vmem:[#allocation2 + $0xa0] sm:$0xff]
      %v243 = vld [vmem:[#allocation2 + $0xa8] sm:$0xff]
      %v244 = vld [vmem:[#allocation2 + $0xb0] sm:$0xff]
      %v245 = vld [vmem:[#allocation2 + $0xb8] sm:$0xff]
      %v246 = vld [vmem:[#allocation2 + $0xc0] sm:$0xff]
      %v247 = vld [vmem:[#allocation2 + $0xc8] sm:$0xff]
      %v248 = vld [vmem:[#allocation2 + $0xd0] sm:$0xff]
      %v249 = vld [vmem:[#allocation2 + $0xd8] sm:$0xff]
      %v250 = vld [vmem:[#allocation2 + $0xe0] sm:$0xff]
      %v251 = vld [vmem:[#allocation2 + $0xe8] sm:$0xff]
      %v252 = vpack.c.bf16 %v223, %v222
      %v253 = vpack.c.bf16 %v225, %v224
      %v254 = vpack.c.bf16 %v227, %v226
      %v255 = vpack.c.bf16 %v229, %v228
      %v256 = vpack.c.bf16 %v231, %v230
      %v257 = vpack.c.bf16 %v233, %v232
      %v258 = vpack.c.bf16 %v235, %v234
      %v259 = vpack.c.bf16 %v237, %v236
      %v260 = vpack.c.bf16 %v239, %v238
      %v261 = vpack.c.bf16 %v241, %v240
      %v262 = vpack.c.bf16 %v243, %v242
      %v263 = vpack.c.bf16 %v245, %v244
      %v264 = vpack.c.bf16 %v247, %v246
      %v265 = vpack.c.bf16 %v249, %v248
      %v266 = vpack.c.bf16 %v251, %v250
      %v267 = vld [vmem:[%s1] sm:$0xf]
      %v268 = vld [vmem:[%s1 + $0x4] sm:$0xf]
      %v269 = vld [vmem:[%s1 + $0x8] sm:$0xf]
      %v270 = vld [vmem:[%s1 + $0xc] sm:$0xf]
      %v271 = vld [vmem:[%s1 + $0x10] sm:$0xf]
      %v272 = vld [vmem:[%s1 + $0x14] sm:$0xf]
      %v273 = vld [vmem:[%s1 + $0x18] sm:$0xf]
      %v274 = vld [vmem:[%s1 + $0x1c] sm:$0xf]
      %v283 = vunpack.c.l.b16 %v267
      %v284 = vunpack.c.l.b16 %v268
      %v285 = vunpack.c.l.b16 %v269
      %v286 = vunpack.c.l.b16 %v270
      %v287 = vunpack.c.l.b16 %v271
      %v288 = vunpack.c.l.b16 %v272
      %v289 = vunpack.c.l.b16 %v273
      %v290 = vunpack.c.l.b16 %v274
      %v291 = vpack.c.b16 %v284, %v283
      %v292 = vpack.c.b16 %v286, %v285
      %v293 = vpack.c.b16 %v288, %v287
      %v294 = vpack.c.b16 %v290, %v289
      %v300 = vsel %vm188, %v252, 0
      %v303 = vsel %vm188, %v253, 0
      %v306 = vsel %vm188, %v254, 0
      %v309 = vsel %vm188, %v255, 0
      %v312 = vsel %vm188, %v256, 0
      %v315 = vsel %vm188, %v257, 0
      %v318 = vsel %vm188, %v258, 0
      %v321 = vsel %vm188, %v259, 0
      %v324 = vsel %vm188, %v260, 0
      %v327 = vsel %vm188, %v261, 0
      %v330 = vsel %vm188, %v262, 0
      %v333 = vsel %vm188, %v263, 0
      %v336 = vsel %vm188, %v264, 0
      %v339 = vsel %vm188, %v265, 0
      %v342 = vsel %vm188, %v266, 0
      %344 = vmatprep.subr.bf16.mxu0 0
      %345 = vmatpush1.bf16.msra.mxu0 %v291
      %346 = vmatprep.subr.bf16.mxu0 0
      %347 = vmatpush1.bf16.msra.mxu0 %v292
      %348 = vmatprep.subr.bf16.mxu0 0
      %349 = vmatpush1.bf16.msra.mxu0 %v293
      %350 = vmatprep.subr.bf16.mxu0 0
      %351 = vmatpush1.bf16.msra.mxu0 %v294
      %352 = vmatprep.subr.bf16.mxu0 0
      %353 = vmatpush1.bf16.msra.mxu0 0
      %354 = vmatprep.subr.bf16.mxu0 0
      %355 = vmatpush1.bf16.msra.mxu0 0
      %356 = vmatprep.subr.bf16.mxu0 0
      %357 = vmatpush1.bf16.msra.mxu0 0
      %358 = vmatprep.subr.bf16.mxu0 0
      %359 = vmatpush1.bf16.msra.mxu0 0
      %360 = vmatprep.subr.bf16.mxu0 0
      %361 = vmatpush1.bf16.msra.mxu0 0
      %362 = vmatprep.subr.bf16.mxu0 0
      %363 = vmatpush1.bf16.msra.mxu0 0
      %364 = vmatprep.subr.bf16.mxu0 0
      %365 = vmatpush1.bf16.msra.mxu0 0
      %366 = vmatprep.subr.bf16.mxu0 0
      %367 = vmatpush1.bf16.msra.mxu0 0
      %368 = vmatprep.subr.bf16.mxu0 0
      %369 = vmatpush1.bf16.msra.mxu0 0
      %370 = vmatprep.subr.bf16.mxu0 0
      %371 = vmatpush1.bf16.msra.mxu0 0
      %372 = vmatprep.subr.bf16.mxu0 0
      %373 = vmatpush1.bf16.msra.mxu0 0
      %374 = vmatprep.subr.bf16.mxu0 0
      %375 = vmatpush1.bf16.msra.mxu0 0
      %376 = vmatprep.mubr.bf16.mxu0 0
      %377 = vmatmul.mubr.bf16.gmra.mrb[0].mxu0 %v300
      %v378 = vpop.f32.mrb[0].mxu0
      %v379 = vadd.f32 0.0, %v378
      %v380 = vpop.f32.mrb[0].mxu0
      %v381 = vpop.f32.mrb[0].mxu0
      %v382 = vadd.f32 0.0, %v381
      %v383 = vpop.f32.mrb[0].mxu0
      %384 = vmatprep.mubr.bf16.mxu0 0
      %385 = vmatmul.mubr.bf16.gmra.mrb[0].mxu0 %v303
      %v386 = vpop.f32.mrb[0].mxu0
      %v387 = vadd.f32 0.0, %v386
      %v388 = vpop.f32.mrb[0].mxu0
      %v389 = vpop.f32.mrb[0].mxu0
      %v390 = vadd.f32 0.0, %v389
      %v391 = vpop.f32.mrb[0].mxu0
      %392 = vmatprep.mubr.bf16.mxu0 0
      %393 = vmatmul.mubr.bf16.gmra.mrb[0].mxu0 %v306
      %v394 = vpop.f32.mrb[0].mxu0
      %v395 = vadd.f32 0.0, %v394
      %v396 = vpop.f32.mrb[0].mxu0
      %v397 = vpop.f32.mrb[0].mxu0
      %v398 = vadd.f32 0.0, %v397
      %v399 = vpop.f32.mrb[0].mxu0
      %400 = vmatprep.mubr.bf16.mxu0 0
      %401 = vmatmul.mubr.bf16.gmra.mrb[0].mxu0 %v309
      %v402 = vpop.f32.mrb[0].mxu0
      %v403 = vadd.f32 0.0, %v402
      %v404 = vpop.f32.mrb[0].mxu0
      %v405 = vpop.f32.mrb[0].mxu0
      %v406 = vadd.f32 0.0, %v405
      %v407 = vpop.f32.mrb[0].mxu0
      %408 = vmatprep.mubr.bf16.mxu0 0
      %409 = vmatmul.mubr.bf16.gmra.mrb[0].mxu0 %v312
      %v410 = vpop.f32.mrb[0].mxu0
      %v411 = vadd.f32 0.0, %v410
      %v412 = vpop.f32.mrb[0].mxu0
      %v413 = vpop.f32.mrb[0].mxu0
      %v414 = vadd.f32 0.0, %v413
      %v415 = vpop.f32.mrb[0].mxu0
      %416 = vmatprep.mubr.bf16.mxu0 0
      %417 = vmatmul.mubr.bf16.gmra.mrb[0].mxu0 %v315
      %v418 = vpop.f32.mrb[0].mxu0
      %v419 = vadd.f32 0.0, %v418
      %v420 = vpop.f32.mrb[0].mxu0
      %v421 = vpop.f32.mrb[0].mxu0
      %v422 = vadd.f32 0.0, %v421
      %v423 = vpop.f32.mrb[0].mxu0
      %424 = vmatprep.mubr.bf16.mxu0 0
      %425 = vmatmul.mubr.bf16.gmra.mrb[0].mxu0 %v318
      %v426 = vpop.f32.mrb[0].mxu0
      %v427 = vadd.f32 0.0, %v426
      %v428 = vpop.f32.mrb[0].mxu0
      %v429 = vpop.f32.mrb[0].mxu0
      %v430 = vadd.f32 0.0, %v429
      %v431 = vpop.f32.mrb[0].mxu0
      %432 = vmatprep.mubr.bf16.mxu0 0
      %433 = vmatmul.mubr.bf16.gmra.mrb[0].mxu0 %v321
      %v434 = vpop.f32.mrb[0].mxu0
      %v435 = vadd.f32 0.0, %v434
      %v436 = vpop.f32.mrb[0].mxu0
      %v437 = vpop.f32.mrb[0].mxu0
      %v438 = vadd.f32 0.0, %v437
      %v439 = vpop.f32.mrb[0].mxu0
      %440 = vmatprep.mubr.bf16.mxu0 0
      %441 = vmatmul.mubr.bf16.gmra.mrb[0].mxu0 %v324
      %v442 = vpop.f32.mrb[0].mxu0
      %v443 = vadd.f32 0.0, %v442
      %v444 = vpop.f32.mrb[0].mxu0
      %v445 = vpop.f32.mrb[0].mxu0
      %v446 = vadd.f32 0.0, %v445
      %v447 = vpop.f32.mrb[0].mxu0
      %448 = vmatprep.mubr.bf16.mxu0 0
      %449 = vmatmul.mubr.bf16.gmra.mrb[0].mxu0 %v327
      %v450 = vpop.f32.mrb[0].mxu0
      %v451 = vadd.f32 0.0, %v450
      %v452 = vpop.f32.mrb[0].mxu0
      %v453 = vpop.f32.mrb[0].mxu0
      %v454 = vadd.f32 0.0, %v453
      %v455 = vpop.f32.mrb[0].mxu0
      %456 = vmatprep.mubr.bf16.mxu0 0
      %457 = vmatmul.mubr.bf16.gmra.mrb[0].mxu0 %v330
      %v458 = vpop.f32.mrb[0].mxu0
      %v459 = vadd.f32 0.0, %v458
      %v460 = vpop.f32.mrb[0].mxu0
      %v461 = vpop.f32.mrb[0].mxu0
      %v462 = vadd.f32 0.0, %v461
      %v463 = vpop.f32.mrb[0].mxu0
      %464 = vmatprep.mubr.bf16.mxu0 0
      %465 = vmatmul.mubr.bf16.gmra.mrb[0].mxu0 %v333
      %v466 = vpop.f32.mrb[0].mxu0
      %v467 = vadd.f32 0.0, %v466
      %v468 = vpop.f32.mrb[0].mxu0
      %v469 = vpop.f32.mrb[0].mxu0
      %v470 = vadd.f32 0.0, %v469
      %v471 = vpop.f32.mrb[0].mxu0
      %472 = vmatprep.mubr.bf16.mxu0 0
      %473 = vmatmul.mubr.bf16.gmra.mrb[0].mxu0 %v336
      %v474 = vpop.f32.mrb[0].mxu0
      %v475 = vadd.f32 0.0, %v474
      %v476 = vpop.f32.mrb[0].mxu0
      %v477 = vpop.f32.mrb[0].mxu0
      %v478 = vadd.f32 0.0, %v477
      %v479 = vpop.f32.mrb[0].mxu0
      %480 = vmatprep.mubr.bf16.mxu0 0
      %481 = vmatmul.mubr.bf16.gmra.mrb[0].mxu0 %v339
      %v482 = vpop.f32.mrb[0].mxu0
      %v483 = vadd.f32 0.0, %v482
      %v484 = vpop.f32.mrb[0].mxu0
      %v485 = vpop.f32.mrb[0].mxu0
      %v486 = vadd.f32 0.0, %v485
      %v487 = vpop.f32.mrb[0].mxu0
      %488 = vmatprep.mubr.bf16.mxu0 0
      %489 = vmatmul.mubr.bf16.gmra.mrb[0].mxu0 %v342
      %v490 = vpop.f32.mrb[0].mxu0
      %v491 = vadd.f32 0.0, %v490
      %v492 = vpop.f32.mrb[0].mxu0
      %v493 = vpop.f32.mrb[0].mxu0
      %v494 = vadd.f32 0.0, %v493
      %v495 = vpop.f32.mrb[0].mxu0
      %496 = vdwg.mxu0
      %497 = vst [vmem:[%s150] sm:$0xff] %v379
      %498 = vst [vmem:[%s150 + $0x8] sm:$0xff] %v382
      %499 = vst [vmem:[%s150 + $0x10] sm:$0xff] %v387
      %500 = vst [vmem:[%s150 + $0x18] sm:$0xff] %v390
      %501 = vst [vmem:[%s150 + $0x20] sm:$0xff] %v395
      %502 = vst [vmem:[%s150 + $0x28] sm:$0xff] %v398
      %503 = vst [vmem:[%s150 + $0x30] sm:$0xff] %v403
      %504 = vst [vmem:[%s150 + $0x38] sm:$0xff] %v406
      %505 = vst [vmem:[%s150 + $0x40] sm:$0xff] %v411
      %506 = vst [vmem:[%s150 + $0x48] sm:$0xff] %v414
      %507 = vst [vmem:[%s150 + $0x50] sm:$0xff] %v419
      %508 = vst [vmem:[%s150 + $0x58] sm:$0xff] %v422
      %509 = vst [vmem:[%s150 + $0x60] sm:$0xff] %v427
      %510 = vst [vmem:[%s150 + $0x68] sm:$0xff] %v430
      %511 = vst [vmem:[%s150 + $0x70] sm:$0xff] %v435
      %512 = vst [vmem:[%s150 + $0x78] sm:$0xff] %v438
      %513 = vst [vmem:[%s150 + $0x80] sm:$0xff] %v443
      %514 = vst [vmem:[%s150 + $0x88] sm:$0xff] %v446
      %515 = vst [vmem:[%s150 + $0x90] sm:$0xff] %v451
      %516 = vst [vmem:[%s150 + $0x98] sm:$0xff] %v454
      %517 = vst [vmem:[%s150 + $0xa0] sm:$0xff] %v459
      %518 = vst [vmem:[%s150 + $0xa8] sm:$0xff] %v462
      %519 = vst [vmem:[%s150 + $0xb0] sm:$0xff] %v467
      %520 = vst [vmem:[%s150 + $0xb8] sm:$0xff] %v470
      %521 = vst [vmem:[%s150 + $0xc0] sm:$0xff] %v475
      %522 = vst [vmem:[%s150 + $0xc8] sm:$0xff] %v478
      %523 = vst [vmem:[%s150 + $0xd0] sm:$0xff] %v483
      %524 = vst [vmem:[%s150 + $0xd8] sm:$0xff] %v486
      %525 = vst [vmem:[%s150 + $0xe0] sm:$0xff] %v491
      %526 = vst [vmem:[%s150 + $0xe8] sm:$0xff] %v494
      %v527 = vld [vmem:[#allocation2 + $0x1] sm:$0xff]
      %v528 = vld [vmem:[#allocation2 + $0x9] sm:$0xff]
      %v529 = vld [vmem:[#allocation2 + $0x11] sm:$0xff]
      %v530 = vld [vmem:[#allocation2 + $0x19] sm:$0xff]
      %v531 = vld [vmem:[#allocation2 + $0x21] sm:$0xff]
      %v532 = vld [vmem:[#allocation2 + $0x29] sm:$0xff]
      %v533 = vld [vmem:[#allocation2 + $0x31] sm:$0xff]
      %v534 = vld [vmem:[#allocation2 + $0x39] sm:$0xff]
      %v535 = vld [vmem:[#allocation2 + $0x41] sm:$0xff]
      %v536 = vld [vmem:[#allocation2 + $0x49] sm:$0xff]
      %v537 = vld [vmem:[#allocation2 + $0x51] sm:$0xff]
      %v538 = vld [vmem:[#allocation2 + $0x59] sm:$0xff]
      %v539 = vld [vmem:[#allocation2 + $0x61] sm:$0xff]
      %v540 = vld [vmem:[#allocation2 + $0x69] sm:$0xff]
      %v541 = vld [vmem:[#allocation2 + $0x71] sm:$0xff]
      %v542 = vld [vmem:[#allocation2 + $0x79] sm:$0xff]
      %v543 = vld [vmem:[#allocation2 + $0x81] sm:$0xff]
      %v544 = vld [vmem:[#allocation2 + $0x89] sm:$0xff]
      %v545 = vld [vmem:[#allocation2 + $0x91] sm:$0xff]
      %v546 = vld [vmem:[#allocation2 + $0x99] sm:$0xff]
      %v547 = vld [vmem:[#allocation2 + $0xa1] sm:$0xff]
      %v548 = vld [vmem:[#allocation2 + $0xa9] sm:$0xff]
      %v549 = vld [vmem:[#allocation2 + $0xb1] sm:$0xff]
      %v550 = vld [vmem:[#allocation2 + $0xb9] sm:$0xff]
      %v551 = vld [vmem:[#allocation2 + $0xc1] sm:$0xff]
      %v552 = vld [vmem:[#allocation2 + $0xc9] sm:$0xff]
      %v553 = vld [vmem:[#allocation2 + $0xd1] sm:$0xff]
      %v554 = vld [vmem:[#allocation2 + $0xd9] sm:$0xff]
      %v555 = vld [vmem:[#allocation2 + $0xe1] sm:$0xff]
      %v556 = vld [vmem:[#allocation2 + $0xe9] sm:$0xff]
      %v557 = vpack.c.bf16 %v528, %v527
      %v558 = vpack.c.bf16 %v530, %v529
      %v559 = vpack.c.bf16 %v532, %v531
      %v560 = vpack.c.bf16 %v534, %v533
      %v561 = vpack.c.bf16 %v536, %v535
      %v562 = vpack.c.bf16 %v538, %v537
      %v563 = vpack.c.bf16 %v540, %v539
      %v564 = vpack.c.bf16 %v542, %v541
      %v565 = vpack.c.bf16 %v544, %v543
      %v566 = vpack.c.bf16 %v546, %v545
      %v567 = vpack.c.bf16 %v548, %v547
      %v568 = vpack.c.bf16 %v550, %v549
      %v569 = vpack.c.bf16 %v552, %v551
      %v570 = vpack.c.bf16 %v554, %v553
      %v571 = vpack.c.bf16 %v556, %v555
      %s572 = scalar_lea.vmem %s1, 32
      %v573 = vld [vmem:[%s572] sm:$0xf]
      %v574 = vld [vmem:[%s572 + $0x4] sm:$0xf]
      %v575 = vld [vmem:[%s572 + $0x8] sm:$0xf]
      %v576 = vld [vmem:[%s572 + $0xc] sm:$0xf]
      %v577 = vld [vmem:[%s572 + $0x10] sm:$0xf]
      %v578 = vld [vmem:[%s572 + $0x14] sm:$0xf]
      %v579 = vld [vmem:[%s572 + $0x18] sm:$0xf]
      %v580 = vld [vmem:[%s572 + $0x1c] sm:$0xf]
      %v589 = vunpack.c.l.b16 %v573
      %v590 = vunpack.c.l.b16 %v574
      %v591 = vunpack.c.l.b16 %v575
      %v592 = vunpack.c.l.b16 %v576
      %v593 = vunpack.c.l.b16 %v577
      %v594 = vunpack.c.l.b16 %v578
      %v595 = vunpack.c.l.b16 %v579
      %v596 = vunpack.c.l.b16 %v580
      %v597 = vpack.c.b16 %v590, %v589
      %v598 = vpack.c.b16 %v592, %v591
      %v599 = vpack.c.b16 %v594, %v593
      %v600 = vpack.c.b16 %v596, %v595
      %v606 = vsel %vm188, %v557, 0
      %v609 = vsel %vm188, %v558, 0
      %v612 = vsel %vm188, %v559, 0
      %v615 = vsel %vm188, %v560, 0
      %v618 = vsel %vm188, %v561, 0
      %v621 = vsel %vm188, %v562, 0
      %v624 = vsel %vm188, %v563, 0
      %v627 = vsel %vm188, %v564, 0
      %v630 = vsel %vm188, %v565, 0
      %v633 = vsel %vm188, %v566, 0
      %v636 = vsel %vm188, %v567, 0
      %v639 = vsel %vm188, %v568, 0
      %v642 = vsel %vm188, %v569, 0
      %v645 = vsel %vm188, %v570, 0
      %v648 = vsel %vm188, %v571, 0
      %650 = vmatprep.subr.bf16.mxu0 0
      %651 = vmatpush1.bf16.msra.mxu0 %v597
      %652 = vmatprep.subr.bf16.mxu0 0
      %653 = vmatpush1.bf16.msra.mxu0 %v598
      %654 = vmatprep.subr.bf16.mxu0 0
      %655 = vmatpush1.bf16.msra.mxu0 %v599
      %656 = vmatprep.subr.bf16.mxu0 0
      %657 = vmatpush1.bf16.msra.mxu0 %v600
      %658 = vmatprep.subr.bf16.mxu0 0
      %659 = vmatpush1.bf16.msra.mxu0 0
      %660 = vmatprep.subr.bf16.mxu0 0
      %661 = vmatpush1.bf16.msra.mxu0 0
      %662 = vmatprep.subr.bf16.mxu0 0
      %663 = vmatpush1.bf16.msra.mxu0 0
      %664 = vmatprep.subr.bf16.mxu0 0
      %665 = vmatpush1.bf16.msra.mxu0 0
      %666 = vmatprep.subr.bf16.mxu0 0
      %667 = vmatpush1.bf16.msra.mxu0 0
      %668 = vmatprep.subr.bf16.mxu0 0
      %669 = vmatpush1.bf16.msra.mxu0 0
      %670 = vmatprep.subr.bf16.mxu0 0
      %671 = vmatpush1.bf16.msra.mxu0 0
      %672 = vmatprep.subr.bf16.mxu0 0
      %673 = vmatpush1.bf16.msra.mxu0 0
      %674 = vmatprep.subr.bf16.mxu0 0
      %675 = vmatpush1.bf16.msra.mxu0 0
      %676 = vmatprep.subr.bf16.mxu0 0
      %677 = vmatpush1.bf16.msra.mxu0 0
      %678 = vmatprep.subr.bf16.mxu0 0
      %679 = vmatpush1.bf16.msra.mxu0 0
      %680 = vmatprep.subr.bf16.mxu0 0
      %681 = vmatpush1.bf16.msra.mxu0 0
      %682 = vmatprep.mubr.bf16.mxu0 0
      %683 = vmatmul.mubr.bf16.gmra.mrb[0].mxu0 %v606
      %v684 = vpop.f32.mrb[0].mxu0
      %v685 = vadd.f32 0.0, %v684
      %v686 = vpop.f32.mrb[0].mxu0
      %v687 = vpop.f32.mrb[0].mxu0
      %v688 = vadd.f32 0.0, %v687
      %v689 = vpop.f32.mrb[0].mxu0
      %690 = vmatprep.mubr.bf16.mxu0 0
      %691 = vmatmul.mubr.bf16.gmra.mrb[0].mxu0 %v609
      %v692 = vpop.f32.mrb[0].mxu0
      %v693 = vadd.f32 0.0, %v692
      %v694 = vpop.f32.mrb[0].mxu0
      %v695 = vpop.f32.mrb[0].mxu0
      %v696 = vadd.f32 0.0, %v695
      %v697 = vpop.f32.mrb[0].mxu0
      %698 = vmatprep.mubr.bf16.mxu0 0
      %699 = vmatmul.mubr.bf16.gmra.mrb[0].mxu0 %v612
      %v700 = vpop.f32.mrb[0].mxu0
      %v701 = vadd.f32 0.0, %v700
      %v702 = vpop.f32.mrb[0].mxu0
      %v703 = vpop.f32.mrb[0].mxu0
      %v704 = vadd.f32 0.0, %v703
      %v705 = vpop.f32.mrb[0].mxu0
      %706 = vmatprep.mubr.bf16.mxu0 0
      %707 = vmatmul.mubr.bf16.gmra.mrb[0].mxu0 %v615
      %v708 = vpop.f32.mrb[0].mxu0
      %v709 = vadd.f32 0.0, %v708
      %v710 = vpop.f32.mrb[0].mxu0
      %v711 = vpop.f32.mrb[0].mxu0
      %v712 = vadd.f32 0.0, %v711
      %v713 = vpop.f32.mrb[0].mxu0
      %714 = vmatprep.mubr.bf16.mxu0 0
      %715 = vmatmul.mubr.bf16.gmra.mrb[0].mxu0 %v618
      %v716 = vpop.f32.mrb[0].mxu0
      %v717 = vadd.f32 0.0, %v716
      %v718 = vpop.f32.mrb[0].mxu0
      %v719 = vpop.f32.mrb[0].mxu0
      %v720 = vadd.f32 0.0, %v719
      %v721 = vpop.f32.mrb[0].mxu0
      %722 = vmatprep.mubr.bf16.mxu0 0
      %723 = vmatmul.mubr.bf16.gmra.mrb[0].mxu0 %v621
      %v724 = vpop.f32.mrb[0].mxu0
      %v725 = vadd.f32 0.0, %v724
      %v726 = vpop.f32.mrb[0].mxu0
      %v727 = vpop.f32.mrb[0].mxu0
      %v728 = vadd.f32 0.0, %v727
      %v729 = vpop.f32.mrb[0].mxu0
      %730 = vmatprep.mubr.bf16.mxu0 0
      %731 = vmatmul.mubr.bf16.gmra.mrb[0].mxu0 %v624
      %v732 = vpop.f32.mrb[0].mxu0
      %v733 = vadd.f32 0.0, %v732
      %v734 = vpop.f32.mrb[0].mxu0
      %v735 = vpop.f32.mrb[0].mxu0
      %v736 = vadd.f32 0.0, %v735
      %v737 = vpop.f32.mrb[0].mxu0
      %738 = vmatprep.mubr.bf16.mxu0 0
      %739 = vmatmul.mubr.bf16.gmra.mrb[0].mxu0 %v627
      %v740 = vpop.f32.mrb[0].mxu0
      %v741 = vadd.f32 0.0, %v740
      %v742 = vpop.f32.mrb[0].mxu0
      %v743 = vpop.f32.mrb[0].mxu0
      %v744 = vadd.f32 0.0, %v743
      %v745 = vpop.f32.mrb[0].mxu0
      %746 = vmatprep.mubr.bf16.mxu0 0
      %747 = vmatmul.mubr.bf16.gmra.mrb[0].mxu0 %v630
      %v748 = vpop.f32.mrb[0].mxu0
      %v749 = vadd.f32 0.0, %v748
      %v750 = vpop.f32.mrb[0].mxu0
      %v751 = vpop.f32.mrb[0].mxu0
      %v752 = vadd.f32 0.0, %v751
      %v753 = vpop.f32.mrb[0].mxu0
      %754 = vmatprep.mubr.bf16.mxu0 0
      %755 = vmatmul.mubr.bf16.gmra.mrb[0].mxu0 %v633
      %v756 = vpop.f32.mrb[0].mxu0
      %v757 = vadd.f32 0.0, %v756
      %v758 = vpop.f32.mrb[0].mxu0
      %v759 = vpop.f32.mrb[0].mxu0
      %v760 = vadd.f32 0.0, %v759
      %v761 = vpop.f32.mrb[0].mxu0
      %762 = vmatprep.mubr.bf16.mxu0 0
      %763 = vmatmul.mubr.bf16.gmra.mrb[0].mxu0 %v636
      %v764 = vpop.f32.mrb[0].mxu0
      %v765 = vadd.f32 0.0, %v764
      %v766 = vpop.f32.mrb[0].mxu0
      %v767 = vpop.f32.mrb[0].mxu0
      %v768 = vadd.f32 0.0, %v767
      %v769 = vpop.f32.mrb[0].mxu0
      %770 = vmatprep.mubr.bf16.mxu0 0
      %771 = vmatmul.mubr.bf16.gmra.mrb[0].mxu0 %v639
      %v772 = vpop.f32.mrb[0].mxu0
      %v773 = vadd.f32 0.0, %v772
      %v774 = vpop.f32.mrb[0].mxu0
      %v775 = vpop.f32.mrb[0].mxu0
      %v776 = vadd.f32 0.0, %v775
      %v777 = vpop.f32.mrb[0].mxu0
      %778 = vmatprep.mubr.bf16.mxu0 0
      %779 = vmatmul.mubr.bf16.gmra.mrb[0].mxu0 %v642
      %v780 = vpop.f32.mrb[0].mxu0
      %v781 = vadd.f32 0.0, %v780
      %v782 = vpop.f32.mrb[0].mxu0
      %v783 = vpop.f32.mrb[0].mxu0
      %v784 = vadd.f32 0.0, %v783
      %v785 = vpop.f32.mrb[0].mxu0
      %786 = vmatprep.mubr.bf16.mxu0 0
      %787 = vmatmul.mubr.bf16.gmra.mrb[0].mxu0 %v645
      %v788 = vpop.f32.mrb[0].mxu0
      %v789 = vadd.f32 0.0, %v788
      %v790 = vpop.f32.mrb[0].mxu0
      %v791 = vpop.f32.mrb[0].mxu0
      %v792 = vadd.f32 0.0, %v791
      %v793 = vpop.f32.mrb[0].mxu0
      %794 = vmatprep.mubr.bf16.mxu0 0
      %795 = vmatmul.mubr.bf16.gmra.mrb[0].mxu0 %v648
      %v796 = vpop.f32.mrb[0].mxu0
      %v797 = vadd.f32 0.0, %v796
      %v798 = vpop.f32.mrb[0].mxu0
      %v799 = vpop.f32.mrb[0].mxu0
      %v800 = vadd.f32 0.0, %v799
      %v801 = vpop.f32.mrb[0].mxu0
      %802 = vdwg.mxu0
      %v803 = vld [vmem:[%s150] sm:$0xff]
      %v804 = vld [vmem:[%s150 + $0x8] sm:$0xff]
      %v805 = vld [vmem:[%s150 + $0x10] sm:$0xff]
      %v806 = vld [vmem:[%s150 + $0x18] sm:$0xff]
      %v807 = vld [vmem:[%s150 + $0x20] sm:$0xff]
      %v808 = vld [vmem:[%s150 + $0x28] sm:$0xff]
      %v809 = vld [vmem:[%s150 + $0x30] sm:$0xff]
      %v810 = vld [vmem:[%s150 + $0x38] sm:$0xff]
      %v811 = vld [vmem:[%s150 + $0x40] sm:$0xff]
      %v812 = vld [vmem:[%s150 + $0x48] sm:$0xff]
      %v813 = vld [vmem:[%s150 + $0x50] sm:$0xff]
      %v814 = vld [vmem:[%s150 + $0x58] sm:$0xff]
      %v815 = vld [vmem:[%s150 + $0x60] sm:$0xff]
      %v816 = vld [vmem:[%s150 + $0x68] sm:$0xff]
      %v817 = vld [vmem:[%s150 + $0x70] sm:$0xff]
      %v818 = vld [vmem:[%s150 + $0x78] sm:$0xff]
      %v819 = vld [vmem:[%s150 + $0x80] sm:$0xff]
      %v820 = vld [vmem:[%s150 + $0x88] sm:$0xff]
      %v821 = vld [vmem:[%s150 + $0x90] sm:$0xff]
      %v822 = vld [vmem:[%s150 + $0x98] sm:$0xff]
      %v823 = vld [vmem:[%s150 + $0xa0] sm:$0xff]
      %v824 = vld [vmem:[%s150 + $0xa8] sm:$0xff]
      %v825 = vld [vmem:[%s150 + $0xb0] sm:$0xff]
      %v826 = vld [vmem:[%s150 + $0xb8] sm:$0xff]
      %v827 = vld [vmem:[%s150 + $0xc0] sm:$0xff]
      %v828 = vld [vmem:[%s150 + $0xc8] sm:$0xff]
      %v829 = vld [vmem:[%s150 + $0xd0] sm:$0xff]
      %v830 = vld [vmem:[%s150 + $0xd8] sm:$0xff]
      %v831 = vld [vmem:[%s150 + $0xe0] sm:$0xff]
      %v832 = vld [vmem:[%s150 + $0xe8] sm:$0xff]
      %v833 = vadd.f32 %v803, %v685
      %v834 = vadd.f32 %v804, %v688
      %v835 = vadd.f32 %v805, %v693
      %v836 = vadd.f32 %v806, %v696
      %v837 = vadd.f32 %v807, %v701
      %v838 = vadd.f32 %v808, %v704
      %v839 = vadd.f32 %v809, %v709
      %v840 = vadd.f32 %v810, %v712
      %v841 = vadd.f32 %v811, %v717
      %v842 = vadd.f32 %v812, %v720
      %v843 = vadd.f32 %v813, %v725
      %v844 = vadd.f32 %v814, %v728
      %v845 = vadd.f32 %v815, %v733
      %v846 = vadd.f32 %v816, %v736
      %v847 = vadd.f32 %v817, %v741
      %v848 = vadd.f32 %v818, %v744
      %v849 = vadd.f32 %v819, %v749
      %v850 = vadd.f32 %v820, %v752
      %v851 = vadd.f32 %v821, %v757
      %v852 = vadd.f32 %v822, %v760
      %v853 = vadd.f32 %v823, %v765
      %v854 = vadd.f32 %v824, %v768
      %v855 = vadd.f32 %v825, %v773
      %v856 = vadd.f32 %v826, %v776
      %v857 = vadd.f32 %v827, %v781
      %v858 = vadd.f32 %v828, %v784
      %v859 = vadd.f32 %v829, %v789
      %v860 = vadd.f32 %v830, %v792
      %v861 = vadd.f32 %v831, %v797
      %v862 = vadd.f32 %v832, %v800
      %863 = vst [vmem:[%s150] sm:$0xff] %v833
      %864 = vst [vmem:[%s150 + $0x8] sm:$0xff] %v834
      %865 = vst [vmem:[%s150 + $0x10] sm:$0xff] %v835
      %866 = vst [vmem:[%s150 + $0x18] sm:$0xff] %v836
      %867 = vst [vmem:[%s150 + $0x20] sm:$0xff] %v837
      %868 = vst [vmem:[%s150 + $0x28] sm:$0xff] %v838
      %869 = vst [vmem:[%s150 + $0x30] sm:$0xff] %v839
      %870 = vst [vmem:[%s150 + $0x38] sm:$0xff] %v840
      %871 = vst [vmem:[%s150 + $0x40] sm:$0xff] %v841
      %872 = vst [vmem:[%s150 + $0x48] sm:$0xff] %v842
      %873 = vst [vmem:[%s150 + $0x50] sm:$0xff] %v843
      %874 = vst [vmem:[%s150 + $0x58] sm:$0xff] %v844
      %875 = vst [vmem:[%s150 + $0x60] sm:$0xff] %v845
      %876 = vst [vmem:[%s150 + $0x68] sm:$0xff] %v846
      %877 = vst [vmem:[%s150 + $0x70] sm:$0xff] %v847
      %878 = vst [vmem:[%s150 + $0x78] sm:$0xff] %v848
      %879 = vst [vmem:[%s150 + $0x80] sm:$0xff] %v849
      %880 = vst [vmem:[%s150 + $0x88] sm:$0xff] %v850
      %881 = vst [vmem:[%s150 + $0x90] sm:$0xff] %v851
      %882 = vst [vmem:[%s150 + $0x98] sm:$0xff] %v852
      %883 = vst [vmem:[%s150 + $0xa0] sm:$0xff] %v853
      %884 = vst [vmem:[%s150 + $0xa8] sm:$0xff] %v854
      %885 = vst [vmem:[%s150 + $0xb0] sm:$0xff] %v855
      %886 = vst [vmem:[%s150 + $0xb8] sm:$0xff] %v856
      %887 = vst [vmem:[%s150 + $0xc0] sm:$0xff] %v857
      %888 = vst [vmem:[%s150 + $0xc8] sm:$0xff] %v858
      %889 = vst [vmem:[%s150 + $0xd0] sm:$0xff] %v859
      %890 = vst [vmem:[%s150 + $0xd8] sm:$0xff] %v860
      %891 = vst [vmem:[%s150 + $0xe0] sm:$0xff] %v861
      %892 = vst [vmem:[%s150 + $0xe8] sm:$0xff] %v862
      %v893 = vld [vmem:[#allocation2 + $0x2] sm:$0xff]
      %v894 = vld [vmem:[#allocation2 + $0xa] sm:$0xff]
      %v895 = vld [vmem:[#allocation2 + $0x12] sm:$0xff]
      %v896 = vld [vmem:[#allocation2 + $0x1a] sm:$0xff]
      %v897 = vld [vmem:[#allocation2 + $0x22] sm:$0xff]
      %v898 = vld [vmem:[#allocation2 + $0x2a] sm:$0xff]
      %v899 = vld [vmem:[#allocation2 + $0x32] sm:$0xff]
      %v900 = vld [vmem:[#allocation2 + $0x3a] sm:$0xff]
      %v901 = vld [vmem:[#allocation2 + $0x42] sm:$0xff]
      %v902 = vld [vmem:[#allocation2 + $0x4a] sm:$0xff]
      %v903 = vld [vmem:[#allocation2 + $0x52] sm:$0xff]
      %v904 = vld [vmem:[#allocation2 + $0x5a] sm:$0xff]
      %v905 = vld [vmem:[#allocation2 + $0x62] sm:$0xff]
      %v906 = vld [vmem:[#allocation2 + $0x6a] sm:$0xff]
      %v907 = vld [vmem:[#allocation2 + $0x72] sm:$0xff]
      %v908 = vld [vmem:[#allocation2 + $0x7a] sm:$0xff]
      %v909 = vld [vmem:[#allocation2 + $0x82] sm:$0xff]
      %v910 = vld [vmem:[#allocation2 + $0x8a] sm:$0xff]
      %v911 = vld [vmem:[#allocation2 + $0x92] sm:$0xff]
      %v912 = vld [vmem:[#allocation2 + $0x9a] sm:$0xff]
      %v913 = vld [vmem:[#allocation2 + $0xa2] sm:$0xff]
      %v914 = vld [vmem:[#allocation2 + $0xaa] sm:$0xff]
      %v915 = vld [vmem:[#allocation2 + $0xb2] sm:$0xff]
      %v916 = vld [vmem:[#allocation2 + $0xba] sm:$0xff]
      %v917 = vld [vmem:[#allocation2 + $0xc2] sm:$0xff]
      %v918 = vld [vmem:[#allocation2 + $0xca] sm:$0xff]
      %v919 = vld [vmem:[#allocation2 + $0xd2] sm:$0xff]
      %v920 = vld [vmem:[#allocation2 + $0xda] sm:$0xff]
      %v921 = vld [vmem:[#allocation2 + $0xe2] sm:$0xff]
      %v922 = vld [vmem:[#allocation2 + $0xea] sm:$0xff]
      %v923 = vpack.c.bf16 %v894, %v893
      %v924 = vpack.c.bf16 %v896, %v895
      %v925 = vpack.c.bf16 %v898, %v897
      %v926 = vpack.c.bf16 %v900, %v899
      %v927 = vpack.c.bf16 %v902, %v901
      %v928 = vpack.c.bf16 %v904, %v903
      %v929 = vpack.c.bf16 %v906, %v905
      %v930 = vpack.c.bf16 %v908, %v907
      %v931 = vpack.c.bf16 %v910, %v909
      %v932 = vpack.c.bf16 %v912, %v911
      %v933 = vpack.c.bf16 %v914, %v913
      %v934 = vpack.c.bf16 %v916, %v915
      %v935 = vpack.c.bf16 %v918, %v917
      %v936 = vpack.c.bf16 %v920, %v919
      %v937 = vpack.c.bf16 %v922, %v921
      %s938 = scalar_lea.vmem %s1, 64
      %v939 = vld [vmem:[%s938] sm:$0xf]
      %v940 = vld [vmem:[%s938 + $0x4] sm:$0xf]
      %v941 = vld [vmem:[%s938 + $0x8] sm:$0xf]
      %v942 = vld [vmem:[%s938 + $0xc] sm:$0xf]
      %v943 = vld [vmem:[%s938 + $0x10] sm:$0xf]
      %v944 = vld [vmem:[%s938 + $0x14] sm:$0xf]
      %v945 = vld [vmem:[%s938 + $0x18] sm:$0xf]
      %v946 = vld [vmem:[%s938 + $0x1c] sm:$0xf]
      %v955 = vunpack.c.l.b16 %v939
      %v956 = vunpack.c.l.b16 %v940
      %v957 = vunpack.c.l.b16 %v941
      %v958 = vunpack.c.l.b16 %v942
      %v959 = vunpack.c.l.b16 %v943
      %v960 = vunpack.c.l.b16 %v944
      %v961 = vunpack.c.l.b16 %v945
      %v962 = vunpack.c.l.b16 %v946
      %v963 = vpack.c.b16 %v956, %v955
      %v964 = vpack.c.b16 %v958, %v957
      %v965 = vpack.c.b16 %v960, %v959
      %v966 = vpack.c.b16 %v962, %v961
      %v972 = vsel %vm188, %v923, 0
      %v975 = vsel %vm188, %v924, 0
      %v978 = vsel %vm188, %v925, 0
      %v981 = vsel %vm188, %v926, 0
      %v984 = vsel %vm188, %v927, 0
      %v987 = vsel %vm188, %v928, 0
      %v990 = vsel %vm188, %v929, 0
      %v993 = vsel %vm188, %v930, 0
      %v996 = vsel %vm188, %v931, 0
      %v999 = vsel %vm188, %v932, 0
      %v1002 = vsel %vm188, %v933, 0
      %v1005 = vsel %vm188, %v934, 0
      %v1008 = vsel %vm188, %v935, 0
      %v1011 = vsel %vm188, %v936, 0
      %v1014 = vsel %vm188, %v937, 0
      %1016 = vmatprep.subr.bf16.mxu0 0
      %1017 = vmatpush1.bf16.msra.mxu0 %v963
      %1018 = vmatprep.subr.bf16.mxu0 0
      %1019 = vmatpush1.bf16.msra.mxu0 %v964
      %1020 = vmatprep.subr.bf16.mxu0 0
      %1021 = vmatpush1.bf16.msra.mxu0 %v965
      %1022 = vmatprep.subr.bf16.mxu0 0
      %1023 = vmatpush1.bf16.msra.mxu0 %v966
      %1024 = vmatprep.subr.bf16.mxu0 0
      %1025 = vmatpush1.bf16.msra.mxu0 0
      %1026 = vmatprep.subr.bf16.mxu0 0
      %1027 = vmatpush1.bf16.msra.mxu0 0
      %1028 = vmatprep.subr.bf16.mxu0 0
      %1029 = vmatpush1.bf16.msra.mxu0 0
      %1030 = vmatprep.subr.bf16.mxu0 0
      %1031 = vmatpush1.bf16.msra.mxu0 0
      %1032 = vmatprep.subr.bf16.mxu0 0
      %1033 = vmatpush1.bf16.msra.mxu0 0
      %1034 = vmatprep.subr.bf16.mxu0 0
      %1035 = vmatpush1.bf16.msra.mxu0 0
      %1036 = vmatprep.subr.bf16.mxu0 0
      %1037 = vmatpush1.bf16.msra.mxu0 0
      %1038 = vmatprep.subr.bf16.mxu0 0
      %1039 = vmatpush1.bf16.msra.mxu0 0
      %1040 = vmatprep.subr.bf16.mxu0 0
      %1041 = vmatpush1.bf16.msra.mxu0 0
      %1042 = vmatprep.subr.bf16.mxu0 0
      %1043 = vmatpush1.bf16.msra.mxu0 0
      %1044 = vmatprep.subr.bf16.mxu0 0
      %1045 = vmatpush1.bf16.msra.mxu0 0
      %1046 = vmatprep.subr.bf16.mxu0 0
      %1047 = vmatpush1.bf16.msra.mxu0 0
      %1048 = vmatprep.mubr.bf16.mxu0 0
      %1049 = vmatmul.mubr.bf16.gmra.mrb[0].mxu0 %v972
      %v1050 = vpop.f32.mrb[0].mxu0
      %v1051 = vadd.f32 0.0, %v1050
      %v1052 = vpop.f32.mrb[0].mxu0
      %v1053 = vpop.f32.mrb[0].mxu0
      %v1054 = vadd.f32 0.0, %v1053
      %v1055 = vpop.f32.mrb[0].mxu0
      %1056 = vmatprep.mubr.bf16.mxu0 0
      %1057 = vmatmul.mubr.bf16.gmra.mrb[0].mxu0 %v975
      %v1058 = vpop.f32.mrb[0].mxu0
      %v1059 = vadd.f32 0.0, %v1058
      %v1060 = vpop.f32.mrb[0].mxu0
      %v1061 = vpop.f32.mrb[0].mxu0
      %v1062 = vadd.f32 0.0, %v1061
      %v1063 = vpop.f32.mrb[0].mxu0
      %1064 = vmatprep.mubr.bf16.mxu0 0
      %1065 = vmatmul.mubr.bf16.gmra.mrb[0].mxu0 %v978
      %v1066 = vpop.f32.mrb[0].mxu0
      %v1067 = vadd.f32 0.0, %v1066
      %v1068 = vpop.f32.mrb[0].mxu0
      %v1069 = vpop.f32.mrb[0].mxu0
      %v1070 = vadd.f32 0.0, %v1069
      %v1071 = vpop.f32.mrb[0].mxu0
      %1072 = vmatprep.mubr.bf16.mxu0 0
      %1073 = vmatmul.mubr.bf16.gmra.mrb[0].mxu0 %v981
      %v1074 = vpop.f32.mrb[0].mxu0
      %v1075 = vadd.f32 0.0, %v1074
      %v1076 = vpop.f32.mrb[0].mxu0
      %v1077 = vpop.f32.mrb[0].mxu0
      %v1078 = vadd.f32 0.0, %v1077
      %v1079 = vpop.f32.mrb[0].mxu0
      %1080 = vmatprep.mubr.bf16.mxu0 0
      %1081 = vmatmul.mubr.bf16.gmra.mrb[0].mxu0 %v984
      %v1082 = vpop.f32.mrb[0].mxu0
      %v1083 = vadd.f32 0.0, %v1082
      %v1084 = vpop.f32.mrb[0].mxu0
      %v1085 = vpop.f32.mrb[0].mxu0
      %v1086 = vadd.f32 0.0, %v1085
      %v1087 = vpop.f32.mrb[0].mxu0
      %1088 = vmatprep.mubr.bf16.mxu0 0
      %1089 = vmatmul.mubr.bf16.gmra.mrb[0].mxu0 %v987
      %v1090 = vpop.f32.mrb[0].mxu0
      %v1091 = vadd.f32 0.0, %v1090
      %v1092 = vpop.f32.mrb[0].mxu0
      %v1093 = vpop.f32.mrb[0].mxu0
      %v1094 = vadd.f32 0.0, %v1093
      %v1095 = vpop.f32.mrb[0].mxu0
      %1096 = vmatprep.mubr.bf16.mxu0 0
      %1097 = vmatmul.mubr.bf16.gmra.mrb[0].mxu0 %v990
      %v1098 = vpop.f32.mrb[0].mxu0
      %v1099 = vadd.f32 0.0, %v1098
      %v1100 = vpop.f32.mrb[0].mxu0
      %v1101 = vpop.f32.mrb[0].mxu0
      %v1102 = vadd.f32 0.0, %v1101
      %v1103 = vpop.f32.mrb[0].mxu0
      %1104 = vmatprep.mubr.bf16.mxu0 0
      %1105 = vmatmul.mubr.bf16.gmra.mrb[0].mxu0 %v993
      %v1106 = vpop.f32.mrb[0].mxu0
      %v1107 = vadd.f32 0.0, %v1106
      %v1108 = vpop.f32.mrb[0].mxu0
      %v1109 = vpop.f32.mrb[0].mxu0
      %v1110 = vadd.f32 0.0, %v1109
      %v1111 = vpop.f32.mrb[0].mxu0
      %1112 = vmatprep.mubr.bf16.mxu0 0
      %1113 = vmatmul.mubr.bf16.gmra.mrb[0].mxu0 %v996
      %v1114 = vpop.f32.mrb[0].mxu0
      %v1115 = vadd.f32 0.0, %v1114
      %v1116 = vpop.f32.mrb[0].mxu0
      %v1117 = vpop.f32.mrb[0].mxu0
      %v1118 = vadd.f32 0.0, %v1117
      %v1119 = vpop.f32.mrb[0].mxu0
      %1120 = vmatprep.mubr.bf16.mxu0 0
      %1121 = vmatmul.mubr.bf16.gmra.mrb[0].mxu0 %v999
      %v1122 = vpop.f32.mrb[0].mxu0
      %v1123 = vadd.f32 0.0, %v1122
      %v1124 = vpop.f32.mrb[0].mxu0
      %v1125 = vpop.f32.mrb[0].mxu0
      %v1126 = vadd.f32 0.0, %v1125
      %v1127 = vpop.f32.mrb[0].mxu0
      %1128 = vmatprep.mubr.bf16.mxu0 0
      %1129 = vmatmul.mubr.bf16.gmra.mrb[0].mxu0 %v1002
      %v1130 = vpop.f32.mrb[0].mxu0
      %v1131 = vadd.f32 0.0, %v1130
      %v1132 = vpop.f32.mrb[0].mxu0
      %v1133 = vpop.f32.mrb[0].mxu0
      %v1134 = vadd.f32 0.0, %v1133
      %v1135 = vpop.f32.mrb[0].mxu0
      %1136 = vmatprep.mubr.bf16.mxu0 0
      %1137 = vmatmul.mubr.bf16.gmra.mrb[0].mxu0 %v1005
      %v1138 = vpop.f32.mrb[0].mxu0
      %v1139 = vadd.f32 0.0, %v1138
      %v1140 = vpop.f32.mrb[0].mxu0
      %v1141 = vpop.f32.mrb[0].mxu0
      %v1142 = vadd.f32 0.0, %v1141
      %v1143 = vpop.f32.mrb[0].mxu0
      %1144 = vmatprep.mubr.bf16.mxu0 0
      %1145 = vmatmul.mubr.bf16.gmra.mrb[0].mxu0 %v1008
      %v1146 = vpop.f32.mrb[0].mxu0
      %v1147 = vadd.f32 0.0, %v1146
      %v1148 = vpop.f32.mrb[0].mxu0
      %v1149 = vpop.f32.mrb[0].mxu0
      %v1150 = vadd.f32 0.0, %v1149
      %v1151 = vpop.f32.mrb[0].mxu0
      %1152 = vmatprep.mubr.bf16.mxu0 0
      %1153 = vmatmul.mubr.bf16.gmra.mrb[0].mxu0 %v1011
      %v1154 = vpop.f32.mrb[0].mxu0
      %v1155 = vadd.f32 0.0, %v1154
      %v1156 = vpop.f32.mrb[0].mxu0
      %v1157 = vpop.f32.mrb[0].mxu0
      %v1158 = vadd.f32 0.0, %v1157
      %v1159 = vpop.f32.mrb[0].mxu0
      %1160 = vmatprep.mubr.bf16.mxu0 0
      %1161 = vmatmul.mubr.bf16.gmra.mrb[0].mxu0 %v1014
      %v1162 = vpop.f32.mrb[0].mxu0
      %v1163 = vadd.f32 0.0, %v1162
      %v1164 = vpop.f32.mrb[0].mxu0
      %v1165 = vpop.f32.mrb[0].mxu0
      %v1166 = vadd.f32 0.0, %v1165
      %v1167 = vpop.f32.mrb[0].mxu0
      %1168 = vdwg.mxu0
      %v1169 = vld [vmem:[%s150] sm:$0xff]
      %v1170 = vld [vmem:[%s150 + $0x8] sm:$0xff]
      %v1171 = vld [vmem:[%s150 + $0x10] sm:$0xff]
      %v1172 = vld [vmem:[%s150 + $0x18] sm:$0xff]
      %v1173 = vld [vmem:[%s150 + $0x20] sm:$0xff]
      %v1174 = vld [vmem:[%s150 + $0x28] sm:$0xff]
      %v1175 = vld [vmem:[%s150 + $0x30] sm:$0xff]
      %v1176 = vld [vmem:[%s150 + $0x38] sm:$0xff]
      %v1177 = vld [vmem:[%s150 + $0x40] sm:$0xff]
      %v1178 = vld [vmem:[%s150 + $0x48] sm:$0xff]
      %v1179 = vld [vmem:[%s150 + $0x50] sm:$0xff]
      %v1180 = vld [vmem:[%s150 + $0x58] sm:$0xff]
      %v1181 = vld [vmem:[%s150 + $0x60] sm:$0xff]
      %v1182 = vld [vmem:[%s150 + $0x68] sm:$0xff]
      %v1183 = vld [vmem:[%s150 + $0x70] sm:$0xff]
      %v1184 = vld [vmem:[%s150 + $0x78] sm:$0xff]
      %v1185 = vld [vmem:[%s150 + $0x80] sm:$0xff]
      %v1186 = vld [vmem:[%s150 + $0x88] sm:$0xff]
      %v1187 = vld [vmem:[%s150 + $0x90] sm:$0xff]
      %v1188 = vld [vmem:[%s150 + $0x98] sm:$0xff]
      %v1189 = vld [vmem:[%s150 + $0xa0] sm:$0xff]
      %v1190 = vld [vmem:[%s150 + $0xa8] sm:$0xff]
      %v1191 = vld [vmem:[%s150 + $0xb0] sm:$0xff]
      %v1192 = vld [vmem:[%s150 + $0xb8] sm:$0xff]
      %v1193 = vld [vmem:[%s150 + $0xc0] sm:$0xff]
      %v1194 = vld [vmem:[%s150 + $0xc8] sm:$0xff]
      %v1195 = vld [vmem:[%s150 + $0xd0] sm:$0xff]
      %v1196 = vld [vmem:[%s150 + $0xd8] sm:$0xff]
      %v1197 = vld [vmem:[%s150 + $0xe0] sm:$0xff]
      %v1198 = vld [vmem:[%s150 + $0xe8] sm:$0xff]
      %v1199 = vadd.f32 %v1169, %v1051
      %v1200 = vadd.f32 %v1170, %v1054
      %v1201 = vadd.f32 %v1171, %v1059
      %v1202 = vadd.f32 %v1172, %v1062
      %v1203 = vadd.f32 %v1173, %v1067
      %v1204 = vadd.f32 %v1174, %v1070
      %v1205 = vadd.f32 %v1175, %v1075
      %v1206 = vadd.f32 %v1176, %v1078
      %v1207 = vadd.f32 %v1177, %v1083
      %v1208 = vadd.f32 %v1178, %v1086
      %v1209 = vadd.f32 %v1179, %v1091
      %v1210 = vadd.f32 %v1180, %v1094
      %v1211 = vadd.f32 %v1181, %v1099
      %v1212 = vadd.f32 %v1182, %v1102
      %v1213 = vadd.f32 %v1183, %v1107
      %v1214 = vadd.f32 %v1184, %v1110
      %v1215 = vadd.f32 %v1185, %v1115
      %v1216 = vadd.f32 %v1186, %v1118
      %v1217 = vadd.f32 %v1187, %v1123
      %v1218 = vadd.f32 %v1188, %v1126
      %v1219 = vadd.f32 %v1189, %v1131
      %v1220 = vadd.f32 %v1190, %v1134
      %v1221 = vadd.f32 %v1191, %v1139
      %v1222 = vadd.f32 %v1192, %v1142
      %v1223 = vadd.f32 %v1193, %v1147
      %v1224 = vadd.f32 %v1194, %v1150
      %v1225 = vadd.f32 %v1195, %v1155
      %v1226 = vadd.f32 %v1196, %v1158
      %v1227 = vadd.f32 %v1197, %v1163
      %v1228 = vadd.f32 %v1198, %v1166
      %1229 = vst [vmem:[%s150] sm:$0xff] %v1199
      %1230 = vst [vmem:[%s150 + $0x8] sm:$0xff] %v1200
      %1231 = vst [vmem:[%s150 + $0x10] sm:$0xff] %v1201
      %1232 = vst [vmem:[%s150 + $0x18] sm:$0xff] %v1202
      %1233 = vst [vmem:[%s150 + $0x20] sm:$0xff] %v1203
      %1234 = vst [vmem:[%s150 + $0x28] sm:$0xff] %v1204
      %1235 = vst [vmem:[%s150 + $0x30] sm:$0xff] %v1205
      %1236 = vst [vmem:[%s150 + $0x38] sm:$0xff] %v1206
      %1237 = vst [vmem:[%s150 + $0x40] sm:$0xff] %v1207
      %1238 = vst [vmem:[%s150 + $0x48] sm:$0xff] %v1208
      %1239 = vst [vmem:[%s150 + $0x50] sm:$0xff] %v1209
      %1240 = vst [vmem:[%s150 + $0x58] sm:$0xff] %v1210
      %1241 = vst [vmem:[%s150 + $0x60] sm:$0xff] %v1211
      %1242 = vst [vmem:[%s150 + $0x68] sm:$0xff] %v1212
      %1243 = vst [vmem:[%s150 + $0x70] sm:$0xff] %v1213
      %1244 = vst [vmem:[%s150 + $0x78] sm:$0xff] %v1214
      %1245 = vst [vmem:[%s150 + $0x80] sm:$0xff] %v1215
      %1246 = vst [vmem:[%s150 + $0x88] sm:$0xff] %v1216
      %1247 = vst [vmem:[%s150 + $0x90] sm:$0xff] %v1217
      %1248 = vst [vmem:[%s150 + $0x98] sm:$0xff] %v1218
      %1249 = vst [vmem:[%s150 + $0xa0] sm:$0xff] %v1219
      %1250 = vst [vmem:[%s150 + $0xa8] sm:$0xff] %v1220
      %1251 = vst [vmem:[%s150 + $0xb0] sm:$0xff] %v1221
      %1252 = vst [vmem:[%s150 + $0xb8] sm:$0xff] %v1222
      %1253 = vst [vmem:[%s150 + $0xc0] sm:$0xff] %v1223
      %1254 = vst [vmem:[%s150 + $0xc8] sm:$0xff] %v1224
      %1255 = vst [vmem:[%s150 + $0xd0] sm:$0xff] %v1225
      %1256 = vst [vmem:[%s150 + $0xd8] sm:$0xff] %v1226
      %1257 = vst [vmem:[%s150 + $0xe0] sm:$0xff] %v1227
      %1258 = vst [vmem:[%s150 + $0xe8] sm:$0xff] %v1228
      %v1259 = vld [vmem:[#allocation2 + $0xa] sm:$0xff]
      %v1260 = vld [vmem:[#allocation2 + $0x12] sm:$0xff]
      %v1261 = vld [vmem:[#allocation2 + $0x1a] sm:$0xff]
      %v1262 = vld [vmem:[#allocation2 + $0x22] sm:$0xff]
      %v1263 = vld [vmem:[#allocation2 + $0x2a] sm:$0xff]
      %v1264 = vld [vmem:[#allocation2 + $0x32] sm:$0xff]
      %v1265 = vld [vmem:[#allocation2 + $0x3a] sm:$0xff]
      %v1266 = vld [vmem:[#allocation2 + $0x42] sm:$0xff]
      %v1267 = vld [vmem:[#allocation2 + $0x4a] sm:$0xff]
      %v1268 = vld [vmem:[#allocation2 + $0x52] sm:$0xff]
      %v1269 = vld [vmem:[#allocation2 + $0x5a] sm:$0xff]
      %v1270 = vld [vmem:[#allocation2 + $0x62] sm:$0xff]
      %v1271 = vld [vmem:[#allocation2 + $0x6a] sm:$0xff]
      %v1272 = vld [vmem:[#allocation2 + $0x72] sm:$0xff]
      %v1273 = vld [vmem:[#allocation2 + $0x7a] sm:$0xff]
      %v1274 = vld [vmem:[#allocation2 + $0x82] sm:$0xff]
      %v1275 = vld [vmem:[#allocation2 + $0x8a] sm:$0xff]
      %v1276 = vld [vmem:[#allocation2 + $0x92] sm:$0xff]
      %v1277 = vld [vmem:[#allocation2 + $0x9a] sm:$0xff]
      %v1278 = vld [vmem:[#allocation2 + $0xa2] sm:$0xff]
      %v1279 = vld [vmem:[#allocation2 + $0xaa] sm:$0xff]
      %v1280 = vld [vmem:[#allocation2 + $0xb2] sm:$0xff]
      %v1281 = vld [vmem:[#allocation2 + $0xba] sm:$0xff]
      %v1282 = vld [vmem:[#allocation2 + $0xc2] sm:$0xff]
      %v1283 = vld [vmem:[#allocation2 + $0xca] sm:$0xff]
      %v1284 = vld [vmem:[#allocation2 + $0xd2] sm:$0xff]
      %v1285 = vld [vmem:[#allocation2 + $0xda] sm:$0xff]
      %v1286 = vld [vmem:[#allocation2 + $0xe2] sm:$0xff]
      %v1287 = vld [vmem:[#allocation2 + $0xea] sm:$0xff]
      %v1288 = vld [vmem:[#allocation2 + $0xf2] sm:$0xff]
      %v1289 = vpack.c.bf16 %v1260, %v1259
      %v1290 = vpack.c.bf16 %v1262, %v1261
      %v1291 = vpack.c.bf16 %v1264, %v1263
      %v1292 = vpack.c.bf16 %v1266, %v1265
      %v1293 = vpack.c.bf16 %v1268, %v1267
      %v1294 = vpack.c.bf16 %v1270, %v1269
      %v1295 = vpack.c.bf16 %v1272, %v1271
      %v1296 = vpack.c.bf16 %v1274, %v1273
      %v1297 = vpack.c.bf16 %v1276, %v1275
      %v1298 = vpack.c.bf16 %v1278, %v1277
      %v1299 = vpack.c.bf16 %v1280, %v1279
      %v1300 = vpack.c.bf16 %v1282, %v1281
      %v1301 = vpack.c.bf16 %v1284, %v1283
      %v1302 = vpack.c.bf16 %v1286, %v1285
      %v1303 = vpack.c.bf16 %v1288, %v1287
      %s1304 = scalar_lea.vmem %s1, 96
      %v1305 = vld [vmem:[%s1304] sm:$0xf]
      %v1306 = vld [vmem:[%s1304 + $0x4] sm:$0xf]
      %v1307 = vld [vmem:[%s1304 + $0x8] sm:$0xf]
      %v1308 = vld [vmem:[%s1304 + $0xc] sm:$0xf]
      %v1309 = vld [vmem:[%s1304 + $0x10] sm:$0xf]
      %v1310 = vld [vmem:[%s1304 + $0x14] sm:$0xf]
      %v1311 = vld [vmem:[%s1304 + $0x18] sm:$0xf]
      %v1312 = vld [vmem:[%s1304 + $0x1c] sm:$0xf]
      %v1321 = vunpack.c.l.b16 %v1305
      %v1322 = vunpack.c.l.b16 %v1306
      %v1323 = vunpack.c.l.b16 %v1307
      %v1324 = vunpack.c.l.b16 %v1308
      %v1325 = vunpack.c.l.b16 %v1309
      %v1326 = vunpack.c.l.b16 %v1310
      %v1327 = vunpack.c.l.b16 %v1311
      %v1328 = vunpack.c.l.b16 %v1312
      %v1329 = vpack.c.b16 %v1322, %v1321
      %v1330 = vpack.c.b16 %v1324, %v1323
      %v1331 = vpack.c.b16 %v1326, %v1325
      %v1332 = vpack.c.b16 %v1328, %v1327
      %v1338 = vsel %vm188, %v1289, 0
      %v1341 = vsel %vm188, %v1290, 0
      %v1344 = vsel %vm188, %v1291, 0
      %v1347 = vsel %vm188, %v1292, 0
      %v1350 = vsel %vm188, %v1293, 0
      %v1353 = vsel %vm188, %v1294, 0
      %v1356 = vsel %vm188, %v1295, 0
      %v1359 = vsel %vm188, %v1296, 0
      %v1362 = vsel %vm188, %v1297, 0
      %v1365 = vsel %vm188, %v1298, 0
      %v1368 = vsel %vm188, %v1299, 0
      %v1371 = vsel %vm188, %v1300, 0
      %v1374 = vsel %vm188, %v1301, 0
      %v1377 = vsel %vm188, %v1302, 0
      %v1380 = vsel %vm188, %v1303, 0
      %1382 = vmatprep.subr.bf16.mxu0 0
      %1383 = vmatpush1.bf16.msra.mxu0 %v1329
      %1384 = vmatprep.subr.bf16.mxu0 0
      %1385 = vmatpush1.bf16.msra.mxu0 %v1330
      %1386 = vmatprep.subr.bf16.mxu0 0
      %1387 = vmatpush1.bf16.msra.mxu0 %v1331
      %1388 = vmatprep.subr.bf16.mxu0 0
      %1389 = vmatpush1.bf16.msra.mxu0 %v1332
      %1390 = vmatprep.subr.bf16.mxu0 0
      %1391 = vmatpush1.bf16.msra.mxu0 0
      %1392 = vmatprep.subr.bf16.mxu0 0
      %1393 = vmatpush1.bf16.msra.mxu0 0
      %1394 = vmatprep.subr.bf16.mxu0 0
      %1395 = vmatpush1.bf16.msra.mxu0 0
      %1396 = vmatprep.subr.bf16.mxu0 0
      %1397 = vmatpush1.bf16.msra.mxu0 0
      %1398 = vmatprep.subr.bf16.mxu0 0
      %1399 = vmatpush1.bf16.msra.mxu0 0
      %1400 = vmatprep.subr.bf16.mxu0 0
      %1401 = vmatpush1.bf16.msra.mxu0 0
      %1402 = vmatprep.subr.bf16.mxu0 0
      %1403 = vmatpush1.bf16.msra.mxu0 0
      %1404 = vmatprep.subr.bf16.mxu0 0
      %1405 = vmatpush1.bf16.msra.mxu0 0
      %1406 = vmatprep.subr.bf16.mxu0 0
      %1407 = vmatpush1.bf16.msra.mxu0 0
      %1408 = vmatprep.subr.bf16.mxu0 0
      %1409 = vmatpush1.bf16.msra.mxu0 0
      %1410 = vmatprep.subr.bf16.mxu0 0
      %1411 = vmatpush1.bf16.msra.mxu0 0
      %1412 = vmatprep.subr.bf16.mxu0 0
      %1413 = vmatpush1.bf16.msra.mxu0 0
      %1414 = vmatprep.mubr.bf16.mxu0 0
      %1415 = vmatmul.mubr.bf16.gmra.mrb[0].mxu0 %v1338
      %v1416 = vpop.f32.mrb[0].mxu0
      %v1417 = vadd.f32 0.0, %v1416
      %v1418 = vpop.f32.mrb[0].mxu0
      %v1419 = vpop.f32.mrb[0].mxu0
      %v1420 = vadd.f32 0.0, %v1419
      %v1421 = vpop.f32.mrb[0].mxu0
      %1422 = vmatprep.mubr.bf16.mxu0 0
      %1423 = vmatmul.mubr.bf16.gmra.mrb[0].mxu0 %v1341
      %v1424 = vpop.f32.mrb[0].mxu0
      %v1425 = vadd.f32 0.0, %v1424
      %v1426 = vpop.f32.mrb[0].mxu0
      %v1427 = vpop.f32.mrb[0].mxu0
      %v1428 = vadd.f32 0.0, %v1427
      %v1429 = vpop.f32.mrb[0].mxu0
      %1430 = vmatprep.mubr.bf16.mxu0 0
      %1431 = vmatmul.mubr.bf16.gmra.mrb[0].mxu0 %v1344
      %v1432 = vpop.f32.mrb[0].mxu0
      %v1433 = vadd.f32 0.0, %v1432
      %v1434 = vpop.f32.mrb[0].mxu0
      %v1435 = vpop.f32.mrb[0].mxu0
      %v1436 = vadd.f32 0.0, %v1435
      %v1437 = vpop.f32.mrb[0].mxu0
      %1438 = vmatprep.mubr.bf16.mxu0 0
      %1439 = vmatmul.mubr.bf16.gmra.mrb[0].mxu0 %v1347
      %v1440 = vpop.f32.mrb[0].mxu0
      %v1441 = vadd.f32 0.0, %v1440
      %v1442 = vpop.f32.mrb[0].mxu0
      %v1443 = vpop.f32.mrb[0].mxu0
      %v1444 = vadd.f32 0.0, %v1443
      %v1445 = vpop.f32.mrb[0].mxu0
      %1446 = vmatprep.mubr.bf16.mxu0 0
      %1447 = vmatmul.mubr.bf16.gmra.mrb[0].mxu0 %v1350
      %v1448 = vpop.f32.mrb[0].mxu0
      %v1449 = vadd.f32 0.0, %v1448
      %v1450 = vpop.f32.mrb[0].mxu0
      %v1451 = vpop.f32.mrb[0].mxu0
      %v1452 = vadd.f32 0.0, %v1451
      %v1453 = vpop.f32.mrb[0].mxu0
      %1454 = vmatprep.mubr.bf16.mxu0 0
      %1455 = vmatmul.mubr.bf16.gmra.mrb[0].mxu0 %v1353
      %v1456 = vpop.f32.mrb[0].mxu0
      %v1457 = vadd.f32 0.0, %v1456
      %v1458 = vpop.f32.mrb[0].mxu0
      %v1459 = vpop.f32.mrb[0].mxu0
      %v1460 = vadd.f32 0.0, %v1459
      %v1461 = vpop.f32.mrb[0].mxu0
      %1462 = vmatprep.mubr.bf16.mxu0 0
      %1463 = vmatmul.mubr.bf16.gmra.mrb[0].mxu0 %v1356
      %v1464 = vpop.f32.mrb[0].mxu0
      %v1465 = vadd.f32 0.0, %v1464
      %v1466 = vpop.f32.mrb[0].mxu0
      %v1467 = vpop.f32.mrb[0].mxu0
      %v1468 = vadd.f32 0.0, %v1467
      %v1469 = vpop.f32.mrb[0].mxu0
      %1470 = vmatprep.mubr.bf16.mxu0 0
      %1471 = vmatmul.mubr.bf16.gmra.mrb[0].mxu0 %v1359
      %v1472 = vpop.f32.mrb[0].mxu0
      %v1473 = vadd.f32 0.0, %v1472
      %v1474 = vpop.f32.mrb[0].mxu0
      %v1475 = vpop.f32.mrb[0].mxu0
      %v1476 = vadd.f32 0.0, %v1475
      %v1477 = vpop.f32.mrb[0].mxu0
      %1478 = vmatprep.mubr.bf16.mxu0 0
      %1479 = vmatmul.mubr.bf16.gmra.mrb[0].mxu0 %v1362
      %v1480 = vpop.f32.mrb[0].mxu0
      %v1481 = vadd.f32 0.0, %v1480
      %v1482 = vpop.f32.mrb[0].mxu0
      %v1483 = vpop.f32.mrb[0].mxu0
      %v1484 = vadd.f32 0.0, %v1483
      %v1485 = vpop.f32.mrb[0].mxu0
      %1486 = vmatprep.mubr.bf16.mxu0 0
      %1487 = vmatmul.mubr.bf16.gmra.mrb[0].mxu0 %v1365
      %v1488 = vpop.f32.mrb[0].mxu0
      %v1489 = vadd.f32 0.0, %v1488
      %v1490 = vpop.f32.mrb[0].mxu0
      %v1491 = vpop.f32.mrb[0].mxu0
      %v1492 = vadd.f32 0.0, %v1491
      %v1493 = vpop.f32.mrb[0].mxu0
      %1494 = vmatprep.mubr.bf16.mxu0 0
      %1495 = vmatmul.mubr.bf16.gmra.mrb[0].mxu0 %v1368
      %v1496 = vpop.f32.mrb[0].mxu0
      %v1497 = vadd.f32 0.0, %v1496
      %v1498 = vpop.f32.mrb[0].mxu0
      %v1499 = vpop.f32.mrb[0].mxu0
      %v1500 = vadd.f32 0.0, %v1499
      %v1501 = vpop.f32.mrb[0].mxu0
      %1502 = vmatprep.mubr.bf16.mxu0 0
      %1503 = vmatmul.mubr.bf16.gmra.mrb[0].mxu0 %v1371
      %v1504 = vpop.f32.mrb[0].mxu0
      %v1505 = vadd.f32 0.0, %v1504
      %v1506 = vpop.f32.mrb[0].mxu0
      %v1507 = vpop.f32.mrb[0].mxu0
      %v1508 = vadd.f32 0.0, %v1507
      %v1509 = vpop.f32.mrb[0].mxu0
      %1510 = vmatprep.mubr.bf16.mxu0 0
      %1511 = vmatmul.mubr.bf16.gmra.mrb[0].mxu0 %v1374
      %v1512 = vpop.f32.mrb[0].mxu0
      %v1513 = vadd.f32 0.0, %v1512
      %v1514 = vpop.f32.mrb[0].mxu0
      %v1515 = vpop.f32.mrb[0].mxu0
      %v1516 = vadd.f32 0.0, %v1515
      %v1517 = vpop.f32.mrb[0].mxu0
      %1518 = vmatprep.mubr.bf16.mxu0 0
      %1519 = vmatmul.mubr.bf16.gmra.mrb[0].mxu0 %v1377
      %v1520 = vpop.f32.mrb[0].mxu0
      %v1521 = vadd.f32 0.0, %v1520
      %v1522 = vpop.f32.mrb[0].mxu0
      %v1523 = vpop.f32.mrb[0].mxu0
      %v1524 = vadd.f32 0.0, %v1523
      %v1525 = vpop.f32.mrb[0].mxu0
      %1526 = vmatprep.mubr.bf16.mxu0 0
      %1527 = vmatmul.mubr.bf16.gmra.mrb[0].mxu0 %v1380
      %v1528 = vpop.f32.mrb[0].mxu0
      %v1529 = vadd.f32 0.0, %v1528
      %v1530 = vpop.f32.mrb[0].mxu0
      %v1531 = vpop.f32.mrb[0].mxu0
      %v1532 = vadd.f32 0.0, %v1531
      %v1533 = vpop.f32.mrb[0].mxu0
      %1534 = vdwg.mxu0
      %v1535 = vld [vmem:[%s150] sm:$0xff]
      %v1536 = vld [vmem:[%s150 + $0x8] sm:$0xff]
      %v1537 = vld [vmem:[%s150 + $0x10] sm:$0xff]
      %v1538 = vld [vmem:[%s150 + $0x18] sm:$0xff]
      %v1539 = vld [vmem:[%s150 + $0x20] sm:$0xff]
      %v1540 = vld [vmem:[%s150 + $0x28] sm:$0xff]
      %v1541 = vld [vmem:[%s150 + $0x30] sm:$0xff]
      %v1542 = vld [vmem:[%s150 + $0x38] sm:$0xff]
      %v1543 = vld [vmem:[%s150 + $0x40] sm:$0xff]
      %v1544 = vld [vmem:[%s150 + $0x48] sm:$0xff]
      %v1545 = vld [vmem:[%s150 + $0x50] sm:$0xff]
      %v1546 = vld [vmem:[%s150 + $0x58] sm:$0xff]
      %v1547 = vld [vmem:[%s150 + $0x60] sm:$0xff]
      %v1548 = vld [vmem:[%s150 + $0x68] sm:$0xff]
      %v1549 = vld [vmem:[%s150 + $0x70] sm:$0xff]
      %v1550 = vld [vmem:[%s150 + $0x78] sm:$0xff]
      %v1551 = vld [vmem:[%s150 + $0x80] sm:$0xff]
      %v1552 = vld [vmem:[%s150 + $0x88] sm:$0xff]
      %v1553 = vld [vmem:[%s150 + $0x90] sm:$0xff]
      %v1554 = vld [vmem:[%s150 + $0x98] sm:$0xff]
      %v1555 = vld [vmem:[%s150 + $0xa0] sm:$0xff]
      %v1556 = vld [vmem:[%s150 + $0xa8] sm:$0xff]
      %v1557 = vld [vmem:[%s150 + $0xb0] sm:$0xff]
      %v1558 = vld [vmem:[%s150 + $0xb8] sm:$0xff]
      %v1559 = vld [vmem:[%s150 + $0xc0] sm:$0xff]
      %v1560 = vld [vmem:[%s150 + $0xc8] sm:$0xff]
      %v1561 = vld [vmem:[%s150 + $0xd0] sm:$0xff]
      %v1562 = vld [vmem:[%s150 + $0xd8] sm:$0xff]
      %v1563 = vld [vmem:[%s150 + $0xe0] sm:$0xff]
      %v1564 = vld [vmem:[%s150 + $0xe8] sm:$0xff]
      %v1565 = vadd.f32 %v1535, %v1417
      %v1566 = vadd.f32 %v1536, %v1420
      %v1567 = vadd.f32 %v1537, %v1425
      %v1568 = vadd.f32 %v1538, %v1428
      %v1569 = vadd.f32 %v1539, %v1433
      %v1570 = vadd.f32 %v1540, %v1436
      %v1571 = vadd.f32 %v1541, %v1441
      %v1572 = vadd.f32 %v1542, %v1444
      %v1573 = vadd.f32 %v1543, %v1449
      %v1574 = vadd.f32 %v1544, %v1452
      %v1575 = vadd.f32 %v1545, %v1457
      %v1576 = vadd.f32 %v1546, %v1460
      %v1577 = vadd.f32 %v1547, %v1465
      %v1578 = vadd.f32 %v1548, %v1468
      %v1579 = vadd.f32 %v1549, %v1473
      %v1580 = vadd.f32 %v1550, %v1476
      %v1581 = vadd.f32 %v1551, %v1481
      %v1582 = vadd.f32 %v1552, %v1484
      %v1583 = vadd.f32 %v1553, %v1489
      %v1584 = vadd.f32 %v1554, %v1492
      %v1585 = vadd.f32 %v1555, %v1497
      %v1586 = vadd.f32 %v1556, %v1500
      %v1587 = vadd.f32 %v1557, %v1505
      %v1588 = vadd.f32 %v1558, %v1508
      %v1589 = vadd.f32 %v1559, %v1513
      %v1590 = vadd.f32 %v1560, %v1516
      %v1591 = vadd.f32 %v1561, %v1521
      %v1592 = vadd.f32 %v1562, %v1524
      %v1593 = vadd.f32 %v1563, %v1529
      %v1594 = vadd.f32 %v1564, %v1532
      %1595 = vst [vmem:[%s150] sm:$0xff] %v1565
      %1596 = vst [vmem:[%s150 + $0x8] sm:$0xff] %v1566
      %1597 = vst [vmem:[%s150 + $0x10] sm:$0xff] %v1567
      %1598 = vst [vmem:[%s150 + $0x18] sm:$0xff] %v1568
      %1599 = vst [vmem:[%s150 + $0x20] sm:$0xff] %v1569
      %1600 = vst [vmem:[%s150 + $0x28] sm:$0xff] %v1570
      %1601 = vst [vmem:[%s150 + $0x30] sm:$0xff] %v1571
      %1602 = vst [vmem:[%s150 + $0x38] sm:$0xff] %v1572
      %1603 = vst [vmem:[%s150 + $0x40] sm:$0xff] %v1573
      %1604 = vst [vmem:[%s150 + $0x48] sm:$0xff] %v1574
      %1605 = vst [vmem:[%s150 + $0x50] sm:$0xff] %v1575
      %1606 = vst [vmem:[%s150 + $0x58] sm:$0xff] %v1576
      %1607 = vst [vmem:[%s150 + $0x60] sm:$0xff] %v1577
      %1608 = vst [vmem:[%s150 + $0x68] sm:$0xff] %v1578
      %1609 = vst [vmem:[%s150 + $0x70] sm:$0xff] %v1579
      %1610 = vst [vmem:[%s150 + $0x78] sm:$0xff] %v1580
      %1611 = vst [vmem:[%s150 + $0x80] sm:$0xff] %v1581
      %1612 = vst [vmem:[%s150 + $0x88] sm:$0xff] %v1582
      %1613 = vst [vmem:[%s150 + $0x90] sm:$0xff] %v1583
      %1614 = vst [vmem:[%s150 + $0x98] sm:$0xff] %v1584
      %1615 = vst [vmem:[%s150 + $0xa0] sm:$0xff] %v1585
      %1616 = vst [vmem:[%s150 + $0xa8] sm:$0xff] %v1586
      %1617 = vst [vmem:[%s150 + $0xb0] sm:$0xff] %v1587
      %1618 = vst [vmem:[%s150 + $0xb8] sm:$0xff] %v1588
      %1619 = vst [vmem:[%s150 + $0xc0] sm:$0xff] %v1589
      %1620 = vst [vmem:[%s150 + $0xc8] sm:$0xff] %v1590
      %1621 = vst [vmem:[%s150 + $0xd0] sm:$0xff] %v1591
      %1622 = vst [vmem:[%s150 + $0xd8] sm:$0xff] %v1592
      %1623 = vst [vmem:[%s150 + $0xe0] sm:$0xff] %v1593
      %1624 = vst [vmem:[%s150 + $0xe8] sm:$0xff] %v1594
      %v1625 = vld [vmem:[#allocation2 + $0xb] sm:$0xff]
      %v1626 = vld [vmem:[#allocation2 + $0x13] sm:$0xff]
      %v1627 = vld [vmem:[#allocation2 + $0x1b] sm:$0xff]
      %v1628 = vld [vmem:[#allocation2 + $0x23] sm:$0xff]
      %v1629 = vld [vmem:[#allocation2 + $0x2b] sm:$0xff]
      %v1630 = vld [vmem:[#allocation2 + $0x33] sm:$0xff]
      %v1631 = vld [vmem:[#allocation2 + $0x3b] sm:$0xff]
      %v1632 = vld [vmem:[#allocation2 + $0x43] sm:$0xff]
      %v1633 = vld [vmem:[#allocation2 + $0x4b] sm:$0xff]
      %v1634 = vld [vmem:[#allocation2 + $0x53] sm:$0xff]
      %v1635 = vld [vmem:[#allocation2 + $0x5b] sm:$0xff]
      %v1636 = vld [vmem:[#allocation2 + $0x63] sm:$0xff]
      %v1637 = vld [vmem:[#allocation2 + $0x6b] sm:$0xff]
      %v1638 = vld [vmem:[#allocation2 + $0x73] sm:$0xff]
      %v1639 = vld [vmem:[#allocation2 + $0x7b] sm:$0xff]
      %v1640 = vld [vmem:[#allocation2 + $0x83] sm:$0xff]
      %v1641 = vld [vmem:[#allocation2 + $0x8b] sm:$0xff]
      %v1642 = vld [vmem:[#allocation2 + $0x93] sm:$0xff]
      %v1643 = vld [vmem:[#allocation2 + $0x9b] sm:$0xff]
      %v1644 = vld [vmem:[#allocation2 + $0xa3] sm:$0xff]
      %v1645 = vld [vmem:[#allocation2 + $0xab] sm:$0xff]
      %v1646 = vld [vmem:[#allocation2 + $0xb3] sm:$0xff]
      %v1647 = vld [vmem:[#allocation2 + $0xbb] sm:$0xff]
      %v1648 = vld [vmem:[#allocation2 + $0xc3] sm:$0xff]
      %v1649 = vld [vmem:[#allocation2 + $0xcb] sm:$0xff]
      %v1650 = vld [vmem:[#allocation2 + $0xd3] sm:$0xff]
      %v1651 = vld [vmem:[#allocation2 + $0xdb] sm:$0xff]
      %v1652 = vld [vmem:[#allocation2 + $0xe3] sm:$0xff]
      %v1653 = vld [vmem:[#allocation2 + $0xeb] sm:$0xff]
      %v1654 = vld [vmem:[#allocation2 + $0xf3] sm:$0xff]
      %v1655 = vpack.c.bf16 %v1626, %v1625
      %v1656 = vpack.c.bf16 %v1628, %v1627
      %v1657 = vpack.c.bf16 %v1630, %v1629
      %v1658 = vpack.c.bf16 %v1632, %v1631
      %v1659 = vpack.c.bf16 %v1634, %v1633
      %v1660 = vpack.c.bf16 %v1636, %v1635
      %v1661 = vpack.c.bf16 %v1638, %v1637
      %v1662 = vpack.c.bf16 %v1640, %v1639
      %v1663 = vpack.c.bf16 %v1642, %v1641
      %v1664 = vpack.c.bf16 %v1644, %v1643
      %v1665 = vpack.c.bf16 %v1646, %v1645
      %v1666 = vpack.c.bf16 %v1648, %v1647
      %v1667 = vpack.c.bf16 %v1650, %v1649
      %v1668 = vpack.c.bf16 %v1652, %v1651
      %v1669 = vpack.c.bf16 %v1654, %v1653
      %s1670 = scalar_lea.vmem %s1, 128
      %v1671 = vld [vmem:[%s1670] sm:$0xf]
      %v1672 = vld [vmem:[%s1670 + $0x4] sm:$0xf]
      %v1673 = vld [vmem:[%s1670 + $0x8] sm:$0xf]
      %v1674 = vld [vmem:[%s1670 + $0xc] sm:$0xf]
      %v1675 = vld [vmem:[%s1670 + $0x10] sm:$0xf]
      %v1676 = vld [vmem:[%s1670 + $0x14] sm:$0xf]
      %v1677 = vld [vmem:[%s1670 + $0x18] sm:$0xf]
      %v1678 = vld [vmem:[%s1670 + $0x1c] sm:$0xf]
      %v1687 = vunpack.c.l.b16 %v1671
      %v1688 = vunpack.c.l.b16 %v1672
      %v1689 = vunpack.c.l.b16 %v1673
      %v1690 = vunpack.c.l.b16 %v1674
      %v1691 = vunpack.c.l.b16 %v1675
      %v1692 = vunpack.c.l.b16 %v1676
      %v1693 = vunpack.c.l.b16 %v1677
      %v1694 = vunpack.c.l.b16 %v1678
      %v1695 = vpack.c.b16 %v1688, %v1687
      %v1696 = vpack.c.b16 %v1690, %v1689
      %v1697 = vpack.c.b16 %v1692, %v1691
      %v1698 = vpack.c.b16 %v1694, %v1693
      %v1704 = vsel %vm188, %v1655, 0
      %v1707 = vsel %vm188, %v1656, 0
      %v1710 = vsel %vm188, %v1657, 0
      %v1713 = vsel %vm188, %v1658, 0
      %v1716 = vsel %vm188, %v1659, 0
      %v1719 = vsel %vm188, %v1660, 0
      %v1722 = vsel %vm188, %v1661, 0
      %v1725 = vsel %vm188, %v1662, 0
      %v1728 = vsel %vm188, %v1663, 0
      %v1731 = vsel %vm188, %v1664, 0
      %v1734 = vsel %vm188, %v1665, 0
      %v1737 = vsel %vm188, %v1666, 0
      %v1740 = vsel %vm188, %v1667, 0
      %v1743 = vsel %vm188, %v1668, 0
      %v1746 = vsel %vm188, %v1669, 0
      %1748 = vmatprep.subr.bf16.mxu0 0
      %1749 = vmatpush1.bf16.msra.mxu0 %v1695
      %1750 = vmatprep.subr.bf16.mxu0 0
      %1751 = vmatpush1.bf16.msra.mxu0 %v1696
      %1752 = vmatprep.subr.bf16.mxu0 0
      %1753 = vmatpush1.bf16.msra.mxu0 %v1697
      %1754 = vmatprep.subr.bf16.mxu0 0
      %1755 = vmatpush1.bf16.msra.mxu0 %v1698
      %1756 = vmatprep.subr.bf16.mxu0 0
      %1757 = vmatpush1.bf16.msra.mxu0 0
      %1758 = vmatprep.subr.bf16.mxu0 0
      %1759 = vmatpush1.bf16.msra.mxu0 0
      %1760 = vmatprep.subr.bf16.mxu0 0
      %1761 = vmatpush1.bf16.msra.mxu0 0
      %1762 = vmatprep.subr.bf16.mxu0 0
      %1763 = vmatpush1.bf16.msra.mxu0 0
      %1764 = vmatprep.subr.bf16.mxu0 0
      %1765 = vmatpush1.bf16.msra.mxu0 0
      %1766 = vmatprep.subr.bf16.mxu0 0
      %1767 = vmatpush1.bf16.msra.mxu0 0
      %1768 = vmatprep.subr.bf16.mxu0 0
      %1769 = vmatpush1.bf16.msra.mxu0 0
      %1770 = vmatprep.subr.bf16.mxu0 0
      %1771 = vmatpush1.bf16.msra.mxu0 0
      %1772 = vmatprep.subr.bf16.mxu0 0
      %1773 = vmatpush1.bf16.msra.mxu0 0
      %1774 = vmatprep.subr.bf16.mxu0 0
      %1775 = vmatpush1.bf16.msra.mxu0 0
      %1776 = vmatprep.subr.bf16.mxu0 0
      %1777 = vmatpush1.bf16.msra.mxu0 0
      %1778 = vmatprep.subr.bf16.mxu0 0
      %1779 = vmatpush1.bf16.msra.mxu0 0
      %1780 = vmatprep.mubr.bf16.mxu0 0
      %1781 = vmatmul.mubr.bf16.gmra.mrb[0].mxu0 %v1704
      %v1782 = vpop.f32.mrb[0].mxu0
      %v1783 = vadd.f32 0.0, %v1782
      %v1784 = vpop.f32.mrb[0].mxu0
      %v1785 = vpop.f32.mrb[0].mxu0
      %v1786 = vadd.f32 0.0, %v1785
      %v1787 = vpop.f32.mrb[0].mxu0
      %1788 = vmatprep.mubr.bf16.mxu0 0
      %1789 = vmatmul.mubr.bf16.gmra.mrb[0].mxu0 %v1707
      %v1790 = vpop.f32.mrb[0].mxu0
      %v1791 = vadd.f32 0.0, %v1790
      %v1792 = vpop.f32.mrb[0].mxu0
      %v1793 = vpop.f32.mrb[0].mxu0
      %v1794 = vadd.f32 0.0, %v1793
      %v1795 = vpop.f32.mrb[0].mxu0
      %1796 = vmatprep.mubr.bf16.mxu0 0
      %1797 = vmatmul.mubr.bf16.gmra.mrb[0].mxu0 %v1710
      %v1798 = vpop.f32.mrb[0].mxu0
      %v1799 = vadd.f32 0.0, %v1798
      %v1800 = vpop.f32.mrb[0].mxu0
      %v1801 = vpop.f32.mrb[0].mxu0
      %v1802 = vadd.f32 0.0, %v1801
      %v1803 = vpop.f32.mrb[0].mxu0
      %1804 = vmatprep.mubr.bf16.mxu0 0
      %1805 = vmatmul.mubr.bf16.gmra.mrb[0].mxu0 %v1713
      %v1806 = vpop.f32.mrb[0].mxu0
      %v1807 = vadd.f32 0.0, %v1806
      %v1808 = vpop.f32.mrb[0].mxu0
      %v1809 = vpop.f32.mrb[0].mxu0
      %v1810 = vadd.f32 0.0, %v1809
      %v1811 = vpop.f32.mrb[0].mxu0
      %1812 = vmatprep.mubr.bf16.mxu0 0
      %1813 = vmatmul.mubr.bf16.gmra.mrb[0].mxu0 %v1716
      %v1814 = vpop.f32.mrb[0].mxu0
      %v1815 = vadd.f32 0.0, %v1814
      %v1816 = vpop.f32.mrb[0].mxu0
      %v1817 = vpop.f32.mrb[0].mxu0
      %v1818 = vadd.f32 0.0, %v1817
      %v1819 = vpop.f32.mrb[0].mxu0
      %1820 = vmatprep.mubr.bf16.mxu0 0
      %1821 = vmatmul.mubr.bf16.gmra.mrb[0].mxu0 %v1719
      %v1822 = vpop.f32.mrb[0].mxu0
      %v1823 = vadd.f32 0.0, %v1822
      %v1824 = vpop.f32.mrb[0].mxu0
      %v1825 = vpop.f32.mrb[0].mxu0
      %v1826 = vadd.f32 0.0, %v1825
      %v1827 = vpop.f32.mrb[0].mxu0
      %1828 = vmatprep.mubr.bf16.mxu0 0
      %1829 = vmatmul.mubr.bf16.gmra.mrb[0].mxu0 %v1722
      %v1830 = vpop.f32.mrb[0].mxu0
      %v1831 = vadd.f32 0.0, %v1830
      %v1832 = vpop.f32.mrb[0].mxu0
      %v1833 = vpop.f32.mrb[0].mxu0
      %v1834 = vadd.f32 0.0, %v1833
      %v1835 = vpop.f32.mrb[0].mxu0
      %1836 = vmatprep.mubr.bf16.mxu0 0
      %1837 = vmatmul.mubr.bf16.gmra.mrb[0].mxu0 %v1725
      %v1838 = vpop.f32.mrb[0].mxu0
      %v1839 = vadd.f32 0.0, %v1838
      %v1840 = vpop.f32.mrb[0].mxu0
      %v1841 = vpop.f32.mrb[0].mxu0
      %v1842 = vadd.f32 0.0, %v1841
      %v1843 = vpop.f32.mrb[0].mxu0
      %1844 = vmatprep.mubr.bf16.mxu0 0
      %1845 = vmatmul.mubr.bf16.gmra.mrb[0].mxu0 %v1728
      %v1846 = vpop.f32.mrb[0].mxu0
      %v1847 = vadd.f32 0.0, %v1846
      %v1848 = vpop.f32.mrb[0].mxu0
      %v1849 = vpop.f32.mrb[0].mxu0
      %v1850 = vadd.f32 0.0, %v1849
      %v1851 = vpop.f32.mrb[0].mxu0
      %1852 = vmatprep.mubr.bf16.mxu0 0
      %1853 = vmatmul.mubr.bf16.gmra.mrb[0].mxu0 %v1731
      %v1854 = vpop.f32.mrb[0].mxu0
      %v1855 = vadd.f32 0.0, %v1854
      %v1856 = vpop.f32.mrb[0].mxu0
      %v1857 = vpop.f32.mrb[0].mxu0
      %v1858 = vadd.f32 0.0, %v1857
      %v1859 = vpop.f32.mrb[0].mxu0
      %1860 = vmatprep.mubr.bf16.mxu0 0
      %1861 = vmatmul.mubr.bf16.gmra.mrb[0].mxu0 %v1734
      %v1862 = vpop.f32.mrb[0].mxu0
      %v1863 = vadd.f32 0.0, %v1862
      %v1864 = vpop.f32.mrb[0].mxu0
      %v1865 = vpop.f32.mrb[0].mxu0
      %v1866 = vadd.f32 0.0, %v1865
      %v1867 = vpop.f32.mrb[0].mxu0
      %1868 = vmatprep.mubr.bf16.mxu0 0
      %1869 = vmatmul.mubr.bf16.gmra.mrb[0].mxu0 %v1737
      %v1870 = vpop.f32.mrb[0].mxu0
      %v1871 = vadd.f32 0.0, %v1870
      %v1872 = vpop.f32.mrb[0].mxu0
      %v1873 = vpop.f32.mrb[0].mxu0
      %v1874 = vadd.f32 0.0, %v1873
      %v1875 = vpop.f32.mrb[0].mxu0
      %1876 = vmatprep.mubr.bf16.mxu0 0
      %1877 = vmatmul.mubr.bf16.gmra.mrb[0].mxu0 %v1740
      %v1878 = vpop.f32.mrb[0].mxu0
      %v1879 = vadd.f32 0.0, %v1878
      %v1880 = vpop.f32.mrb[0].mxu0
      %v1881 = vpop.f32.mrb[0].mxu0
      %v1882 = vadd.f32 0.0, %v1881
      %v1883 = vpop.f32.mrb[0].mxu0
      %1884 = vmatprep.mubr.bf16.mxu0 0
      %1885 = vmatmul.mubr.bf16.gmra.mrb[0].mxu0 %v1743
      %v1886 = vpop.f32.mrb[0].mxu0
      %v1887 = vadd.f32 0.0, %v1886
      %v1888 = vpop.f32.mrb[0].mxu0
      %v1889 = vpop.f32.mrb[0].mxu0
      %v1890 = vadd.f32 0.0, %v1889
      %v1891 = vpop.f32.mrb[0].mxu0
      %1892 = vmatprep.mubr.bf16.mxu0 0
      %1893 = vmatmul.mubr.bf16.gmra.mrb[0].mxu0 %v1746
      %v1894 = vpop.f32.mrb[0].mxu0
      %v1895 = vadd.f32 0.0, %v1894
      %v1896 = vpop.f32.mrb[0].mxu0
      %v1897 = vpop.f32.mrb[0].mxu0
      %v1898 = vadd.f32 0.0, %v1897
      %v1899 = vpop.f32.mrb[0].mxu0
      %1900 = vdwg.mxu0
      %v1901 = vld [vmem:[%s150] sm:$0xff]
      %v1902 = vld [vmem:[%s150 + $0x8] sm:$0xff]
      %v1903 = vld [vmem:[%s150 + $0x10] sm:$0xff]
      %v1904 = vld [vmem:[%s150 + $0x18] sm:$0xff]
      %v1905 = vld [vmem:[%s150 + $0x20] sm:$0xff]
      %v1906 = vld [vmem:[%s150 + $0x28] sm:$0xff]
      %v1907 = vld [vmem:[%s150 + $0x30] sm:$0xff]
      %v1908 = vld [vmem:[%s150 + $0x38] sm:$0xff]
      %v1909 = vld [vmem:[%s150 + $0x40] sm:$0xff]
      %v1910 = vld [vmem:[%s150 + $0x48] sm:$0xff]
      %v1911 = vld [vmem:[%s150 + $0x50] sm:$0xff]
      %v1912 = vld [vmem:[%s150 + $0x58] sm:$0xff]
      %v1913 = vld [vmem:[%s150 + $0x60] sm:$0xff]
      %v1914 = vld [vmem:[%s150 + $0x68] sm:$0xff]
      %v1915 = vld [vmem:[%s150 + $0x70] sm:$0xff]
      %v1916 = vld [vmem:[%s150 + $0x78] sm:$0xff]
      %v1917 = vld [vmem:[%s150 + $0x80] sm:$0xff]
      %v1918 = vld [vmem:[%s150 + $0x88] sm:$0xff]
      %v1919 = vld [vmem:[%s150 + $0x90] sm:$0xff]
      %v1920 = vld [vmem:[%s150 + $0x98] sm:$0xff]
      %v1921 = vld [vmem:[%s150 + $0xa0] sm:$0xff]
      %v1922 = vld [vmem:[%s150 + $0xa8] sm:$0xff]
      %v1923 = vld [vmem:[%s150 + $0xb0] sm:$0xff]
      %v1924 = vld [vmem:[%s150 + $0xb8] sm:$0xff]
      %v1925 = vld [vmem:[%s150 + $0xc0] sm:$0xff]
      %v1926 = vld [vmem:[%s150 + $0xc8] sm:$0xff]
      %v1927 = vld [vmem:[%s150 + $0xd0] sm:$0xff]
      %v1928 = vld [vmem:[%s150 + $0xd8] sm:$0xff]
      %v1929 = vld [vmem:[%s150 + $0xe0] sm:$0xff]
      %v1930 = vld [vmem:[%s150 + $0xe8] sm:$0xff]
      %v1931 = vadd.f32 %v1901, %v1783
      %v1932 = vadd.f32 %v1902, %v1786
      %v1933 = vadd.f32 %v1903, %v1791
      %v1934 = vadd.f32 %v1904, %v1794
      %v1935 = vadd.f32 %v1905, %v1799
      %v1936 = vadd.f32 %v1906, %v1802
      %v1937 = vadd.f32 %v1907, %v1807
      %v1938 = vadd.f32 %v1908, %v1810
      %v1939 = vadd.f32 %v1909, %v1815
      %v1940 = vadd.f32 %v1910, %v1818
      %v1941 = vadd.f32 %v1911, %v1823
      %v1942 = vadd.f32 %v1912, %v1826
      %v1943 = vadd.f32 %v1913, %v1831
      %v1944 = vadd.f32 %v1914, %v1834
      %v1945 = vadd.f32 %v1915, %v1839
      %v1946 = vadd.f32 %v1916, %v1842
      %v1947 = vadd.f32 %v1917, %v1847
      %v1948 = vadd.f32 %v1918, %v1850
      %v1949 = vadd.f32 %v1919, %v1855
      %v1950 = vadd.f32 %v1920, %v1858
      %v1951 = vadd.f32 %v1921, %v1863
      %v1952 = vadd.f32 %v1922, %v1866
      %v1953 = vadd.f32 %v1923, %v1871
      %v1954 = vadd.f32 %v1924, %v1874
      %v1955 = vadd.f32 %v1925, %v1879
      %v1956 = vadd.f32 %v1926, %v1882
      %v1957 = vadd.f32 %v1927, %v1887
      %v1958 = vadd.f32 %v1928, %v1890
      %v1959 = vadd.f32 %v1929, %v1895
      %v1960 = vadd.f32 %v1930, %v1898
      %1961 = vst [vmem:[%s150] sm:$0xff] %v1931
      %1962 = vst [vmem:[%s150 + $0x8] sm:$0xff] %v1932
      %1963 = vst [vmem:[%s150 + $0x10] sm:$0xff] %v1933
      %1964 = vst [vmem:[%s150 + $0x18] sm:$0xff] %v1934
      %1965 = vst [vmem:[%s150 + $0x20] sm:$0xff] %v1935
      %1966 = vst [vmem:[%s150 + $0x28] sm:$0xff] %v1936
      %1967 = vst [vmem:[%s150 + $0x30] sm:$0xff] %v1937
      %1968 = vst [vmem:[%s150 + $0x38] sm:$0xff] %v1938
      %1969 = vst [vmem:[%s150 + $0x40] sm:$0xff] %v1939
      %1970 = vst [vmem:[%s150 + $0x48] sm:$0xff] %v1940
      %1971 = vst [vmem:[%s150 + $0x50] sm:$0xff] %v1941
      %1972 = vst [vmem:[%s150 + $0x58] sm:$0xff] %v1942
      %1973 = vst [vmem:[%s150 + $0x60] sm:$0xff] %v1943
      %1974 = vst [vmem:[%s150 + $0x68] sm:$0xff] %v1944
      %1975 = vst [vmem:[%s150 + $0x70] sm:$0xff] %v1945
      %1976 = vst [vmem:[%s150 + $0x78] sm:$0xff] %v1946
      %1977 = vst [vmem:[%s150 + $0x80] sm:$0xff] %v1947
      %1978 = vst [vmem:[%s150 + $0x88] sm:$0xff] %v1948
      %1979 = vst [vmem:[%s150 + $0x90] sm:$0xff] %v1949
      %1980 = vst [vmem:[%s150 + $0x98] sm:$0xff] %v1950
      %1981 = vst [vmem:[%s150 + $0xa0] sm:$0xff] %v1951
      %1982 = vst [vmem:[%s150 + $0xa8] sm:$0xff] %v1952
      %1983 = vst [vmem:[%s150 + $0xb0] sm:$0xff] %v1953
      %1984 = vst [vmem:[%s150 + $0xb8] sm:$0xff] %v1954
      %1985 = vst [vmem:[%s150 + $0xc0] sm:$0xff] %v1955
      %1986 = vst [vmem:[%s150 + $0xc8] sm:$0xff] %v1956
      %1987 = vst [vmem:[%s150 + $0xd0] sm:$0xff] %v1957
      %1988 = vst [vmem:[%s150 + $0xd8] sm:$0xff] %v1958
      %1989 = vst [vmem:[%s150 + $0xe0] sm:$0xff] %v1959
      %1990 = vst [vmem:[%s150 + $0xe8] sm:$0xff] %v1960
      %v1991 = vld [vmem:[#allocation2 + $0xc] sm:$0xff]
      %v1992 = vld [vmem:[#allocation2 + $0x14] sm:$0xff]
      %v1993 = vld [vmem:[#allocation2 + $0x1c] sm:$0xff]
      %v1994 = vld [vmem:[#allocation2 + $0x24] sm:$0xff]
      %v1995 = vld [vmem:[#allocation2 + $0x2c] sm:$0xff]
      %v1996 = vld [vmem:[#allocation2 + $0x34] sm:$0xff]
      %v1997 = vld [vmem:[#allocation2 + $0x3c] sm:$0xff]
      %v1998 = vld [vmem:[#allocation2 + $0x44] sm:$0xff]
      %v1999 = vld [vmem:[#allocation2 + $0x4c] sm:$0xff]
      %v2000 = vld [vmem:[#allocation2 + $0x54] sm:$0xff]
      %v2001 = vld [vmem:[#allocation2 + $0x5c] sm:$0xff]
      %v2002 = vld [vmem:[#allocation2 + $0x64] sm:$0xff]
      %v2003 = vld [vmem:[#allocation2 + $0x6c] sm:$0xff]
      %v2004 = vld [vmem:[#allocation2 + $0x74] sm:$0xff]
      %v2005 = vld [vmem:[#allocation2 + $0x7c] sm:$0xff]
      %v2006 = vld [vmem:[#allocation2 + $0x84] sm:$0xff]
      %v2007 = vld [vmem:[#allocation2 + $0x8c] sm:$0xff]
      %v2008 = vld [vmem:[#allocation2 + $0x94] sm:$0xff]
      %v2009 = vld [vmem:[#allocation2 + $0x9c] sm:$0xff]
      %v2010 = vld [vmem:[#allocation2 + $0xa4] sm:$0xff]
      %v2011 = vld [vmem:[#allocation2 + $0xac] sm:$0xff]
      %v2012 = vld [vmem:[#allocation2 + $0xb4] sm:$0xff]
      %v2013 = vld [vmem:[#allocation2 + $0xbc] sm:$0xff]
      %v2014 = vld [vmem:[#allocation2 + $0xc4] sm:$0xff]
      %v2015 = vld [vmem:[#allocation2 + $0xcc] sm:$0xff]
      %v2016 = vld [vmem:[#allocation2 + $0xd4] sm:$0xff]
      %v2017 = vld [vmem:[#allocation2 + $0xdc] sm:$0xff]
      %v2018 = vld [vmem:[#allocation2 + $0xe4] sm:$0xff]
      %v2019 = vld [vmem:[#allocation2 + $0xec] sm:$0xff]
      %v2020 = vld [vmem:[#allocation2 + $0xf4] sm:$0xff]
      %v2021 = vpack.c.bf16 %v1992, %v1991
      %v2022 = vpack.c.bf16 %v1994, %v1993
      %v2023 = vpack.c.bf16 %v1996, %v1995
      %v2024 = vpack.c.bf16 %v1998, %v1997
      %v2025 = vpack.c.bf16 %v2000, %v1999
      %v2026 = vpack.c.bf16 %v2002, %v2001
      %v2027 = vpack.c.bf16 %v2004, %v2003
      %v2028 = vpack.c.bf16 %v2006, %v2005
      %v2029 = vpack.c.bf16 %v2008, %v2007
      %v2030 = vpack.c.bf16 %v2010, %v2009
      %v2031 = vpack.c.bf16 %v2012, %v2011
      %v2032 = vpack.c.bf16 %v2014, %v2013
      %v2033 = vpack.c.bf16 %v2016, %v2015
      %v2034 = vpack.c.bf16 %v2018, %v2017
      %v2035 = vpack.c.bf16 %v2020, %v2019
      %s2036 = scalar_lea.vmem %s1, 160
      %v2037 = vld [vmem:[%s2036] sm:$0xf]
      %v2038 = vld [vmem:[%s2036 + $0x4] sm:$0xf]
      %v2039 = vld [vmem:[%s2036 + $0x8] sm:$0xf]
      %v2040 = vld [vmem:[%s2036 + $0xc] sm:$0xf]
      %v2041 = vld [vmem:[%s2036 + $0x10] sm:$0xf]
      %v2042 = vld [vmem:[%s2036 + $0x14] sm:$0xf]
      %v2043 = vld [vmem:[%s2036 + $0x18] sm:$0xf]
      %v2044 = vld [vmem:[%s2036 + $0x1c] sm:$0xf]
      %v2053 = vunpack.c.l.b16 %v2037
      %v2054 = vunpack.c.l.b16 %v2038
      %v2055 = vunpack.c.l.b16 %v2039
      %v2056 = vunpack.c.l.b16 %v2040
      %v2057 = vunpack.c.l.b16 %v2041
      %v2058 = vunpack.c.l.b16 %v2042
      %v2059 = vunpack.c.l.b16 %v2043
      %v2060 = vunpack.c.l.b16 %v2044
      %v2061 = vpack.c.b16 %v2054, %v2053
      %v2062 = vpack.c.b16 %v2056, %v2055
      %v2063 = vpack.c.b16 %v2058, %v2057
      %v2064 = vpack.c.b16 %v2060, %v2059
      %v2070 = vsel %vm188, %v2021, 0
      %v2073 = vsel %vm188, %v2022, 0
      %v2076 = vsel %vm188, %v2023, 0
      %v2079 = vsel %vm188, %v2024, 0
      %v2082 = vsel %vm188, %v2025, 0
      %v2085 = vsel %vm188, %v2026, 0
      %v2088 = vsel %vm188, %v2027, 0
      %v2091 = vsel %vm188, %v2028, 0
      %v2094 = vsel %vm188, %v2029, 0
      %v2097 = vsel %vm188, %v2030, 0
      %v2100 = vsel %vm188, %v2031, 0
      %v2103 = vsel %vm188, %v2032, 0
      %v2106 = vsel %vm188, %v2033, 0
      %v2109 = vsel %vm188, %v2034, 0
      %v2112 = vsel %vm188, %v2035, 0
      %2114 = vmatprep.subr.bf16.mxu0 0
      %2115 = vmatpush1.bf16.msra.mxu0 %v2061
      %2116 = vmatprep.subr.bf16.mxu0 0
      %2117 = vmatpush1.bf16.msra.mxu0 %v2062
      %2118 = vmatprep.subr.bf16.mxu0 0
      %2119 = vmatpush1.bf16.msra.mxu0 %v2063
      %2120 = vmatprep.subr.bf16.mxu0 0
      %2121 = vmatpush1.bf16.msra.mxu0 %v2064
      %2122 = vmatprep.subr.bf16.mxu0 0
      %2123 = vmatpush1.bf16.msra.mxu0 0
      %2124 = vmatprep.subr.bf16.mxu0 0
      %2125 = vmatpush1.bf16.msra.mxu0 0
      %2126 = vmatprep.subr.bf16.mxu0 0
      %2127 = vmatpush1.bf16.msra.mxu0 0
      %2128 = vmatprep.subr.bf16.mxu0 0
      %2129 = vmatpush1.bf16.msra.mxu0 0
      %2130 = vmatprep.subr.bf16.mxu0 0
      %2131 = vmatpush1.bf16.msra.mxu0 0
      %2132 = vmatprep.subr.bf16.mxu0 0
      %2133 = vmatpush1.bf16.msra.mxu0 0
      %2134 = vmatprep.subr.bf16.mxu0 0
      %2135 = vmatpush1.bf16.msra.mxu0 0
      %2136 = vmatprep.subr.bf16.mxu0 0
      %2137 = vmatpush1.bf16.msra.mxu0 0
      %2138 = vmatprep.subr.bf16.mxu0 0
      %2139 = vmatpush1.bf16.msra.mxu0 0
      %2140 = vmatprep.subr.bf16.mxu0 0
      %2141 = vmatpush1.bf16.msra.mxu0 0
      %2142 = vmatprep.subr.bf16.mxu0 0
      %2143 = vmatpush1.bf16.msra.mxu0 0
      %2144 = vmatprep.subr.bf16.mxu0 0
      %2145 = vmatpush1.bf16.msra.mxu0 0
      %2146 = vmatprep.mubr.bf16.mxu0 0
      %2147 = vmatmul.mubr.bf16.gmra.mrb[0].mxu0 %v2070
      %v2148 = vpop.f32.mrb[0].mxu0
      %v2149 = vadd.f32 0.0, %v2148
      %v2150 = vpop.f32.mrb[0].mxu0
      %v2151 = vpop.f32.mrb[0].mxu0
      %v2152 = vadd.f32 0.0, %v2151
      %v2153 = vpop.f32.mrb[0].mxu0
      %2154 = vmatprep.mubr.bf16.mxu0 0
      %2155 = vmatmul.mubr.bf16.gmra.mrb[0].mxu0 %v2073
      %v2156 = vpop.f32.mrb[0].mxu0
      %v2157 = vadd.f32 0.0, %v2156
      %v2158 = vpop.f32.mrb[0].mxu0
      %v2159 = vpop.f32.mrb[0].mxu0
      %v2160 = vadd.f32 0.0, %v2159
      %v2161 = vpop.f32.mrb[0].mxu0
      %2162 = vmatprep.mubr.bf16.mxu0 0
      %2163 = vmatmul.mubr.bf16.gmra.mrb[0].mxu0 %v2076
      %v2164 = vpop.f32.mrb[0].mxu0
      %v2165 = vadd.f32 0.0, %v2164
      %v2166 = vpop.f32.mrb[0].mxu0
      %v2167 = vpop.f32.mrb[0].mxu0
      %v2168 = vadd.f32 0.0, %v2167
      %v2169 = vpop.f32.mrb[0].mxu0
      %2170 = vmatprep.mubr.bf16.mxu0 0
      %2171 = vmatmul.mubr.bf16.gmra.mrb[0].mxu0 %v2079
      %v2172 = vpop.f32.mrb[0].mxu0
      %v2173 = vadd.f32 0.0, %v2172
      %v2174 = vpop.f32.mrb[0].mxu0
      %v2175 = vpop.f32.mrb[0].mxu0
      %v2176 = vadd.f32 0.0, %v2175
      %v2177 = vpop.f32.mrb[0].mxu0
      %2178 = vmatprep.mubr.bf16.mxu0 0
      %2179 = vmatmul.mubr.bf16.gmra.mrb[0].mxu0 %v2082
      %v2180 = vpop.f32.mrb[0].mxu0
      %v2181 = vadd.f32 0.0, %v2180
      %v2182 = vpop.f32.mrb[0].mxu0
      %v2183 = vpop.f32.mrb[0].mxu0
      %v2184 = vadd.f32 0.0, %v2183
      %v2185 = vpop.f32.mrb[0].mxu0
      %2186 = vmatprep.mubr.bf16.mxu0 0
      %2187 = vmatmul.mubr.bf16.gmra.mrb[0].mxu0 %v2085
      %v2188 = vpop.f32.mrb[0].mxu0
      %v2189 = vadd.f32 0.0, %v2188
      %v2190 = vpop.f32.mrb[0].mxu0
      %v2191 = vpop.f32.mrb[0].mxu0
      %v2192 = vadd.f32 0.0, %v2191
      %v2193 = vpop.f32.mrb[0].mxu0
      %2194 = vmatprep.mubr.bf16.mxu0 0
      %2195 = vmatmul.mubr.bf16.gmra.mrb[0].mxu0 %v2088
      %v2196 = vpop.f32.mrb[0].mxu0
      %v2197 = vadd.f32 0.0, %v2196
      %v2198 = vpop.f32.mrb[0].mxu0
      %v2199 = vpop.f32.mrb[0].mxu0
      %v2200 = vadd.f32 0.0, %v2199
      %v2201 = vpop.f32.mrb[0].mxu0
      %2202 = vmatprep.mubr.bf16.mxu0 0
      %2203 = vmatmul.mubr.bf16.gmra.mrb[0].mxu0 %v2091
      %v2204 = vpop.f32.mrb[0].mxu0
      %v2205 = vadd.f32 0.0, %v2204
      %v2206 = vpop.f32.mrb[0].mxu0
      %v2207 = vpop.f32.mrb[0].mxu0
      %v2208 = vadd.f32 0.0, %v2207
      %v2209 = vpop.f32.mrb[0].mxu0
      %2210 = vmatprep.mubr.bf16.mxu0 0
      %2211 = vmatmul.mubr.bf16.gmra.mrb[0].mxu0 %v2094
      %v2212 = vpop.f32.mrb[0].mxu0
      %v2213 = vadd.f32 0.0, %v2212
      %v2214 = vpop.f32.mrb[0].mxu0
      %v2215 = vpop.f32.mrb[0].mxu0
      %v2216 = vadd.f32 0.0, %v2215
      %v2217 = vpop.f32.mrb[0].mxu0
      %2218 = vmatprep.mubr.bf16.mxu0 0
      %2219 = vmatmul.mubr.bf16.gmra.mrb[0].mxu0 %v2097
      %v2220 = vpop.f32.mrb[0].mxu0
      %v2221 = vadd.f32 0.0, %v2220
      %v2222 = vpop.f32.mrb[0].mxu0
      %v2223 = vpop.f32.mrb[0].mxu0
      %v2224 = vadd.f32 0.0, %v2223
      %v2225 = vpop.f32.mrb[0].mxu0
      %2226 = vmatprep.mubr.bf16.mxu0 0
      %2227 = vmatmul.mubr.bf16.gmra.mrb[0].mxu0 %v2100
      %v2228 = vpop.f32.mrb[0].mxu0
      %v2229 = vadd.f32 0.0, %v2228
      %v2230 = vpop.f32.mrb[0].mxu0
      %v2231 = vpop.f32.mrb[0].mxu0
      %v2232 = vadd.f32 0.0, %v2231
      %v2233 = vpop.f32.mrb[0].mxu0
      %2234 = vmatprep.mubr.bf16.mxu0 0
      %2235 = vmatmul.mubr.bf16.gmra.mrb[0].mxu0 %v2103
      %v2236 = vpop.f32.mrb[0].mxu0
      %v2237 = vadd.f32 0.0, %v2236
      %v2238 = vpop.f32.mrb[0].mxu0
      %v2239 = vpop.f32.mrb[0].mxu0
      %v2240 = vadd.f32 0.0, %v2239
      %v2241 = vpop.f32.mrb[0].mxu0
      %2242 = vmatprep.mubr.bf16.mxu0 0
      %2243 = vmatmul.mubr.bf16.gmra.mrb[0].mxu0 %v2106
      %v2244 = vpop.f32.mrb[0].mxu0
      %v2245 = vadd.f32 0.0, %v2244
      %v2246 = vpop.f32.mrb[0].mxu0
      %v2247 = vpop.f32.mrb[0].mxu0
      %v2248 = vadd.f32 0.0, %v2247
      %v2249 = vpop.f32.mrb[0].mxu0
      %2250 = vmatprep.mubr.bf16.mxu0 0
      %2251 = vmatmul.mubr.bf16.gmra.mrb[0].mxu0 %v2109
      %v2252 = vpop.f32.mrb[0].mxu0
      %v2253 = vadd.f32 0.0, %v2252
      %v2254 = vpop.f32.mrb[0].mxu0
      %v2255 = vpop.f32.mrb[0].mxu0
      %v2256 = vadd.f32 0.0, %v2255
      %v2257 = vpop.f32.mrb[0].mxu0
      %2258 = vmatprep.mubr.bf16.mxu0 0
      %2259 = vmatmul.mubr.bf16.gmra.mrb[0].mxu0 %v2112
      %v2260 = vpop.f32.mrb[0].mxu0
      %v2261 = vadd.f32 0.0, %v2260
      %v2262 = vpop.f32.mrb[0].mxu0
      %v2263 = vpop.f32.mrb[0].mxu0
      %v2264 = vadd.f32 0.0, %v2263
      %v2265 = vpop.f32.mrb[0].mxu0
      %2266 = vdwg.mxu0
      %v2267 = vld [vmem:[%s150] sm:$0xff]
      %v2268 = vld [vmem:[%s150 + $0x8] sm:$0xff]
      %v2269 = vld [vmem:[%s150 + $0x10] sm:$0xff]
      %v2270 = vld [vmem:[%s150 + $0x18] sm:$0xff]
      %v2271 = vld [vmem:[%s150 + $0x20] sm:$0xff]
      %v2272 = vld [vmem:[%s150 + $0x28] sm:$0xff]
      %v2273 = vld [vmem:[%s150 + $0x30] sm:$0xff]
      %v2274 = vld [vmem:[%s150 + $0x38] sm:$0xff]
      %v2275 = vld [vmem:[%s150 + $0x40] sm:$0xff]
      %v2276 = vld [vmem:[%s150 + $0x48] sm:$0xff]
      %v2277 = vld [vmem:[%s150 + $0x50] sm:$0xff]
      %v2278 = vld [vmem:[%s150 + $0x58] sm:$0xff]
      %v2279 = vld [vmem:[%s150 + $0x60] sm:$0xff]
      %v2280 = vld [vmem:[%s150 + $0x68] sm:$0xff]
      %v2281 = vld [vmem:[%s150 + $0x70] sm:$0xff]
      %v2282 = vld [vmem:[%s150 + $0x78] sm:$0xff]
      %v2283 = vld [vmem:[%s150 + $0x80] sm:$0xff]
      %v2284 = vld [vmem:[%s150 + $0x88] sm:$0xff]
      %v2285 = vld [vmem:[%s150 + $0x90] sm:$0xff]
      %v2286 = vld [vmem:[%s150 + $0x98] sm:$0xff]
      %v2287 = vld [vmem:[%s150 + $0xa0] sm:$0xff]
      %v2288 = vld [vmem:[%s150 + $0xa8] sm:$0xff]
      %v2289 = vld [vmem:[%s150 + $0xb0] sm:$0xff]
      %v2290 = vld [vmem:[%s150 + $0xb8] sm:$0xff]
      %v2291 = vld [vmem:[%s150 + $0xc0] sm:$0xff]
      %v2292 = vld [vmem:[%s150 + $0xc8] sm:$0xff]
      %v2293 = vld [vmem:[%s150 + $0xd0] sm:$0xff]
      %v2294 = vld [vmem:[%s150 + $0xd8] sm:$0xff]
      %v2295 = vld [vmem:[%s150 + $0xe0] sm:$0xff]
      %v2296 = vld [vmem:[%s150 + $0xe8] sm:$0xff]
      %v2297 = vadd.f32 %v2267, %v2149
      %v2298 = vadd.f32 %v2268, %v2152
      %v2299 = vadd.f32 %v2269, %v2157
      %v2300 = vadd.f32 %v2270, %v2160
      %v2301 = vadd.f32 %v2271, %v2165
      %v2302 = vadd.f32 %v2272, %v2168
      %v2303 = vadd.f32 %v2273, %v2173
      %v2304 = vadd.f32 %v2274, %v2176
      %v2305 = vadd.f32 %v2275, %v2181
      %v2306 = vadd.f32 %v2276, %v2184
      %v2307 = vadd.f32 %v2277, %v2189
      %v2308 = vadd.f32 %v2278, %v2192
      %v2309 = vadd.f32 %v2279, %v2197
      %v2310 = vadd.f32 %v2280, %v2200
      %v2311 = vadd.f32 %v2281, %v2205
      %v2312 = vadd.f32 %v2282, %v2208
      %v2313 = vadd.f32 %v2283, %v2213
      %v2314 = vadd.f32 %v2284, %v2216
      %v2315 = vadd.f32 %v2285, %v2221
      %v2316 = vadd.f32 %v2286, %v2224
      %v2317 = vadd.f32 %v2287, %v2229
      %v2318 = vadd.f32 %v2288, %v2232
      %v2319 = vadd.f32 %v2289, %v2237
      %v2320 = vadd.f32 %v2290, %v2240
      %v2321 = vadd.f32 %v2291, %v2245
      %v2322 = vadd.f32 %v2292, %v2248
      %v2323 = vadd.f32 %v2293, %v2253
      %v2324 = vadd.f32 %v2294, %v2256
      %v2325 = vadd.f32 %v2295, %v2261
      %v2326 = vadd.f32 %v2296, %v2264
      %2327 = vst [vmem:[%s150] sm:$0xff] %v2297
      %2328 = vst [vmem:[%s150 + $0x8] sm:$0xff] %v2298
      %2329 = vst [vmem:[%s150 + $0x10] sm:$0xff] %v2299
      %2330 = vst [vmem:[%s150 + $0x18] sm:$0xff] %v2300
      %2331 = vst [vmem:[%s150 + $0x20] sm:$0xff] %v2301
      %2332 = vst [vmem:[%s150 + $0x28] sm:$0xff] %v2302
      %2333 = vst [vmem:[%s150 + $0x30] sm:$0xff] %v2303
      %2334 = vst [vmem:[%s150 + $0x38] sm:$0xff] %v2304
      %2335 = vst [vmem:[%s150 + $0x40] sm:$0xff] %v2305
      %2336 = vst [vmem:[%s150 + $0x48] sm:$0xff] %v2306
      %2337 = vst [vmem:[%s150 + $0x50] sm:$0xff] %v2307
      %2338 = vst [vmem:[%s150 + $0x58] sm:$0xff] %v2308
      %2339 = vst [vmem:[%s150 + $0x60] sm:$0xff] %v2309
      %2340 = vst [vmem:[%s150 + $0x68] sm:$0xff] %v2310
      %2341 = vst [vmem:[%s150 + $0x70] sm:$0xff] %v2311
      %2342 = vst [vmem:[%s150 + $0x78] sm:$0xff] %v2312
      %2343 = vst [vmem:[%s150 + $0x80] sm:$0xff] %v2313
      %2344 = vst [vmem:[%s150 + $0x88] sm:$0xff] %v2314
      %2345 = vst [vmem:[%s150 + $0x90] sm:$0xff] %v2315
      %2346 = vst [vmem:[%s150 + $0x98] sm:$0xff] %v2316
      %2347 = vst [vmem:[%s150 + $0xa0] sm:$0xff] %v2317
      %2348 = vst [vmem:[%s150 + $0xa8] sm:$0xff] %v2318
      %2349 = vst [vmem:[%s150 + $0xb0] sm:$0xff] %v2319
      %2350 = vst [vmem:[%s150 + $0xb8] sm:$0xff] %v2320
      %2351 = vst [vmem:[%s150 + $0xc0] sm:$0xff] %v2321
      %2352 = vst [vmem:[%s150 + $0xc8] sm:$0xff] %v2322
      %2353 = vst [vmem:[%s150 + $0xd0] sm:$0xff] %v2323
      %2354 = vst [vmem:[%s150 + $0xd8] sm:$0xff] %v2324
      %2355 = vst [vmem:[%s150 + $0xe0] sm:$0xff] %v2325
      %2356 = vst [vmem:[%s150 + $0xe8] sm:$0xff] %v2326
      %v2357 = vld [vmem:[#allocation2 + $0x14] sm:$0xff]
      %v2358 = vld [vmem:[#allocation2 + $0x1c] sm:$0xff]
      %v2359 = vld [vmem:[#allocation2 + $0x24] sm:$0xff]
      %v2360 = vld [vmem:[#allocation2 + $0x2c] sm:$0xff]
      %v2361 = vld [vmem:[#allocation2 + $0x34] sm:$0xff]
      %v2362 = vld [vmem:[#allocation2 + $0x3c] sm:$0xff]
      %v2363 = vld [vmem:[#allocation2 + $0x44] sm:$0xff]
      %v2364 = vld [vmem:[#allocation2 + $0x4c] sm:$0xff]
      %v2365 = vld [vmem:[#allocation2 + $0x54] sm:$0xff]
      %v2366 = vld [vmem:[#allocation2 + $0x5c] sm:$0xff]
      %v2367 = vld [vmem:[#allocation2 + $0x64] sm:$0xff]
      %v2368 = vld [vmem:[#allocation2 + $0x6c] sm:$0xff]
      %v2369 = vld [vmem:[#allocation2 + $0x74] sm:$0xff]
      %v2370 = vld [vmem:[#allocation2 + $0x7c] sm:$0xff]
      %v2371 = vld [vmem:[#allocation2 + $0x84] sm:$0xff]
      %v2372 = vld [vmem:[#allocation2 + $0x8c] sm:$0xff]
      %v2373 = vld [vmem:[#allocation2 + $0x94] sm:$0xff]
      %v2374 = vld [vmem:[#allocation2 + $0x9c] sm:$0xff]
      %v2375 = vld [vmem:[#allocation2 + $0xa4] sm:$0xff]
      %v2376 = vld [vmem:[#allocation2 + $0xac] sm:$0xff]
      %v2377 = vld [vmem:[#allocation2 + $0xb4] sm:$0xff]
      %v2378 = vld [vmem:[#allocation2 + $0xbc] sm:$0xff]
      %v2379 = vld [vmem:[#allocation2 + $0xc4] sm:$0xff]
      %v2380 = vld [vmem:[#allocation2 + $0xcc] sm:$0xff]
      %v2381 = vld [vmem:[#allocation2 + $0xd4] sm:$0xff]
      %v2382 = vld [vmem:[#allocation2 + $0xdc] sm:$0xff]
      %v2383 = vld [vmem:[#allocation2 + $0xe4] sm:$0xff]
      %v2384 = vld [vmem:[#allocation2 + $0xec] sm:$0xff]
      %v2385 = vld [vmem:[#allocation2 + $0xf4] sm:$0xff]
      %v2386 = vld [vmem:[#allocation2 + $0xfc] sm:$0xff]
      %v2387 = vpack.c.bf16 %v2358, %v2357
      %v2388 = vpack.c.bf16 %v2360, %v2359
      %v2389 = vpack.c.bf16 %v2362, %v2361
      %v2390 = vpack.c.bf16 %v2364, %v2363
      %v2391 = vpack.c.bf16 %v2366, %v2365
      %v2392 = vpack.c.bf16 %v2368, %v2367
      %v2393 = vpack.c.bf16 %v2370, %v2369
      %v2394 = vpack.c.bf16 %v2372, %v2371
      %v2395 = vpack.c.bf16 %v2374, %v2373
      %v2396 = vpack.c.bf16 %v2376, %v2375
      %v2397 = vpack.c.bf16 %v2378, %v2377
      %v2398 = vpack.c.bf16 %v2380, %v2379
      %v2399 = vpack.c.bf16 %v2382, %v2381
      %v2400 = vpack.c.bf16 %v2384, %v2383
      %v2401 = vpack.c.bf16 %v2386, %v2385
      %s2402 = scalar_lea.vmem %s1, 192
      %v2403 = vld [vmem:[%s2402] sm:$0xf]
      %v2404 = vld [vmem:[%s2402 + $0x4] sm:$0xf]
      %v2405 = vld [vmem:[%s2402 + $0x8] sm:$0xf]
      %v2406 = vld [vmem:[%s2402 + $0xc] sm:$0xf]
      %v2407 = vld [vmem:[%s2402 + $0x10] sm:$0xf]
      %v2408 = vld [vmem:[%s2402 + $0x14] sm:$0xf]
      %v2409 = vld [vmem:[%s2402 + $0x18] sm:$0xf]
      %v2410 = vld [vmem:[%s2402 + $0x1c] sm:$0xf]
      %v2419 = vunpack.c.l.b16 %v2403
      %v2420 = vunpack.c.l.b16 %v2404
      %v2421 = vunpack.c.l.b16 %v2405
      %v2422 = vunpack.c.l.b16 %v2406
      %v2423 = vunpack.c.l.b16 %v2407
      %v2424 = vunpack.c.l.b16 %v2408
      %v2425 = vunpack.c.l.b16 %v2409
      %v2426 = vunpack.c.l.b16 %v2410
      %v2427 = vpack.c.b16 %v2420, %v2419
      %v2428 = vpack.c.b16 %v2422, %v2421
      %v2429 = vpack.c.b16 %v2424, %v2423
      %v2430 = vpack.c.b16 %v2426, %v2425
      %v2436 = vsel %vm188, %v2387, 0
      %v2439 = vsel %vm188, %v2388, 0
      %v2442 = vsel %vm188, %v2389, 0
      %v2445 = vsel %vm188, %v2390, 0
      %v2448 = vsel %vm188, %v2391, 0
      %v2451 = vsel %vm188, %v2392, 0
      %v2454 = vsel %vm188, %v2393, 0
      %v2457 = vsel %vm188, %v2394, 0
      %v2460 = vsel %vm188, %v2395, 0
      %v2463 = vsel %vm188, %v2396, 0
      %v2466 = vsel %vm188, %v2397, 0
      %v2469 = vsel %vm188, %v2398, 0
      %v2472 = vsel %vm188, %v2399, 0
      %v2475 = vsel %vm188, %v2400, 0
      %v2478 = vsel %vm188, %v2401, 0
      %2480 = vmatprep.subr.bf16.mxu0 0
      %2481 = vmatpush1.bf16.msra.mxu0 %v2427
      %2482 = vmatprep.subr.bf16.mxu0 0
      %2483 = vmatpush1.bf16.msra.mxu0 %v2428
      %2484 = vmatprep.subr.bf16.mxu0 0
      %2485 = vmatpush1.bf16.msra.mxu0 %v2429
      %2486 = vmatprep.subr.bf16.mxu0 0
      %2487 = vmatpush1.bf16.msra.mxu0 %v2430
      %2488 = vmatprep.subr.bf16.mxu0 0
      %2489 = vmatpush1.bf16.msra.mxu0 0
      %2490 = vmatprep.subr.bf16.mxu0 0
      %2491 = vmatpush1.bf16.msra.mxu0 0
      %2492 = vmatprep.subr.bf16.mxu0 0
      %2493 = vmatpush1.bf16.msra.mxu0 0
      %2494 = vmatprep.subr.bf16.mxu0 0
      %2495 = vmatpush1.bf16.msra.mxu0 0
      %2496 = vmatprep.subr.bf16.mxu0 0
      %2497 = vmatpush1.bf16.msra.mxu0 0
      %2498 = vmatprep.subr.bf16.mxu0 0
      %2499 = vmatpush1.bf16.msra.mxu0 0
      %2500 = vmatprep.subr.bf16.mxu0 0
      %2501 = vmatpush1.bf16.msra.mxu0 0
      %2502 = vmatprep.subr.bf16.mxu0 0
      %2503 = vmatpush1.bf16.msra.mxu0 0
      %2504 = vmatprep.subr.bf16.mxu0 0
      %2505 = vmatpush1.bf16.msra.mxu0 0
      %2506 = vmatprep.subr.bf16.mxu0 0
      %2507 = vmatpush1.bf16.msra.mxu0 0
      %2508 = vmatprep.subr.bf16.mxu0 0
      %2509 = vmatpush1.bf16.msra.mxu0 0
      %2510 = vmatprep.subr.bf16.mxu0 0
      %2511 = vmatpush1.bf16.msra.mxu0 0
      %2512 = vmatprep.mubr.bf16.mxu0 0
      %2513 = vmatmul.mubr.bf16.gmra.mrb[0].mxu0 %v2436
      %v2514 = vpop.f32.mrb[0].mxu0
      %v2515 = vadd.f32 0.0, %v2514
      %v2516 = vpop.f32.mrb[0].mxu0
      %v2517 = vpop.f32.mrb[0].mxu0
      %v2518 = vadd.f32 0.0, %v2517
      %v2519 = vpop.f32.mrb[0].mxu0
      %2520 = vmatprep.mubr.bf16.mxu0 0
      %2521 = vmatmul.mubr.bf16.gmra.mrb[0].mxu0 %v2439
      %v2522 = vpop.f32.mrb[0].mxu0
      %v2523 = vadd.f32 0.0, %v2522
      %v2524 = vpop.f32.mrb[0].mxu0
      %v2525 = vpop.f32.mrb[0].mxu0
      %v2526 = vadd.f32 0.0, %v2525
      %v2527 = vpop.f32.mrb[0].mxu0
      %2528 = vmatprep.mubr.bf16.mxu0 0
      %2529 = vmatmul.mubr.bf16.gmra.mrb[0].mxu0 %v2442
      %v2530 = vpop.f32.mrb[0].mxu0
      %v2531 = vadd.f32 0.0, %v2530
      %v2532 = vpop.f32.mrb[0].mxu0
      %v2533 = vpop.f32.mrb[0].mxu0
      %v2534 = vadd.f32 0.0, %v2533
      %v2535 = vpop.f32.mrb[0].mxu0
      %2536 = vmatprep.mubr.bf16.mxu0 0
      %2537 = vmatmul.mubr.bf16.gmra.mrb[0].mxu0 %v2445
      %v2538 = vpop.f32.mrb[0].mxu0
      %v2539 = vadd.f32 0.0, %v2538
      %v2540 = vpop.f32.mrb[0].mxu0
      %v2541 = vpop.f32.mrb[0].mxu0
      %v2542 = vadd.f32 0.0, %v2541
      %v2543 = vpop.f32.mrb[0].mxu0
      %2544 = vmatprep.mubr.bf16.mxu0 0
      %2545 = vmatmul.mubr.bf16.gmra.mrb[0].mxu0 %v2448
      %v2546 = vpop.f32.mrb[0].mxu0
      %v2547 = vadd.f32 0.0, %v2546
      %v2548 = vpop.f32.mrb[0].mxu0
      %v2549 = vpop.f32.mrb[0].mxu0
      %v2550 = vadd.f32 0.0, %v2549
      %v2551 = vpop.f32.mrb[0].mxu0
      %2552 = vmatprep.mubr.bf16.mxu0 0
      %2553 = vmatmul.mubr.bf16.gmra.mrb[0].mxu0 %v2451
      %v2554 = vpop.f32.mrb[0].mxu0
      %v2555 = vadd.f32 0.0, %v2554
      %v2556 = vpop.f32.mrb[0].mxu0
      %v2557 = vpop.f32.mrb[0].mxu0
      %v2558 = vadd.f32 0.0, %v2557
      %v2559 = vpop.f32.mrb[0].mxu0
      %2560 = vmatprep.mubr.bf16.mxu0 0
      %2561 = vmatmul.mubr.bf16.gmra.mrb[0].mxu0 %v2454
      %v2562 = vpop.f32.mrb[0].mxu0
      %v2563 = vadd.f32 0.0, %v2562
      %v2564 = vpop.f32.mrb[0].mxu0
      %v2565 = vpop.f32.mrb[0].mxu0
      %v2566 = vadd.f32 0.0, %v2565
      %v2567 = vpop.f32.mrb[0].mxu0
      %2568 = vmatprep.mubr.bf16.mxu0 0
      %2569 = vmatmul.mubr.bf16.gmra.mrb[0].mxu0 %v2457
      %v2570 = vpop.f32.mrb[0].mxu0
      %v2571 = vadd.f32 0.0, %v2570
      %v2572 = vpop.f32.mrb[0].mxu0
      %v2573 = vpop.f32.mrb[0].mxu0
      %v2574 = vadd.f32 0.0, %v2573
      %v2575 = vpop.f32.mrb[0].mxu0
      %2576 = vmatprep.mubr.bf16.mxu0 0
      %2577 = vmatmul.mubr.bf16.gmra.mrb[0].mxu0 %v2460
      %v2578 = vpop.f32.mrb[0].mxu0
      %v2579 = vadd.f32 0.0, %v2578
      %v2580 = vpop.f32.mrb[0].mxu0
      %v2581 = vpop.f32.mrb[0].mxu0
      %v2582 = vadd.f32 0.0, %v2581
      %v2583 = vpop.f32.mrb[0].mxu0
      %2584 = vmatprep.mubr.bf16.mxu0 0
      %2585 = vmatmul.mubr.bf16.gmra.mrb[0].mxu0 %v2463
      %v2586 = vpop.f32.mrb[0].mxu0
      %v2587 = vadd.f32 0.0, %v2586
      %v2588 = vpop.f32.mrb[0].mxu0
      %v2589 = vpop.f32.mrb[0].mxu0
      %v2590 = vadd.f32 0.0, %v2589
      %v2591 = vpop.f32.mrb[0].mxu0
      %2592 = vmatprep.mubr.bf16.mxu0 0
      %2593 = vmatmul.mubr.bf16.gmra.mrb[0].mxu0 %v2466
      %v2594 = vpop.f32.mrb[0].mxu0
      %v2595 = vadd.f32 0.0, %v2594
      %v2596 = vpop.f32.mrb[0].mxu0
      %v2597 = vpop.f32.mrb[0].mxu0
      %v2598 = vadd.f32 0.0, %v2597
      %v2599 = vpop.f32.mrb[0].mxu0
      %2600 = vmatprep.mubr.bf16.mxu0 0
      %2601 = vmatmul.mubr.bf16.gmra.mrb[0].mxu0 %v2469
      %v2602 = vpop.f32.mrb[0].mxu0
      %v2603 = vadd.f32 0.0, %v2602
      %v2604 = vpop.f32.mrb[0].mxu0
      %v2605 = vpop.f32.mrb[0].mxu0
      %v2606 = vadd.f32 0.0, %v2605
      %v2607 = vpop.f32.mrb[0].mxu0
      %2608 = vmatprep.mubr.bf16.mxu0 0
      %2609 = vmatmul.mubr.bf16.gmra.mrb[0].mxu0 %v2472
      %v2610 = vpop.f32.mrb[0].mxu0
      %v2611 = vadd.f32 0.0, %v2610
      %v2612 = vpop.f32.mrb[0].mxu0
      %v2613 = vpop.f32.mrb[0].mxu0
      %v2614 = vadd.f32 0.0, %v2613
      %v2615 = vpop.f32.mrb[0].mxu0
      %2616 = vmatprep.mubr.bf16.mxu0 0
      %2617 = vmatmul.mubr.bf16.gmra.mrb[0].mxu0 %v2475
      %v2618 = vpop.f32.mrb[0].mxu0
      %v2619 = vadd.f32 0.0, %v2618
      %v2620 = vpop.f32.mrb[0].mxu0
      %v2621 = vpop.f32.mrb[0].mxu0
      %v2622 = vadd.f32 0.0, %v2621
      %v2623 = vpop.f32.mrb[0].mxu0
      %2624 = vmatprep.mubr.bf16.mxu0 0
      %2625 = vmatmul.mubr.bf16.gmra.mrb[0].mxu0 %v2478
      %v2626 = vpop.f32.mrb[0].mxu0
      %v2627 = vadd.f32 0.0, %v2626
      %v2628 = vpop.f32.mrb[0].mxu0
      %v2629 = vpop.f32.mrb[0].mxu0
      %v2630 = vadd.f32 0.0, %v2629
      %v2631 = vpop.f32.mrb[0].mxu0
      %2632 = vdwg.mxu0
      %v2633 = vld [vmem:[%s150] sm:$0xff]
      %v2634 = vld [vmem:[%s150 + $0x8] sm:$0xff]
      %v2635 = vld [vmem:[%s150 + $0x10] sm:$0xff]
      %v2636 = vld [vmem:[%s150 + $0x18] sm:$0xff]
      %v2637 = vld [vmem:[%s150 + $0x20] sm:$0xff]
      %v2638 = vld [vmem:[%s150 + $0x28] sm:$0xff]
      %v2639 = vld [vmem:[%s150 + $0x30] sm:$0xff]
      %v2640 = vld [vmem:[%s150 + $0x38] sm:$0xff]
      %v2641 = vld [vmem:[%s150 + $0x40] sm:$0xff]
      %v2642 = vld [vmem:[%s150 + $0x48] sm:$0xff]
      %v2643 = vld [vmem:[%s150 + $0x50] sm:$0xff]
      %v2644 = vld [vmem:[%s150 + $0x58] sm:$0xff]
      %v2645 = vld [vmem:[%s150 + $0x60] sm:$0xff]
      %v2646 = vld [vmem:[%s150 + $0x68] sm:$0xff]
      %v2647 = vld [vmem:[%s150 + $0x70] sm:$0xff]
      %v2648 = vld [vmem:[%s150 + $0x78] sm:$0xff]
      %v2649 = vld [vmem:[%s150 + $0x80] sm:$0xff]
      %v2650 = vld [vmem:[%s150 + $0x88] sm:$0xff]
      %v2651 = vld [vmem:[%s150 + $0x90] sm:$0xff]
      %v2652 = vld [vmem:[%s150 + $0x98] sm:$0xff]
      %v2653 = vld [vmem:[%s150 + $0xa0] sm:$0xff]
      %v2654 = vld [vmem:[%s150 + $0xa8] sm:$0xff]
      %v2655 = vld [vmem:[%s150 + $0xb0] sm:$0xff]
      %v2656 = vld [vmem:[%s150 + $0xb8] sm:$0xff]
      %v2657 = vld [vmem:[%s150 + $0xc0] sm:$0xff]
      %v2658 = vld [vmem:[%s150 + $0xc8] sm:$0xff]
      %v2659 = vld [vmem:[%s150 + $0xd0] sm:$0xff]
      %v2660 = vld [vmem:[%s150 + $0xd8] sm:$0xff]
      %v2661 = vld [vmem:[%s150 + $0xe0] sm:$0xff]
      %v2662 = vld [vmem:[%s150 + $0xe8] sm:$0xff]
      %v2663 = vadd.f32 %v2633, %v2515
      %v2664 = vadd.f32 %v2634, %v2518
      %v2665 = vadd.f32 %v2635, %v2523
      %v2666 = vadd.f32 %v2636, %v2526
      %v2667 = vadd.f32 %v2637, %v2531
      %v2668 = vadd.f32 %v2638, %v2534
      %v2669 = vadd.f32 %v2639, %v2539
      %v2670 = vadd.f32 %v2640, %v2542
      %v2671 = vadd.f32 %v2641, %v2547
      %v2672 = vadd.f32 %v2642, %v2550
      %v2673 = vadd.f32 %v2643, %v2555
      %v2674 = vadd.f32 %v2644, %v2558
      %v2675 = vadd.f32 %v2645, %v2563
      %v2676 = vadd.f32 %v2646, %v2566
      %v2677 = vadd.f32 %v2647, %v2571
      %v2678 = vadd.f32 %v2648, %v2574
      %v2679 = vadd.f32 %v2649, %v2579
      %v2680 = vadd.f32 %v2650, %v2582
      %v2681 = vadd.f32 %v2651, %v2587
      %v2682 = vadd.f32 %v2652, %v2590
      %v2683 = vadd.f32 %v2653, %v2595
      %v2684 = vadd.f32 %v2654, %v2598
      %v2685 = vadd.f32 %v2655, %v2603
      %v2686 = vadd.f32 %v2656, %v2606
      %v2687 = vadd.f32 %v2657, %v2611
      %v2688 = vadd.f32 %v2658, %v2614
      %v2689 = vadd.f32 %v2659, %v2619
      %v2690 = vadd.f32 %v2660, %v2622
      %v2691 = vadd.f32 %v2661, %v2627
      %v2692 = vadd.f32 %v2662, %v2630
      %2693 = vst [vmem:[%s150] sm:$0xff] %v2663
      %2694 = vst [vmem:[%s150 + $0x8] sm:$0xff] %v2664
      %2695 = vst [vmem:[%s150 + $0x10] sm:$0xff] %v2665
      %2696 = vst [vmem:[%s150 + $0x18] sm:$0xff] %v2666
      %2697 = vst [vmem:[%s150 + $0x20] sm:$0xff] %v2667
      %2698 = vst [vmem:[%s150 + $0x28] sm:$0xff] %v2668
      %2699 = vst [vmem:[%s150 + $0x30] sm:$0xff] %v2669
      %2700 = vst [vmem:[%s150 + $0x38] sm:$0xff] %v2670
      %2701 = vst [vmem:[%s150 + $0x40] sm:$0xff] %v2671
      %2702 = vst [vmem:[%s150 + $0x48] sm:$0xff] %v2672
      %2703 = vst [vmem:[%s150 + $0x50] sm:$0xff] %v2673
      %2704 = vst [vmem:[%s150 + $0x58] sm:$0xff] %v2674
      %2705 = vst [vmem:[%s150 + $0x60] sm:$0xff] %v2675
      %2706 = vst [vmem:[%s150 + $0x68] sm:$0xff] %v2676
      %2707 = vst [vmem:[%s150 + $0x70] sm:$0xff] %v2677
      %2708 = vst [vmem:[%s150 + $0x78] sm:$0xff] %v2678
      %2709 = vst [vmem:[%s150 + $0x80] sm:$0xff] %v2679
      %2710 = vst [vmem:[%s150 + $0x88] sm:$0xff] %v2680
      %2711 = vst [vmem:[%s150 + $0x90] sm:$0xff] %v2681
      %2712 = vst [vmem:[%s150 + $0x98] sm:$0xff] %v2682
      %2713 = vst [vmem:[%s150 + $0xa0] sm:$0xff] %v2683
      %2714 = vst [vmem:[%s150 + $0xa8] sm:$0xff] %v2684
      %2715 = vst [vmem:[%s150 + $0xb0] sm:$0xff] %v2685
      %2716 = vst [vmem:[%s150 + $0xb8] sm:$0xff] %v2686
      %2717 = vst [vmem:[%s150 + $0xc0] sm:$0xff] %v2687
      %2718 = vst [vmem:[%s150 + $0xc8] sm:$0xff] %v2688
      %2719 = vst [vmem:[%s150 + $0xd0] sm:$0xff] %v2689
      %2720 = vst [vmem:[%s150 + $0xd8] sm:$0xff] %v2690
      %2721 = vst [vmem:[%s150 + $0xe0] sm:$0xff] %v2691
      %2722 = vst [vmem:[%s150 + $0xe8] sm:$0xff] %v2692
      %v2723 = vld [vmem:[#allocation2 + $0x15] sm:$0xff]
      %v2724 = vld [vmem:[#allocation2 + $0x1d] sm:$0xff]
      %v2725 = vld [vmem:[#allocation2 + $0x25] sm:$0xff]
      %v2726 = vld [vmem:[#allocation2 + $0x2d] sm:$0xff]
      %v2727 = vld [vmem:[#allocation2 + $0x35] sm:$0xff]
      %v2728 = vld [vmem:[#allocation2 + $0x3d] sm:$0xff]
      %v2729 = vld [vmem:[#allocation2 + $0x45] sm:$0xff]
      %v2730 = vld [vmem:[#allocation2 + $0x4d] sm:$0xff]
      %v2731 = vld [vmem:[#allocation2 + $0x55] sm:$0xff]
      %v2732 = vld [vmem:[#allocation2 + $0x5d] sm:$0xff]
      %v2733 = vld [vmem:[#allocation2 + $0x65] sm:$0xff]
      %v2734 = vld [vmem:[#allocation2 + $0x6d] sm:$0xff]
      %v2735 = vld [vmem:[#allocation2 + $0x75] sm:$0xff]
      %v2736 = vld [vmem:[#allocation2 + $0x7d] sm:$0xff]
      %v2737 = vld [vmem:[#allocation2 + $0x85] sm:$0xff]
      %v2738 = vld [vmem:[#allocation2 + $0x8d] sm:$0xff]
      %v2739 = vld [vmem:[#allocation2 + $0x95] sm:$0xff]
      %v2740 = vld [vmem:[#allocation2 + $0x9d] sm:$0xff]
      %v2741 = vld [vmem:[#allocation2 + $0xa5] sm:$0xff]
      %v2742 = vld [vmem:[#allocation2 + $0xad] sm:$0xff]
      %v2743 = vld [vmem:[#allocation2 + $0xb5] sm:$0xff]
      %v2744 = vld [vmem:[#allocation2 + $0xbd] sm:$0xff]
      %v2745 = vld [vmem:[#allocation2 + $0xc5] sm:$0xff]
      %v2746 = vld [vmem:[#allocation2 + $0xcd] sm:$0xff]
      %v2747 = vld [vmem:[#allocation2 + $0xd5] sm:$0xff]
      %v2748 = vld [vmem:[#allocation2 + $0xdd] sm:$0xff]
      %v2749 = vld [vmem:[#allocation2 + $0xe5] sm:$0xff]
      %v2750 = vld [vmem:[#allocation2 + $0xed] sm:$0xff]
      %v2751 = vld [vmem:[#allocation2 + $0xf5] sm:$0xff]
      %v2752 = vld [vmem:[#allocation2 + $0xfd] sm:$0xff]
      %v2753 = vpack.c.bf16 %v2724, %v2723
      %v2754 = vpack.c.bf16 %v2726, %v2725
      %v2755 = vpack.c.bf16 %v2728, %v2727
      %v2756 = vpack.c.bf16 %v2730, %v2729
      %v2757 = vpack.c.bf16 %v2732, %v2731
      %v2758 = vpack.c.bf16 %v2734, %v2733
      %v2759 = vpack.c.bf16 %v2736, %v2735
      %v2760 = vpack.c.bf16 %v2738, %v2737
      %v2761 = vpack.c.bf16 %v2740, %v2739
      %v2762 = vpack.c.bf16 %v2742, %v2741
      %v2763 = vpack.c.bf16 %v2744, %v2743
      %v2764 = vpack.c.bf16 %v2746, %v2745
      %v2765 = vpack.c.bf16 %v2748, %v2747
      %v2766 = vpack.c.bf16 %v2750, %v2749
      %v2767 = vpack.c.bf16 %v2752, %v2751
      %s2768 = scalar_lea.vmem %s1, 224
      %v2769 = vld [vmem:[%s2768] sm:$0xf]
      %v2770 = vld [vmem:[%s2768 + $0x4] sm:$0xf]
      %v2771 = vld [vmem:[%s2768 + $0x8] sm:$0xf]
      %v2772 = vld [vmem:[%s2768 + $0xc] sm:$0xf]
      %v2773 = vld [vmem:[%s2768 + $0x10] sm:$0xf]
      %v2774 = vld [vmem:[%s2768 + $0x14] sm:$0xf]
      %v2775 = vld [vmem:[%s2768 + $0x18] sm:$0xf]
      %v2776 = vld [vmem:[%s2768 + $0x1c] sm:$0xf]
      %v2785 = vunpack.c.l.b16 %v2769
      %v2786 = vunpack.c.l.b16 %v2770
      %v2787 = vunpack.c.l.b16 %v2771
      %v2788 = vunpack.c.l.b16 %v2772
      %v2789 = vunpack.c.l.b16 %v2773
      %v2790 = vunpack.c.l.b16 %v2774
      %v2791 = vunpack.c.l.b16 %v2775
      %v2792 = vunpack.c.l.b16 %v2776
      %v2793 = vpack.c.b16 %v2786, %v2785
      %v2794 = vpack.c.b16 %v2788, %v2787
      %v2795 = vpack.c.b16 %v2790, %v2789
      %v2796 = vpack.c.b16 %v2792, %v2791
      %v2802 = vsel %vm188, %v2753, 0
      %v2805 = vsel %vm188, %v2754, 0
      %v2808 = vsel %vm188, %v2755, 0
      %v2811 = vsel %vm188, %v2756, 0
      %v2814 = vsel %vm188, %v2757, 0
      %v2817 = vsel %vm188, %v2758, 0
      %v2820 = vsel %vm188, %v2759, 0
      %v2823 = vsel %vm188, %v2760, 0
      %v2826 = vsel %vm188, %v2761, 0
      %v2829 = vsel %vm188, %v2762, 0
      %v2832 = vsel %vm188, %v2763, 0
      %v2835 = vsel %vm188, %v2764, 0
      %v2838 = vsel %vm188, %v2765, 0
      %v2841 = vsel %vm188, %v2766, 0
      %v2844 = vsel %vm188, %v2767, 0
      %2846 = vmatprep.subr.bf16.mxu0 0
      %2847 = vmatpush1.bf16.msra.mxu0 %v2793
      %2848 = vmatprep.subr.bf16.mxu0 0
      %2849 = vmatpush1.bf16.msra.mxu0 %v2794
      %2850 = vmatprep.subr.bf16.mxu0 0
      %2851 = vmatpush1.bf16.msra.mxu0 %v2795
      %2852 = vmatprep.subr.bf16.mxu0 0
      %2853 = vmatpush1.bf16.msra.mxu0 %v2796
      %2854 = vmatprep.subr.bf16.mxu0 0
      %2855 = vmatpush1.bf16.msra.mxu0 0
      %2856 = vmatprep.subr.bf16.mxu0 0
      %2857 = vmatpush1.bf16.msra.mxu0 0
      %2858 = vmatprep.subr.bf16.mxu0 0
      %2859 = vmatpush1.bf16.msra.mxu0 0
      %2860 = vmatprep.subr.bf16.mxu0 0
      %2861 = vmatpush1.bf16.msra.mxu0 0
      %2862 = vmatprep.subr.bf16.mxu0 0
      %2863 = vmatpush1.bf16.msra.mxu0 0
      %2864 = vmatprep.subr.bf16.mxu0 0
      %2865 = vmatpush1.bf16.msra.mxu0 0
      %2866 = vmatprep.subr.bf16.mxu0 0
      %2867 = vmatpush1.bf16.msra.mxu0 0
      %2868 = vmatprep.subr.bf16.mxu0 0
      %2869 = vmatpush1.bf16.msra.mxu0 0
      %2870 = vmatprep.subr.bf16.mxu0 0
      %2871 = vmatpush1.bf16.msra.mxu0 0
      %2872 = vmatprep.subr.bf16.mxu0 0
      %2873 = vmatpush1.bf16.msra.mxu0 0
      %2874 = vmatprep.subr.bf16.mxu0 0
      %2875 = vmatpush1.bf16.msra.mxu0 0
      %2876 = vmatprep.subr.bf16.mxu0 0
      %2877 = vmatpush1.bf16.msra.mxu0 0
      %2878 = vmatprep.mubr.bf16.mxu0 0
      %2879 = vmatmul.mubr.bf16.gmra.mrb[0].mxu0 %v2802
      %v2880 = vpop.f32.mrb[0].mxu0
      %v2881 = vadd.f32 0.0, %v2880
      %v2882 = vpop.f32.mrb[0].mxu0
      %v2883 = vpop.f32.mrb[0].mxu0
      %v2884 = vadd.f32 0.0, %v2883
      %v2885 = vpop.f32.mrb[0].mxu0
      %2886 = vmatprep.mubr.bf16.mxu0 0
      %2887 = vmatmul.mubr.bf16.gmra.mrb[0].mxu0 %v2805
      %v2888 = vpop.f32.mrb[0].mxu0
      %v2889 = vadd.f32 0.0, %v2888
      %v2890 = vpop.f32.mrb[0].mxu0
      %v2891 = vpop.f32.mrb[0].mxu0
      %v2892 = vadd.f32 0.0, %v2891
      %v2893 = vpop.f32.mrb[0].mxu0
      %2894 = vmatprep.mubr.bf16.mxu0 0
      %2895 = vmatmul.mubr.bf16.gmra.mrb[0].mxu0 %v2808
      %v2896 = vpop.f32.mrb[0].mxu0
      %v2897 = vadd.f32 0.0, %v2896
      %v2898 = vpop.f32.mrb[0].mxu0
      %v2899 = vpop.f32.mrb[0].mxu0
      %v2900 = vadd.f32 0.0, %v2899
      %v2901 = vpop.f32.mrb[0].mxu0
      %2902 = vmatprep.mubr.bf16.mxu0 0
      %2903 = vmatmul.mubr.bf16.gmra.mrb[0].mxu0 %v2811
      %v2904 = vpop.f32.mrb[0].mxu0
      %v2905 = vadd.f32 0.0, %v2904
      %v2906 = vpop.f32.mrb[0].mxu0
      %v2907 = vpop.f32.mrb[0].mxu0
      %v2908 = vadd.f32 0.0, %v2907
      %v2909 = vpop.f32.mrb[0].mxu0
      %2910 = vmatprep.mubr.bf16.mxu0 0
      %2911 = vmatmul.mubr.bf16.gmra.mrb[0].mxu0 %v2814
      %v2912 = vpop.f32.mrb[0].mxu0
      %v2913 = vadd.f32 0.0, %v2912
      %v2914 = vpop.f32.mrb[0].mxu0
      %v2915 = vpop.f32.mrb[0].mxu0
      %v2916 = vadd.f32 0.0, %v2915
      %v2917 = vpop.f32.mrb[0].mxu0
      %2918 = vmatprep.mubr.bf16.mxu0 0
      %2919 = vmatmul.mubr.bf16.gmra.mrb[0].mxu0 %v2817
      %v2920 = vpop.f32.mrb[0].mxu0
      %v2921 = vadd.f32 0.0, %v2920
      %v2922 = vpop.f32.mrb[0].mxu0
      %v2923 = vpop.f32.mrb[0].mxu0
      %v2924 = vadd.f32 0.0, %v2923
      %v2925 = vpop.f32.mrb[0].mxu0
      %2926 = vmatprep.mubr.bf16.mxu0 0
      %2927 = vmatmul.mubr.bf16.gmra.mrb[0].mxu0 %v2820
      %v2928 = vpop.f32.mrb[0].mxu0
      %v2929 = vadd.f32 0.0, %v2928
      %v2930 = vpop.f32.mrb[0].mxu0
      %v2931 = vpop.f32.mrb[0].mxu0
      %v2932 = vadd.f32 0.0, %v2931
      %v2933 = vpop.f32.mrb[0].mxu0
      %2934 = vmatprep.mubr.bf16.mxu0 0
      %2935 = vmatmul.mubr.bf16.gmra.mrb[0].mxu0 %v2823
      %v2936 = vpop.f32.mrb[0].mxu0
      %v2937 = vadd.f32 0.0, %v2936
      %v2938 = vpop.f32.mrb[0].mxu0
      %v2939 = vpop.f32.mrb[0].mxu0
      %v2940 = vadd.f32 0.0, %v2939
      %v2941 = vpop.f32.mrb[0].mxu0
      %2942 = vmatprep.mubr.bf16.mxu0 0
      %2943 = vmatmul.mubr.bf16.gmra.mrb[0].mxu0 %v2826
      %v2944 = vpop.f32.mrb[0].mxu0
      %v2945 = vadd.f32 0.0, %v2944
      %v2946 = vpop.f32.mrb[0].mxu0
      %v2947 = vpop.f32.mrb[0].mxu0
      %v2948 = vadd.f32 0.0, %v2947
      %v2949 = vpop.f32.mrb[0].mxu0
      %2950 = vmatprep.mubr.bf16.mxu0 0
      %2951 = vmatmul.mubr.bf16.gmra.mrb[0].mxu0 %v2829
      %v2952 = vpop.f32.mrb[0].mxu0
      %v2953 = vadd.f32 0.0, %v2952
      %v2954 = vpop.f32.mrb[0].mxu0
      %v2955 = vpop.f32.mrb[0].mxu0
      %v2956 = vadd.f32 0.0, %v2955
      %v2957 = vpop.f32.mrb[0].mxu0
      %2958 = vmatprep.mubr.bf16.mxu0 0
      %2959 = vmatmul.mubr.bf16.gmra.mrb[0].mxu0 %v2832
      %v2960 = vpop.f32.mrb[0].mxu0
      %v2961 = vadd.f32 0.0, %v2960
      %v2962 = vpop.f32.mrb[0].mxu0
      %v2963 = vpop.f32.mrb[0].mxu0
      %v2964 = vadd.f32 0.0, %v2963
      %v2965 = vpop.f32.mrb[0].mxu0
      %2966 = vmatprep.mubr.bf16.mxu0 0
      %2967 = vmatmul.mubr.bf16.gmra.mrb[0].mxu0 %v2835
      %v2968 = vpop.f32.mrb[0].mxu0
      %v2969 = vadd.f32 0.0, %v2968
      %v2970 = vpop.f32.mrb[0].mxu0
      %v2971 = vpop.f32.mrb[0].mxu0
      %v2972 = vadd.f32 0.0, %v2971
      %v2973 = vpop.f32.mrb[0].mxu0
      %2974 = vmatprep.mubr.bf16.mxu0 0
      %2975 = vmatmul.mubr.bf16.gmra.mrb[0].mxu0 %v2838
      %v2976 = vpop.f32.mrb[0].mxu0
      %v2977 = vadd.f32 0.0, %v2976
      %v2978 = vpop.f32.mrb[0].mxu0
      %v2979 = vpop.f32.mrb[0].mxu0
      %v2980 = vadd.f32 0.0, %v2979
      %v2981 = vpop.f32.mrb[0].mxu0
      %2982 = vmatprep.mubr.bf16.mxu0 0
      %2983 = vmatmul.mubr.bf16.gmra.mrb[0].mxu0 %v2841
      %v2984 = vpop.f32.mrb[0].mxu0
      %v2985 = vadd.f32 0.0, %v2984
      %v2986 = vpop.f32.mrb[0].mxu0
      %v2987 = vpop.f32.mrb[0].mxu0
      %v2988 = vadd.f32 0.0, %v2987
      %v2989 = vpop.f32.mrb[0].mxu0
      %2990 = vmatprep.mubr.bf16.mxu0 0
      %2991 = vmatmul.mubr.bf16.gmra.mrb[0].mxu0 %v2844
      %v2992 = vpop.f32.mrb[0].mxu0
      %v2993 = vadd.f32 0.0, %v2992
      %v2994 = vpop.f32.mrb[0].mxu0
      %v2995 = vpop.f32.mrb[0].mxu0
      %v2996 = vadd.f32 0.0, %v2995
      %v2997 = vpop.f32.mrb[0].mxu0
      %2998 = vdwg.mxu0
      %v2999 = vld [vmem:[%s150] sm:$0xff]
      %v3000 = vld [vmem:[%s150 + $0x8] sm:$0xff]
      %v3001 = vld [vmem:[%s150 + $0x10] sm:$0xff]
      %v3002 = vld [vmem:[%s150 + $0x18] sm:$0xff]
      %v3003 = vld [vmem:[%s150 + $0x20] sm:$0xff]
      %v3004 = vld [vmem:[%s150 + $0x28] sm:$0xff]
      %v3005 = vld [vmem:[%s150 + $0x30] sm:$0xff]
      %v3006 = vld [vmem:[%s150 + $0x38] sm:$0xff]
      %v3007 = vld [vmem:[%s150 + $0x40] sm:$0xff]
      %v3008 = vld [vmem:[%s150 + $0x48] sm:$0xff]
      %v3009 = vld [vmem:[%s150 + $0x50] sm:$0xff]
      %v3010 = vld [vmem:[%s150 + $0x58] sm:$0xff]
      %v3011 = vld [vmem:[%s150 + $0x60] sm:$0xff]
      %v3012 = vld [vmem:[%s150 + $0x68] sm:$0xff]
      %v3013 = vld [vmem:[%s150 + $0x70] sm:$0xff]
      %v3014 = vld [vmem:[%s150 + $0x78] sm:$0xff]
      %v3015 = vld [vmem:[%s150 + $0x80] sm:$0xff]
      %v3016 = vld [vmem:[%s150 + $0x88] sm:$0xff]
      %v3017 = vld [vmem:[%s150 + $0x90] sm:$0xff]
      %v3018 = vld [vmem:[%s150 + $0x98] sm:$0xff]
      %v3019 = vld [vmem:[%s150 + $0xa0] sm:$0xff]
      %v3020 = vld [vmem:[%s150 + $0xa8] sm:$0xff]
      %v3021 = vld [vmem:[%s150 + $0xb0] sm:$0xff]
      %v3022 = vld [vmem:[%s150 + $0xb8] sm:$0xff]
      %v3023 = vld [vmem:[%s150 + $0xc0] sm:$0xff]
      %v3024 = vld [vmem:[%s150 + $0xc8] sm:$0xff]
      %v3025 = vld [vmem:[%s150 + $0xd0] sm:$0xff]
      %v3026 = vld [vmem:[%s150 + $0xd8] sm:$0xff]
      %v3027 = vld [vmem:[%s150 + $0xe0] sm:$0xff]
      %v3028 = vld [vmem:[%s150 + $0xe8] sm:$0xff]
      %v3029 = vadd.f32 %v2999, %v2881
      %v3030 = vadd.f32 %v3000, %v2884
      %v3031 = vadd.f32 %v3001, %v2889
      %v3032 = vadd.f32 %v3002, %v2892
      %v3033 = vadd.f32 %v3003, %v2897
      %v3034 = vadd.f32 %v3004, %v2900
      %v3035 = vadd.f32 %v3005, %v2905
      %v3036 = vadd.f32 %v3006, %v2908
      %v3037 = vadd.f32 %v3007, %v2913
      %v3038 = vadd.f32 %v3008, %v2916
      %v3039 = vadd.f32 %v3009, %v2921
      %v3040 = vadd.f32 %v3010, %v2924
      %v3041 = vadd.f32 %v3011, %v2929
      %v3042 = vadd.f32 %v3012, %v2932
      %v3043 = vadd.f32 %v3013, %v2937
      %v3044 = vadd.f32 %v3014, %v2940
      %v3045 = vadd.f32 %v3015, %v2945
      %v3046 = vadd.f32 %v3016, %v2948
      %v3047 = vadd.f32 %v3017, %v2953
      %v3048 = vadd.f32 %v3018, %v2956
      %v3049 = vadd.f32 %v3019, %v2961
      %v3050 = vadd.f32 %v3020, %v2964
      %v3051 = vadd.f32 %v3021, %v2969
      %v3052 = vadd.f32 %v3022, %v2972
      %v3053 = vadd.f32 %v3023, %v2977
      %v3054 = vadd.f32 %v3024, %v2980
      %v3055 = vadd.f32 %v3025, %v2985
      %v3056 = vadd.f32 %v3026, %v2988
      %v3057 = vadd.f32 %v3027, %v2993
      %v3058 = vadd.f32 %v3028, %v2996
      %3059 = vst [vmem:[%s150] sm:$0xff] %v3029
      %3060 = vst [vmem:[%s150 + $0x8] sm:$0xff] %v3030
      %3061 = vst [vmem:[%s150 + $0x10] sm:$0xff] %v3031
      %3062 = vst [vmem:[%s150 + $0x18] sm:$0xff] %v3032
      %3063 = vst [vmem:[%s150 + $0x20] sm:$0xff] %v3033
      %3064 = vst [vmem:[%s150 + $0x28] sm:$0xff] %v3034
      %3065 = vst [vmem:[%s150 + $0x30] sm:$0xff] %v3035
      %3066 = vst [vmem:[%s150 + $0x38] sm:$0xff] %v3036
      %3067 = vst [vmem:[%s150 + $0x40] sm:$0xff] %v3037
      %3068 = vst [vmem:[%s150 + $0x48] sm:$0xff] %v3038
      %3069 = vst [vmem:[%s150 + $0x50] sm:$0xff] %v3039
      %3070 = vst [vmem:[%s150 + $0x58] sm:$0xff] %v3040
      %3071 = vst [vmem:[%s150 + $0x60] sm:$0xff] %v3041
      %3072 = vst [vmem:[%s150 + $0x68] sm:$0xff] %v3042
      %3073 = vst [vmem:[%s150 + $0x70] sm:$0xff] %v3043
      %3074 = vst [vmem:[%s150 + $0x78] sm:$0xff] %v3044
      %3075 = vst [vmem:[%s150 + $0x80] sm:$0xff] %v3045
      %3076 = vst [vmem:[%s150 + $0x88] sm:$0xff] %v3046
      %3077 = vst [vmem:[%s150 + $0x90] sm:$0xff] %v3047
      %3078 = vst [vmem:[%s150 + $0x98] sm:$0xff] %v3048
      %3079 = vst [vmem:[%s150 + $0xa0] sm:$0xff] %v3049
      %3080 = vst [vmem:[%s150 + $0xa8] sm:$0xff] %v3050
      %3081 = vst [vmem:[%s150 + $0xb0] sm:$0xff] %v3051
      %3082 = vst [vmem:[%s150 + $0xb8] sm:$0xff] %v3052
      %3083 = vst [vmem:[%s150 + $0xc0] sm:$0xff] %v3053
      %3084 = vst [vmem:[%s150 + $0xc8] sm:$0xff] %v3054
      %3085 = vst [vmem:[%s150 + $0xd0] sm:$0xff] %v3055
      %3086 = vst [vmem:[%s150 + $0xd8] sm:$0xff] %v3056
      %3087 = vst [vmem:[%s150 + $0xe0] sm:$0xff] %v3057
      %3088 = vst [vmem:[%s150 + $0xe8] sm:$0xff] %v3058
      %v3089 = vld [vmem:[#allocation2 + $0x16] sm:$0xff]
      %v3090 = vld [vmem:[#allocation2 + $0x1e] sm:$0xff]
      %v3091 = vld [vmem:[#allocation2 + $0x26] sm:$0xff]
      %v3092 = vld [vmem:[#allocation2 + $0x2e] sm:$0xff]
      %v3093 = vld [vmem:[#allocation2 + $0x36] sm:$0xff]
      %v3094 = vld [vmem:[#allocation2 + $0x3e] sm:$0xff]
      %v3095 = vld [vmem:[#allocation2 + $0x46] sm:$0xff]
      %v3096 = vld [vmem:[#allocation2 + $0x4e] sm:$0xff]
      %v3097 = vld [vmem:[#allocation2 + $0x56] sm:$0xff]
      %v3098 = vld [vmem:[#allocation2 + $0x5e] sm:$0xff]
      %v3099 = vld [vmem:[#allocation2 + $0x66] sm:$0xff]
      %v3100 = vld [vmem:[#allocation2 + $0x6e] sm:$0xff]
      %v3101 = vld [vmem:[#allocation2 + $0x76] sm:$0xff]
      %v3102 = vld [vmem:[#allocation2 + $0x7e] sm:$0xff]
      %v3103 = vld [vmem:[#allocation2 + $0x86] sm:$0xff]
      %v3104 = vld [vmem:[#allocation2 + $0x8e] sm:$0xff]
      %v3105 = vld [vmem:[#allocation2 + $0x96] sm:$0xff]
      %v3106 = vld [vmem:[#allocation2 + $0x9e] sm:$0xff]
      %v3107 = vld [vmem:[#allocation2 + $0xa6] sm:$0xff]
      %v3108 = vld [vmem:[#allocation2 + $0xae] sm:$0xff]
      %v3109 = vld [vmem:[#allocation2 + $0xb6] sm:$0xff]
      %v3110 = vld [vmem:[#allocation2 + $0xbe] sm:$0xff]
      %v3111 = vld [vmem:[#allocation2 + $0xc6] sm:$0xff]
      %v3112 = vld [vmem:[#allocation2 + $0xce] sm:$0xff]
      %v3113 = vld [vmem:[#allocation2 + $0xd6] sm:$0xff]
      %v3114 = vld [vmem:[#allocation2 + $0xde] sm:$0xff]
      %v3115 = vld [vmem:[#allocation2 + $0xe6] sm:$0xff]
      %v3116 = vld [vmem:[#allocation2 + $0xee] sm:$0xff]
      %v3117 = vld [vmem:[#allocation2 + $0xf6] sm:$0xff]
      %v3118 = vld [vmem:[#allocation2 + $0xfe] sm:$0xff]
      %v3119 = vpack.c.bf16 %v3090, %v3089
      %v3120 = vpack.c.bf16 %v3092, %v3091
      %v3121 = vpack.c.bf16 %v3094, %v3093
      %v3122 = vpack.c.bf16 %v3096, %v3095
      %v3123 = vpack.c.bf16 %v3098, %v3097
      %v3124 = vpack.c.bf16 %v3100, %v3099
      %v3125 = vpack.c.bf16 %v3102, %v3101
      %v3126 = vpack.c.bf16 %v3104, %v3103
      %v3127 = vpack.c.bf16 %v3106, %v3105
      %v3128 = vpack.c.bf16 %v3108, %v3107
      %v3129 = vpack.c.bf16 %v3110, %v3109
      %v3130 = vpack.c.bf16 %v3112, %v3111
      %v3131 = vpack.c.bf16 %v3114, %v3113
      %v3132 = vpack.c.bf16 %v3116, %v3115
      %v3133 = vpack.c.bf16 %v3118, %v3117
      %s3134 = scalar_lea.vmem %s1, 256
      %v3135 = vld [vmem:[%s3134] sm:$0xf]
      %v3136 = vld [vmem:[%s3134 + $0x4] sm:$0xf]
      %v3137 = vld [vmem:[%s3134 + $0x8] sm:$0xf]
      %v3138 = vld [vmem:[%s3134 + $0xc] sm:$0xf]
      %v3139 = vld [vmem:[%s3134 + $0x10] sm:$0xf]
      %v3140 = vld [vmem:[%s3134 + $0x14] sm:$0xf]
      %v3141 = vld [vmem:[%s3134 + $0x18] sm:$0xf]
      %v3142 = vld [vmem:[%s3134 + $0x1c] sm:$0xf]
      %v3151 = vunpack.c.l.b16 %v3135
      %v3152 = vunpack.c.l.b16 %v3136
      %v3153 = vunpack.c.l.b16 %v3137
      %v3154 = vunpack.c.l.b16 %v3138
      %v3155 = vunpack.c.l.b16 %v3139
      %v3156 = vunpack.c.l.b16 %v3140
      %v3157 = vunpack.c.l.b16 %v3141
      %v3158 = vunpack.c.l.b16 %v3142
      %v3159 = vpack.c.b16 %v3152, %v3151
      %v3160 = vpack.c.b16 %v3154, %v3153
      %v3161 = vpack.c.b16 %v3156, %v3155
      %v3162 = vpack.c.b16 %v3158, %v3157
      %v3168 = vsel %vm188, %v3119, 0
      %v3171 = vsel %vm188, %v3120, 0
      %v3174 = vsel %vm188, %v3121, 0
      %v3177 = vsel %vm188, %v3122, 0
      %v3180 = vsel %vm188, %v3123, 0
      %v3183 = vsel %vm188, %v3124, 0
      %v3186 = vsel %vm188, %v3125, 0
      %v3189 = vsel %vm188, %v3126, 0
      %v3192 = vsel %vm188, %v3127, 0
      %v3195 = vsel %vm188, %v3128, 0
      %v3198 = vsel %vm188, %v3129, 0
      %v3201 = vsel %vm188, %v3130, 0
      %v3204 = vsel %vm188, %v3131, 0
      %v3207 = vsel %vm188, %v3132, 0
      %v3210 = vsel %vm188, %v3133, 0
      %3212 = vmatprep.subr.bf16.mxu0 0
      %3213 = vmatpush1.bf16.msra.mxu0 %v3159
      %3214 = vmatprep.subr.bf16.mxu0 0
      %3215 = vmatpush1.bf16.msra.mxu0 %v3160
      %3216 = vmatprep.subr.bf16.mxu0 0
      %3217 = vmatpush1.bf16.msra.mxu0 %v3161
      %3218 = vmatprep.subr.bf16.mxu0 0
      %3219 = vmatpush1.bf16.msra.mxu0 %v3162
      %3220 = vmatprep.subr.bf16.mxu0 0
      %3221 = vmatpush1.bf16.msra.mxu0 0
      %3222 = vmatprep.subr.bf16.mxu0 0
      %3223 = vmatpush1.bf16.msra.mxu0 0
      %3224 = vmatprep.subr.bf16.mxu0 0
      %3225 = vmatpush1.bf16.msra.mxu0 0
      %3226 = vmatprep.subr.bf16.mxu0 0
      %3227 = vmatpush1.bf16.msra.mxu0 0
      %3228 = vmatprep.subr.bf16.mxu0 0
      %3229 = vmatpush1.bf16.msra.mxu0 0
      %3230 = vmatprep.subr.bf16.mxu0 0
      %3231 = vmatpush1.bf16.msra.mxu0 0
      %3232 = vmatprep.subr.bf16.mxu0 0
      %3233 = vmatpush1.bf16.msra.mxu0 0
      %3234 = vmatprep.subr.bf16.mxu0 0
      %3235 = vmatpush1.bf16.msra.mxu0 0
      %3236 = vmatprep.subr.bf16.mxu0 0
      %3237 = vmatpush1.bf16.msra.mxu0 0
      %3238 = vmatprep.subr.bf16.mxu0 0
      %3239 = vmatpush1.bf16.msra.mxu0 0
      %3240 = vmatprep.subr.bf16.mxu0 0
      %3241 = vmatpush1.bf16.msra.mxu0 0
      %3242 = vmatprep.subr.bf16.mxu0 0
      %3243 = vmatpush1.bf16.msra.mxu0 0
      %3244 = vmatprep.mubr.bf16.mxu0 0
      %3245 = vmatmul.mubr.bf16.gmra.mrb[0].mxu0 %v3168
      %v3246 = vpop.f32.mrb[0].mxu0
      %v3247 = vadd.f32 0.0, %v3246
      %v3248 = vpop.f32.mrb[0].mxu0
      %v3249 = vpop.f32.mrb[0].mxu0
      %v3250 = vadd.f32 0.0, %v3249
      %v3251 = vpop.f32.mrb[0].mxu0
      %3252 = vmatprep.mubr.bf16.mxu0 0
      %3253 = vmatmul.mubr.bf16.gmra.mrb[0].mxu0 %v3171
      %v3254 = vpop.f32.mrb[0].mxu0
      %v3255 = vadd.f32 0.0, %v3254
      %v3256 = vpop.f32.mrb[0].mxu0
      %v3257 = vpop.f32.mrb[0].mxu0
      %v3258 = vadd.f32 0.0, %v3257
      %v3259 = vpop.f32.mrb[0].mxu0
      %3260 = vmatprep.mubr.bf16.mxu0 0
      %3261 = vmatmul.mubr.bf16.gmra.mrb[0].mxu0 %v3174
      %v3262 = vpop.f32.mrb[0].mxu0
      %v3263 = vadd.f32 0.0, %v3262
      %v3264 = vpop.f32.mrb[0].mxu0
      %v3265 = vpop.f32.mrb[0].mxu0
      %v3266 = vadd.f32 0.0, %v3265
      %v3267 = vpop.f32.mrb[0].mxu0
      %3268 = vmatprep.mubr.bf16.mxu0 0
      %3269 = vmatmul.mubr.bf16.gmra.mrb[0].mxu0 %v3177
      %v3270 = vpop.f32.mrb[0].mxu0
      %v3271 = vadd.f32 0.0, %v3270
      %v3272 = vpop.f32.mrb[0].mxu0
      %v3273 = vpop.f32.mrb[0].mxu0
      %v3274 = vadd.f32 0.0, %v3273
      %v3275 = vpop.f32.mrb[0].mxu0
      %3276 = vmatprep.mubr.bf16.mxu0 0
      %3277 = vmatmul.mubr.bf16.gmra.mrb[0].mxu0 %v3180
      %v3278 = vpop.f32.mrb[0].mxu0
      %v3279 = vadd.f32 0.0, %v3278
      %v3280 = vpop.f32.mrb[0].mxu0
      %v3281 = vpop.f32.mrb[0].mxu0
      %v3282 = vadd.f32 0.0, %v3281
      %v3283 = vpop.f32.mrb[0].mxu0
      %3284 = vmatprep.mubr.bf16.mxu0 0
      %3285 = vmatmul.mubr.bf16.gmra.mrb[0].mxu0 %v3183
      %v3286 = vpop.f32.mrb[0].mxu0
      %v3287 = vadd.f32 0.0, %v3286
      %v3288 = vpop.f32.mrb[0].mxu0
      %v3289 = vpop.f32.mrb[0].mxu0
      %v3290 = vadd.f32 0.0, %v3289
      %v3291 = vpop.f32.mrb[0].mxu0
      %3292 = vmatprep.mubr.bf16.mxu0 0
      %3293 = vmatmul.mubr.bf16.gmra.mrb[0].mxu0 %v3186
      %v3294 = vpop.f32.mrb[0].mxu0
      %v3295 = vadd.f32 0.0, %v3294
      %v3296 = vpop.f32.mrb[0].mxu0
      %v3297 = vpop.f32.mrb[0].mxu0
      %v3298 = vadd.f32 0.0, %v3297
      %v3299 = vpop.f32.mrb[0].mxu0
      %3300 = vmatprep.mubr.bf16.mxu0 0
      %3301 = vmatmul.mubr.bf16.gmra.mrb[0].mxu0 %v3189
      %v3302 = vpop.f32.mrb[0].mxu0
      %v3303 = vadd.f32 0.0, %v3302
      %v3304 = vpop.f32.mrb[0].mxu0
      %v3305 = vpop.f32.mrb[0].mxu0
      %v3306 = vadd.f32 0.0, %v3305
      %v3307 = vpop.f32.mrb[0].mxu0
      %3308 = vmatprep.mubr.bf16.mxu0 0
      %3309 = vmatmul.mubr.bf16.gmra.mrb[0].mxu0 %v3192
      %v3310 = vpop.f32.mrb[0].mxu0
      %v3311 = vadd.f32 0.0, %v3310
      %v3312 = vpop.f32.mrb[0].mxu0
      %v3313 = vpop.f32.mrb[0].mxu0
      %v3314 = vadd.f32 0.0, %v3313
      %v3315 = vpop.f32.mrb[0].mxu0
      %3316 = vmatprep.mubr.bf16.mxu0 0
      %3317 = vmatmul.mubr.bf16.gmra.mrb[0].mxu0 %v3195
      %v3318 = vpop.f32.mrb[0].mxu0
      %v3319 = vadd.f32 0.0, %v3318
      %v3320 = vpop.f32.mrb[0].mxu0
      %v3321 = vpop.f32.mrb[0].mxu0
      %v3322 = vadd.f32 0.0, %v3321
      %v3323 = vpop.f32.mrb[0].mxu0
      %3324 = vmatprep.mubr.bf16.mxu0 0
      %3325 = vmatmul.mubr.bf16.gmra.mrb[0].mxu0 %v3198
      %v3326 = vpop.f32.mrb[0].mxu0
      %v3327 = vadd.f32 0.0, %v3326
      %v3328 = vpop.f32.mrb[0].mxu0
      %v3329 = vpop.f32.mrb[0].mxu0
      %v3330 = vadd.f32 0.0, %v3329
      %v3331 = vpop.f32.mrb[0].mxu0
      %3332 = vmatprep.mubr.bf16.mxu0 0
      %3333 = vmatmul.mubr.bf16.gmra.mrb[0].mxu0 %v3201
      %v3334 = vpop.f32.mrb[0].mxu0
      %v3335 = vadd.f32 0.0, %v3334
      %v3336 = vpop.f32.mrb[0].mxu0
      %v3337 = vpop.f32.mrb[0].mxu0
      %v3338 = vadd.f32 0.0, %v3337
      %v3339 = vpop.f32.mrb[0].mxu0
      %3340 = vmatprep.mubr.bf16.mxu0 0
      %3341 = vmatmul.mubr.bf16.gmra.mrb[0].mxu0 %v3204
      %v3342 = vpop.f32.mrb[0].mxu0
      %v3343 = vadd.f32 0.0, %v3342
      %v3344 = vpop.f32.mrb[0].mxu0
      %v3345 = vpop.f32.mrb[0].mxu0
      %v3346 = vadd.f32 0.0, %v3345
      %v3347 = vpop.f32.mrb[0].mxu0
      %3348 = vmatprep.mubr.bf16.mxu0 0
      %3349 = vmatmul.mubr.bf16.gmra.mrb[0].mxu0 %v3207
      %v3350 = vpop.f32.mrb[0].mxu0
      %v3351 = vadd.f32 0.0, %v3350
      %v3352 = vpop.f32.mrb[0].mxu0
      %v3353 = vpop.f32.mrb[0].mxu0
      %v3354 = vadd.f32 0.0, %v3353
      %v3355 = vpop.f32.mrb[0].mxu0
      %3356 = vmatprep.mubr.bf16.mxu0 0
      %3357 = vmatmul.mubr.bf16.gmra.mrb[0].mxu0 %v3210
      %v3358 = vpop.f32.mrb[0].mxu0
      %v3359 = vadd.f32 0.0, %v3358
      %v3360 = vpop.f32.mrb[0].mxu0
      %v3361 = vpop.f32.mrb[0].mxu0
      %v3362 = vadd.f32 0.0, %v3361
      %v3363 = vpop.f32.mrb[0].mxu0
      %3364 = vdwg.mxu0
      %v3365 = vld [vmem:[%s150] sm:$0xff]
      %v3366 = vld [vmem:[%s150 + $0x8] sm:$0xff]
      %v3367 = vld [vmem:[%s150 + $0x10] sm:$0xff]
      %v3368 = vld [vmem:[%s150 + $0x18] sm:$0xff]
      %v3369 = vld [vmem:[%s150 + $0x20] sm:$0xff]
      %v3370 = vld [vmem:[%s150 + $0x28] sm:$0xff]
      %v3371 = vld [vmem:[%s150 + $0x30] sm:$0xff]
      %v3372 = vld [vmem:[%s150 + $0x38] sm:$0xff]
      %v3373 = vld [vmem:[%s150 + $0x40] sm:$0xff]
      %v3374 = vld [vmem:[%s150 + $0x48] sm:$0xff]
      %v3375 = vld [vmem:[%s150 + $0x50] sm:$0xff]
      %v3376 = vld [vmem:[%s150 + $0x58] sm:$0xff]
      %v3377 = vld [vmem:[%s150 + $0x60] sm:$0xff]
      %v3378 = vld [vmem:[%s150 + $0x68] sm:$0xff]
      %v3379 = vld [vmem:[%s150 + $0x70] sm:$0xff]
      %v3380 = vld [vmem:[%s150 + $0x78] sm:$0xff]
      %v3381 = vld [vmem:[%s150 + $0x80] sm:$0xff]
      %v3382 = vld [vmem:[%s150 + $0x88] sm:$0xff]
      %v3383 = vld [vmem:[%s150 + $0x90] sm:$0xff]
      %v3384 = vld [vmem:[%s150 + $0x98] sm:$0xff]
      %v3385 = vld [vmem:[%s150 + $0xa0] sm:$0xff]
      %v3386 = vld [vmem:[%s150 + $0xa8] sm:$0xff]
      %v3387 = vld [vmem:[%s150 + $0xb0] sm:$0xff]
      %v3388 = vld [vmem:[%s150 + $0xb8] sm:$0xff]
      %v3389 = vld [vmem:[%s150 + $0xc0] sm:$0xff]
      %v3390 = vld [vmem:[%s150 + $0xc8] sm:$0xff]
      %v3391 = vld [vmem:[%s150 + $0xd0] sm:$0xff]
      %v3392 = vld [vmem:[%s150 + $0xd8] sm:$0xff]
      %v3393 = vld [vmem:[%s150 + $0xe0] sm:$0xff]
      %v3394 = vld [vmem:[%s150 + $0xe8] sm:$0xff]
      %v3395 = vadd.f32 %v3365, %v3247
      %v3396 = vadd.f32 %v3366, %v3250
      %v3397 = vadd.f32 %v3367, %v3255
      %v3398 = vadd.f32 %v3368, %v3258
      %v3399 = vadd.f32 %v3369, %v3263
      %v3400 = vadd.f32 %v3370, %v3266
      %v3401 = vadd.f32 %v3371, %v3271
      %v3402 = vadd.f32 %v3372, %v3274
      %v3403 = vadd.f32 %v3373, %v3279
      %v3404 = vadd.f32 %v3374, %v3282
      %v3405 = vadd.f32 %v3375, %v3287
      %v3406 = vadd.f32 %v3376, %v3290
      %v3407 = vadd.f32 %v3377, %v3295
      %v3408 = vadd.f32 %v3378, %v3298
      %v3409 = vadd.f32 %v3379, %v3303
      %v3410 = vadd.f32 %v3380, %v3306
      %v3411 = vadd.f32 %v3381, %v3311
      %v3412 = vadd.f32 %v3382, %v3314
      %v3413 = vadd.f32 %v3383, %v3319
      %v3414 = vadd.f32 %v3384, %v3322
      %v3415 = vadd.f32 %v3385, %v3327
      %v3416 = vadd.f32 %v3386, %v3330
      %v3417 = vadd.f32 %v3387, %v3335
      %v3418 = vadd.f32 %v3388, %v3338
      %v3419 = vadd.f32 %v3389, %v3343
      %v3420 = vadd.f32 %v3390, %v3346
      %v3421 = vadd.f32 %v3391, %v3351
      %v3422 = vadd.f32 %v3392, %v3354
      %v3423 = vadd.f32 %v3393, %v3359
      %v3424 = vadd.f32 %v3394, %v3362
      %3425 = vst [vmem:[%s150] sm:$0xff] %v3395
      %3426 = vst [vmem:[%s150 + $0x8] sm:$0xff] %v3396
      %3427 = vst [vmem:[%s150 + $0x10] sm:$0xff] %v3397
      %3428 = vst [vmem:[%s150 + $0x18] sm:$0xff] %v3398
      %3429 = vst [vmem:[%s150 + $0x20] sm:$0xff] %v3399
      %3430 = vst [vmem:[%s150 + $0x28] sm:$0xff] %v3400
      %3431 = vst [vmem:[%s150 + $0x30] sm:$0xff] %v3401
      %3432 = vst [vmem:[%s150 + $0x38] sm:$0xff] %v3402
      %3433 = vst [vmem:[%s150 + $0x40] sm:$0xff] %v3403
      %3434 = vst [vmem:[%s150 + $0x48] sm:$0xff] %v3404
      %3435 = vst [vmem:[%s150 + $0x50] sm:$0xff] %v3405
      %3436 = vst [vmem:[%s150 + $0x58] sm:$0xff] %v3406
      %3437 = vst [vmem:[%s150 + $0x60] sm:$0xff] %v3407
      %3438 = vst [vmem:[%s150 + $0x68] sm:$0xff] %v3408
      %3439 = vst [vmem:[%s150 + $0x70] sm:$0xff] %v3409
      %3440 = vst [vmem:[%s150 + $0x78] sm:$0xff] %v3410
      %3441 = vst [vmem:[%s150 + $0x80] sm:$0xff] %v3411
      %3442 = vst [vmem:[%s150 + $0x88] sm:$0xff] %v3412
      %3443 = vst [vmem:[%s150 + $0x90] sm:$0xff] %v3413
      %3444 = vst [vmem:[%s150 + $0x98] sm:$0xff] %v3414
      %3445 = vst [vmem:[%s150 + $0xa0] sm:$0xff] %v3415
      %3446 = vst [vmem:[%s150 + $0xa8] sm:$0xff] %v3416
      %3447 = vst [vmem:[%s150 + $0xb0] sm:$0xff] %v3417
      %3448 = vst [vmem:[%s150 + $0xb8] sm:$0xff] %v3418
      %3449 = vst [vmem:[%s150 + $0xc0] sm:$0xff] %v3419
      %3450 = vst [vmem:[%s150 + $0xc8] sm:$0xff] %v3420
      %3451 = vst [vmem:[%s150 + $0xd0] sm:$0xff] %v3421
      %3452 = vst [vmem:[%s150 + $0xd8] sm:$0xff] %v3422
      %3453 = vst [vmem:[%s150 + $0xe0] sm:$0xff] %v3423
      %3454 = vst [vmem:[%s150 + $0xe8] sm:$0xff] %v3424
      %v3455 = vld [vmem:[%s150] sm:$0xff]
      %v3456 = vld [vmem:[%s150 + $0x8] sm:$0xff]
      %v3457 = vld [vmem:[%s150 + $0x10] sm:$0xff]
      %v3458 = vld [vmem:[%s150 + $0x18] sm:$0xff]
      %v3459 = vld [vmem:[%s150 + $0x20] sm:$0xff]
      %v3460 = vld [vmem:[%s150 + $0x28] sm:$0xff]
      %v3461 = vld [vmem:[%s150 + $0x30] sm:$0xff]
      %v3462 = vld [vmem:[%s150 + $0x38] sm:$0xff]
      %v3463 = vld [vmem:[%s150 + $0x40] sm:$0xff]
      %v3464 = vld [vmem:[%s150 + $0x48] sm:$0xff]
      %v3465 = vld [vmem:[%s150 + $0x50] sm:$0xff]
      %v3466 = vld [vmem:[%s150 + $0x58] sm:$0xff]
      %v3467 = vld [vmem:[%s150 + $0x60] sm:$0xff]
      %v3468 = vld [vmem:[%s150 + $0x68] sm:$0xff]
      %v3469 = vld [vmem:[%s150 + $0x70] sm:$0xff]
      %v3470 = vld [vmem:[%s150 + $0x78] sm:$0xff]
      %v3471 = vld [vmem:[%s150 + $0x80] sm:$0xff]
      %v3472 = vld [vmem:[%s150 + $0x88] sm:$0xff]
      %v3473 = vld [vmem:[%s150 + $0x90] sm:$0xff]
      %v3474 = vld [vmem:[%s150 + $0x98] sm:$0xff]
      %v3475 = vld [vmem:[%s150 + $0xa0] sm:$0xff]
      %v3476 = vld [vmem:[%s150 + $0xa8] sm:$0xff]
      %v3477 = vld [vmem:[%s150 + $0xb0] sm:$0xff]
      %v3478 = vld [vmem:[%s150 + $0xb8] sm:$0xff]
      %v3479 = vld [vmem:[%s150 + $0xc0] sm:$0xff]
      %v3480 = vld [vmem:[%s150 + $0xc8] sm:$0xff]
      %v3481 = vld [vmem:[%s150 + $0xd0] sm:$0xff]
      %v3482 = vld [vmem:[%s150 + $0xd8] sm:$0xff]
      %v3483 = vld [vmem:[%s150 + $0xe0] sm:$0xff]
      %v3484 = vld [vmem:[%s150 + $0xe8] sm:$0xff]
      %v3485 = vld [vmem:[%s2] sm:$0x1]
      %v3487 = vlaneseq
      %v3488 = vshrl.u32 %v3487, 7
      %v3489 = vsub.s32 0, %v3488
      %v3490 = vrot.slane %v3485, %v3489
      %v3492 = vadd.f32 %v3455, %v3490
      %v3493 = vadd.f32 %v3456, %v3490
      %v3494 = vadd.f32 %v3457, %v3490
      %v3495 = vadd.f32 %v3458, %v3490
      %v3496 = vadd.f32 %v3459, %v3490
      %v3497 = vadd.f32 %v3460, %v3490
      %v3498 = vadd.f32 %v3461, %v3490
      %v3499 = vadd.f32 %v3462, %v3490
      %v3500 = vadd.f32 %v3463, %v3490
      %v3501 = vadd.f32 %v3464, %v3490
      %v3502 = vadd.f32 %v3465, %v3490
      %v3503 = vadd.f32 %v3466, %v3490
      %v3504 = vadd.f32 %v3467, %v3490
      %v3505 = vadd.f32 %v3468, %v3490
      %v3506 = vadd.f32 %v3469, %v3490
      %v3507 = vadd.f32 %v3470, %v3490
      %v3508 = vadd.f32 %v3471, %v3490
      %v3509 = vadd.f32 %v3472, %v3490
      %v3510 = vadd.f32 %v3473, %v3490
      %v3511 = vadd.f32 %v3474, %v3490
      %v3512 = vadd.f32 %v3475, %v3490
      %v3513 = vadd.f32 %v3476, %v3490
      %v3514 = vadd.f32 %v3477, %v3490
      %v3515 = vadd.f32 %v3478, %v3490
      %v3516 = vadd.f32 %v3479, %v3490
      %v3517 = vadd.f32 %v3480, %v3490
      %v3518 = vadd.f32 %v3481, %v3490
      %v3519 = vadd.f32 %v3482, %v3490
      %v3520 = vadd.f32 %v3483, %v3490
      %v3521 = vadd.f32 %v3484, %v3490
      %v3522 = vmax.f32 %v3492, 0.0
      %v3523 = vmax.f32 %v3493, 0.0
      %v3524 = vmax.f32 %v3494, 0.0
      %v3525 = vmax.f32 %v3495, 0.0
      %v3526 = vmax.f32 %v3496, 0.0
      %v3527 = vmax.f32 %v3497, 0.0
      %v3528 = vmax.f32 %v3498, 0.0
      %v3529 = vmax.f32 %v3499, 0.0
      %v3530 = vmax.f32 %v3500, 0.0
      %v3531 = vmax.f32 %v3501, 0.0
      %v3532 = vmax.f32 %v3502, 0.0
      %v3533 = vmax.f32 %v3503, 0.0
      %v3534 = vmax.f32 %v3504, 0.0
      %v3535 = vmax.f32 %v3505, 0.0
      %v3536 = vmax.f32 %v3506, 0.0
      %v3537 = vmax.f32 %v3507, 0.0
      %v3538 = vmax.f32 %v3508, 0.0
      %v3539 = vmax.f32 %v3509, 0.0
      %v3540 = vmax.f32 %v3510, 0.0
      %v3541 = vmax.f32 %v3511, 0.0
      %v3542 = vmax.f32 %v3512, 0.0
      %v3543 = vmax.f32 %v3513, 0.0
      %v3544 = vmax.f32 %v3514, 0.0
      %v3545 = vmax.f32 %v3515, 0.0
      %v3546 = vmax.f32 %v3516, 0.0
      %v3547 = vmax.f32 %v3517, 0.0
      %v3548 = vmax.f32 %v3518, 0.0
      %v3549 = vmax.f32 %v3519, 0.0
      %v3550 = vmax.f32 %v3520, 0.0
      %v3551 = vmax.f32 %v3521, 0.0
      %3552 = vst [vmem:[%s150] sm:$0xff] %v3522
      %3553 = vst [vmem:[%s150 + $0x8] sm:$0xff] %v3523
      %3554 = vst [vmem:[%s150 + $0x10] sm:$0xff] %v3524
      %3555 = vst [vmem:[%s150 + $0x18] sm:$0xff] %v3525
      %3556 = vst [vmem:[%s150 + $0x20] sm:$0xff] %v3526
      %3557 = vst [vmem:[%s150 + $0x28] sm:$0xff] %v3527
      %3558 = vst [vmem:[%s150 + $0x30] sm:$0xff] %v3528
      %3559 = vst [vmem:[%s150 + $0x38] sm:$0xff] %v3529
      %3560 = vst [vmem:[%s150 + $0x40] sm:$0xff] %v3530
      %3561 = vst [vmem:[%s150 + $0x48] sm:$0xff] %v3531
      %3562 = vst [vmem:[%s150 + $0x50] sm:$0xff] %v3532
      %3563 = vst [vmem:[%s150 + $0x58] sm:$0xff] %v3533
      %3564 = vst [vmem:[%s150 + $0x60] sm:$0xff] %v3534
      %3565 = vst [vmem:[%s150 + $0x68] sm:$0xff] %v3535
      %3566 = vst [vmem:[%s150 + $0x70] sm:$0xff] %v3536
      %3567 = vst [vmem:[%s150 + $0x78] sm:$0xff] %v3537
      %3568 = vst [vmem:[%s150 + $0x80] sm:$0xff] %v3538
      %3569 = vst [vmem:[%s150 + $0x88] sm:$0xff] %v3539
      %3570 = vst [vmem:[%s150 + $0x90] sm:$0xff] %v3540
      %3571 = vst [vmem:[%s150 + $0x98] sm:$0xff] %v3541
      %3572 = vst [vmem:[%s150 + $0xa0] sm:$0xff] %v3542
      %3573 = vst [vmem:[%s150 + $0xa8] sm:$0xff] %v3543
      %3574 = vst [vmem:[%s150 + $0xb0] sm:$0xff] %v3544
      %3575 = vst [vmem:[%s150 + $0xb8] sm:$0xff] %v3545
      %3576 = vst [vmem:[%s150 + $0xc0] sm:$0xff] %v3546
      %3577 = vst [vmem:[%s150 + $0xc8] sm:$0xff] %v3547
      %3578 = vst [vmem:[%s150 + $0xd0] sm:$0xff] %v3548
      %3579 = vst [vmem:[%s150 + $0xd8] sm:$0xff] %v3549
      %3580 = vst [vmem:[%s150 + $0xe0] sm:$0xff] %v3550
      %3581 = vst [vmem:[%s150 + $0xe8] sm:$0xff] %v3551
      %s3582 = smul.u32 30, %s14
      %p3583 = scmp.lt.s32.totalorder %s3582, 329
      %s3584 = scalar_select %p3583, %s3582, 329
      %s3585 = smul.addr %s3584, 8
      %s3586 = scalar_lea.vmem %s3, %s3585
      // Predicated region
      $region33: #{emotion_cnn_forward.3} parent=31 // pred_check
        %p3587 = pneg %p95
      $region34: #{emotion_cnn_forward.3} parent=31 // pred_check_branch
        %3589 = sbr.rel (%p3587) target = $region36
      $region35: #{emotion_cnn_forward.3} parent=31 // pred_region
        %s3590 = smul.u32 30, %s14
      $region36: #{emotion_cnn_forward.3} parent=31 // pred_fallthru
        _
    $region32: #{emotion_cnn_forward.3} parent=5 // pred_fallthru
      _
    %p3591 = scmp.le.s32.totalorder 2, %s9
    // Predicated region
    $region37: #{emotion_cnn_forward.3} parent=5 // pred_check
      %p3592 = pneg %p3591
    $region38: #{emotion_cnn_forward.3} parent=5 // pred_check_branch
      %3594 = sbr.rel (%p3592) target = $region40
    $region39: #{emotion_cnn_forward.3} parent=5 // pred_region
      %s3595 = ssub.s32 %s9, 2
      // Predicated region
      $region41: #{emotion_cnn_forward.3} parent=39 // pred_check
        %p3596 = pneg %p101
      $region42: #{emotion_cnn_forward.3} parent=39 // pred_check_branch
        %3598 = sbr.rel (%p3596) target = $region44
      $region43: #{emotion_cnn_forward.3} parent=39 // pred_region
        %s3599 = smul.u32 30, %s15
        %p3600 = scmp.lt.s32.totalorder %s3599, 329
        %s3601 = scalar_select %p3600, %s3599, 329
        %s3602 = smul.addr %s3601, 8
        %s3603 = scalar_lea.vmem %s3, %s3602
      $region44: #{emotion_cnn_forward.3} parent=39 // pred_fallthru
        _
    $region40: #{emotion_cnn_forward.3} parent=5 // pred_fallthru
      _
  $region6: #{emotion_cnn_forward.3} parent=0 // loop_footer
    %s13 = sadd.s32 1, %s9
  $region7: #{emotion_cnn_forward.3} parent=0 // loop_footer_branch
    %8 = sbr.rel target = $region3
  $region8: #{emotion_cnn_forward.3} parent=0 // loop_exit
    _

// kernel: emotion_cnn_forward.4
$region0: #{emotion_cnn_forward.4}
  #allocation0 [shape = 'u32[]', space=smem, size = 0x4, offset = 0x4, fixed_abs, tag = 'smem constant byte address 0x4 - core index']
  #allocation1 [shape = 'u32[144,128]{1,0:T(1,128)}', space=vmem, size = 0x12000, scoped, tag = 'internal scratch']
  #allocation2 [shape = 'f32[216,64]{1,0:T(8,128)}', space=vmem, size = 0x1b000, scoped, tag = 'scratch operand']
  %s0 = inlined_call_operand.vmem [shape: f32[816,64], index: 0, kind: input, shape index: {}]
  %s1 = inlined_call_operand.vmem [shape: bf16[9,64,128], index: 1, kind: input, shape index: {}]
  %s2 = inlined_call_operand.vmem [shape: f32[1,128], index: 2, kind: input, shape index: {}]
  %s3 = inlined_call_operand.vmem [shape: f32[800,128], index: 3, kind: output, shape index: {}]
  %s4 = sld [smem:[#allocation0]]
  $region45: #{emotion_cnn_forward.4} parent=0
    _
  %s6 = ssub.s32 1, %s4
  %s7 = scalar_select 0, %s6, %s4
  loop: start=0, step=1, limit=6
  $region2: #{emotion_cnn_forward.4} parent=0 // loop_pre_header
    _
  $region3: #{emotion_cnn_forward.4} parent=0 // loop_header
    %s9 = sphi 0, %s13
    %p10 = scmp.ge.s32.totalorder %s9, 6
    %s17 = sphi 0, %s17
    %s19 = sphi 0, %s17
    %s20 = sphi 0, %s19
    %s34 = sphi 0, %s20
    %s38 = sphi 0, %s38
    %s40 = sphi 0, %s38
    %s41 = sphi 0, %s40
    %s55 = sphi 0, %s41
    %s59 = sphi 0, %s59
    %s61 = sphi 0, %s59
    %s62 = sphi 0, %s61
    %s76 = sphi 0, %s62
    %s82 = sphi 0, %s84
    %s85 = sphi 0, %s82
    %s86 = sphi 0, %s85
    %s102 = sphi 0, %s86
  $region4: #{emotion_cnn_forward.4} parent=0 // loop_header_branch
    %12 = sbr.rel (%p10) target = $region8
  $region5: #{emotion_cnn_forward.4} parent=0 // loop_body
    %s14 = ssub.s32 %s9, 1
    %s15 = ssub.s32 %s9, 2
    %s16 = sadd.s32 %s9, 1
    %s18 = sadd.s32 %s17, 1
    %p21 = scmp.eq.s32.totalorder %s9, 3
    %p22 = scmp.ne.s32.totalorder %s17, %s19
    %p23 = scmp.eq.s32.totalorder %s9, 0
    %p24 = por %p22, %p23
    %p25 = scmp.ne.s32.totalorder %s17, %s19
    %p26 = scmp.eq.s32.totalorder %s14, 3
    %p27 = por %p25, %p26
    %p28 = scmp.ne.s32.totalorder %s19, %s20
    %p29 = scmp.eq.s32.totalorder %s14, 0
    %p30 = por %p28, %p29
    %p31 = scmp.ne.s32.totalorder %s19, %s20
    %p32 = scmp.eq.s32.totalorder %s15, 3
    %p33 = por %p31, %p32
    %p35 = scmp.ne.s32.totalorder %s20, %s34
    %p36 = scmp.eq.s32.totalorder %s15, 0
    %p37 = por %p35, %p36
    %s39 = sadd.s32 %s38, 1
    %p42 = scmp.eq.s32.totalorder %s9, 3
    %p43 = scmp.ne.s32.totalorder %s38, %s40
    %p44 = scmp.eq.s32.totalorder %s9, 0
    %p45 = por %p43, %p44
    %p46 = scmp.ne.s32.totalorder %s38, %s40
    %p47 = scmp.eq.s32.totalorder %s14, 3
    %p48 = por %p46, %p47
    %p49 = scmp.ne.s32.totalorder %s40, %s41
    %p50 = scmp.eq.s32.totalorder %s14, 0
    %p51 = por %p49, %p50
    %p52 = scmp.ne.s32.totalorder %s40, %s41
    %p53 = scmp.eq.s32.totalorder %s15, 3
    %p54 = por %p52, %p53
    %p56 = scmp.ne.s32.totalorder %s41, %s55
    %p57 = scmp.eq.s32.totalorder %s15, 0
    %p58 = por %p56, %p57
    %s60 = sadd.s32 %s59, 1
    %p63 = scmp.eq.s32.totalorder %s9, 3
    %p64 = scmp.ne.s32.totalorder %s59, %s61
    %p65 = scmp.eq.s32.totalorder %s9, 0
    %p66 = por %p64, %p65
    %p67 = scmp.ne.s32.totalorder %s59, %s61
    %p68 = scmp.eq.s32.totalorder %s14, 3
    %p69 = por %p67, %p68
    %p70 = scmp.ne.s32.totalorder %s61, %s62
    %p71 = scmp.eq.s32.totalorder %s14, 0
    %p72 = por %p70, %p71
    %p73 = scmp.ne.s32.totalorder %s61, %s62
    %p74 = scmp.eq.s32.totalorder %s15, 3
    %p75 = por %p73, %p74
    %p77 = scmp.ne.s32.totalorder %s62, %s76
    %p78 = scmp.eq.s32.totalorder %s15, 0
    %p79 = por %p77, %p78
    %s80 = ssub.s32 %s9, %s16
    %p81 = scmp.eq.s32.totalorder %s80, 0
    %s83 = sadd.s32 %s82, 1
    %s84 = scalar_select %p81, %s82, %s83
    %p87 = pneg %p81
    %p88 = scmp.eq.s32.totalorder %s9, 3
    %p89 = por %p87, %p88
    %p90 = scmp.ne.s32.totalorder %s82, %s85
    %p91 = scmp.eq.s32.totalorder %s9, 0
    %p92 = por %p90, %p91
    %p93 = scmp.ne.s32.totalorder %s82, %s85
    %p94 = scmp.eq.s32.totalorder %s14, 3
    %p95 = por %p93, %p94
    %p96 = scmp.ne.s32.totalorder %s85, %s86
    %p97 = scmp.eq.s32.totalorder %s14, 0
    %p98 = por %p96, %p97
    %p99 = scmp.ne.s32.totalorder %s85, %s86
    %p100 = scmp.eq.s32.totalorder %s15, 3
    %p101 = por %p99, %p100
    %p103 = scmp.ne.s32.totalorder %s86, %s102
    %p104 = scmp.eq.s32.totalorder %s15, 0
    %p105 = por %p103, %p104
    %p106 = scmp.le.s32.totalorder 1, %s9
    %p107 = scmp.lt.s32.totalorder %s9, 5
    %p108 = pnand %p106, %p107
    %p109 = pneg %p108
    // Predicated region
    $region9: #{emotion_cnn_forward.4} parent=5 // pred_check
      _
    $region10: #{emotion_cnn_forward.4} parent=5 // pred_check_branch
      %111 = sbr.rel (%p108) target = $region12
    $region11: #{emotion_cnn_forward.4} parent=5 // pred_region
      %s112 = ssub.s32 %s9, 1
      // Predicated region
      $region13: #{emotion_cnn_forward.4} parent=11 // pred_check
        %p113 = pneg %p30
      $region14: #{emotion_cnn_forward.4} parent=11 // pred_check_branch
        %115 = sbr.rel (%p113) target = $region16
      $region15: #{emotion_cnn_forward.4} parent=11 // pred_region
        _
      $region16: #{emotion_cnn_forward.4} parent=11 // pred_fallthru
        _
      // Predicated region
      $region17: #{emotion_cnn_forward.4} parent=11 // pred_check
        %p116 = pneg %p51
      $region18: #{emotion_cnn_forward.4} parent=11 // pred_check_branch
        %118 = sbr.rel (%p116) target = $region20
      $region19: #{emotion_cnn_forward.4} parent=11 // pred_region
        _
      $region20: #{emotion_cnn_forward.4} parent=11 // pred_fallthru
        _
      // Predicated region
      $region21: #{emotion_cnn_forward.4} parent=11 // pred_check
        %p119 = pneg %p72
      $region22: #{emotion_cnn_forward.4} parent=11 // pred_check_branch
        %121 = sbr.rel (%p119) target = $region24
      $region23: #{emotion_cnn_forward.4} parent=11 // pred_region
        _
      $region24: #{emotion_cnn_forward.4} parent=11 // pred_fallthru
        _
    $region12: #{emotion_cnn_forward.4} parent=5 // pred_fallthru
      _
    %p122 = scmp.lt.s32.totalorder %s9, 4
    // Predicated region
    $region25: #{emotion_cnn_forward.4} parent=5 // pred_check
      %p123 = pneg %p122
    $region26: #{emotion_cnn_forward.4} parent=5 // pred_check_branch
      %125 = sbr.rel (%p123) target = $region28
    $region27: #{emotion_cnn_forward.4} parent=5 // pred_region
      _
    $region28: #{emotion_cnn_forward.4} parent=5 // pred_fallthru
      _
    %p126 = scmp.le.s32.totalorder 1, %s9
    %p127 = scmp.lt.s32.totalorder %s9, 5
    %p128 = pnand %p126, %p127
    %p129 = pneg %p128
    // Predicated region
    $region29: #{emotion_cnn_forward.4} parent=5 // pred_check
      _
    $region30: #{emotion_cnn_forward.4} parent=5 // pred_check_branch
      %131 = sbr.rel (%p128) target = $region32
    $region31: #{emotion_cnn_forward.4} parent=5 // pred_region
      %s132 = ssub.s32 %s9, 1
      %p133 = pneg %p30
      %p134 = pneg %p27
      %p135 = pneg %p51
      %p136 = pneg %p48
      %p137 = pneg %p72
      %p138 = pneg %p69
      %p139 = pneg %p98
      %p140 = pneg %p95
      %s141 = smul.u32 25, %s14
      %p142 = scmp.lt.s32.totalorder %s141, 99
      %s143 = scalar_select %p142, %s141, 99
      %s144 = smul.addr %s143, 8
      %s145 = scalar_lea.vmem %s3, %s144
      %s146 = smul.u32 25, %s14
      %p147 = scmp.lt.s32.totalorder %s146, 99
      %s148 = scalar_select %p147, %s146, 99
      %s149 = smul.addr %s148, 8
      %s150 = scalar_lea.vmem %s3, %s149
      %s151 = smul.u32 25, %s14
      %s153 = smul.u32 %s14, 200
      %s154 = scalar_lea.vmem %s0, %s153
      %v155 = vld [vmem:[%s154] sm:$0xff]
      %v156 = vld [vmem:[%s154 + $0x8] sm:$0xff]
      %v157 = vld [vmem:[%s154 + $0x10] sm:$0xff]
      %v158 = vld [vmem:[%s154 + $0x18] sm:$0xff]
      %v159 = vld [vmem:[%s154 + $0x20] sm:$0xff]
      %v160 = vld [vmem:[%s154 + $0x28] sm:$0xff]
      %v161 = vld [vmem:[%s154 + $0x30] sm:$0xff]
      %v162 = vld [vmem:[%s154 + $0x38] sm:$0xff]
      %v163 = vld [vmem:[%s154 + $0x40] sm:$0xff]
      %v164 = vld [vmem:[%s154 + $0x48] sm:$0xff]
      %v165 = vld [vmem:[%s154 + $0x50] sm:$0xff]
      %v166 = vld [vmem:[%s154 + $0x58] sm:$0xff]
      %v167 = vld [vmem:[%s154 + $0x60] sm:$0xff]
      %v168 = vld [vmem:[%s154 + $0x68] sm:$0xff]
      %v169 = vld [vmem:[%s154 + $0x70] sm:$0xff]
      %v170 = vld [vmem:[%s154 + $0x78] sm:$0xff]
      %v171 = vld [vmem:[%s154 + $0x80] sm:$0xff]
      %v172 = vld [vmem:[%s154 + $0x88] sm:$0xff]
      %v173 = vld [vmem:[%s154 + $0x90] sm:$0xff]
      %v174 = vld [vmem:[%s154 + $0x98] sm:$0xff]
      %v175 = vld [vmem:[%s154 + $0xa0] sm:$0xff]
      %v176 = vld [vmem:[%s154 + $0xa8] sm:$0xff]
      %v177 = vld [vmem:[%s154 + $0xb0] sm:$0xff]
      %v178 = vld [vmem:[%s154 + $0xb8] sm:$0xff]
      %v179 = vld [vmem:[%s154 + $0xc0] sm:$0xff]
      %v180 = vld [vmem:[%s154 + $0xc8] sm:$0xff]
      %v181 = vld [vmem:[%s154 + $0xd0] sm:$0xff]
      %vm182 = vcmask 523264
      %183 = vst.msk [vmem:[#allocation2] sm:$0xff] %vm182, %v155
      %184 = vst.msk [vmem:[#allocation2 + $0x8] sm:$0xff] %vm182, %v156
      %185 = vst.msk [vmem:[#allocation2 + $0x10] sm:$0xff] %vm182, %v157
      %186 = vst.msk [vmem:[#allocation2 + $0x18] sm:$0xff] %vm182, %v158
      %187 = vst.msk [vmem:[#allocation2 + $0x20] sm:$0xff] %vm182, %v159
      %188 = vst.msk [vmem:[#allocation2 + $0x28] sm:$0xff] %vm182, %v160
      %189 = vst.msk [vmem:[#allocation2 + $0x30] sm:$0xff] %vm182, %v161
      %190 = vst.msk [vmem:[#allocation2 + $0x38] sm:$0xff] %vm182, %v162
      %191 = vst.msk [vmem:[#allocation2 + $0x40] sm:$0xff] %vm182, %v163
      %192 = vst.msk [vmem:[#allocation2 + $0x48] sm:$0xff] %vm182, %v164
      %193 = vst.msk [vmem:[#allocation2 + $0x50] sm:$0xff] %vm182, %v165
      %194 = vst.msk [vmem:[#allocation2 + $0x58] sm:$0xff] %vm182, %v166
      %195 = vst.msk [vmem:[#allocation2 + $0x60] sm:$0xff] %vm182, %v167
      %196 = vst.msk [vmem:[#allocation2 + $0x68] sm:$0xff] %vm182, %v168
      %197 = vst.msk [vmem:[#allocation2 + $0x70] sm:$0xff] %vm182, %v169
      %198 = vst.msk [vmem:[#allocation2 + $0x78] sm:$0xff] %vm182, %v170
      %199 = vst.msk [vmem:[#allocation2 + $0x80] sm:$0xff] %vm182, %v171
      %200 = vst.msk [vmem:[#allocation2 + $0x88] sm:$0xff] %vm182, %v172
      %201 = vst.msk [vmem:[#allocation2 + $0x90] sm:$0xff] %vm182, %v173
      %202 = vst.msk [vmem:[#allocation2 + $0x98] sm:$0xff] %vm182, %v174
      %203 = vst.msk [vmem:[#allocation2 + $0xa0] sm:$0xff] %vm182, %v175
      %204 = vst.msk [vmem:[#allocation2 + $0xa8] sm:$0xff] %vm182, %v176
      %205 = vst.msk [vmem:[#allocation2 + $0xb0] sm:$0xff] %vm182, %v177
      %206 = vst.msk [vmem:[#allocation2 + $0xb8] sm:$0xff] %vm182, %v178
      %207 = vst.msk [vmem:[#allocation2 + $0xc0] sm:$0xff] %vm182, %v179
      %208 = vst.msk [vmem:[#allocation2 + $0xc8] sm:$0xff] %vm182, %v180
      %209 = vst.msk [vmem:[#allocation2 + $0xd0] sm:$0xff] %vm182, %v181
      %v210 = vld [vmem:[#allocation2] sm:$0xff]
      %v211 = vld [vmem:[#allocation2 + $0x8] sm:$0xff]
      %v212 = vld [vmem:[#allocation2 + $0x10] sm:$0xff]
      %v213 = vld [vmem:[#allocation2 + $0x18] sm:$0xff]
      %v214 = vld [vmem:[#allocation2 + $0x20] sm:$0xff]
      %v215 = vld [vmem:[#allocation2 + $0x28] sm:$0xff]
      %v216 = vld [vmem:[#allocation2 + $0x30] sm:$0xff]
      %v217 = vld [vmem:[#allocation2 + $0x38] sm:$0xff]
      %v218 = vld [vmem:[#allocation2 + $0x40] sm:$0xff]
      %v219 = vld [vmem:[#allocation2 + $0x48] sm:$0xff]
      %v220 = vld [vmem:[#allocation2 + $0x50] sm:$0xff]
      %v221 = vld [vmem:[#allocation2 + $0x58] sm:$0xff]
      %v222 = vld [vmem:[#allocation2 + $0x60] sm:$0xff]
      %v223 = vld [vmem:[#allocation2 + $0x68] sm:$0xff]
      %v224 = vld [vmem:[#allocation2 + $0x70] sm:$0xff]
      %v225 = vld [vmem:[#allocation2 + $0x78] sm:$0xff]
      %v226 = vld [vmem:[#allocation2 + $0x80] sm:$0xff]
      %v227 = vld [vmem:[#allocation2 + $0x88] sm:$0xff]
      %v228 = vld [vmem:[#allocation2 + $0x90] sm:$0xff]
      %v229 = vld [vmem:[#allocation2 + $0x98] sm:$0xff]
      %v230 = vld [vmem:[#allocation2 + $0xa0] sm:$0xff]
      %v231 = vld [vmem:[#allocation2 + $0xa8] sm:$0xff]
      %v232 = vld [vmem:[#allocation2 + $0xb0] sm:$0xff]
      %v233 = vld [vmem:[#allocation2 + $0xb8] sm:$0xff]
      %v234 = vld [vmem:[#allocation2 + $0xc0] sm:$0xff]
      %v235 = vpack.c.bf16 %v211, %v210
      %v236 = vpack.c.bf16 %v213, %v212
      %v237 = vpack.c.bf16 %v215, %v214
      %v238 = vpack.c.bf16 %v217, %v216
      %v239 = vpack.c.bf16 %v219, %v218
      %v240 = vpack.c.bf16 %v221, %v220
      %v241 = vpack.c.bf16 %v223, %v222
      %v242 = vpack.c.bf16 %v225, %v224
      %v243 = vpack.c.bf16 %v227, %v226
      %v244 = vpack.c.bf16 %v229, %v228
      %v245 = vpack.c.bf16 %v231, %v230
      %v246 = vpack.c.bf16 %v233, %v232
      %v247 = vpack.c.bf16 %v234, %v234
      %v248 = vld [vmem:[%s1] sm:$0xf]
      %v249 = vld [vmem:[%s1 + $0x4] sm:$0xf]
      %v250 = vld [vmem:[%s1 + $0x8] sm:$0xf]
      %v251 = vld [vmem:[%s1 + $0xc] sm:$0xf]
      %v252 = vld [vmem:[%s1 + $0x10] sm:$0xf]
      %v253 = vld [vmem:[%s1 + $0x14] sm:$0xf]
      %v254 = vld [vmem:[%s1 + $0x18] sm:$0xf]
      %v255 = vld [vmem:[%s1 + $0x1c] sm:$0xf]
      %v264 = vunpack.c.l.b16 %v248
      %v265 = vunpack.c.l.b16 %v249
      %v266 = vunpack.c.l.b16 %v250
      %v267 = vunpack.c.l.b16 %v251
      %v268 = vunpack.c.l.b16 %v252
      %v269 = vunpack.c.l.b16 %v253
      %v270 = vunpack.c.l.b16 %v254
      %v271 = vunpack.c.l.b16 %v255
      %v272 = vpack.c.b16 %v265, %v264
      %v273 = vpack.c.b16 %v267, %v266
      %v274 = vpack.c.b16 %v269, %v268
      %v275 = vpack.c.b16 %v271, %v270
      %v281 = vsel %vm182, %v235, 0
      %v284 = vsel %vm182, %v236, 0
      %v287 = vsel %vm182, %v237, 0
      %v290 = vsel %vm182, %v238, 0
      %v293 = vsel %vm182, %v239, 0
      %v296 = vsel %vm182, %v240, 0
      %v299 = vsel %vm182, %v241, 0
      %v302 = vsel %vm182, %v242, 0
      %v305 = vsel %vm182, %v243, 0
      %v308 = vsel %vm182, %v244, 0
      %v311 = vsel %vm182, %v245, 0
      %v314 = vsel %vm182, %v246, 0
      %v317 = vsel %vm182, %v247, 0
      %319 = vmatprep.subr.bf16.mxu0 0
      %320 = vmatpush1.bf16.msra.mxu0 %v272
      %321 = vmatprep.subr.bf16.mxu0 0
      %322 = vmatpush1.bf16.msra.mxu0 %v273
      %323 = vmatprep.subr.bf16.mxu0 0
      %324 = vmatpush1.bf16.msra.mxu0 %v274
      %325 = vmatprep.subr.bf16.mxu0 0
      %326 = vmatpush1.bf16.msra.mxu0 %v275
      %327 = vmatprep.subr.bf16.mxu0 0
      %328 = vmatpush1.bf16.msra.mxu0 0
      %329 = vmatprep.subr.bf16.mxu0 0
      %330 = vmatpush1.bf16.msra.mxu0 0
      %331 = vmatprep.subr.bf16.mxu0 0
      %332 = vmatpush1.bf16.msra.mxu0 0
      %333 = vmatprep.subr.bf16.mxu0 0
      %334 = vmatpush1.bf16.msra.mxu0 0
      %335 = vmatprep.subr.bf16.mxu0 0
      %336 = vmatpush1.bf16.msra.mxu0 0
      %337 = vmatprep.subr.bf16.mxu0 0
      %338 = vmatpush1.bf16.msra.mxu0 0
      %339 = vmatprep.subr.bf16.mxu0 0
      %340 = vmatpush1.bf16.msra.mxu0 0
      %341 = vmatprep.subr.bf16.mxu0 0
      %342 = vmatpush1.bf16.msra.mxu0 0
      %343 = vmatprep.subr.bf16.mxu0 0
      %344 = vmatpush1.bf16.msra.mxu0 0
      %345 = vmatprep.subr.bf16.mxu0 0
      %346 = vmatpush1.bf16.msra.mxu0 0
      %347 = vmatprep.subr.bf16.mxu0 0
      %348 = vmatpush1.bf16.msra.mxu0 0
      %349 = vmatprep.subr.bf16.mxu0 0
      %350 = vmatpush1.bf16.msra.mxu0 0
      %351 = vmatprep.mubr.bf16.mxu0 0
      %352 = vmatmul.mubr.bf16.gmra.mrb[0].mxu0 %v281
      %v353 = vpop.f32.mrb[0].mxu0
      %v354 = vadd.f32 0.0, %v353
      %v355 = vpop.f32.mrb[0].mxu0
      %v356 = vpop.f32.mrb[0].mxu0
      %v357 = vadd.f32 0.0, %v356
      %v358 = vpop.f32.mrb[0].mxu0
      %359 = vmatprep.mubr.bf16.mxu0 0
      %360 = vmatmul.mubr.bf16.gmra.mrb[0].mxu0 %v284
      %v361 = vpop.f32.mrb[0].mxu0
      %v362 = vadd.f32 0.0, %v361
      %v363 = vpop.f32.mrb[0].mxu0
      %v364 = vpop.f32.mrb[0].mxu0
      %v365 = vadd.f32 0.0, %v364
      %v366 = vpop.f32.mrb[0].mxu0
      %367 = vmatprep.mubr.bf16.mxu0 0
      %368 = vmatmul.mubr.bf16.gmra.mrb[0].mxu0 %v287
      %v369 = vpop.f32.mrb[0].mxu0
      %v370 = vadd.f32 0.0, %v369
      %v371 = vpop.f32.mrb[0].mxu0
      %v372 = vpop.f32.mrb[0].mxu0
      %v373 = vadd.f32 0.0, %v372
      %v374 = vpop.f32.mrb[0].mxu0
      %375 = vmatprep.mubr.bf16.mxu0 0
      %376 = vmatmul.mubr.bf16.gmra.mrb[0].mxu0 %v290
      %v377 = vpop.f32.mrb[0].mxu0
      %v378 = vadd.f32 0.0, %v377
      %v379 = vpop.f32.mrb[0].mxu0
      %v380 = vpop.f32.mrb[0].mxu0
      %v381 = vadd.f32 0.0, %v380
      %v382 = vpop.f32.mrb[0].mxu0
      %383 = vmatprep.mubr.bf16.mxu0 0
      %384 = vmatmul.mubr.bf16.gmra.mrb[0].mxu0 %v293
      %v385 = vpop.f32.mrb[0].mxu0
      %v386 = vadd.f32 0.0, %v385
      %v387 = vpop.f32.mrb[0].mxu0
      %v388 = vpop.f32.mrb[0].mxu0
      %v389 = vadd.f32 0.0, %v388
      %v390 = vpop.f32.mrb[0].mxu0
      %391 = vmatprep.mubr.bf16.mxu0 0
      %392 = vmatmul.mubr.bf16.gmra.mrb[0].mxu0 %v296
      %v393 = vpop.f32.mrb[0].mxu0
      %v394 = vadd.f32 0.0, %v393
      %v395 = vpop.f32.mrb[0].mxu0
      %v396 = vpop.f32.mrb[0].mxu0
      %v397 = vadd.f32 0.0, %v396
      %v398 = vpop.f32.mrb[0].mxu0
      %399 = vmatprep.mubr.bf16.mxu0 0
      %400 = vmatmul.mubr.bf16.gmra.mrb[0].mxu0 %v299
      %v401 = vpop.f32.mrb[0].mxu0
      %v402 = vadd.f32 0.0, %v401
      %v403 = vpop.f32.mrb[0].mxu0
      %v404 = vpop.f32.mrb[0].mxu0
      %v405 = vadd.f32 0.0, %v404
      %v406 = vpop.f32.mrb[0].mxu0
      %407 = vmatprep.mubr.bf16.mxu0 0
      %408 = vmatmul.mubr.bf16.gmra.mrb[0].mxu0 %v302
      %v409 = vpop.f32.mrb[0].mxu0
      %v410 = vadd.f32 0.0, %v409
      %v411 = vpop.f32.mrb[0].mxu0
      %v412 = vpop.f32.mrb[0].mxu0
      %v413 = vadd.f32 0.0, %v412
      %v414 = vpop.f32.mrb[0].mxu0
      %415 = vmatprep.mubr.bf16.mxu0 0
      %416 = vmatmul.mubr.bf16.gmra.mrb[0].mxu0 %v305
      %v417 = vpop.f32.mrb[0].mxu0
      %v418 = vadd.f32 0.0, %v417
      %v419 = vpop.f32.mrb[0].mxu0
      %v420 = vpop.f32.mrb[0].mxu0
      %v421 = vadd.f32 0.0, %v420
      %v422 = vpop.f32.mrb[0].mxu0
      %423 = vmatprep.mubr.bf16.mxu0 0
      %424 = vmatmul.mubr.bf16.gmra.mrb[0].mxu0 %v308
      %v425 = vpop.f32.mrb[0].mxu0
      %v426 = vadd.f32 0.0, %v425
      %v427 = vpop.f32.mrb[0].mxu0
      %v428 = vpop.f32.mrb[0].mxu0
      %v429 = vadd.f32 0.0, %v428
      %v430 = vpop.f32.mrb[0].mxu0
      %431 = vmatprep.mubr.bf16.mxu0 0
      %432 = vmatmul.mubr.bf16.gmra.mrb[0].mxu0 %v311
      %v433 = vpop.f32.mrb[0].mxu0
      %v434 = vadd.f32 0.0, %v433
      %v435 = vpop.f32.mrb[0].mxu0
      %v436 = vpop.f32.mrb[0].mxu0
      %v437 = vadd.f32 0.0, %v436
      %v438 = vpop.f32.mrb[0].mxu0
      %439 = vmatprep.mubr.bf16.mxu0 0
      %440 = vmatmul.mubr.bf16.gmra.mrb[0].mxu0 %v314
      %v441 = vpop.f32.mrb[0].mxu0
      %v442 = vadd.f32 0.0, %v441
      %v443 = vpop.f32.mrb[0].mxu0
      %v444 = vpop.f32.mrb[0].mxu0
      %v445 = vadd.f32 0.0, %v444
      %v446 = vpop.f32.mrb[0].mxu0
      %447 = vmatprep.mubr.bf16.mxu0 0
      %448 = vmatmul.mubr.bf16.gmra.mrb[0].mxu0 %v317
      %v449 = vpop.f32.mrb[0].mxu0
      %v450 = vadd.f32 0.0, %v449
      %v451 = vpop.f32.mrb[0].mxu0
      %v452 = vpop.f32.mrb[0].mxu0
      %v453 = vpop.f32.mrb[0].mxu0
      %454 = vdwg.mxu0
      %455 = vst [vmem:[%s150] sm:$0xff] %v354
      %456 = vst [vmem:[%s150 + $0x8] sm:$0xff] %v357
      %457 = vst [vmem:[%s150 + $0x10] sm:$0xff] %v362
      %458 = vst [vmem:[%s150 + $0x18] sm:$0xff] %v365
      %459 = vst [vmem:[%s150 + $0x20] sm:$0xff] %v370
      %460 = vst [vmem:[%s150 + $0x28] sm:$0xff] %v373
      %461 = vst [vmem:[%s150 + $0x30] sm:$0xff] %v378
      %462 = vst [vmem:[%s150 + $0x38] sm:$0xff] %v381
      %463 = vst [vmem:[%s150 + $0x40] sm:$0xff] %v386
      %464 = vst [vmem:[%s150 + $0x48] sm:$0xff] %v389
      %465 = vst [vmem:[%s150 + $0x50] sm:$0xff] %v394
      %466 = vst [vmem:[%s150 + $0x58] sm:$0xff] %v397
      %467 = vst [vmem:[%s150 + $0x60] sm:$0xff] %v402
      %468 = vst [vmem:[%s150 + $0x68] sm:$0xff] %v405
      %469 = vst [vmem:[%s150 + $0x70] sm:$0xff] %v410
      %470 = vst [vmem:[%s150 + $0x78] sm:$0xff] %v413
      %471 = vst [vmem:[%s150 + $0x80] sm:$0xff] %v418
      %472 = vst [vmem:[%s150 + $0x88] sm:$0xff] %v421
      %473 = vst [vmem:[%s150 + $0x90] sm:$0xff] %v426
      %474 = vst [vmem:[%s150 + $0x98] sm:$0xff] %v429
      %475 = vst [vmem:[%s150 + $0xa0] sm:$0xff] %v434
      %476 = vst [vmem:[%s150 + $0xa8] sm:$0xff] %v437
      %477 = vst [vmem:[%s150 + $0xb0] sm:$0xff] %v442
      %478 = vst [vmem:[%s150 + $0xb8] sm:$0xff] %v445
      %479 = vst [vmem:[%s150 + $0xc0] sm:$0xff] %v450
      %v480 = vld [vmem:[#allocation2 + $0x1] sm:$0xff]
      %v481 = vld [vmem:[#allocation2 + $0x9] sm:$0xff]
      %v482 = vld [vmem:[#allocation2 + $0x11] sm:$0xff]
      %v483 = vld [vmem:[#allocation2 + $0x19] sm:$0xff]
      %v484 = vld [vmem:[#allocation2 + $0x21] sm:$0xff]
      %v485 = vld [vmem:[#allocation2 + $0x29] sm:$0xff]
      %v486 = vld [vmem:[#allocation2 + $0x31] sm:$0xff]
      %v487 = vld [vmem:[#allocation2 + $0x39] sm:$0xff]
      %v488 = vld [vmem:[#allocation2 + $0x41] sm:$0xff]
      %v489 = vld [vmem:[#allocation2 + $0x49] sm:$0xff]
      %v490 = vld [vmem:[#allocation2 + $0x51] sm:$0xff]
      %v491 = vld [vmem:[#allocation2 + $0x59] sm:$0xff]
      %v492 = vld [vmem:[#allocation2 + $0x61] sm:$0xff]
      %v493 = vld [vmem:[#allocation2 + $0x69] sm:$0xff]
      %v494 = vld [vmem:[#allocation2 + $0x71] sm:$0xff]
      %v495 = vld [vmem:[#allocation2 + $0x79] sm:$0xff]
      %v496 = vld [vmem:[#allocation2 + $0x81] sm:$0xff]
      %v497 = vld [vmem:[#allocation2 + $0x89] sm:$0xff]
      %v498 = vld [vmem:[#allocation2 + $0x91] sm:$0xff]
      %v499 = vld [vmem:[#allocation2 + $0x99] sm:$0xff]
      %v500 = vld [vmem:[#allocation2 + $0xa1] sm:$0xff]
      %v501 = vld [vmem:[#allocation2 + $0xa9] sm:$0xff]
      %v502 = vld [vmem:[#allocation2 + $0xb1] sm:$0xff]
      %v503 = vld [vmem:[#allocation2 + $0xb9] sm:$0xff]
      %v504 = vld [vmem:[#allocation2 + $0xc1] sm:$0xff]
      %v505 = vpack.c.bf16 %v481, %v480
      %v506 = vpack.c.bf16 %v483, %v482
      %v507 = vpack.c.bf16 %v485, %v484
      %v508 = vpack.c.bf16 %v487, %v486
      %v509 = vpack.c.bf16 %v489, %v488
      %v510 = vpack.c.bf16 %v491, %v490
      %v511 = vpack.c.bf16 %v493, %v492
      %v512 = vpack.c.bf16 %v495, %v494
      %v513 = vpack.c.bf16 %v497, %v496
      %v514 = vpack.c.bf16 %v499, %v498
      %v515 = vpack.c.bf16 %v501, %v500
      %v516 = vpack.c.bf16 %v503, %v502
      %v517 = vpack.c.bf16 %v504, %v504
      %s518 = scalar_lea.vmem %s1, 32
      %v519 = vld [vmem:[%s518] sm:$0xf]
      %v520 = vld [vmem:[%s518 + $0x4] sm:$0xf]
      %v521 = vld [vmem:[%s518 + $0x8] sm:$0xf]
      %v522 = vld [vmem:[%s518 + $0xc] sm:$0xf]
      %v523 = vld [vmem:[%s518 + $0x10] sm:$0xf]
      %v524 = vld [vmem:[%s518 + $0x14] sm:$0xf]
      %v525 = vld [vmem:[%s518 + $0x18] sm:$0xf]
      %v526 = vld [vmem:[%s518 + $0x1c] sm:$0xf]
      %v535 = vunpack.c.l.b16 %v519
      %v536 = vunpack.c.l.b16 %v520
      %v537 = vunpack.c.l.b16 %v521
      %v538 = vunpack.c.l.b16 %v522
      %v539 = vunpack.c.l.b16 %v523
      %v540 = vunpack.c.l.b16 %v524
      %v541 = vunpack.c.l.b16 %v525
      %v542 = vunpack.c.l.b16 %v526
      %v543 = vpack.c.b16 %v536, %v535
      %v544 = vpack.c.b16 %v538, %v537
      %v545 = vpack.c.b16 %v540, %v539
      %v546 = vpack.c.b16 %v542, %v541
      %v552 = vsel %vm182, %v505, 0
      %v555 = vsel %vm182, %v506, 0
      %v558 = vsel %vm182, %v507, 0
      %v561 = vsel %vm182, %v508, 0
      %v564 = vsel %vm182, %v509, 0
      %v567 = vsel %vm182, %v510, 0
      %v570 = vsel %vm182, %v511, 0
      %v573 = vsel %vm182, %v512, 0
      %v576 = vsel %vm182, %v513, 0
      %v579 = vsel %vm182, %v514, 0
      %v582 = vsel %vm182, %v515, 0
      %v585 = vsel %vm182, %v516, 0
      %v588 = vsel %vm182, %v517, 0
      %590 = vmatprep.subr.bf16.mxu0 0
      %591 = vmatpush1.bf16.msra.mxu0 %v543
      %592 = vmatprep.subr.bf16.mxu0 0
      %593 = vmatpush1.bf16.msra.mxu0 %v544
      %594 = vmatprep.subr.bf16.mxu0 0
      %595 = vmatpush1.bf16.msra.mxu0 %v545
      %596 = vmatprep.subr.bf16.mxu0 0
      %597 = vmatpush1.bf16.msra.mxu0 %v546
      %598 = vmatprep.subr.bf16.mxu0 0
      %599 = vmatpush1.bf16.msra.mxu0 0
      %600 = vmatprep.subr.bf16.mxu0 0
      %601 = vmatpush1.bf16.msra.mxu0 0
      %602 = vmatprep.subr.bf16.mxu0 0
      %603 = vmatpush1.bf16.msra.mxu0 0
      %604 = vmatprep.subr.bf16.mxu0 0
      %605 = vmatpush1.bf16.msra.mxu0 0
      %606 = vmatprep.subr.bf16.mxu0 0
      %607 = vmatpush1.bf16.msra.mxu0 0
      %608 = vmatprep.subr.bf16.mxu0 0
      %609 = vmatpush1.bf16.msra.mxu0 0
      %610 = vmatprep.subr.bf16.mxu0 0
      %611 = vmatpush1.bf16.msra.mxu0 0
      %612 = vmatprep.subr.bf16.mxu0 0
      %613 = vmatpush1.bf16.msra.mxu0 0
      %614 = vmatprep.subr.bf16.mxu0 0
      %615 = vmatpush1.bf16.msra.mxu0 0
      %616 = vmatprep.subr.bf16.mxu0 0
      %617 = vmatpush1.bf16.msra.mxu0 0
      %618 = vmatprep.subr.bf16.mxu0 0
      %619 = vmatpush1.bf16.msra.mxu0 0
      %620 = vmatprep.subr.bf16.mxu0 0
      %621 = vmatpush1.bf16.msra.mxu0 0
      %622 = vmatprep.mubr.bf16.mxu0 0
      %623 = vmatmul.mubr.bf16.gmra.mrb[0].mxu0 %v552
      %v624 = vpop.f32.mrb[0].mxu0
      %v625 = vadd.f32 0.0, %v624
      %v626 = vpop.f32.mrb[0].mxu0
      %v627 = vpop.f32.mrb[0].mxu0
      %v628 = vadd.f32 0.0, %v627
      %v629 = vpop.f32.mrb[0].mxu0
      %630 = vmatprep.mubr.bf16.mxu0 0
      %631 = vmatmul.mubr.bf16.gmra.mrb[0].mxu0 %v555
      %v632 = vpop.f32.mrb[0].mxu0
      %v633 = vadd.f32 0.0, %v632
      %v634 = vpop.f32.mrb[0].mxu0
      %v635 = vpop.f32.mrb[0].mxu0
      %v636 = vadd.f32 0.0, %v635
      %v637 = vpop.f32.mrb[0].mxu0
      %638 = vmatprep.mubr.bf16.mxu0 0
      %639 = vmatmul.mubr.bf16.gmra.mrb[0].mxu0 %v558
      %v640 = vpop.f32.mrb[0].mxu0
      %v641 = vadd.f32 0.0, %v640
      %v642 = vpop.f32.mrb[0].mxu0
      %v643 = vpop.f32.mrb[0].mxu0
      %v644 = vadd.f32 0.0, %v643
      %v645 = vpop.f32.mrb[0].mxu0
      %646 = vmatprep.mubr.bf16.mxu0 0
      %647 = vmatmul.mubr.bf16.gmra.mrb[0].mxu0 %v561
      %v648 = vpop.f32.mrb[0].mxu0
      %v649 = vadd.f32 0.0, %v648
      %v650 = vpop.f32.mrb[0].mxu0
      %v651 = vpop.f32.mrb[0].mxu0
      %v652 = vadd.f32 0.0, %v651
      %v653 = vpop.f32.mrb[0].mxu0
      %654 = vmatprep.mubr.bf16.mxu0 0
      %655 = vmatmul.mubr.bf16.gmra.mrb[0].mxu0 %v564
      %v656 = vpop.f32.mrb[0].mxu0
      %v657 = vadd.f32 0.0, %v656
      %v658 = vpop.f32.mrb[0].mxu0
      %v659 = vpop.f32.mrb[0].mxu0
      %v660 = vadd.f32 0.0, %v659
      %v661 = vpop.f32.mrb[0].mxu0
      %662 = vmatprep.mubr.bf16.mxu0 0
      %663 = vmatmul.mubr.bf16.gmra.mrb[0].mxu0 %v567
      %v664 = vpop.f32.mrb[0].mxu0
      %v665 = vadd.f32 0.0, %v664
      %v666 = vpop.f32.mrb[0].mxu0
      %v667 = vpop.f32.mrb[0].mxu0
      %v668 = vadd.f32 0.0, %v667
      %v669 = vpop.f32.mrb[0].mxu0
      %670 = vmatprep.mubr.bf16.mxu0 0
      %671 = vmatmul.mubr.bf16.gmra.mrb[0].mxu0 %v570
      %v672 = vpop.f32.mrb[0].mxu0
      %v673 = vadd.f32 0.0, %v672
      %v674 = vpop.f32.mrb[0].mxu0
      %v675 = vpop.f32.mrb[0].mxu0
      %v676 = vadd.f32 0.0, %v675
      %v677 = vpop.f32.mrb[0].mxu0
      %678 = vmatprep.mubr.bf16.mxu0 0
      %679 = vmatmul.mubr.bf16.gmra.mrb[0].mxu0 %v573
      %v680 = vpop.f32.mrb[0].mxu0
      %v681 = vadd.f32 0.0, %v680
      %v682 = vpop.f32.mrb[0].mxu0
      %v683 = vpop.f32.mrb[0].mxu0
      %v684 = vadd.f32 0.0, %v683
      %v685 = vpop.f32.mrb[0].mxu0
      %686 = vmatprep.mubr.bf16.mxu0 0
      %687 = vmatmul.mubr.bf16.gmra.mrb[0].mxu0 %v576
      %v688 = vpop.f32.mrb[0].mxu0
      %v689 = vadd.f32 0.0, %v688
      %v690 = vpop.f32.mrb[0].mxu0
      %v691 = vpop.f32.mrb[0].mxu0
      %v692 = vadd.f32 0.0, %v691
      %v693 = vpop.f32.mrb[0].mxu0
      %694 = vmatprep.mubr.bf16.mxu0 0
      %695 = vmatmul.mubr.bf16.gmra.mrb[0].mxu0 %v579
      %v696 = vpop.f32.mrb[0].mxu0
      %v697 = vadd.f32 0.0, %v696
      %v698 = vpop.f32.mrb[0].mxu0
      %v699 = vpop.f32.mrb[0].mxu0
      %v700 = vadd.f32 0.0, %v699
      %v701 = vpop.f32.mrb[0].mxu0
      %702 = vmatprep.mubr.bf16.mxu0 0
      %703 = vmatmul.mubr.bf16.gmra.mrb[0].mxu0 %v582
      %v704 = vpop.f32.mrb[0].mxu0
      %v705 = vadd.f32 0.0, %v704
      %v706 = vpop.f32.mrb[0].mxu0
      %v707 = vpop.f32.mrb[0].mxu0
      %v708 = vadd.f32 0.0, %v707
      %v709 = vpop.f32.mrb[0].mxu0
      %710 = vmatprep.mubr.bf16.mxu0 0
      %711 = vmatmul.mubr.bf16.gmra.mrb[0].mxu0 %v585
      %v712 = vpop.f32.mrb[0].mxu0
      %v713 = vadd.f32 0.0, %v712
      %v714 = vpop.f32.mrb[0].mxu0
      %v715 = vpop.f32.mrb[0].mxu0
      %v716 = vadd.f32 0.0, %v715
      %v717 = vpop.f32.mrb[0].mxu0
      %718 = vmatprep.mubr.bf16.mxu0 0
      %719 = vmatmul.mubr.bf16.gmra.mrb[0].mxu0 %v588
      %v720 = vpop.f32.mrb[0].mxu0
      %v721 = vadd.f32 0.0, %v720
      %v722 = vpop.f32.mrb[0].mxu0
      %v723 = vpop.f32.mrb[0].mxu0
      %v724 = vpop.f32.mrb[0].mxu0
      %725 = vdwg.mxu0
      %v726 = vld [vmem:[%s150] sm:$0xff]
      %v727 = vld [vmem:[%s150 + $0x8] sm:$0xff]
      %v728 = vld [vmem:[%s150 + $0x10] sm:$0xff]
      %v729 = vld [vmem:[%s150 + $0x18] sm:$0xff]
      %v730 = vld [vmem:[%s150 + $0x20] sm:$0xff]
      %v731 = vld [vmem:[%s150 + $0x28] sm:$0xff]
      %v732 = vld [vmem:[%s150 + $0x30] sm:$0xff]
      %v733 = vld [vmem:[%s150 + $0x38] sm:$0xff]
      %v734 = vld [vmem:[%s150 + $0x40] sm:$0xff]
      %v735 = vld [vmem:[%s150 + $0x48] sm:$0xff]
      %v736 = vld [vmem:[%s150 + $0x50] sm:$0xff]
      %v737 = vld [vmem:[%s150 + $0x58] sm:$0xff]
      %v738 = vld [vmem:[%s150 + $0x60] sm:$0xff]
      %v739 = vld [vmem:[%s150 + $0x68] sm:$0xff]
      %v740 = vld [vmem:[%s150 + $0x70] sm:$0xff]
      %v741 = vld [vmem:[%s150 + $0x78] sm:$0xff]
      %v742 = vld [vmem:[%s150 + $0x80] sm:$0xff]
      %v743 = vld [vmem:[%s150 + $0x88] sm:$0xff]
      %v744 = vld [vmem:[%s150 + $0x90] sm:$0xff]
      %v745 = vld [vmem:[%s150 + $0x98] sm:$0xff]
      %v746 = vld [vmem:[%s150 + $0xa0] sm:$0xff]
      %v747 = vld [vmem:[%s150 + $0xa8] sm:$0xff]
      %v748 = vld [vmem:[%s150 + $0xb0] sm:$0xff]
      %v749 = vld [vmem:[%s150 + $0xb8] sm:$0xff]
      %v750 = vld [vmem:[%s150 + $0xc0] sm:$0xff]
      %v751 = vadd.f32 %v726, %v625
      %v752 = vadd.f32 %v727, %v628
      %v753 = vadd.f32 %v728, %v633
      %v754 = vadd.f32 %v729, %v636
      %v755 = vadd.f32 %v730, %v641
      %v756 = vadd.f32 %v731, %v644
      %v757 = vadd.f32 %v732, %v649
      %v758 = vadd.f32 %v733, %v652
      %v759 = vadd.f32 %v734, %v657
      %v760 = vadd.f32 %v735, %v660
      %v761 = vadd.f32 %v736, %v665
      %v762 = vadd.f32 %v737, %v668
      %v763 = vadd.f32 %v738, %v673
      %v764 = vadd.f32 %v739, %v676
      %v765 = vadd.f32 %v740, %v681
      %v766 = vadd.f32 %v741, %v684
      %v767 = vadd.f32 %v742, %v689
      %v768 = vadd.f32 %v743, %v692
      %v769 = vadd.f32 %v744, %v697
      %v770 = vadd.f32 %v745, %v700
      %v771 = vadd.f32 %v746, %v705
      %v772 = vadd.f32 %v747, %v708
      %v773 = vadd.f32 %v748, %v713
      %v774 = vadd.f32 %v749, %v716
      %v775 = vadd.f32 %v750, %v721
      %776 = vst [vmem:[%s150] sm:$0xff] %v751
      %777 = vst [vmem:[%s150 + $0x8] sm:$0xff] %v752
      %778 = vst [vmem:[%s150 + $0x10] sm:$0xff] %v753
      %779 = vst [vmem:[%s150 + $0x18] sm:$0xff] %v754
      %780 = vst [vmem:[%s150 + $0x20] sm:$0xff] %v755
      %781 = vst [vmem:[%s150 + $0x28] sm:$0xff] %v756
      %782 = vst [vmem:[%s150 + $0x30] sm:$0xff] %v757
      %783 = vst [vmem:[%s150 + $0x38] sm:$0xff] %v758
      %784 = vst [vmem:[%s150 + $0x40] sm:$0xff] %v759
      %785 = vst [vmem:[%s150 + $0x48] sm:$0xff] %v760
      %786 = vst [vmem:[%s150 + $0x50] sm:$0xff] %v761
      %787 = vst [vmem:[%s150 + $0x58] sm:$0xff] %v762
      %788 = vst [vmem:[%s150 + $0x60] sm:$0xff] %v763
      %789 = vst [vmem:[%s150 + $0x68] sm:$0xff] %v764
      %790 = vst [vmem:[%s150 + $0x70] sm:$0xff] %v765
      %791 = vst [vmem:[%s150 + $0x78] sm:$0xff] %v766
      %792 = vst [vmem:[%s150 + $0x80] sm:$0xff] %v767
      %793 = vst [vmem:[%s150 + $0x88] sm:$0xff] %v768
      %794 = vst [vmem:[%s150 + $0x90] sm:$0xff] %v769
      %795 = vst [vmem:[%s150 + $0x98] sm:$0xff] %v770
      %796 = vst [vmem:[%s150 + $0xa0] sm:$0xff] %v771
      %797 = vst [vmem:[%s150 + $0xa8] sm:$0xff] %v772
      %798 = vst [vmem:[%s150 + $0xb0] sm:$0xff] %v773
      %799 = vst [vmem:[%s150 + $0xb8] sm:$0xff] %v774
      %800 = vst [vmem:[%s150 + $0xc0] sm:$0xff] %v775
      %v801 = vld [vmem:[#allocation2 + $0x2] sm:$0xff]
      %v802 = vld [vmem:[#allocation2 + $0xa] sm:$0xff]
      %v803 = vld [vmem:[#allocation2 + $0x12] sm:$0xff]
      %v804 = vld [vmem:[#allocation2 + $0x1a] sm:$0xff]
      %v805 = vld [vmem:[#allocation2 + $0x22] sm:$0xff]
      %v806 = vld [vmem:[#allocation2 + $0x2a] sm:$0xff]
      %v807 = vld [vmem:[#allocation2 + $0x32] sm:$0xff]
      %v808 = vld [vmem:[#allocation2 + $0x3a] sm:$0xff]
      %v809 = vld [vmem:[#allocation2 + $0x42] sm:$0xff]
      %v810 = vld [vmem:[#allocation2 + $0x4a] sm:$0xff]
      %v811 = vld [vmem:[#allocation2 + $0x52] sm:$0xff]
      %v812 = vld [vmem:[#allocation2 + $0x5a] sm:$0xff]
      %v813 = vld [vmem:[#allocation2 + $0x62] sm:$0xff]
      %v814 = vld [vmem:[#allocation2 + $0x6a] sm:$0xff]
      %v815 = vld [vmem:[#allocation2 + $0x72] sm:$0xff]
      %v816 = vld [vmem:[#allocation2 + $0x7a] sm:$0xff]
      %v817 = vld [vmem:[#allocation2 + $0x82] sm:$0xff]
      %v818 = vld [vmem:[#allocation2 + $0x8a] sm:$0xff]
      %v819 = vld [vmem:[#allocation2 + $0x92] sm:$0xff]
      %v820 = vld [vmem:[#allocation2 + $0x9a] sm:$0xff]
      %v821 = vld [vmem:[#allocation2 + $0xa2] sm:$0xff]
      %v822 = vld [vmem:[#allocation2 + $0xaa] sm:$0xff]
      %v823 = vld [vmem:[#allocation2 + $0xb2] sm:$0xff]
      %v824 = vld [vmem:[#allocation2 + $0xba] sm:$0xff]
      %v825 = vld [vmem:[#allocation2 + $0xc2] sm:$0xff]
      %v826 = vpack.c.bf16 %v802, %v801
      %v827 = vpack.c.bf16 %v804, %v803
      %v828 = vpack.c.bf16 %v806, %v805
      %v829 = vpack.c.bf16 %v808, %v807
      %v830 = vpack.c.bf16 %v810, %v809
      %v831 = vpack.c.bf16 %v812, %v811
      %v832 = vpack.c.bf16 %v814, %v813
      %v833 = vpack.c.bf16 %v816, %v815
      %v834 = vpack.c.bf16 %v818, %v817
      %v835 = vpack.c.bf16 %v820, %v819
      %v836 = vpack.c.bf16 %v822, %v821
      %v837 = vpack.c.bf16 %v824, %v823
      %v838 = vpack.c.bf16 %v825, %v825
      %s839 = scalar_lea.vmem %s1, 64
      %v840 = vld [vmem:[%s839] sm:$0xf]
      %v841 = vld [vmem:[%s839 + $0x4] sm:$0xf]
      %v842 = vld [vmem:[%s839 + $0x8] sm:$0xf]
      %v843 = vld [vmem:[%s839 + $0xc] sm:$0xf]
      %v844 = vld [vmem:[%s839 + $0x10] sm:$0xf]
      %v845 = vld [vmem:[%s839 + $0x14] sm:$0xf]
      %v846 = vld [vmem:[%s839 + $0x18] sm:$0xf]
      %v847 = vld [vmem:[%s839 + $0x1c] sm:$0xf]
      %v856 = vunpack.c.l.b16 %v840
      %v857 = vunpack.c.l.b16 %v841
      %v858 = vunpack.c.l.b16 %v842
      %v859 = vunpack.c.l.b16 %v843
      %v860 = vunpack.c.l.b16 %v844
      %v861 = vunpack.c.l.b16 %v845
      %v862 = vunpack.c.l.b16 %v846
      %v863 = vunpack.c.l.b16 %v847
      %v864 = vpack.c.b16 %v857, %v856
      %v865 = vpack.c.b16 %v859, %v858
      %v866 = vpack.c.b16 %v861, %v860
      %v867 = vpack.c.b16 %v863, %v862
      %v873 = vsel %vm182, %v826, 0
      %v876 = vsel %vm182, %v827, 0
      %v879 = vsel %vm182, %v828, 0
      %v882 = vsel %vm182, %v829, 0
      %v885 = vsel %vm182, %v830, 0
      %v888 = vsel %vm182, %v831, 0
      %v891 = vsel %vm182, %v832, 0
      %v894 = vsel %vm182, %v833, 0
      %v897 = vsel %vm182, %v834, 0
      %v900 = vsel %vm182, %v835, 0
      %v903 = vsel %vm182, %v836, 0
      %v906 = vsel %vm182, %v837, 0
      %v909 = vsel %vm182, %v838, 0
      %911 = vmatprep.subr.bf16.mxu0 0
      %912 = vmatpush1.bf16.msra.mxu0 %v864
      %913 = vmatprep.subr.bf16.mxu0 0
      %914 = vmatpush1.bf16.msra.mxu0 %v865
      %915 = vmatprep.subr.bf16.mxu0 0
      %916 = vmatpush1.bf16.msra.mxu0 %v866
      %917 = vmatprep.subr.bf16.mxu0 0
      %918 = vmatpush1.bf16.msra.mxu0 %v867
      %919 = vmatprep.subr.bf16.mxu0 0
      %920 = vmatpush1.bf16.msra.mxu0 0
      %921 = vmatprep.subr.bf16.mxu0 0
      %922 = vmatpush1.bf16.msra.mxu0 0
      %923 = vmatprep.subr.bf16.mxu0 0
      %924 = vmatpush1.bf16.msra.mxu0 0
      %925 = vmatprep.subr.bf16.mxu0 0
      %926 = vmatpush1.bf16.msra.mxu0 0
      %927 = vmatprep.subr.bf16.mxu0 0
      %928 = vmatpush1.bf16.msra.mxu0 0
      %929 = vmatprep.subr.bf16.mxu0 0
      %930 = vmatpush1.bf16.msra.mxu0 0
      %931 = vmatprep.subr.bf16.mxu0 0
      %932 = vmatpush1.bf16.msra.mxu0 0
      %933 = vmatprep.subr.bf16.mxu0 0
      %934 = vmatpush1.bf16.msra.mxu0 0
      %935 = vmatprep.subr.bf16.mxu0 0
      %936 = vmatpush1.bf16.msra.mxu0 0
      %937 = vmatprep.subr.bf16.mxu0 0
      %938 = vmatpush1.bf16.msra.mxu0 0
      %939 = vmatprep.subr.bf16.mxu0 0
      %940 = vmatpush1.bf16.msra.mxu0 0
      %941 = vmatprep.subr.bf16.mxu0 0
      %942 = vmatpush1.bf16.msra.mxu0 0
      %943 = vmatprep.mubr.bf16.mxu0 0
      %944 = vmatmul.mubr.bf16.gmra.mrb[0].mxu0 %v873
      %v945 = vpop.f32.mrb[0].mxu0
      %v946 = vadd.f32 0.0, %v945
      %v947 = vpop.f32.mrb[0].mxu0
      %v948 = vpop.f32.mrb[0].mxu0
      %v949 = vadd.f32 0.0, %v948
      %v950 = vpop.f32.mrb[0].mxu0
      %951 = vmatprep.mubr.bf16.mxu0 0
      %952 = vmatmul.mubr.bf16.gmra.mrb[0].mxu0 %v876
      %v953 = vpop.f32.mrb[0].mxu0
      %v954 = vadd.f32 0.0, %v953
      %v955 = vpop.f32.mrb[0].mxu0
      %v956 = vpop.f32.mrb[0].mxu0
      %v957 = vadd.f32 0.0, %v956
      %v958 = vpop.f32.mrb[0].mxu0
      %959 = vmatprep.mubr.bf16.mxu0 0
      %960 = vmatmul.mubr.bf16.gmra.mrb[0].mxu0 %v879
      %v961 = vpop.f32.mrb[0].mxu0
      %v962 = vadd.f32 0.0, %v961
      %v963 = vpop.f32.mrb[0].mxu0
      %v964 = vpop.f32.mrb[0].mxu0
      %v965 = vadd.f32 0.0, %v964
      %v966 = vpop.f32.mrb[0].mxu0
      %967 = vmatprep.mubr.bf16.mxu0 0
      %968 = vmatmul.mubr.bf16.gmra.mrb[0].mxu0 %v882
      %v969 = vpop.f32.mrb[0].mxu0
      %v970 = vadd.f32 0.0, %v969
      %v971 = vpop.f32.mrb[0].mxu0
      %v972 = vpop.f32.mrb[0].mxu0
      %v973 = vadd.f32 0.0, %v972
      %v974 = vpop.f32.mrb[0].mxu0
      %975 = vmatprep.mubr.bf16.mxu0 0
      %976 = vmatmul.mubr.bf16.gmra.mrb[0].mxu0 %v885
      %v977 = vpop.f32.mrb[0].mxu0
      %v978 = vadd.f32 0.0, %v977
      %v979 = vpop.f32.mrb[0].mxu0
      %v980 = vpop.f32.mrb[0].mxu0
      %v981 = vadd.f32 0.0, %v980
      %v982 = vpop.f32.mrb[0].mxu0
      %983 = vmatprep.mubr.bf16.mxu0 0
      %984 = vmatmul.mubr.bf16.gmra.mrb[0].mxu0 %v888
      %v985 = vpop.f32.mrb[0].mxu0
      %v986 = vadd.f32 0.0, %v985
      %v987 = vpop.f32.mrb[0].mxu0
      %v988 = vpop.f32.mrb[0].mxu0
      %v989 = vadd.f32 0.0, %v988
      %v990 = vpop.f32.mrb[0].mxu0
      %991 = vmatprep.mubr.bf16.mxu0 0
      %992 = vmatmul.mubr.bf16.gmra.mrb[0].mxu0 %v891
      %v993 = vpop.f32.mrb[0].mxu0
      %v994 = vadd.f32 0.0, %v993
      %v995 = vpop.f32.mrb[0].mxu0
      %v996 = vpop.f32.mrb[0].mxu0
      %v997 = vadd.f32 0.0, %v996
      %v998 = vpop.f32.mrb[0].mxu0
      %999 = vmatprep.mubr.bf16.mxu0 0
      %1000 = vmatmul.mubr.bf16.gmra.mrb[0].mxu0 %v894
      %v1001 = vpop.f32.mrb[0].mxu0
      %v1002 = vadd.f32 0.0, %v1001
      %v1003 = vpop.f32.mrb[0].mxu0
      %v1004 = vpop.f32.mrb[0].mxu0
      %v1005 = vadd.f32 0.0, %v1004
      %v1006 = vpop.f32.mrb[0].mxu0
      %1007 = vmatprep.mubr.bf16.mxu0 0
      %1008 = vmatmul.mubr.bf16.gmra.mrb[0].mxu0 %v897
      %v1009 = vpop.f32.mrb[0].mxu0
      %v1010 = vadd.f32 0.0, %v1009
      %v1011 = vpop.f32.mrb[0].mxu0
      %v1012 = vpop.f32.mrb[0].mxu0
      %v1013 = vadd.f32 0.0, %v1012
      %v1014 = vpop.f32.mrb[0].mxu0
      %1015 = vmatprep.mubr.bf16.mxu0 0
      %1016 = vmatmul.mubr.bf16.gmra.mrb[0].mxu0 %v900
      %v1017 = vpop.f32.mrb[0].mxu0
      %v1018 = vadd.f32 0.0, %v1017
      %v1019 = vpop.f32.mrb[0].mxu0
      %v1020 = vpop.f32.mrb[0].mxu0
      %v1021 = vadd.f32 0.0, %v1020
      %v1022 = vpop.f32.mrb[0].mxu0
      %1023 = vmatprep.mubr.bf16.mxu0 0
      %1024 = vmatmul.mubr.bf16.gmra.mrb[0].mxu0 %v903
      %v1025 = vpop.f32.mrb[0].mxu0
      %v1026 = vadd.f32 0.0, %v1025
      %v1027 = vpop.f32.mrb[0].mxu0
      %v1028 = vpop.f32.mrb[0].mxu0
      %v1029 = vadd.f32 0.0, %v1028
      %v1030 = vpop.f32.mrb[0].mxu0
      %1031 = vmatprep.mubr.bf16.mxu0 0
      %1032 = vmatmul.mubr.bf16.gmra.mrb[0].mxu0 %v906
      %v1033 = vpop.f32.mrb[0].mxu0
      %v1034 = vadd.f32 0.0, %v1033
      %v1035 = vpop.f32.mrb[0].mxu0
      %v1036 = vpop.f32.mrb[0].mxu0
      %v1037 = vadd.f32 0.0, %v1036
      %v1038 = vpop.f32.mrb[0].mxu0
      %1039 = vmatprep.mubr.bf16.mxu0 0
      %1040 = vmatmul.mubr.bf16.gmra.mrb[0].mxu0 %v909
      %v1041 = vpop.f32.mrb[0].mxu0
      %v1042 = vadd.f32 0.0, %v1041
      %v1043 = vpop.f32.mrb[0].mxu0
      %v1044 = vpop.f32.mrb[0].mxu0
      %v1045 = vpop.f32.mrb[0].mxu0
      %1046 = vdwg.mxu0
      %v1047 = vld [vmem:[%s150] sm:$0xff]
      %v1048 = vld [vmem:[%s150 + $0x8] sm:$0xff]
      %v1049 = vld [vmem:[%s150 + $0x10] sm:$0xff]
      %v1050 = vld [vmem:[%s150 + $0x18] sm:$0xff]
      %v1051 = vld [vmem:[%s150 + $0x20] sm:$0xff]
      %v1052 = vld [vmem:[%s150 + $0x28] sm:$0xff]
      %v1053 = vld [vmem:[%s150 + $0x30] sm:$0xff]
      %v1054 = vld [vmem:[%s150 + $0x38] sm:$0xff]
      %v1055 = vld [vmem:[%s150 + $0x40] sm:$0xff]
      %v1056 = vld [vmem:[%s150 + $0x48] sm:$0xff]
      %v1057 = vld [vmem:[%s150 + $0x50] sm:$0xff]
      %v1058 = vld [vmem:[%s150 + $0x58] sm:$0xff]
      %v1059 = vld [vmem:[%s150 + $0x60] sm:$0xff]
      %v1060 = vld [vmem:[%s150 + $0x68] sm:$0xff]
      %v1061 = vld [vmem:[%s150 + $0x70] sm:$0xff]
      %v1062 = vld [vmem:[%s150 + $0x78] sm:$0xff]
      %v1063 = vld [vmem:[%s150 + $0x80] sm:$0xff]
      %v1064 = vld [vmem:[%s150 + $0x88] sm:$0xff]
      %v1065 = vld [vmem:[%s150 + $0x90] sm:$0xff]
      %v1066 = vld [vmem:[%s150 + $0x98] sm:$0xff]
      %v1067 = vld [vmem:[%s150 + $0xa0] sm:$0xff]
      %v1068 = vld [vmem:[%s150 + $0xa8] sm:$0xff]
      %v1069 = vld [vmem:[%s150 + $0xb0] sm:$0xff]
      %v1070 = vld [vmem:[%s150 + $0xb8] sm:$0xff]
      %v1071 = vld [vmem:[%s150 + $0xc0] sm:$0xff]
      %v1072 = vadd.f32 %v1047, %v946
      %v1073 = vadd.f32 %v1048, %v949
      %v1074 = vadd.f32 %v1049, %v954
      %v1075 = vadd.f32 %v1050, %v957
      %v1076 = vadd.f32 %v1051, %v962
      %v1077 = vadd.f32 %v1052, %v965
      %v1078 = vadd.f32 %v1053, %v970
      %v1079 = vadd.f32 %v1054, %v973
      %v1080 = vadd.f32 %v1055, %v978
      %v1081 = vadd.f32 %v1056, %v981
      %v1082 = vadd.f32 %v1057, %v986
      %v1083 = vadd.f32 %v1058, %v989
      %v1084 = vadd.f32 %v1059, %v994
      %v1085 = vadd.f32 %v1060, %v997
      %v1086 = vadd.f32 %v1061, %v1002
      %v1087 = vadd.f32 %v1062, %v1005
      %v1088 = vadd.f32 %v1063, %v1010
      %v1089 = vadd.f32 %v1064, %v1013
      %v1090 = vadd.f32 %v1065, %v1018
      %v1091 = vadd.f32 %v1066, %v1021
      %v1092 = vadd.f32 %v1067, %v1026
      %v1093 = vadd.f32 %v1068, %v1029
      %v1094 = vadd.f32 %v1069, %v1034
      %v1095 = vadd.f32 %v1070, %v1037
      %v1096 = vadd.f32 %v1071, %v1042
      %1097 = vst [vmem:[%s150] sm:$0xff] %v1072
      %1098 = vst [vmem:[%s150 + $0x8] sm:$0xff] %v1073
      %1099 = vst [vmem:[%s150 + $0x10] sm:$0xff] %v1074
      %1100 = vst [vmem:[%s150 + $0x18] sm:$0xff] %v1075
      %1101 = vst [vmem:[%s150 + $0x20] sm:$0xff] %v1076
      %1102 = vst [vmem:[%s150 + $0x28] sm:$0xff] %v1077
      %1103 = vst [vmem:[%s150 + $0x30] sm:$0xff] %v1078
      %1104 = vst [vmem:[%s150 + $0x38] sm:$0xff] %v1079
      %1105 = vst [vmem:[%s150 + $0x40] sm:$0xff] %v1080
      %1106 = vst [vmem:[%s150 + $0x48] sm:$0xff] %v1081
      %1107 = vst [vmem:[%s150 + $0x50] sm:$0xff] %v1082
      %1108 = vst [vmem:[%s150 + $0x58] sm:$0xff] %v1083
      %1109 = vst [vmem:[%s150 + $0x60] sm:$0xff] %v1084
      %1110 = vst [vmem:[%s150 + $0x68] sm:$0xff] %v1085
      %1111 = vst [vmem:[%s150 + $0x70] sm:$0xff] %v1086
      %1112 = vst [vmem:[%s150 + $0x78] sm:$0xff] %v1087
      %1113 = vst [vmem:[%s150 + $0x80] sm:$0xff] %v1088
      %1114 = vst [vmem:[%s150 + $0x88] sm:$0xff] %v1089
      %1115 = vst [vmem:[%s150 + $0x90] sm:$0xff] %v1090
      %1116 = vst [vmem:[%s150 + $0x98] sm:$0xff] %v1091
      %1117 = vst [vmem:[%s150 + $0xa0] sm:$0xff] %v1092
      %1118 = vst [vmem:[%s150 + $0xa8] sm:$0xff] %v1093
      %1119 = vst [vmem:[%s150 + $0xb0] sm:$0xff] %v1094
      %1120 = vst [vmem:[%s150 + $0xb8] sm:$0xff] %v1095
      %1121 = vst [vmem:[%s150 + $0xc0] sm:$0xff] %v1096
      %v1122 = vld [vmem:[#allocation2 + $0x6] sm:$0xff]
      %v1123 = vld [vmem:[#allocation2 + $0xe] sm:$0xff]
      %v1124 = vld [vmem:[#allocation2 + $0x16] sm:$0xff]
      %v1125 = vld [vmem:[#allocation2 + $0x1e] sm:$0xff]
      %v1126 = vld [vmem:[#allocation2 + $0x26] sm:$0xff]
      %v1127 = vld [vmem:[#allocation2 + $0x2e] sm:$0xff]
      %v1128 = vld [vmem:[#allocation2 + $0x36] sm:$0xff]
      %v1129 = vld [vmem:[#allocation2 + $0x3e] sm:$0xff]
      %v1130 = vld [vmem:[#allocation2 + $0x46] sm:$0xff]
      %v1131 = vld [vmem:[#allocation2 + $0x4e] sm:$0xff]
      %v1132 = vld [vmem:[#allocation2 + $0x56] sm:$0xff]
      %v1133 = vld [vmem:[#allocation2 + $0x5e] sm:$0xff]
      %v1134 = vld [vmem:[#allocation2 + $0x66] sm:$0xff]
      %v1135 = vld [vmem:[#allocation2 + $0x6e] sm:$0xff]
      %v1136 = vld [vmem:[#allocation2 + $0x76] sm:$0xff]
      %v1137 = vld [vmem:[#allocation2 + $0x7e] sm:$0xff]
      %v1138 = vld [vmem:[#allocation2 + $0x86] sm:$0xff]
      %v1139 = vld [vmem:[#allocation2 + $0x8e] sm:$0xff]
      %v1140 = vld [vmem:[#allocation2 + $0x96] sm:$0xff]
      %v1141 = vld [vmem:[#allocation2 + $0x9e] sm:$0xff]
      %v1142 = vld [vmem:[#allocation2 + $0xa6] sm:$0xff]
      %v1143 = vld [vmem:[#allocation2 + $0xae] sm:$0xff]
      %v1144 = vld [vmem:[#allocation2 + $0xb6] sm:$0xff]
      %v1145 = vld [vmem:[#allocation2 + $0xbe] sm:$0xff]
      %v1146 = vld [vmem:[#allocation2 + $0xc6] sm:$0xff]
      %v1147 = vpack.c.bf16 %v1123, %v1122
      %v1148 = vpack.c.bf16 %v1125, %v1124
      %v1149 = vpack.c.bf16 %v1127, %v1126
      %v1150 = vpack.c.bf16 %v1129, %v1128
      %v1151 = vpack.c.bf16 %v1131, %v1130
      %v1152 = vpack.c.bf16 %v1133, %v1132
      %v1153 = vpack.c.bf16 %v1135, %v1134
      %v1154 = vpack.c.bf16 %v1137, %v1136
      %v1155 = vpack.c.bf16 %v1139, %v1138
      %v1156 = vpack.c.bf16 %v1141, %v1140
      %v1157 = vpack.c.bf16 %v1143, %v1142
      %v1158 = vpack.c.bf16 %v1145, %v1144
      %v1159 = vpack.c.bf16 %v1146, %v1146
      %s1160 = scalar_lea.vmem %s1, 96
      %v1161 = vld [vmem:[%s1160] sm:$0xf]
      %v1162 = vld [vmem:[%s1160 + $0x4] sm:$0xf]
      %v1163 = vld [vmem:[%s1160 + $0x8] sm:$0xf]
      %v1164 = vld [vmem:[%s1160 + $0xc] sm:$0xf]
      %v1165 = vld [vmem:[%s1160 + $0x10] sm:$0xf]
      %v1166 = vld [vmem:[%s1160 + $0x14] sm:$0xf]
      %v1167 = vld [vmem:[%s1160 + $0x18] sm:$0xf]
      %v1168 = vld [vmem:[%s1160 + $0x1c] sm:$0xf]
      %v1177 = vunpack.c.l.b16 %v1161
      %v1178 = vunpack.c.l.b16 %v1162
      %v1179 = vunpack.c.l.b16 %v1163
      %v1180 = vunpack.c.l.b16 %v1164
      %v1181 = vunpack.c.l.b16 %v1165
      %v1182 = vunpack.c.l.b16 %v1166
      %v1183 = vunpack.c.l.b16 %v1167
      %v1184 = vunpack.c.l.b16 %v1168
      %v1185 = vpack.c.b16 %v1178, %v1177
      %v1186 = vpack.c.b16 %v1180, %v1179
      %v1187 = vpack.c.b16 %v1182, %v1181
      %v1188 = vpack.c.b16 %v1184, %v1183
      %v1194 = vsel %vm182, %v1147, 0
      %v1197 = vsel %vm182, %v1148, 0
      %v1200 = vsel %vm182, %v1149, 0
      %v1203 = vsel %vm182, %v1150, 0
      %v1206 = vsel %vm182, %v1151, 0
      %v1209 = vsel %vm182, %v1152, 0
      %v1212 = vsel %vm182, %v1153, 0
      %v1215 = vsel %vm182, %v1154, 0
      %v1218 = vsel %vm182, %v1155, 0
      %v1221 = vsel %vm182, %v1156, 0
      %v1224 = vsel %vm182, %v1157, 0
      %v1227 = vsel %vm182, %v1158, 0
      %v1230 = vsel %vm182, %v1159, 0
      %1232 = vmatprep.subr.bf16.mxu0 0
      %1233 = vmatpush1.bf16.msra.mxu0 %v1185
      %1234 = vmatprep.subr.bf16.mxu0 0
      %1235 = vmatpush1.bf16.msra.mxu0 %v1186
      %1236 = vmatprep.subr.bf16.mxu0 0
      %1237 = vmatpush1.bf16.msra.mxu0 %v1187
      %1238 = vmatprep.subr.bf16.mxu0 0
      %1239 = vmatpush1.bf16.msra.mxu0 %v1188
      %1240 = vmatprep.subr.bf16.mxu0 0
      %1241 = vmatpush1.bf16.msra.mxu0 0
      %1242 = vmatprep.subr.bf16.mxu0 0
      %1243 = vmatpush1.bf16.msra.mxu0 0
      %1244 = vmatprep.subr.bf16.mxu0 0
      %1245 = vmatpush1.bf16.msra.mxu0 0
      %1246 = vmatprep.subr.bf16.mxu0 0
      %1247 = vmatpush1.bf16.msra.mxu0 0
      %1248 = vmatprep.subr.bf16.mxu0 0
      %1249 = vmatpush1.bf16.msra.mxu0 0
      %1250 = vmatprep.subr.bf16.mxu0 0
      %1251 = vmatpush1.bf16.msra.mxu0 0
      %1252 = vmatprep.subr.bf16.mxu0 0
      %1253 = vmatpush1.bf16.msra.mxu0 0
      %1254 = vmatprep.subr.bf16.mxu0 0
      %1255 = vmatpush1.bf16.msra.mxu0 0
      %1256 = vmatprep.subr.bf16.mxu0 0
      %1257 = vmatpush1.bf16.msra.mxu0 0
      %1258 = vmatprep.subr.bf16.mxu0 0
      %1259 = vmatpush1.bf16.msra.mxu0 0
      %1260 = vmatprep.subr.bf16.mxu0 0
      %1261 = vmatpush1.bf16.msra.mxu0 0
      %1262 = vmatprep.subr.bf16.mxu0 0
      %1263 = vmatpush1.bf16.msra.mxu0 0
      %1264 = vmatprep.mubr.bf16.mxu0 0
      %1265 = vmatmul.mubr.bf16.gmra.mrb[0].mxu0 %v1194
      %v1266 = vpop.f32.mrb[0].mxu0
      %v1267 = vadd.f32 0.0, %v1266
      %v1268 = vpop.f32.mrb[0].mxu0
      %v1269 = vpop.f32.mrb[0].mxu0
      %v1270 = vadd.f32 0.0, %v1269
      %v1271 = vpop.f32.mrb[0].mxu0
      %1272 = vmatprep.mubr.bf16.mxu0 0
      %1273 = vmatmul.mubr.bf16.gmra.mrb[0].mxu0 %v1197
      %v1274 = vpop.f32.mrb[0].mxu0
      %v1275 = vadd.f32 0.0, %v1274
      %v1276 = vpop.f32.mrb[0].mxu0
      %v1277 = vpop.f32.mrb[0].mxu0
      %v1278 = vadd.f32 0.0, %v1277
      %v1279 = vpop.f32.mrb[0].mxu0
      %1280 = vmatprep.mubr.bf16.mxu0 0
      %1281 = vmatmul.mubr.bf16.gmra.mrb[0].mxu0 %v1200
      %v1282 = vpop.f32.mrb[0].mxu0
      %v1283 = vadd.f32 0.0, %v1282
      %v1284 = vpop.f32.mrb[0].mxu0
      %v1285 = vpop.f32.mrb[0].mxu0
      %v1286 = vadd.f32 0.0, %v1285
      %v1287 = vpop.f32.mrb[0].mxu0
      %1288 = vmatprep.mubr.bf16.mxu0 0
      %1289 = vmatmul.mubr.bf16.gmra.mrb[0].mxu0 %v1203
      %v1290 = vpop.f32.mrb[0].mxu0
      %v1291 = vadd.f32 0.0, %v1290
      %v1292 = vpop.f32.mrb[0].mxu0
      %v1293 = vpop.f32.mrb[0].mxu0
      %v1294 = vadd.f32 0.0, %v1293
      %v1295 = vpop.f32.mrb[0].mxu0
      %1296 = vmatprep.mubr.bf16.mxu0 0
      %1297 = vmatmul.mubr.bf16.gmra.mrb[0].mxu0 %v1206
      %v1298 = vpop.f32.mrb[0].mxu0
      %v1299 = vadd.f32 0.0, %v1298
      %v1300 = vpop.f32.mrb[0].mxu0
      %v1301 = vpop.f32.mrb[0].mxu0
      %v1302 = vadd.f32 0.0, %v1301
      %v1303 = vpop.f32.mrb[0].mxu0
      %1304 = vmatprep.mubr.bf16.mxu0 0
      %1305 = vmatmul.mubr.bf16.gmra.mrb[0].mxu0 %v1209
      %v1306 = vpop.f32.mrb[0].mxu0
      %v1307 = vadd.f32 0.0, %v1306
      %v1308 = vpop.f32.mrb[0].mxu0
      %v1309 = vpop.f32.mrb[0].mxu0
      %v1310 = vadd.f32 0.0, %v1309
      %v1311 = vpop.f32.mrb[0].mxu0
      %1312 = vmatprep.mubr.bf16.mxu0 0
      %1313 = vmatmul.mubr.bf16.gmra.mrb[0].mxu0 %v1212
      %v1314 = vpop.f32.mrb[0].mxu0
      %v1315 = vadd.f32 0.0, %v1314
      %v1316 = vpop.f32.mrb[0].mxu0
      %v1317 = vpop.f32.mrb[0].mxu0
      %v1318 = vadd.f32 0.0, %v1317
      %v1319 = vpop.f32.mrb[0].mxu0
      %1320 = vmatprep.mubr.bf16.mxu0 0
      %1321 = vmatmul.mubr.bf16.gmra.mrb[0].mxu0 %v1215
      %v1322 = vpop.f32.mrb[0].mxu0
      %v1323 = vadd.f32 0.0, %v1322
      %v1324 = vpop.f32.mrb[0].mxu0
      %v1325 = vpop.f32.mrb[0].mxu0
      %v1326 = vadd.f32 0.0, %v1325
      %v1327 = vpop.f32.mrb[0].mxu0
      %1328 = vmatprep.mubr.bf16.mxu0 0
      %1329 = vmatmul.mubr.bf16.gmra.mrb[0].mxu0 %v1218
      %v1330 = vpop.f32.mrb[0].mxu0
      %v1331 = vadd.f32 0.0, %v1330
      %v1332 = vpop.f32.mrb[0].mxu0
      %v1333 = vpop.f32.mrb[0].mxu0
      %v1334 = vadd.f32 0.0, %v1333
      %v1335 = vpop.f32.mrb[0].mxu0
      %1336 = vmatprep.mubr.bf16.mxu0 0
      %1337 = vmatmul.mubr.bf16.gmra.mrb[0].mxu0 %v1221
      %v1338 = vpop.f32.mrb[0].mxu0
      %v1339 = vadd.f32 0.0, %v1338
      %v1340 = vpop.f32.mrb[0].mxu0
      %v1341 = vpop.f32.mrb[0].mxu0
      %v1342 = vadd.f32 0.0, %v1341
      %v1343 = vpop.f32.mrb[0].mxu0
      %1344 = vmatprep.mubr.bf16.mxu0 0
      %1345 = vmatmul.mubr.bf16.gmra.mrb[0].mxu0 %v1224
      %v1346 = vpop.f32.mrb[0].mxu0
      %v1347 = vadd.f32 0.0, %v1346
      %v1348 = vpop.f32.mrb[0].mxu0
      %v1349 = vpop.f32.mrb[0].mxu0
      %v1350 = vadd.f32 0.0, %v1349
      %v1351 = vpop.f32.mrb[0].mxu0
      %1352 = vmatprep.mubr.bf16.mxu0 0
      %1353 = vmatmul.mubr.bf16.gmra.mrb[0].mxu0 %v1227
      %v1354 = vpop.f32.mrb[0].mxu0
      %v1355 = vadd.f32 0.0, %v1354
      %v1356 = vpop.f32.mrb[0].mxu0
      %v1357 = vpop.f32.mrb[0].mxu0
      %v1358 = vadd.f32 0.0, %v1357
      %v1359 = vpop.f32.mrb[0].mxu0
      %1360 = vmatprep.mubr.bf16.mxu0 0
      %1361 = vmatmul.mubr.bf16.gmra.mrb[0].mxu0 %v1230
      %v1362 = vpop.f32.mrb[0].mxu0
      %v1363 = vadd.f32 0.0, %v1362
      %v1364 = vpop.f32.mrb[0].mxu0
      %v1365 = vpop.f32.mrb[0].mxu0
      %v1366 = vpop.f32.mrb[0].mxu0
      %1367 = vdwg.mxu0
      %v1368 = vld [vmem:[%s150] sm:$0xff]
      %v1369 = vld [vmem:[%s150 + $0x8] sm:$0xff]
      %v1370 = vld [vmem:[%s150 + $0x10] sm:$0xff]
      %v1371 = vld [vmem:[%s150 + $0x18] sm:$0xff]
      %v1372 = vld [vmem:[%s150 + $0x20] sm:$0xff]
      %v1373 = vld [vmem:[%s150 + $0x28] sm:$0xff]
      %v1374 = vld [vmem:[%s150 + $0x30] sm:$0xff]
      %v1375 = vld [vmem:[%s150 + $0x38] sm:$0xff]
      %v1376 = vld [vmem:[%s150 + $0x40] sm:$0xff]
      %v1377 = vld [vmem:[%s150 + $0x48] sm:$0xff]
      %v1378 = vld [vmem:[%s150 + $0x50] sm:$0xff]
      %v1379 = vld [vmem:[%s150 + $0x58] sm:$0xff]
      %v1380 = vld [vmem:[%s150 + $0x60] sm:$0xff]
      %v1381 = vld [vmem:[%s150 + $0x68] sm:$0xff]
      %v1382 = vld [vmem:[%s150 + $0x70] sm:$0xff]
      %v1383 = vld [vmem:[%s150 + $0x78] sm:$0xff]
      %v1384 = vld [vmem:[%s150 + $0x80] sm:$0xff]
      %v1385 = vld [vmem:[%s150 + $0x88] sm:$0xff]
      %v1386 = vld [vmem:[%s150 + $0x90] sm:$0xff]
      %v1387 = vld [vmem:[%s150 + $0x98] sm:$0xff]
      %v1388 = vld [vmem:[%s150 + $0xa0] sm:$0xff]
      %v1389 = vld [vmem:[%s150 + $0xa8] sm:$0xff]
      %v1390 = vld [vmem:[%s150 + $0xb0] sm:$0xff]
      %v1391 = vld [vmem:[%s150 + $0xb8] sm:$0xff]
      %v1392 = vld [vmem:[%s150 + $0xc0] sm:$0xff]
      %v1393 = vadd.f32 %v1368, %v1267
      %v1394 = vadd.f32 %v1369, %v1270
      %v1395 = vadd.f32 %v1370, %v1275
      %v1396 = vadd.f32 %v1371, %v1278
      %v1397 = vadd.f32 %v1372, %v1283
      %v1398 = vadd.f32 %v1373, %v1286
      %v1399 = vadd.f32 %v1374, %v1291
      %v1400 = vadd.f32 %v1375, %v1294
      %v1401 = vadd.f32 %v1376, %v1299
      %v1402 = vadd.f32 %v1377, %v1302
      %v1403 = vadd.f32 %v1378, %v1307
      %v1404 = vadd.f32 %v1379, %v1310
      %v1405 = vadd.f32 %v1380, %v1315
      %v1406 = vadd.f32 %v1381, %v1318
      %v1407 = vadd.f32 %v1382, %v1323
      %v1408 = vadd.f32 %v1383, %v1326
      %v1409 = vadd.f32 %v1384, %v1331
      %v1410 = vadd.f32 %v1385, %v1334
      %v1411 = vadd.f32 %v1386, %v1339
      %v1412 = vadd.f32 %v1387, %v1342
      %v1413 = vadd.f32 %v1388, %v1347
      %v1414 = vadd.f32 %v1389, %v1350
      %v1415 = vadd.f32 %v1390, %v1355
      %v1416 = vadd.f32 %v1391, %v1358
      %v1417 = vadd.f32 %v1392, %v1363
      %1418 = vst [vmem:[%s150] sm:$0xff] %v1393
      %1419 = vst [vmem:[%s150 + $0x8] sm:$0xff] %v1394
      %1420 = vst [vmem:[%s150 + $0x10] sm:$0xff] %v1395
      %1421 = vst [vmem:[%s150 + $0x18] sm:$0xff] %v1396
      %1422 = vst [vmem:[%s150 + $0x20] sm:$0xff] %v1397
      %1423 = vst [vmem:[%s150 + $0x28] sm:$0xff] %v1398
      %1424 = vst [vmem:[%s150 + $0x30] sm:$0xff] %v1399
      %1425 = vst [vmem:[%s150 + $0x38] sm:$0xff] %v1400
      %1426 = vst [vmem:[%s150 + $0x40] sm:$0xff] %v1401
      %1427 = vst [vmem:[%s150 + $0x48] sm:$0xff] %v1402
      %1428 = vst [vmem:[%s150 + $0x50] sm:$0xff] %v1403
      %1429 = vst [vmem:[%s150 + $0x58] sm:$0xff] %v1404
      %1430 = vst [vmem:[%s150 + $0x60] sm:$0xff] %v1405
      %1431 = vst [vmem:[%s150 + $0x68] sm:$0xff] %v1406
      %1432 = vst [vmem:[%s150 + $0x70] sm:$0xff] %v1407
      %1433 = vst [vmem:[%s150 + $0x78] sm:$0xff] %v1408
      %1434 = vst [vmem:[%s150 + $0x80] sm:$0xff] %v1409
      %1435 = vst [vmem:[%s150 + $0x88] sm:$0xff] %v1410
      %1436 = vst [vmem:[%s150 + $0x90] sm:$0xff] %v1411
      %1437 = vst [vmem:[%s150 + $0x98] sm:$0xff] %v1412
      %1438 = vst [vmem:[%s150 + $0xa0] sm:$0xff] %v1413
      %1439 = vst [vmem:[%s150 + $0xa8] sm:$0xff] %v1414
      %1440 = vst [vmem:[%s150 + $0xb0] sm:$0xff] %v1415
      %1441 = vst [vmem:[%s150 + $0xb8] sm:$0xff] %v1416
      %1442 = vst [vmem:[%s150 + $0xc0] sm:$0xff] %v1417
      %v1443 = vld [vmem:[#allocation2 + $0x7] sm:$0xff]
      %v1444 = vld [vmem:[#allocation2 + $0xf] sm:$0xff]
      %v1445 = vld [vmem:[#allocation2 + $0x17] sm:$0xff]
      %v1446 = vld [vmem:[#allocation2 + $0x1f] sm:$0xff]
      %v1447 = vld [vmem:[#allocation2 + $0x27] sm:$0xff]
      %v1448 = vld [vmem:[#allocation2 + $0x2f] sm:$0xff]
      %v1449 = vld [vmem:[#allocation2 + $0x37] sm:$0xff]
      %v1450 = vld [vmem:[#allocation2 + $0x3f] sm:$0xff]
      %v1451 = vld [vmem:[#allocation2 + $0x47] sm:$0xff]
      %v1452 = vld [vmem:[#allocation2 + $0x4f] sm:$0xff]
      %v1453 = vld [vmem:[#allocation2 + $0x57] sm:$0xff]
      %v1454 = vld [vmem:[#allocation2 + $0x5f] sm:$0xff]
      %v1455 = vld [vmem:[#allocation2 + $0x67] sm:$0xff]
      %v1456 = vld [vmem:[#allocation2 + $0x6f] sm:$0xff]
      %v1457 = vld [vmem:[#allocation2 + $0x77] sm:$0xff]
      %v1458 = vld [vmem:[#allocation2 + $0x7f] sm:$0xff]
      %v1459 = vld [vmem:[#allocation2 + $0x87] sm:$0xff]
      %v1460 = vld [vmem:[#allocation2 + $0x8f] sm:$0xff]
      %v1461 = vld [vmem:[#allocation2 + $0x97] sm:$0xff]
      %v1462 = vld [vmem:[#allocation2 + $0x9f] sm:$0xff]
      %v1463 = vld [vmem:[#allocation2 + $0xa7] sm:$0xff]
      %v1464 = vld [vmem:[#allocation2 + $0xaf] sm:$0xff]
      %v1465 = vld [vmem:[#allocation2 + $0xb7] sm:$0xff]
      %v1466 = vld [vmem:[#allocation2 + $0xbf] sm:$0xff]
      %v1467 = vld [vmem:[#allocation2 + $0xc7] sm:$0xff]
      %v1468 = vpack.c.bf16 %v1444, %v1443
      %v1469 = vpack.c.bf16 %v1446, %v1445
      %v1470 = vpack.c.bf16 %v1448, %v1447
      %v1471 = vpack.c.bf16 %v1450, %v1449
      %v1472 = vpack.c.bf16 %v1452, %v1451
      %v1473 = vpack.c.bf16 %v1454, %v1453
      %v1474 = vpack.c.bf16 %v1456, %v1455
      %v1475 = vpack.c.bf16 %v1458, %v1457
      %v1476 = vpack.c.bf16 %v1460, %v1459
      %v1477 = vpack.c.bf16 %v1462, %v1461
      %v1478 = vpack.c.bf16 %v1464, %v1463
      %v1479 = vpack.c.bf16 %v1466, %v1465
      %v1480 = vpack.c.bf16 %v1467, %v1467
      %s1481 = scalar_lea.vmem %s1, 128
      %v1482 = vld [vmem:[%s1481] sm:$0xf]
      %v1483 = vld [vmem:[%s1481 + $0x4] sm:$0xf]
      %v1484 = vld [vmem:[%s1481 + $0x8] sm:$0xf]
      %v1485 = vld [vmem:[%s1481 + $0xc] sm:$0xf]
      %v1486 = vld [vmem:[%s1481 + $0x10] sm:$0xf]
      %v1487 = vld [vmem:[%s1481 + $0x14] sm:$0xf]
      %v1488 = vld [vmem:[%s1481 + $0x18] sm:$0xf]
      %v1489 = vld [vmem:[%s1481 + $0x1c] sm:$0xf]
      %v1498 = vunpack.c.l.b16 %v1482
      %v1499 = vunpack.c.l.b16 %v1483
      %v1500 = vunpack.c.l.b16 %v1484
      %v1501 = vunpack.c.l.b16 %v1485
      %v1502 = vunpack.c.l.b16 %v1486
      %v1503 = vunpack.c.l.b16 %v1487
      %v1504 = vunpack.c.l.b16 %v1488
      %v1505 = vunpack.c.l.b16 %v1489
      %v1506 = vpack.c.b16 %v1499, %v1498
      %v1507 = vpack.c.b16 %v1501, %v1500
      %v1508 = vpack.c.b16 %v1503, %v1502
      %v1509 = vpack.c.b16 %v1505, %v1504
      %v1515 = vsel %vm182, %v1468, 0
      %v1518 = vsel %vm182, %v1469, 0
      %v1521 = vsel %vm182, %v1470, 0
      %v1524 = vsel %vm182, %v1471, 0
      %v1527 = vsel %vm182, %v1472, 0
      %v1530 = vsel %vm182, %v1473, 0
      %v1533 = vsel %vm182, %v1474, 0
      %v1536 = vsel %vm182, %v1475, 0
      %v1539 = vsel %vm182, %v1476, 0
      %v1542 = vsel %vm182, %v1477, 0
      %v1545 = vsel %vm182, %v1478, 0
      %v1548 = vsel %vm182, %v1479, 0
      %v1551 = vsel %vm182, %v1480, 0
      %1553 = vmatprep.subr.bf16.mxu0 0
      %1554 = vmatpush1.bf16.msra.mxu0 %v1506
      %1555 = vmatprep.subr.bf16.mxu0 0
      %1556 = vmatpush1.bf16.msra.mxu0 %v1507
      %1557 = vmatprep.subr.bf16.mxu0 0
      %1558 = vmatpush1.bf16.msra.mxu0 %v1508
      %1559 = vmatprep.subr.bf16.mxu0 0
      %1560 = vmatpush1.bf16.msra.mxu0 %v1509
      %1561 = vmatprep.subr.bf16.mxu0 0
      %1562 = vmatpush1.bf16.msra.mxu0 0
      %1563 = vmatprep.subr.bf16.mxu0 0
      %1564 = vmatpush1.bf16.msra.mxu0 0
      %1565 = vmatprep.subr.bf16.mxu0 0
      %1566 = vmatpush1.bf16.msra.mxu0 0
      %1567 = vmatprep.subr.bf16.mxu0 0
      %1568 = vmatpush1.bf16.msra.mxu0 0
      %1569 = vmatprep.subr.bf16.mxu0 0
      %1570 = vmatpush1.bf16.msra.mxu0 0
      %1571 = vmatprep.subr.bf16.mxu0 0
      %1572 = vmatpush1.bf16.msra.mxu0 0
      %1573 = vmatprep.subr.bf16.mxu0 0
      %1574 = vmatpush1.bf16.msra.mxu0 0
      %1575 = vmatprep.subr.bf16.mxu0 0
      %1576 = vmatpush1.bf16.msra.mxu0 0
      %1577 = vmatprep.subr.bf16.mxu0 0
      %1578 = vmatpush1.bf16.msra.mxu0 0
      %1579 = vmatprep.subr.bf16.mxu0 0
      %1580 = vmatpush1.bf16.msra.mxu0 0
      %1581 = vmatprep.subr.bf16.mxu0 0
      %1582 = vmatpush1.bf16.msra.mxu0 0
      %1583 = vmatprep.subr.bf16.mxu0 0
      %1584 = vmatpush1.bf16.msra.mxu0 0
      %1585 = vmatprep.mubr.bf16.mxu0 0
      %1586 = vmatmul.mubr.bf16.gmra.mrb[0].mxu0 %v1515
      %v1587 = vpop.f32.mrb[0].mxu0
      %v1588 = vadd.f32 0.0, %v1587
      %v1589 = vpop.f32.mrb[0].mxu0
      %v1590 = vpop.f32.mrb[0].mxu0
      %v1591 = vadd.f32 0.0, %v1590
      %v1592 = vpop.f32.mrb[0].mxu0
      %1593 = vmatprep.mubr.bf16.mxu0 0
      %1594 = vmatmul.mubr.bf16.gmra.mrb[0].mxu0 %v1518
      %v1595 = vpop.f32.mrb[0].mxu0
      %v1596 = vadd.f32 0.0, %v1595
      %v1597 = vpop.f32.mrb[0].mxu0
      %v1598 = vpop.f32.mrb[0].mxu0
      %v1599 = vadd.f32 0.0, %v1598
      %v1600 = vpop.f32.mrb[0].mxu0
      %1601 = vmatprep.mubr.bf16.mxu0 0
      %1602 = vmatmul.mubr.bf16.gmra.mrb[0].mxu0 %v1521
      %v1603 = vpop.f32.mrb[0].mxu0
      %v1604 = vadd.f32 0.0, %v1603
      %v1605 = vpop.f32.mrb[0].mxu0
      %v1606 = vpop.f32.mrb[0].mxu0
      %v1607 = vadd.f32 0.0, %v1606
      %v1608 = vpop.f32.mrb[0].mxu0
      %1609 = vmatprep.mubr.bf16.mxu0 0
      %1610 = vmatmul.mubr.bf16.gmra.mrb[0].mxu0 %v1524
      %v1611 = vpop.f32.mrb[0].mxu0
      %v1612 = vadd.f32 0.0, %v1611
      %v1613 = vpop.f32.mrb[0].mxu0
      %v1614 = vpop.f32.mrb[0].mxu0
      %v1615 = vadd.f32 0.0, %v1614
      %v1616 = vpop.f32.mrb[0].mxu0
      %1617 = vmatprep.mubr.bf16.mxu0 0
      %1618 = vmatmul.mubr.bf16.gmra.mrb[0].mxu0 %v1527
      %v1619 = vpop.f32.mrb[0].mxu0
      %v1620 = vadd.f32 0.0, %v1619
      %v1621 = vpop.f32.mrb[0].mxu0
      %v1622 = vpop.f32.mrb[0].mxu0
      %v1623 = vadd.f32 0.0, %v1622
      %v1624 = vpop.f32.mrb[0].mxu0
      %1625 = vmatprep.mubr.bf16.mxu0 0
      %1626 = vmatmul.mubr.bf16.gmra.mrb[0].mxu0 %v1530
      %v1627 = vpop.f32.mrb[0].mxu0
      %v1628 = vadd.f32 0.0, %v1627
      %v1629 = vpop.f32.mrb[0].mxu0
      %v1630 = vpop.f32.mrb[0].mxu0
      %v1631 = vadd.f32 0.0, %v1630
      %v1632 = vpop.f32.mrb[0].mxu0
      %1633 = vmatprep.mubr.bf16.mxu0 0
      %1634 = vmatmul.mubr.bf16.gmra.mrb[0].mxu0 %v1533
      %v1635 = vpop.f32.mrb[0].mxu0
      %v1636 = vadd.f32 0.0, %v1635
      %v1637 = vpop.f32.mrb[0].mxu0
      %v1638 = vpop.f32.mrb[0].mxu0
      %v1639 = vadd.f32 0.0, %v1638
      %v1640 = vpop.f32.mrb[0].mxu0
      %1641 = vmatprep.mubr.bf16.mxu0 0
      %1642 = vmatmul.mubr.bf16.gmra.mrb[0].mxu0 %v1536
      %v1643 = vpop.f32.mrb[0].mxu0
      %v1644 = vadd.f32 0.0, %v1643
      %v1645 = vpop.f32.mrb[0].mxu0
      %v1646 = vpop.f32.mrb[0].mxu0
      %v1647 = vadd.f32 0.0, %v1646
      %v1648 = vpop.f32.mrb[0].mxu0
      %1649 = vmatprep.mubr.bf16.mxu0 0
      %1650 = vmatmul.mubr.bf16.gmra.mrb[0].mxu0 %v1539
      %v1651 = vpop.f32.mrb[0].mxu0
      %v1652 = vadd.f32 0.0, %v1651
      %v1653 = vpop.f32.mrb[0].mxu0
      %v1654 = vpop.f32.mrb[0].mxu0
      %v1655 = vadd.f32 0.0, %v1654
      %v1656 = vpop.f32.mrb[0].mxu0
      %1657 = vmatprep.mubr.bf16.mxu0 0
      %1658 = vmatmul.mubr.bf16.gmra.mrb[0].mxu0 %v1542
      %v1659 = vpop.f32.mrb[0].mxu0
      %v1660 = vadd.f32 0.0, %v1659
      %v1661 = vpop.f32.mrb[0].mxu0
      %v1662 = vpop.f32.mrb[0].mxu0
      %v1663 = vadd.f32 0.0, %v1662
      %v1664 = vpop.f32.mrb[0].mxu0
      %1665 = vmatprep.mubr.bf16.mxu0 0
      %1666 = vmatmul.mubr.bf16.gmra.mrb[0].mxu0 %v1545
      %v1667 = vpop.f32.mrb[0].mxu0
      %v1668 = vadd.f32 0.0, %v1667
      %v1669 = vpop.f32.mrb[0].mxu0
      %v1670 = vpop.f32.mrb[0].mxu0
      %v1671 = vadd.f32 0.0, %v1670
      %v1672 = vpop.f32.mrb[0].mxu0
      %1673 = vmatprep.mubr.bf16.mxu0 0
      %1674 = vmatmul.mubr.bf16.gmra.mrb[0].mxu0 %v1548
      %v1675 = vpop.f32.mrb[0].mxu0
      %v1676 = vadd.f32 0.0, %v1675
      %v1677 = vpop.f32.mrb[0].mxu0
      %v1678 = vpop.f32.mrb[0].mxu0
      %v1679 = vadd.f32 0.0, %v1678
      %v1680 = vpop.f32.mrb[0].mxu0
      %1681 = vmatprep.mubr.bf16.mxu0 0
      %1682 = vmatmul.mubr.bf16.gmra.mrb[0].mxu0 %v1551
      %v1683 = vpop.f32.mrb[0].mxu0
      %v1684 = vadd.f32 0.0, %v1683
      %v1685 = vpop.f32.mrb[0].mxu0
      %v1686 = vpop.f32.mrb[0].mxu0
      %v1687 = vpop.f32.mrb[0].mxu0
      %1688 = vdwg.mxu0
      %v1689 = vld [vmem:[%s150] sm:$0xff]
      %v1690 = vld [vmem:[%s150 + $0x8] sm:$0xff]
      %v1691 = vld [vmem:[%s150 + $0x10] sm:$0xff]
      %v1692 = vld [vmem:[%s150 + $0x18] sm:$0xff]
      %v1693 = vld [vmem:[%s150 + $0x20] sm:$0xff]
      %v1694 = vld [vmem:[%s150 + $0x28] sm:$0xff]
      %v1695 = vld [vmem:[%s150 + $0x30] sm:$0xff]
      %v1696 = vld [vmem:[%s150 + $0x38] sm:$0xff]
      %v1697 = vld [vmem:[%s150 + $0x40] sm:$0xff]
      %v1698 = vld [vmem:[%s150 + $0x48] sm:$0xff]
      %v1699 = vld [vmem:[%s150 + $0x50] sm:$0xff]
      %v1700 = vld [vmem:[%s150 + $0x58] sm:$0xff]
      %v1701 = vld [vmem:[%s150 + $0x60] sm:$0xff]
      %v1702 = vld [vmem:[%s150 + $0x68] sm:$0xff]
      %v1703 = vld [vmem:[%s150 + $0x70] sm:$0xff]
      %v1704 = vld [vmem:[%s150 + $0x78] sm:$0xff]
      %v1705 = vld [vmem:[%s150 + $0x80] sm:$0xff]
      %v1706 = vld [vmem:[%s150 + $0x88] sm:$0xff]
      %v1707 = vld [vmem:[%s150 + $0x90] sm:$0xff]
      %v1708 = vld [vmem:[%s150 + $0x98] sm:$0xff]
      %v1709 = vld [vmem:[%s150 + $0xa0] sm:$0xff]
      %v1710 = vld [vmem:[%s150 + $0xa8] sm:$0xff]
      %v1711 = vld [vmem:[%s150 + $0xb0] sm:$0xff]
      %v1712 = vld [vmem:[%s150 + $0xb8] sm:$0xff]
      %v1713 = vld [vmem:[%s150 + $0xc0] sm:$0xff]
      %v1714 = vadd.f32 %v1689, %v1588
      %v1715 = vadd.f32 %v1690, %v1591
      %v1716 = vadd.f32 %v1691, %v1596
      %v1717 = vadd.f32 %v1692, %v1599
      %v1718 = vadd.f32 %v1693, %v1604
      %v1719 = vadd.f32 %v1694, %v1607
      %v1720 = vadd.f32 %v1695, %v1612
      %v1721 = vadd.f32 %v1696, %v1615
      %v1722 = vadd.f32 %v1697, %v1620
      %v1723 = vadd.f32 %v1698, %v1623
      %v1724 = vadd.f32 %v1699, %v1628
      %v1725 = vadd.f32 %v1700, %v1631
      %v1726 = vadd.f32 %v1701, %v1636
      %v1727 = vadd.f32 %v1702, %v1639
      %v1728 = vadd.f32 %v1703, %v1644
      %v1729 = vadd.f32 %v1704, %v1647
      %v1730 = vadd.f32 %v1705, %v1652
      %v1731 = vadd.f32 %v1706, %v1655
      %v1732 = vadd.f32 %v1707, %v1660
      %v1733 = vadd.f32 %v1708, %v1663
      %v1734 = vadd.f32 %v1709, %v1668
      %v1735 = vadd.f32 %v1710, %v1671
      %v1736 = vadd.f32 %v1711, %v1676
      %v1737 = vadd.f32 %v1712, %v1679
      %v1738 = vadd.f32 %v1713, %v1684
      %1739 = vst [vmem:[%s150] sm:$0xff] %v1714
      %1740 = vst [vmem:[%s150 + $0x8] sm:$0xff] %v1715
      %1741 = vst [vmem:[%s150 + $0x10] sm:$0xff] %v1716
      %1742 = vst [vmem:[%s150 + $0x18] sm:$0xff] %v1717
      %1743 = vst [vmem:[%s150 + $0x20] sm:$0xff] %v1718
      %1744 = vst [vmem:[%s150 + $0x28] sm:$0xff] %v1719
      %1745 = vst [vmem:[%s150 + $0x30] sm:$0xff] %v1720
      %1746 = vst [vmem:[%s150 + $0x38] sm:$0xff] %v1721
      %1747 = vst [vmem:[%s150 + $0x40] sm:$0xff] %v1722
      %1748 = vst [vmem:[%s150 + $0x48] sm:$0xff] %v1723
      %1749 = vst [vmem:[%s150 + $0x50] sm:$0xff] %v1724
      %1750 = vst [vmem:[%s150 + $0x58] sm:$0xff] %v1725
      %1751 = vst [vmem:[%s150 + $0x60] sm:$0xff] %v1726
      %1752 = vst [vmem:[%s150 + $0x68] sm:$0xff] %v1727
      %1753 = vst [vmem:[%s150 + $0x70] sm:$0xff] %v1728
      %1754 = vst [vmem:[%s150 + $0x78] sm:$0xff] %v1729
      %1755 = vst [vmem:[%s150 + $0x80] sm:$0xff] %v1730
      %1756 = vst [vmem:[%s150 + $0x88] sm:$0xff] %v1731
      %1757 = vst [vmem:[%s150 + $0x90] sm:$0xff] %v1732
      %1758 = vst [vmem:[%s150 + $0x98] sm:$0xff] %v1733
      %1759 = vst [vmem:[%s150 + $0xa0] sm:$0xff] %v1734
      %1760 = vst [vmem:[%s150 + $0xa8] sm:$0xff] %v1735
      %1761 = vst [vmem:[%s150 + $0xb0] sm:$0xff] %v1736
      %1762 = vst [vmem:[%s150 + $0xb8] sm:$0xff] %v1737
      %1763 = vst [vmem:[%s150 + $0xc0] sm:$0xff] %v1738
      %v1764 = vld [vmem:[#allocation2 + $0x8] sm:$0xff]
      %v1765 = vld [vmem:[#allocation2 + $0x10] sm:$0xff]
      %v1766 = vld [vmem:[#allocation2 + $0x18] sm:$0xff]
      %v1767 = vld [vmem:[#allocation2 + $0x20] sm:$0xff]
      %v1768 = vld [vmem:[#allocation2 + $0x28] sm:$0xff]
      %v1769 = vld [vmem:[#allocation2 + $0x30] sm:$0xff]
      %v1770 = vld [vmem:[#allocation2 + $0x38] sm:$0xff]
      %v1771 = vld [vmem:[#allocation2 + $0x40] sm:$0xff]
      %v1772 = vld [vmem:[#allocation2 + $0x48] sm:$0xff]
      %v1773 = vld [vmem:[#allocation2 + $0x50] sm:$0xff]
      %v1774 = vld [vmem:[#allocation2 + $0x58] sm:$0xff]
      %v1775 = vld [vmem:[#allocation2 + $0x60] sm:$0xff]
      %v1776 = vld [vmem:[#allocation2 + $0x68] sm:$0xff]
      %v1777 = vld [vmem:[#allocation2 + $0x70] sm:$0xff]
      %v1778 = vld [vmem:[#allocation2 + $0x78] sm:$0xff]
      %v1779 = vld [vmem:[#allocation2 + $0x80] sm:$0xff]
      %v1780 = vld [vmem:[#allocation2 + $0x88] sm:$0xff]
      %v1781 = vld [vmem:[#allocation2 + $0x90] sm:$0xff]
      %v1782 = vld [vmem:[#allocation2 + $0x98] sm:$0xff]
      %v1783 = vld [vmem:[#allocation2 + $0xa0] sm:$0xff]
      %v1784 = vld [vmem:[#allocation2 + $0xa8] sm:$0xff]
      %v1785 = vld [vmem:[#allocation2 + $0xb0] sm:$0xff]
      %v1786 = vld [vmem:[#allocation2 + $0xb8] sm:$0xff]
      %v1787 = vld [vmem:[#allocation2 + $0xc0] sm:$0xff]
      %v1788 = vld [vmem:[#allocation2 + $0xc8] sm:$0xff]
      %v1789 = vpack.c.bf16 %v1765, %v1764
      %v1790 = vpack.c.bf16 %v1767, %v1766
      %v1791 = vpack.c.bf16 %v1769, %v1768
      %v1792 = vpack.c.bf16 %v1771, %v1770
      %v1793 = vpack.c.bf16 %v1773, %v1772
      %v1794 = vpack.c.bf16 %v1775, %v1774
      %v1795 = vpack.c.bf16 %v1777, %v1776
      %v1796 = vpack.c.bf16 %v1779, %v1778
      %v1797 = vpack.c.bf16 %v1781, %v1780
      %v1798 = vpack.c.bf16 %v1783, %v1782
      %v1799 = vpack.c.bf16 %v1785, %v1784
      %v1800 = vpack.c.bf16 %v1787, %v1786
      %v1801 = vpack.c.bf16 %v1788, %v1788
      %s1802 = scalar_lea.vmem %s1, 160
      %v1803 = vld [vmem:[%s1802] sm:$0xf]
      %v1804 = vld [vmem:[%s1802 + $0x4] sm:$0xf]
      %v1805 = vld [vmem:[%s1802 + $0x8] sm:$0xf]
      %v1806 = vld [vmem:[%s1802 + $0xc] sm:$0xf]
      %v1807 = vld [vmem:[%s1802 + $0x10] sm:$0xf]
      %v1808 = vld [vmem:[%s1802 + $0x14] sm:$0xf]
      %v1809 = vld [vmem:[%s1802 + $0x18] sm:$0xf]
      %v1810 = vld [vmem:[%s1802 + $0x1c] sm:$0xf]
      %v1819 = vunpack.c.l.b16 %v1803
      %v1820 = vunpack.c.l.b16 %v1804
      %v1821 = vunpack.c.l.b16 %v1805
      %v1822 = vunpack.c.l.b16 %v1806
      %v1823 = vunpack.c.l.b16 %v1807
      %v1824 = vunpack.c.l.b16 %v1808
      %v1825 = vunpack.c.l.b16 %v1809
      %v1826 = vunpack.c.l.b16 %v1810
      %v1827 = vpack.c.b16 %v1820, %v1819
      %v1828 = vpack.c.b16 %v1822, %v1821
      %v1829 = vpack.c.b16 %v1824, %v1823
      %v1830 = vpack.c.b16 %v1826, %v1825
      %v1836 = vsel %vm182, %v1789, 0
      %v1839 = vsel %vm182, %v1790, 0
      %v1842 = vsel %vm182, %v1791, 0
      %v1845 = vsel %vm182, %v1792, 0
      %v1848 = vsel %vm182, %v1793, 0
      %v1851 = vsel %vm182, %v1794, 0
      %v1854 = vsel %vm182, %v1795, 0
      %v1857 = vsel %vm182, %v1796, 0
      %v1860 = vsel %vm182, %v1797, 0
      %v1863 = vsel %vm182, %v1798, 0
      %v1866 = vsel %vm182, %v1799, 0
      %v1869 = vsel %vm182, %v1800, 0
      %v1872 = vsel %vm182, %v1801, 0
      %1874 = vmatprep.subr.bf16.mxu0 0
      %1875 = vmatpush1.bf16.msra.mxu0 %v1827
      %1876 = vmatprep.subr.bf16.mxu0 0
      %1877 = vmatpush1.bf16.msra.mxu0 %v1828
      %1878 = vmatprep.subr.bf16.mxu0 0
      %1879 = vmatpush1.bf16.msra.mxu0 %v1829
      %1880 = vmatprep.subr.bf16.mxu0 0
      %1881 = vmatpush1.bf16.msra.mxu0 %v1830
      %1882 = vmatprep.subr.bf16.mxu0 0
      %1883 = vmatpush1.bf16.msra.mxu0 0
      %1884 = vmatprep.subr.bf16.mxu0 0
      %1885 = vmatpush1.bf16.msra.mxu0 0
      %1886 = vmatprep.subr.bf16.mxu0 0
      %1887 = vmatpush1.bf16.msra.mxu0 0
      %1888 = vmatprep.subr.bf16.mxu0 0
      %1889 = vmatpush1.bf16.msra.mxu0 0
      %1890 = vmatprep.subr.bf16.mxu0 0
      %1891 = vmatpush1.bf16.msra.mxu0 0
      %1892 = vmatprep.subr.bf16.mxu0 0
      %1893 = vmatpush1.bf16.msra.mxu0 0
      %1894 = vmatprep.subr.bf16.mxu0 0
      %1895 = vmatpush1.bf16.msra.mxu0 0
      %1896 = vmatprep.subr.bf16.mxu0 0
      %1897 = vmatpush1.bf16.msra.mxu0 0
      %1898 = vmatprep.subr.bf16.mxu0 0
      %1899 = vmatpush1.bf16.msra.mxu0 0
      %1900 = vmatprep.subr.bf16.mxu0 0
      %1901 = vmatpush1.bf16.msra.mxu0 0
      %1902 = vmatprep.subr.bf16.mxu0 0
      %1903 = vmatpush1.bf16.msra.mxu0 0
      %1904 = vmatprep.subr.bf16.mxu0 0
      %1905 = vmatpush1.bf16.msra.mxu0 0
      %1906 = vmatprep.mubr.bf16.mxu0 0
      %1907 = vmatmul.mubr.bf16.gmra.mrb[0].mxu0 %v1836
      %v1908 = vpop.f32.mrb[0].mxu0
      %v1909 = vadd.f32 0.0, %v1908
      %v1910 = vpop.f32.mrb[0].mxu0
      %v1911 = vpop.f32.mrb[0].mxu0
      %v1912 = vadd.f32 0.0, %v1911
      %v1913 = vpop.f32.mrb[0].mxu0
      %1914 = vmatprep.mubr.bf16.mxu0 0
      %1915 = vmatmul.mubr.bf16.gmra.mrb[0].mxu0 %v1839
      %v1916 = vpop.f32.mrb[0].mxu0
      %v1917 = vadd.f32 0.0, %v1916
      %v1918 = vpop.f32.mrb[0].mxu0
      %v1919 = vpop.f32.mrb[0].mxu0
      %v1920 = vadd.f32 0.0, %v1919
      %v1921 = vpop.f32.mrb[0].mxu0
      %1922 = vmatprep.mubr.bf16.mxu0 0
      %1923 = vmatmul.mubr.bf16.gmra.mrb[0].mxu0 %v1842
      %v1924 = vpop.f32.mrb[0].mxu0
      %v1925 = vadd.f32 0.0, %v1924
      %v1926 = vpop.f32.mrb[0].mxu0
      %v1927 = vpop.f32.mrb[0].mxu0
      %v1928 = vadd.f32 0.0, %v1927
      %v1929 = vpop.f32.mrb[0].mxu0
      %1930 = vmatprep.mubr.bf16.mxu0 0
      %1931 = vmatmul.mubr.bf16.gmra.mrb[0].mxu0 %v1845
      %v1932 = vpop.f32.mrb[0].mxu0
      %v1933 = vadd.f32 0.0, %v1932
      %v1934 = vpop.f32.mrb[0].mxu0
      %v1935 = vpop.f32.mrb[0].mxu0
      %v1936 = vadd.f32 0.0, %v1935
      %v1937 = vpop.f32.mrb[0].mxu0
      %1938 = vmatprep.mubr.bf16.mxu0 0
      %1939 = vmatmul.mubr.bf16.gmra.mrb[0].mxu0 %v1848
      %v1940 = vpop.f32.mrb[0].mxu0
      %v1941 = vadd.f32 0.0, %v1940
      %v1942 = vpop.f32.mrb[0].mxu0
      %v1943 = vpop.f32.mrb[0].mxu0
      %v1944 = vadd.f32 0.0, %v1943
      %v1945 = vpop.f32.mrb[0].mxu0
      %1946 = vmatprep.mubr.bf16.mxu0 0
      %1947 = vmatmul.mubr.bf16.gmra.mrb[0].mxu0 %v1851
      %v1948 = vpop.f32.mrb[0].mxu0
      %v1949 = vadd.f32 0.0, %v1948
      %v1950 = vpop.f32.mrb[0].mxu0
      %v1951 = vpop.f32.mrb[0].mxu0
      %v1952 = vadd.f32 0.0, %v1951
      %v1953 = vpop.f32.mrb[0].mxu0
      %1954 = vmatprep.mubr.bf16.mxu0 0
      %1955 = vmatmul.mubr.bf16.gmra.mrb[0].mxu0 %v1854
      %v1956 = vpop.f32.mrb[0].mxu0
      %v1957 = vadd.f32 0.0, %v1956
      %v1958 = vpop.f32.mrb[0].mxu0
      %v1959 = vpop.f32.mrb[0].mxu0
      %v1960 = vadd.f32 0.0, %v1959
      %v1961 = vpop.f32.mrb[0].mxu0
      %1962 = vmatprep.mubr.bf16.mxu0 0
      %1963 = vmatmul.mubr.bf16.gmra.mrb[0].mxu0 %v1857
      %v1964 = vpop.f32.mrb[0].mxu0
      %v1965 = vadd.f32 0.0, %v1964
      %v1966 = vpop.f32.mrb[0].mxu0
      %v1967 = vpop.f32.mrb[0].mxu0
      %v1968 = vadd.f32 0.0, %v1967
      %v1969 = vpop.f32.mrb[0].mxu0
      %1970 = vmatprep.mubr.bf16.mxu0 0
      %1971 = vmatmul.mubr.bf16.gmra.mrb[0].mxu0 %v1860
      %v1972 = vpop.f32.mrb[0].mxu0
      %v1973 = vadd.f32 0.0, %v1972
      %v1974 = vpop.f32.mrb[0].mxu0
      %v1975 = vpop.f32.mrb[0].mxu0
      %v1976 = vadd.f32 0.0, %v1975
      %v1977 = vpop.f32.mrb[0].mxu0
      %1978 = vmatprep.mubr.bf16.mxu0 0
      %1979 = vmatmul.mubr.bf16.gmra.mrb[0].mxu0 %v1863
      %v1980 = vpop.f32.mrb[0].mxu0
      %v1981 = vadd.f32 0.0, %v1980
      %v1982 = vpop.f32.mrb[0].mxu0
      %v1983 = vpop.f32.mrb[0].mxu0
      %v1984 = vadd.f32 0.0, %v1983
      %v1985 = vpop.f32.mrb[0].mxu0
      %1986 = vmatprep.mubr.bf16.mxu0 0
      %1987 = vmatmul.mubr.bf16.gmra.mrb[0].mxu0 %v1866
      %v1988 = vpop.f32.mrb[0].mxu0
      %v1989 = vadd.f32 0.0, %v1988
      %v1990 = vpop.f32.mrb[0].mxu0
      %v1991 = vpop.f32.mrb[0].mxu0
      %v1992 = vadd.f32 0.0, %v1991
      %v1993 = vpop.f32.mrb[0].mxu0
      %1994 = vmatprep.mubr.bf16.mxu0 0
      %1995 = vmatmul.mubr.bf16.gmra.mrb[0].mxu0 %v1869
      %v1996 = vpop.f32.mrb[0].mxu0
      %v1997 = vadd.f32 0.0, %v1996
      %v1998 = vpop.f32.mrb[0].mxu0
      %v1999 = vpop.f32.mrb[0].mxu0
      %v2000 = vadd.f32 0.0, %v1999
      %v2001 = vpop.f32.mrb[0].mxu0
      %2002 = vmatprep.mubr.bf16.mxu0 0
      %2003 = vmatmul.mubr.bf16.gmra.mrb[0].mxu0 %v1872
      %v2004 = vpop.f32.mrb[0].mxu0
      %v2005 = vadd.f32 0.0, %v2004
      %v2006 = vpop.f32.mrb[0].mxu0
      %v2007 = vpop.f32.mrb[0].mxu0
      %v2008 = vpop.f32.mrb[0].mxu0
      %2009 = vdwg.mxu0
      %v2010 = vld [vmem:[%s150] sm:$0xff]
      %v2011 = vld [vmem:[%s150 + $0x8] sm:$0xff]
      %v2012 = vld [vmem:[%s150 + $0x10] sm:$0xff]
      %v2013 = vld [vmem:[%s150 + $0x18] sm:$0xff]
      %v2014 = vld [vmem:[%s150 + $0x20] sm:$0xff]
      %v2015 = vld [vmem:[%s150 + $0x28] sm:$0xff]
      %v2016 = vld [vmem:[%s150 + $0x30] sm:$0xff]
      %v2017 = vld [vmem:[%s150 + $0x38] sm:$0xff]
      %v2018 = vld [vmem:[%s150 + $0x40] sm:$0xff]
      %v2019 = vld [vmem:[%s150 + $0x48] sm:$0xff]
      %v2020 = vld [vmem:[%s150 + $0x50] sm:$0xff]
      %v2021 = vld [vmem:[%s150 + $0x58] sm:$0xff]
      %v2022 = vld [vmem:[%s150 + $0x60] sm:$0xff]
      %v2023 = vld [vmem:[%s150 + $0x68] sm:$0xff]
      %v2024 = vld [vmem:[%s150 + $0x70] sm:$0xff]
      %v2025 = vld [vmem:[%s150 + $0x78] sm:$0xff]
      %v2026 = vld [vmem:[%s150 + $0x80] sm:$0xff]
      %v2027 = vld [vmem:[%s150 + $0x88] sm:$0xff]
      %v2028 = vld [vmem:[%s150 + $0x90] sm:$0xff]
      %v2029 = vld [vmem:[%s150 + $0x98] sm:$0xff]
      %v2030 = vld [vmem:[%s150 + $0xa0] sm:$0xff]
      %v2031 = vld [vmem:[%s150 + $0xa8] sm:$0xff]
      %v2032 = vld [vmem:[%s150 + $0xb0] sm:$0xff]
      %v2033 = vld [vmem:[%s150 + $0xb8] sm:$0xff]
      %v2034 = vld [vmem:[%s150 + $0xc0] sm:$0xff]
      %v2035 = vadd.f32 %v2010, %v1909
      %v2036 = vadd.f32 %v2011, %v1912
      %v2037 = vadd.f32 %v2012, %v1917
      %v2038 = vadd.f32 %v2013, %v1920
      %v2039 = vadd.f32 %v2014, %v1925
      %v2040 = vadd.f32 %v2015, %v1928
      %v2041 = vadd.f32 %v2016, %v1933
      %v2042 = vadd.f32 %v2017, %v1936
      %v2043 = vadd.f32 %v2018, %v1941
      %v2044 = vadd.f32 %v2019, %v1944
      %v2045 = vadd.f32 %v2020, %v1949
      %v2046 = vadd.f32 %v2021, %v1952
      %v2047 = vadd.f32 %v2022, %v1957
      %v2048 = vadd.f32 %v2023, %v1960
      %v2049 = vadd.f32 %v2024, %v1965
      %v2050 = vadd.f32 %v2025, %v1968
      %v2051 = vadd.f32 %v2026, %v1973
      %v2052 = vadd.f32 %v2027, %v1976
      %v2053 = vadd.f32 %v2028, %v1981
      %v2054 = vadd.f32 %v2029, %v1984
      %v2055 = vadd.f32 %v2030, %v1989
      %v2056 = vadd.f32 %v2031, %v1992
      %v2057 = vadd.f32 %v2032, %v1997
      %v2058 = vadd.f32 %v2033, %v2000
      %v2059 = vadd.f32 %v2034, %v2005
      %2060 = vst [vmem:[%s150] sm:$0xff] %v2035
      %2061 = vst [vmem:[%s150 + $0x8] sm:$0xff] %v2036
      %2062 = vst [vmem:[%s150 + $0x10] sm:$0xff] %v2037
      %2063 = vst [vmem:[%s150 + $0x18] sm:$0xff] %v2038
      %2064 = vst [vmem:[%s150 + $0x20] sm:$0xff] %v2039
      %2065 = vst [vmem:[%s150 + $0x28] sm:$0xff] %v2040
      %2066 = vst [vmem:[%s150 + $0x30] sm:$0xff] %v2041
      %2067 = vst [vmem:[%s150 + $0x38] sm:$0xff] %v2042
      %2068 = vst [vmem:[%s150 + $0x40] sm:$0xff] %v2043
      %2069 = vst [vmem:[%s150 + $0x48] sm:$0xff] %v2044
      %2070 = vst [vmem:[%s150 + $0x50] sm:$0xff] %v2045
      %2071 = vst [vmem:[%s150 + $0x58] sm:$0xff] %v2046
      %2072 = vst [vmem:[%s150 + $0x60] sm:$0xff] %v2047
      %2073 = vst [vmem:[%s150 + $0x68] sm:$0xff] %v2048
      %2074 = vst [vmem:[%s150 + $0x70] sm:$0xff] %v2049
      %2075 = vst [vmem:[%s150 + $0x78] sm:$0xff] %v2050
      %2076 = vst [vmem:[%s150 + $0x80] sm:$0xff] %v2051
      %2077 = vst [vmem:[%s150 + $0x88] sm:$0xff] %v2052
      %2078 = vst [vmem:[%s150 + $0x90] sm:$0xff] %v2053
      %2079 = vst [vmem:[%s150 + $0x98] sm:$0xff] %v2054
      %2080 = vst [vmem:[%s150 + $0xa0] sm:$0xff] %v2055
      %2081 = vst [vmem:[%s150 + $0xa8] sm:$0xff] %v2056
      %2082 = vst [vmem:[%s150 + $0xb0] sm:$0xff] %v2057
      %2083 = vst [vmem:[%s150 + $0xb8] sm:$0xff] %v2058
      %2084 = vst [vmem:[%s150 + $0xc0] sm:$0xff] %v2059
      %v2085 = vld [vmem:[#allocation2 + $0xc] sm:$0xff]
      %v2086 = vld [vmem:[#allocation2 + $0x14] sm:$0xff]
      %v2087 = vld [vmem:[#allocation2 + $0x1c] sm:$0xff]
      %v2088 = vld [vmem:[#allocation2 + $0x24] sm:$0xff]
      %v2089 = vld [vmem:[#allocation2 + $0x2c] sm:$0xff]
      %v2090 = vld [vmem:[#allocation2 + $0x34] sm:$0xff]
      %v2091 = vld [vmem:[#allocation2 + $0x3c] sm:$0xff]
      %v2092 = vld [vmem:[#allocation2 + $0x44] sm:$0xff]
      %v2093 = vld [vmem:[#allocation2 + $0x4c] sm:$0xff]
      %v2094 = vld [vmem:[#allocation2 + $0x54] sm:$0xff]
      %v2095 = vld [vmem:[#allocation2 + $0x5c] sm:$0xff]
      %v2096 = vld [vmem:[#allocation2 + $0x64] sm:$0xff]
      %v2097 = vld [vmem:[#allocation2 + $0x6c] sm:$0xff]
      %v2098 = vld [vmem:[#allocation2 + $0x74] sm:$0xff]
      %v2099 = vld [vmem:[#allocation2 + $0x7c] sm:$0xff]
      %v2100 = vld [vmem:[#allocation2 + $0x84] sm:$0xff]
      %v2101 = vld [vmem:[#allocation2 + $0x8c] sm:$0xff]
      %v2102 = vld [vmem:[#allocation2 + $0x94] sm:$0xff]
      %v2103 = vld [vmem:[#allocation2 + $0x9c] sm:$0xff]
      %v2104 = vld [vmem:[#allocation2 + $0xa4] sm:$0xff]
      %v2105 = vld [vmem:[#allocation2 + $0xac] sm:$0xff]
      %v2106 = vld [vmem:[#allocation2 + $0xb4] sm:$0xff]
      %v2107 = vld [vmem:[#allocation2 + $0xbc] sm:$0xff]
      %v2108 = vld [vmem:[#allocation2 + $0xc4] sm:$0xff]
      %v2109 = vld [vmem:[#allocation2 + $0xcc] sm:$0xff]
      %v2110 = vpack.c.bf16 %v2086, %v2085
      %v2111 = vpack.c.bf16 %v2088, %v2087
      %v2112 = vpack.c.bf16 %v2090, %v2089
      %v2113 = vpack.c.bf16 %v2092, %v2091
      %v2114 = vpack.c.bf16 %v2094, %v2093
      %v2115 = vpack.c.bf16 %v2096, %v2095
      %v2116 = vpack.c.bf16 %v2098, %v2097
      %v2117 = vpack.c.bf16 %v2100, %v2099
      %v2118 = vpack.c.bf16 %v2102, %v2101
      %v2119 = vpack.c.bf16 %v2104, %v2103
      %v2120 = vpack.c.bf16 %v2106, %v2105
      %v2121 = vpack.c.bf16 %v2108, %v2107
      %v2122 = vpack.c.bf16 %v2109, %v2109
      %s2123 = scalar_lea.vmem %s1, 192
      %v2124 = vld [vmem:[%s2123] sm:$0xf]
      %v2125 = vld [vmem:[%s2123 + $0x4] sm:$0xf]
      %v2126 = vld [vmem:[%s2123 + $0x8] sm:$0xf]
      %v2127 = vld [vmem:[%s2123 + $0xc] sm:$0xf]
      %v2128 = vld [vmem:[%s2123 + $0x10] sm:$0xf]
      %v2129 = vld [vmem:[%s2123 + $0x14] sm:$0xf]
      %v2130 = vld [vmem:[%s2123 + $0x18] sm:$0xf]
      %v2131 = vld [vmem:[%s2123 + $0x1c] sm:$0xf]
      %v2140 = vunpack.c.l.b16 %v2124
      %v2141 = vunpack.c.l.b16 %v2125
      %v2142 = vunpack.c.l.b16 %v2126
      %v2143 = vunpack.c.l.b16 %v2127
      %v2144 = vunpack.c.l.b16 %v2128
      %v2145 = vunpack.c.l.b16 %v2129
      %v2146 = vunpack.c.l.b16 %v2130
      %v2147 = vunpack.c.l.b16 %v2131
      %v2148 = vpack.c.b16 %v2141, %v2140
      %v2149 = vpack.c.b16 %v2143, %v2142
      %v2150 = vpack.c.b16 %v2145, %v2144
      %v2151 = vpack.c.b16 %v2147, %v2146
      %v2157 = vsel %vm182, %v2110, 0
      %v2160 = vsel %vm182, %v2111, 0
      %v2163 = vsel %vm182, %v2112, 0
      %v2166 = vsel %vm182, %v2113, 0
      %v2169 = vsel %vm182, %v2114, 0
      %v2172 = vsel %vm182, %v2115, 0
      %v2175 = vsel %vm182, %v2116, 0
      %v2178 = vsel %vm182, %v2117, 0
      %v2181 = vsel %vm182, %v2118, 0
      %v2184 = vsel %vm182, %v2119, 0
      %v2187 = vsel %vm182, %v2120, 0
      %v2190 = vsel %vm182, %v2121, 0
      %v2193 = vsel %vm182, %v2122, 0
      %2195 = vmatprep.subr.bf16.mxu0 0
      %2196 = vmatpush1.bf16.msra.mxu0 %v2148
      %2197 = vmatprep.subr.bf16.mxu0 0
      %2198 = vmatpush1.bf16.msra.mxu0 %v2149
      %2199 = vmatprep.subr.bf16.mxu0 0
      %2200 = vmatpush1.bf16.msra.mxu0 %v2150
      %2201 = vmatprep.subr.bf16.mxu0 0
      %2202 = vmatpush1.bf16.msra.mxu0 %v2151
      %2203 = vmatprep.subr.bf16.mxu0 0
      %2204 = vmatpush1.bf16.msra.mxu0 0
      %2205 = vmatprep.subr.bf16.mxu0 0
      %2206 = vmatpush1.bf16.msra.mxu0 0
      %2207 = vmatprep.subr.bf16.mxu0 0
      %2208 = vmatpush1.bf16.msra.mxu0 0
      %2209 = vmatprep.subr.bf16.mxu0 0
      %2210 = vmatpush1.bf16.msra.mxu0 0
      %2211 = vmatprep.subr.bf16.mxu0 0
      %2212 = vmatpush1.bf16.msra.mxu0 0
      %2213 = vmatprep.subr.bf16.mxu0 0
      %2214 = vmatpush1.bf16.msra.mxu0 0
      %2215 = vmatprep.subr.bf16.mxu0 0
      %2216 = vmatpush1.bf16.msra.mxu0 0
      %2217 = vmatprep.subr.bf16.mxu0 0
      %2218 = vmatpush1.bf16.msra.mxu0 0
      %2219 = vmatprep.subr.bf16.mxu0 0
      %2220 = vmatpush1.bf16.msra.mxu0 0
      %2221 = vmatprep.subr.bf16.mxu0 0
      %2222 = vmatpush1.bf16.msra.mxu0 0
      %2223 = vmatprep.subr.bf16.mxu0 0
      %2224 = vmatpush1.bf16.msra.mxu0 0
      %2225 = vmatprep.subr.bf16.mxu0 0
      %2226 = vmatpush1.bf16.msra.mxu0 0
      %2227 = vmatprep.mubr.bf16.mxu0 0
      %2228 = vmatmul.mubr.bf16.gmra.mrb[0].mxu0 %v2157
      %v2229 = vpop.f32.mrb[0].mxu0
      %v2230 = vadd.f32 0.0, %v2229
      %v2231 = vpop.f32.mrb[0].mxu0
      %v2232 = vpop.f32.mrb[0].mxu0
      %v2233 = vadd.f32 0.0, %v2232
      %v2234 = vpop.f32.mrb[0].mxu0
      %2235 = vmatprep.mubr.bf16.mxu0 0
      %2236 = vmatmul.mubr.bf16.gmra.mrb[0].mxu0 %v2160
      %v2237 = vpop.f32.mrb[0].mxu0
      %v2238 = vadd.f32 0.0, %v2237
      %v2239 = vpop.f32.mrb[0].mxu0
      %v2240 = vpop.f32.mrb[0].mxu0
      %v2241 = vadd.f32 0.0, %v2240
      %v2242 = vpop.f32.mrb[0].mxu0
      %2243 = vmatprep.mubr.bf16.mxu0 0
      %2244 = vmatmul.mubr.bf16.gmra.mrb[0].mxu0 %v2163
      %v2245 = vpop.f32.mrb[0].mxu0
      %v2246 = vadd.f32 0.0, %v2245
      %v2247 = vpop.f32.mrb[0].mxu0
      %v2248 = vpop.f32.mrb[0].mxu0
      %v2249 = vadd.f32 0.0, %v2248
      %v2250 = vpop.f32.mrb[0].mxu0
      %2251 = vmatprep.mubr.bf16.mxu0 0
      %2252 = vmatmul.mubr.bf16.gmra.mrb[0].mxu0 %v2166
      %v2253 = vpop.f32.mrb[0].mxu0
      %v2254 = vadd.f32 0.0, %v2253
      %v2255 = vpop.f32.mrb[0].mxu0
      %v2256 = vpop.f32.mrb[0].mxu0
      %v2257 = vadd.f32 0.0, %v2256
      %v2258 = vpop.f32.mrb[0].mxu0
      %2259 = vmatprep.mubr.bf16.mxu0 0
      %2260 = vmatmul.mubr.bf16.gmra.mrb[0].mxu0 %v2169
      %v2261 = vpop.f32.mrb[0].mxu0
      %v2262 = vadd.f32 0.0, %v2261
      %v2263 = vpop.f32.mrb[0].mxu0
      %v2264 = vpop.f32.mrb[0].mxu0
      %v2265 = vadd.f32 0.0, %v2264
      %v2266 = vpop.f32.mrb[0].mxu0
      %2267 = vmatprep.mubr.bf16.mxu0 0
      %2268 = vmatmul.mubr.bf16.gmra.mrb[0].mxu0 %v2172
      %v2269 = vpop.f32.mrb[0].mxu0
      %v2270 = vadd.f32 0.0, %v2269
      %v2271 = vpop.f32.mrb[0].mxu0
      %v2272 = vpop.f32.mrb[0].mxu0
      %v2273 = vadd.f32 0.0, %v2272
      %v2274 = vpop.f32.mrb[0].mxu0
      %2275 = vmatprep.mubr.bf16.mxu0 0
      %2276 = vmatmul.mubr.bf16.gmra.mrb[0].mxu0 %v2175
      %v2277 = vpop.f32.mrb[0].mxu0
      %v2278 = vadd.f32 0.0, %v2277
      %v2279 = vpop.f32.mrb[0].mxu0
      %v2280 = vpop.f32.mrb[0].mxu0
      %v2281 = vadd.f32 0.0, %v2280
      %v2282 = vpop.f32.mrb[0].mxu0
      %2283 = vmatprep.mubr.bf16.mxu0 0
      %2284 = vmatmul.mubr.bf16.gmra.mrb[0].mxu0 %v2178
      %v2285 = vpop.f32.mrb[0].mxu0
      %v2286 = vadd.f32 0.0, %v2285
      %v2287 = vpop.f32.mrb[0].mxu0
      %v2288 = vpop.f32.mrb[0].mxu0
      %v2289 = vadd.f32 0.0, %v2288
      %v2290 = vpop.f32.mrb[0].mxu0
      %2291 = vmatprep.mubr.bf16.mxu0 0
      %2292 = vmatmul.mubr.bf16.gmra.mrb[0].mxu0 %v2181
      %v2293 = vpop.f32.mrb[0].mxu0
      %v2294 = vadd.f32 0.0, %v2293
      %v2295 = vpop.f32.mrb[0].mxu0
      %v2296 = vpop.f32.mrb[0].mxu0
      %v2297 = vadd.f32 0.0, %v2296
      %v2298 = vpop.f32.mrb[0].mxu0
      %2299 = vmatprep.mubr.bf16.mxu0 0
      %2300 = vmatmul.mubr.bf16.gmra.mrb[0].mxu0 %v2184
      %v2301 = vpop.f32.mrb[0].mxu0
      %v2302 = vadd.f32 0.0, %v2301
      %v2303 = vpop.f32.mrb[0].mxu0
      %v2304 = vpop.f32.mrb[0].mxu0
      %v2305 = vadd.f32 0.0, %v2304
      %v2306 = vpop.f32.mrb[0].mxu0
      %2307 = vmatprep.mubr.bf16.mxu0 0
      %2308 = vmatmul.mubr.bf16.gmra.mrb[0].mxu0 %v2187
      %v2309 = vpop.f32.mrb[0].mxu0
      %v2310 = vadd.f32 0.0, %v2309
      %v2311 = vpop.f32.mrb[0].mxu0
      %v2312 = vpop.f32.mrb[0].mxu0
      %v2313 = vadd.f32 0.0, %v2312
      %v2314 = vpop.f32.mrb[0].mxu0
      %2315 = vmatprep.mubr.bf16.mxu0 0
      %2316 = vmatmul.mubr.bf16.gmra.mrb[0].mxu0 %v2190
      %v2317 = vpop.f32.mrb[0].mxu0
      %v2318 = vadd.f32 0.0, %v2317
      %v2319 = vpop.f32.mrb[0].mxu0
      %v2320 = vpop.f32.mrb[0].mxu0
      %v2321 = vadd.f32 0.0, %v2320
      %v2322 = vpop.f32.mrb[0].mxu0
      %2323 = vmatprep.mubr.bf16.mxu0 0
      %2324 = vmatmul.mubr.bf16.gmra.mrb[0].mxu0 %v2193
      %v2325 = vpop.f32.mrb[0].mxu0
      %v2326 = vadd.f32 0.0, %v2325
      %v2327 = vpop.f32.mrb[0].mxu0
      %v2328 = vpop.f32.mrb[0].mxu0
      %v2329 = vpop.f32.mrb[0].mxu0
      %2330 = vdwg.mxu0
      %v2331 = vld [vmem:[%s150] sm:$0xff]
      %v2332 = vld [vmem:[%s150 + $0x8] sm:$0xff]
      %v2333 = vld [vmem:[%s150 + $0x10] sm:$0xff]
      %v2334 = vld [vmem:[%s150 + $0x18] sm:$0xff]
      %v2335 = vld [vmem:[%s150 + $0x20] sm:$0xff]
      %v2336 = vld [vmem:[%s150 + $0x28] sm:$0xff]
      %v2337 = vld [vmem:[%s150 + $0x30] sm:$0xff]
      %v2338 = vld [vmem:[%s150 + $0x38] sm:$0xff]
      %v2339 = vld [vmem:[%s150 + $0x40] sm:$0xff]
      %v2340 = vld [vmem:[%s150 + $0x48] sm:$0xff]
      %v2341 = vld [vmem:[%s150 + $0x50] sm:$0xff]
      %v2342 = vld [vmem:[%s150 + $0x58] sm:$0xff]
      %v2343 = vld [vmem:[%s150 + $0x60] sm:$0xff]
      %v2344 = vld [vmem:[%s150 + $0x68] sm:$0xff]
      %v2345 = vld [vmem:[%s150 + $0x70] sm:$0xff]
      %v2346 = vld [vmem:[%s150 + $0x78] sm:$0xff]
      %v2347 = vld [vmem:[%s150 + $0x80] sm:$0xff]
      %v2348 = vld [vmem:[%s150 + $0x88] sm:$0xff]
      %v2349 = vld [vmem:[%s150 + $0x90] sm:$0xff]
      %v2350 = vld [vmem:[%s150 + $0x98] sm:$0xff]
      %v2351 = vld [vmem:[%s150 + $0xa0] sm:$0xff]
      %v2352 = vld [vmem:[%s150 + $0xa8] sm:$0xff]
      %v2353 = vld [vmem:[%s150 + $0xb0] sm:$0xff]
      %v2354 = vld [vmem:[%s150 + $0xb8] sm:$0xff]
      %v2355 = vld [vmem:[%s150 + $0xc0] sm:$0xff]
      %v2356 = vadd.f32 %v2331, %v2230
      %v2357 = vadd.f32 %v2332, %v2233
      %v2358 = vadd.f32 %v2333, %v2238
      %v2359 = vadd.f32 %v2334, %v2241
      %v2360 = vadd.f32 %v2335, %v2246
      %v2361 = vadd.f32 %v2336, %v2249
      %v2362 = vadd.f32 %v2337, %v2254
      %v2363 = vadd.f32 %v2338, %v2257
      %v2364 = vadd.f32 %v2339, %v2262
      %v2365 = vadd.f32 %v2340, %v2265
      %v2366 = vadd.f32 %v2341, %v2270
      %v2367 = vadd.f32 %v2342, %v2273
      %v2368 = vadd.f32 %v2343, %v2278
      %v2369 = vadd.f32 %v2344, %v2281
      %v2370 = vadd.f32 %v2345, %v2286
      %v2371 = vadd.f32 %v2346, %v2289
      %v2372 = vadd.f32 %v2347, %v2294
      %v2373 = vadd.f32 %v2348, %v2297
      %v2374 = vadd.f32 %v2349, %v2302
      %v2375 = vadd.f32 %v2350, %v2305
      %v2376 = vadd.f32 %v2351, %v2310
      %v2377 = vadd.f32 %v2352, %v2313
      %v2378 = vadd.f32 %v2353, %v2318
      %v2379 = vadd.f32 %v2354, %v2321
      %v2380 = vadd.f32 %v2355, %v2326
      %2381 = vst [vmem:[%s150] sm:$0xff] %v2356
      %2382 = vst [vmem:[%s150 + $0x8] sm:$0xff] %v2357
      %2383 = vst [vmem:[%s150 + $0x10] sm:$0xff] %v2358
      %2384 = vst [vmem:[%s150 + $0x18] sm:$0xff] %v2359
      %2385 = vst [vmem:[%s150 + $0x20] sm:$0xff] %v2360
      %2386 = vst [vmem:[%s150 + $0x28] sm:$0xff] %v2361
      %2387 = vst [vmem:[%s150 + $0x30] sm:$0xff] %v2362
      %2388 = vst [vmem:[%s150 + $0x38] sm:$0xff] %v2363
      %2389 = vst [vmem:[%s150 + $0x40] sm:$0xff] %v2364
      %2390 = vst [vmem:[%s150 + $0x48] sm:$0xff] %v2365
      %2391 = vst [vmem:[%s150 + $0x50] sm:$0xff] %v2366
      %2392 = vst [vmem:[%s150 + $0x58] sm:$0xff] %v2367
      %2393 = vst [vmem:[%s150 + $0x60] sm:$0xff] %v2368
      %2394 = vst [vmem:[%s150 + $0x68] sm:$0xff] %v2369
      %2395 = vst [vmem:[%s150 + $0x70] sm:$0xff] %v2370
      %2396 = vst [vmem:[%s150 + $0x78] sm:$0xff] %v2371
      %2397 = vst [vmem:[%s150 + $0x80] sm:$0xff] %v2372
      %2398 = vst [vmem:[%s150 + $0x88] sm:$0xff] %v2373
      %2399 = vst [vmem:[%s150 + $0x90] sm:$0xff] %v2374
      %2400 = vst [vmem:[%s150 + $0x98] sm:$0xff] %v2375
      %2401 = vst [vmem:[%s150 + $0xa0] sm:$0xff] %v2376
      %2402 = vst [vmem:[%s150 + $0xa8] sm:$0xff] %v2377
      %2403 = vst [vmem:[%s150 + $0xb0] sm:$0xff] %v2378
      %2404 = vst [vmem:[%s150 + $0xb8] sm:$0xff] %v2379
      %2405 = vst [vmem:[%s150 + $0xc0] sm:$0xff] %v2380
      %v2406 = vld [vmem:[#allocation2 + $0xd] sm:$0xff]
      %v2407 = vld [vmem:[#allocation2 + $0x15] sm:$0xff]
      %v2408 = vld [vmem:[#allocation2 + $0x1d] sm:$0xff]
      %v2409 = vld [vmem:[#allocation2 + $0x25] sm:$0xff]
      %v2410 = vld [vmem:[#allocation2 + $0x2d] sm:$0xff]
      %v2411 = vld [vmem:[#allocation2 + $0x35] sm:$0xff]
      %v2412 = vld [vmem:[#allocation2 + $0x3d] sm:$0xff]
      %v2413 = vld [vmem:[#allocation2 + $0x45] sm:$0xff]
      %v2414 = vld [vmem:[#allocation2 + $0x4d] sm:$0xff]
      %v2415 = vld [vmem:[#allocation2 + $0x55] sm:$0xff]
      %v2416 = vld [vmem:[#allocation2 + $0x5d] sm:$0xff]
      %v2417 = vld [vmem:[#allocation2 + $0x65] sm:$0xff]
      %v2418 = vld [vmem:[#allocation2 + $0x6d] sm:$0xff]
      %v2419 = vld [vmem:[#allocation2 + $0x75] sm:$0xff]
      %v2420 = vld [vmem:[#allocation2 + $0x7d] sm:$0xff]
      %v2421 = vld [vmem:[#allocation2 + $0x85] sm:$0xff]
      %v2422 = vld [vmem:[#allocation2 + $0x8d] sm:$0xff]
      %v2423 = vld [vmem:[#allocation2 + $0x95] sm:$0xff]
      %v2424 = vld [vmem:[#allocation2 + $0x9d] sm:$0xff]
      %v2425 = vld [vmem:[#allocation2 + $0xa5] sm:$0xff]
      %v2426 = vld [vmem:[#allocation2 + $0xad] sm:$0xff]
      %v2427 = vld [vmem:[#allocation2 + $0xb5] sm:$0xff]
      %v2428 = vld [vmem:[#allocation2 + $0xbd] sm:$0xff]
      %v2429 = vld [vmem:[#allocation2 + $0xc5] sm:$0xff]
      %v2430 = vld [vmem:[#allocation2 + $0xcd] sm:$0xff]
      %v2431 = vpack.c.bf16 %v2407, %v2406
      %v2432 = vpack.c.bf16 %v2409, %v2408
      %v2433 = vpack.c.bf16 %v2411, %v2410
      %v2434 = vpack.c.bf16 %v2413, %v2412
      %v2435 = vpack.c.bf16 %v2415, %v2414
      %v2436 = vpack.c.bf16 %v2417, %v2416
      %v2437 = vpack.c.bf16 %v2419, %v2418
      %v2438 = vpack.c.bf16 %v2421, %v2420
      %v2439 = vpack.c.bf16 %v2423, %v2422
      %v2440 = vpack.c.bf16 %v2425, %v2424
      %v2441 = vpack.c.bf16 %v2427, %v2426
      %v2442 = vpack.c.bf16 %v2429, %v2428
      %v2443 = vpack.c.bf16 %v2430, %v2430
      %s2444 = scalar_lea.vmem %s1, 224
      %v2445 = vld [vmem:[%s2444] sm:$0xf]
      %v2446 = vld [vmem:[%s2444 + $0x4] sm:$0xf]
      %v2447 = vld [vmem:[%s2444 + $0x8] sm:$0xf]
      %v2448 = vld [vmem:[%s2444 + $0xc] sm:$0xf]
      %v2449 = vld [vmem:[%s2444 + $0x10] sm:$0xf]
      %v2450 = vld [vmem:[%s2444 + $0x14] sm:$0xf]
      %v2451 = vld [vmem:[%s2444 + $0x18] sm:$0xf]
      %v2452 = vld [vmem:[%s2444 + $0x1c] sm:$0xf]
      %v2461 = vunpack.c.l.b16 %v2445
      %v2462 = vunpack.c.l.b16 %v2446
      %v2463 = vunpack.c.l.b16 %v2447
      %v2464 = vunpack.c.l.b16 %v2448
      %v2465 = vunpack.c.l.b16 %v2449
      %v2466 = vunpack.c.l.b16 %v2450
      %v2467 = vunpack.c.l.b16 %v2451
      %v2468 = vunpack.c.l.b16 %v2452
      %v2469 = vpack.c.b16 %v2462, %v2461
      %v2470 = vpack.c.b16 %v2464, %v2463
      %v2471 = vpack.c.b16 %v2466, %v2465
      %v2472 = vpack.c.b16 %v2468, %v2467
      %v2478 = vsel %vm182, %v2431, 0
      %v2481 = vsel %vm182, %v2432, 0
      %v2484 = vsel %vm182, %v2433, 0
      %v2487 = vsel %vm182, %v2434, 0
      %v2490 = vsel %vm182, %v2435, 0
      %v2493 = vsel %vm182, %v2436, 0
      %v2496 = vsel %vm182, %v2437, 0
      %v2499 = vsel %vm182, %v2438, 0
      %v2502 = vsel %vm182, %v2439, 0
      %v2505 = vsel %vm182, %v2440, 0
      %v2508 = vsel %vm182, %v2441, 0
      %v2511 = vsel %vm182, %v2442, 0
      %v2514 = vsel %vm182, %v2443, 0
      %2516 = vmatprep.subr.bf16.mxu0 0
      %2517 = vmatpush1.bf16.msra.mxu0 %v2469
      %2518 = vmatprep.subr.bf16.mxu0 0
      %2519 = vmatpush1.bf16.msra.mxu0 %v2470
      %2520 = vmatprep.subr.bf16.mxu0 0
      %2521 = vmatpush1.bf16.msra.mxu0 %v2471
      %2522 = vmatprep.subr.bf16.mxu0 0
      %2523 = vmatpush1.bf16.msra.mxu0 %v2472
      %2524 = vmatprep.subr.bf16.mxu0 0
      %2525 = vmatpush1.bf16.msra.mxu0 0
      %2526 = vmatprep.subr.bf16.mxu0 0
      %2527 = vmatpush1.bf16.msra.mxu0 0
      %2528 = vmatprep.subr.bf16.mxu0 0
      %2529 = vmatpush1.bf16.msra.mxu0 0
      %2530 = vmatprep.subr.bf16.mxu0 0
      %2531 = vmatpush1.bf16.msra.mxu0 0
      %2532 = vmatprep.subr.bf16.mxu0 0
      %2533 = vmatpush1.bf16.msra.mxu0 0
      %2534 = vmatprep.subr.bf16.mxu0 0
      %2535 = vmatpush1.bf16.msra.mxu0 0
      %2536 = vmatprep.subr.bf16.mxu0 0
      %2537 = vmatpush1.bf16.msra.mxu0 0
      %2538 = vmatprep.subr.bf16.mxu0 0
      %2539 = vmatpush1.bf16.msra.mxu0 0
      %2540 = vmatprep.subr.bf16.mxu0 0
      %2541 = vmatpush1.bf16.msra.mxu0 0
      %2542 = vmatprep.subr.bf16.mxu0 0
      %2543 = vmatpush1.bf16.msra.mxu0 0
      %2544 = vmatprep.subr.bf16.mxu0 0
      %2545 = vmatpush1.bf16.msra.mxu0 0
      %2546 = vmatprep.subr.bf16.mxu0 0
      %2547 = vmatpush1.bf16.msra.mxu0 0
      %2548 = vmatprep.mubr.bf16.mxu0 0
      %2549 = vmatmul.mubr.bf16.gmra.mrb[0].mxu0 %v2478
      %v2550 = vpop.f32.mrb[0].mxu0
      %v2551 = vadd.f32 0.0, %v2550
      %v2552 = vpop.f32.mrb[0].mxu0
      %v2553 = vpop.f32.mrb[0].mxu0
      %v2554 = vadd.f32 0.0, %v2553
      %v2555 = vpop.f32.mrb[0].mxu0
      %2556 = vmatprep.mubr.bf16.mxu0 0
      %2557 = vmatmul.mubr.bf16.gmra.mrb[0].mxu0 %v2481
      %v2558 = vpop.f32.mrb[0].mxu0
      %v2559 = vadd.f32 0.0, %v2558
      %v2560 = vpop.f32.mrb[0].mxu0
      %v2561 = vpop.f32.mrb[0].mxu0
      %v2562 = vadd.f32 0.0, %v2561
      %v2563 = vpop.f32.mrb[0].mxu0
      %2564 = vmatprep.mubr.bf16.mxu0 0
      %2565 = vmatmul.mubr.bf16.gmra.mrb[0].mxu0 %v2484
      %v2566 = vpop.f32.mrb[0].mxu0
      %v2567 = vadd.f32 0.0, %v2566
      %v2568 = vpop.f32.mrb[0].mxu0
      %v2569 = vpop.f32.mrb[0].mxu0
      %v2570 = vadd.f32 0.0, %v2569
      %v2571 = vpop.f32.mrb[0].mxu0
      %2572 = vmatprep.mubr.bf16.mxu0 0
      %2573 = vmatmul.mubr.bf16.gmra.mrb[0].mxu0 %v2487
      %v2574 = vpop.f32.mrb[0].mxu0
      %v2575 = vadd.f32 0.0, %v2574
      %v2576 = vpop.f32.mrb[0].mxu0
      %v2577 = vpop.f32.mrb[0].mxu0
      %v2578 = vadd.f32 0.0, %v2577
      %v2579 = vpop.f32.mrb[0].mxu0
      %2580 = vmatprep.mubr.bf16.mxu0 0
      %2581 = vmatmul.mubr.bf16.gmra.mrb[0].mxu0 %v2490
      %v2582 = vpop.f32.mrb[0].mxu0
      %v2583 = vadd.f32 0.0, %v2582
      %v2584 = vpop.f32.mrb[0].mxu0
      %v2585 = vpop.f32.mrb[0].mxu0
      %v2586 = vadd.f32 0.0, %v2585
      %v2587 = vpop.f32.mrb[0].mxu0
      %2588 = vmatprep.mubr.bf16.mxu0 0
      %2589 = vmatmul.mubr.bf16.gmra.mrb[0].mxu0 %v2493
      %v2590 = vpop.f32.mrb[0].mxu0
      %v2591 = vadd.f32 0.0, %v2590
      %v2592 = vpop.f32.mrb[0].mxu0
      %v2593 = vpop.f32.mrb[0].mxu0
      %v2594 = vadd.f32 0.0, %v2593
      %v2595 = vpop.f32.mrb[0].mxu0
      %2596 = vmatprep.mubr.bf16.mxu0 0
      %2597 = vmatmul.mubr.bf16.gmra.mrb[0].mxu0 %v2496
      %v2598 = vpop.f32.mrb[0].mxu0
      %v2599 = vadd.f32 0.0, %v2598
      %v2600 = vpop.f32.mrb[0].mxu0
      %v2601 = vpop.f32.mrb[0].mxu0
      %v2602 = vadd.f32 0.0, %v2601
      %v2603 = vpop.f32.mrb[0].mxu0
      %2604 = vmatprep.mubr.bf16.mxu0 0
      %2605 = vmatmul.mubr.bf16.gmra.mrb[0].mxu0 %v2499
      %v2606 = vpop.f32.mrb[0].mxu0
      %v2607 = vadd.f32 0.0, %v2606
      %v2608 = vpop.f32.mrb[0].mxu0
      %v2609 = vpop.f32.mrb[0].mxu0
      %v2610 = vadd.f32 0.0, %v2609
      %v2611 = vpop.f32.mrb[0].mxu0
      %2612 = vmatprep.mubr.bf16.mxu0 0
      %2613 = vmatmul.mubr.bf16.gmra.mrb[0].mxu0 %v2502
      %v2614 = vpop.f32.mrb[0].mxu0
      %v2615 = vadd.f32 0.0, %v2614
      %v2616 = vpop.f32.mrb[0].mxu0
      %v2617 = vpop.f32.mrb[0].mxu0
      %v2618 = vadd.f32 0.0, %v2617
      %v2619 = vpop.f32.mrb[0].mxu0
      %2620 = vmatprep.mubr.bf16.mxu0 0
      %2621 = vmatmul.mubr.bf16.gmra.mrb[0].mxu0 %v2505
      %v2622 = vpop.f32.mrb[0].mxu0
      %v2623 = vadd.f32 0.0, %v2622
      %v2624 = vpop.f32.mrb[0].mxu0
      %v2625 = vpop.f32.mrb[0].mxu0
      %v2626 = vadd.f32 0.0, %v2625
      %v2627 = vpop.f32.mrb[0].mxu0
      %2628 = vmatprep.mubr.bf16.mxu0 0
      %2629 = vmatmul.mubr.bf16.gmra.mrb[0].mxu0 %v2508
      %v2630 = vpop.f32.mrb[0].mxu0
      %v2631 = vadd.f32 0.0, %v2630
      %v2632 = vpop.f32.mrb[0].mxu0
      %v2633 = vpop.f32.mrb[0].mxu0
      %v2634 = vadd.f32 0.0, %v2633
      %v2635 = vpop.f32.mrb[0].mxu0
      %2636 = vmatprep.mubr.bf16.mxu0 0
      %2637 = vmatmul.mubr.bf16.gmra.mrb[0].mxu0 %v2511
      %v2638 = vpop.f32.mrb[0].mxu0
      %v2639 = vadd.f32 0.0, %v2638
      %v2640 = vpop.f32.mrb[0].mxu0
      %v2641 = vpop.f32.mrb[0].mxu0
      %v2642 = vadd.f32 0.0, %v2641
      %v2643 = vpop.f32.mrb[0].mxu0
      %2644 = vmatprep.mubr.bf16.mxu0 0
      %2645 = vmatmul.mubr.bf16.gmra.mrb[0].mxu0 %v2514
      %v2646 = vpop.f32.mrb[0].mxu0
      %v2647 = vadd.f32 0.0, %v2646
      %v2648 = vpop.f32.mrb[0].mxu0
      %v2649 = vpop.f32.mrb[0].mxu0
      %v2650 = vpop.f32.mrb[0].mxu0
      %2651 = vdwg.mxu0
      %v2652 = vld [vmem:[%s150] sm:$0xff]
      %v2653 = vld [vmem:[%s150 + $0x8] sm:$0xff]
      %v2654 = vld [vmem:[%s150 + $0x10] sm:$0xff]
      %v2655 = vld [vmem:[%s150 + $0x18] sm:$0xff]
      %v2656 = vld [vmem:[%s150 + $0x20] sm:$0xff]
      %v2657 = vld [vmem:[%s150 + $0x28] sm:$0xff]
      %v2658 = vld [vmem:[%s150 + $0x30] sm:$0xff]
      %v2659 = vld [vmem:[%s150 + $0x38] sm:$0xff]
      %v2660 = vld [vmem:[%s150 + $0x40] sm:$0xff]
      %v2661 = vld [vmem:[%s150 + $0x48] sm:$0xff]
      %v2662 = vld [vmem:[%s150 + $0x50] sm:$0xff]
      %v2663 = vld [vmem:[%s150 + $0x58] sm:$0xff]
      %v2664 = vld [vmem:[%s150 + $0x60] sm:$0xff]
      %v2665 = vld [vmem:[%s150 + $0x68] sm:$0xff]
      %v2666 = vld [vmem:[%s150 + $0x70] sm:$0xff]
      %v2667 = vld [vmem:[%s150 + $0x78] sm:$0xff]
      %v2668 = vld [vmem:[%s150 + $0x80] sm:$0xff]
      %v2669 = vld [vmem:[%s150 + $0x88] sm:$0xff]
      %v2670 = vld [vmem:[%s150 + $0x90] sm:$0xff]
      %v2671 = vld [vmem:[%s150 + $0x98] sm:$0xff]
      %v2672 = vld [vmem:[%s150 + $0xa0] sm:$0xff]
      %v2673 = vld [vmem:[%s150 + $0xa8] sm:$0xff]
      %v2674 = vld [vmem:[%s150 + $0xb0] sm:$0xff]
      %v2675 = vld [vmem:[%s150 + $0xb8] sm:$0xff]
      %v2676 = vld [vmem:[%s150 + $0xc0] sm:$0xff]
      %v2677 = vadd.f32 %v2652, %v2551
      %v2678 = vadd.f32 %v2653, %v2554
      %v2679 = vadd.f32 %v2654, %v2559
      %v2680 = vadd.f32 %v2655, %v2562
      %v2681 = vadd.f32 %v2656, %v2567
      %v2682 = vadd.f32 %v2657, %v2570
      %v2683 = vadd.f32 %v2658, %v2575
      %v2684 = vadd.f32 %v2659, %v2578
      %v2685 = vadd.f32 %v2660, %v2583
      %v2686 = vadd.f32 %v2661, %v2586
      %v2687 = vadd.f32 %v2662, %v2591
      %v2688 = vadd.f32 %v2663, %v2594
      %v2689 = vadd.f32 %v2664, %v2599
      %v2690 = vadd.f32 %v2665, %v2602
      %v2691 = vadd.f32 %v2666, %v2607
      %v2692 = vadd.f32 %v2667, %v2610
      %v2693 = vadd.f32 %v2668, %v2615
      %v2694 = vadd.f32 %v2669, %v2618
      %v2695 = vadd.f32 %v2670, %v2623
      %v2696 = vadd.f32 %v2671, %v2626
      %v2697 = vadd.f32 %v2672, %v2631
      %v2698 = vadd.f32 %v2673, %v2634
      %v2699 = vadd.f32 %v2674, %v2639
      %v2700 = vadd.f32 %v2675, %v2642
      %v2701 = vadd.f32 %v2676, %v2647
      %2702 = vst [vmem:[%s150] sm:$0xff] %v2677
      %2703 = vst [vmem:[%s150 + $0x8] sm:$0xff] %v2678
      %2704 = vst [vmem:[%s150 + $0x10] sm:$0xff] %v2679
      %2705 = vst [vmem:[%s150 + $0x18] sm:$0xff] %v2680
      %2706 = vst [vmem:[%s150 + $0x20] sm:$0xff] %v2681
      %2707 = vst [vmem:[%s150 + $0x28] sm:$0xff] %v2682
      %2708 = vst [vmem:[%s150 + $0x30] sm:$0xff] %v2683
      %2709 = vst [vmem:[%s150 + $0x38] sm:$0xff] %v2684
      %2710 = vst [vmem:[%s150 + $0x40] sm:$0xff] %v2685
      %2711 = vst [vmem:[%s150 + $0x48] sm:$0xff] %v2686
      %2712 = vst [vmem:[%s150 + $0x50] sm:$0xff] %v2687
      %2713 = vst [vmem:[%s150 + $0x58] sm:$0xff] %v2688
      %2714 = vst [vmem:[%s150 + $0x60] sm:$0xff] %v2689
      %2715 = vst [vmem:[%s150 + $0x68] sm:$0xff] %v2690
      %2716 = vst [vmem:[%s150 + $0x70] sm:$0xff] %v2691
      %2717 = vst [vmem:[%s150 + $0x78] sm:$0xff] %v2692
      %2718 = vst [vmem:[%s150 + $0x80] sm:$0xff] %v2693
      %2719 = vst [vmem:[%s150 + $0x88] sm:$0xff] %v2694
      %2720 = vst [vmem:[%s150 + $0x90] sm:$0xff] %v2695
      %2721 = vst [vmem:[%s150 + $0x98] sm:$0xff] %v2696
      %2722 = vst [vmem:[%s150 + $0xa0] sm:$0xff] %v2697
      %2723 = vst [vmem:[%s150 + $0xa8] sm:$0xff] %v2698
      %2724 = vst [vmem:[%s150 + $0xb0] sm:$0xff] %v2699
      %2725 = vst [vmem:[%s150 + $0xb8] sm:$0xff] %v2700
      %2726 = vst [vmem:[%s150 + $0xc0] sm:$0xff] %v2701
      %v2727 = vld [vmem:[#allocation2 + $0xe] sm:$0xff]
      %v2728 = vld [vmem:[#allocation2 + $0x16] sm:$0xff]
      %v2729 = vld [vmem:[#allocation2 + $0x1e] sm:$0xff]
      %v2730 = vld [vmem:[#allocation2 + $0x26] sm:$0xff]
      %v2731 = vld [vmem:[#allocation2 + $0x2e] sm:$0xff]
      %v2732 = vld [vmem:[#allocation2 + $0x36] sm:$0xff]
      %v2733 = vld [vmem:[#allocation2 + $0x3e] sm:$0xff]
      %v2734 = vld [vmem:[#allocation2 + $0x46] sm:$0xff]
      %v2735 = vld [vmem:[#allocation2 + $0x4e] sm:$0xff]
      %v2736 = vld [vmem:[#allocation2 + $0x56] sm:$0xff]
      %v2737 = vld [vmem:[#allocation2 + $0x5e] sm:$0xff]
      %v2738 = vld [vmem:[#allocation2 + $0x66] sm:$0xff]
      %v2739 = vld [vmem:[#allocation2 + $0x6e] sm:$0xff]
      %v2740 = vld [vmem:[#allocation2 + $0x76] sm:$0xff]
      %v2741 = vld [vmem:[#allocation2 + $0x7e] sm:$0xff]
      %v2742 = vld [vmem:[#allocation2 + $0x86] sm:$0xff]
      %v2743 = vld [vmem:[#allocation2 + $0x8e] sm:$0xff]
      %v2744 = vld [vmem:[#allocation2 + $0x96] sm:$0xff]
      %v2745 = vld [vmem:[#allocation2 + $0x9e] sm:$0xff]
      %v2746 = vld [vmem:[#allocation2 + $0xa6] sm:$0xff]
      %v2747 = vld [vmem:[#allocation2 + $0xae] sm:$0xff]
      %v2748 = vld [vmem:[#allocation2 + $0xb6] sm:$0xff]
      %v2749 = vld [vmem:[#allocation2 + $0xbe] sm:$0xff]
      %v2750 = vld [vmem:[#allocation2 + $0xc6] sm:$0xff]
      %v2751 = vld [vmem:[#allocation2 + $0xce] sm:$0xff]
      %v2752 = vpack.c.bf16 %v2728, %v2727
      %v2753 = vpack.c.bf16 %v2730, %v2729
      %v2754 = vpack.c.bf16 %v2732, %v2731
      %v2755 = vpack.c.bf16 %v2734, %v2733
      %v2756 = vpack.c.bf16 %v2736, %v2735
      %v2757 = vpack.c.bf16 %v2738, %v2737
      %v2758 = vpack.c.bf16 %v2740, %v2739
      %v2759 = vpack.c.bf16 %v2742, %v2741
      %v2760 = vpack.c.bf16 %v2744, %v2743
      %v2761 = vpack.c.bf16 %v2746, %v2745
      %v2762 = vpack.c.bf16 %v2748, %v2747
      %v2763 = vpack.c.bf16 %v2750, %v2749
      %v2764 = vpack.c.bf16 %v2751, %v2751
      %s2765 = scalar_lea.vmem %s1, 256
      %v2766 = vld [vmem:[%s2765] sm:$0xf]
      %v2767 = vld [vmem:[%s2765 + $0x4] sm:$0xf]
      %v2768 = vld [vmem:[%s2765 + $0x8] sm:$0xf]
      %v2769 = vld [vmem:[%s2765 + $0xc] sm:$0xf]
      %v2770 = vld [vmem:[%s2765 + $0x10] sm:$0xf]
      %v2771 = vld [vmem:[%s2765 + $0x14] sm:$0xf]
      %v2772 = vld [vmem:[%s2765 + $0x18] sm:$0xf]
      %v2773 = vld [vmem:[%s2765 + $0x1c] sm:$0xf]
      %v2782 = vunpack.c.l.b16 %v2766
      %v2783 = vunpack.c.l.b16 %v2767
      %v2784 = vunpack.c.l.b16 %v2768
      %v2785 = vunpack.c.l.b16 %v2769
      %v2786 = vunpack.c.l.b16 %v2770
      %v2787 = vunpack.c.l.b16 %v2771
      %v2788 = vunpack.c.l.b16 %v2772
      %v2789 = vunpack.c.l.b16 %v2773
      %v2790 = vpack.c.b16 %v2783, %v2782
      %v2791 = vpack.c.b16 %v2785, %v2784
      %v2792 = vpack.c.b16 %v2787, %v2786
      %v2793 = vpack.c.b16 %v2789, %v2788
      %v2799 = vsel %vm182, %v2752, 0
      %v2802 = vsel %vm182, %v2753, 0
      %v2805 = vsel %vm182, %v2754, 0
      %v2808 = vsel %vm182, %v2755, 0
      %v2811 = vsel %vm182, %v2756, 0
      %v2814 = vsel %vm182, %v2757, 0
      %v2817 = vsel %vm182, %v2758, 0
      %v2820 = vsel %vm182, %v2759, 0
      %v2823 = vsel %vm182, %v2760, 0
      %v2826 = vsel %vm182, %v2761, 0
      %v2829 = vsel %vm182, %v2762, 0
      %v2832 = vsel %vm182, %v2763, 0
      %v2835 = vsel %vm182, %v2764, 0
      %2837 = vmatprep.subr.bf16.mxu0 0
      %2838 = vmatpush1.bf16.msra.mxu0 %v2790
      %2839 = vmatprep.subr.bf16.mxu0 0
      %2840 = vmatpush1.bf16.msra.mxu0 %v2791
      %2841 = vmatprep.subr.bf16.mxu0 0
      %2842 = vmatpush1.bf16.msra.mxu0 %v2792
      %2843 = vmatprep.subr.bf16.mxu0 0
      %2844 = vmatpush1.bf16.msra.mxu0 %v2793
      %2845 = vmatprep.subr.bf16.mxu0 0
      %2846 = vmatpush1.bf16.msra.mxu0 0
      %2847 = vmatprep.subr.bf16.mxu0 0
      %2848 = vmatpush1.bf16.msra.mxu0 0
      %2849 = vmatprep.subr.bf16.mxu0 0
      %2850 = vmatpush1.bf16.msra.mxu0 0
      %2851 = vmatprep.subr.bf16.mxu0 0
      %2852 = vmatpush1.bf16.msra.mxu0 0
      %2853 = vmatprep.subr.bf16.mxu0 0
      %2854 = vmatpush1.bf16.msra.mxu0 0
      %2855 = vmatprep.subr.bf16.mxu0 0
      %2856 = vmatpush1.bf16.msra.mxu0 0
      %2857 = vmatprep.subr.bf16.mxu0 0
      %2858 = vmatpush1.bf16.msra.mxu0 0
      %2859 = vmatprep.subr.bf16.mxu0 0
      %2860 = vmatpush1.bf16.msra.mxu0 0
      %2861 = vmatprep.subr.bf16.mxu0 0
      %2862 = vmatpush1.bf16.msra.mxu0 0
      %2863 = vmatprep.subr.bf16.mxu0 0
      %2864 = vmatpush1.bf16.msra.mxu0 0
      %2865 = vmatprep.subr.bf16.mxu0 0
      %2866 = vmatpush1.bf16.msra.mxu0 0
      %2867 = vmatprep.subr.bf16.mxu0 0
      %2868 = vmatpush1.bf16.msra.mxu0 0
      %2869 = vmatprep.mubr.bf16.mxu0 0
      %2870 = vmatmul.mubr.bf16.gmra.mrb[0].mxu0 %v2799
      %v2871 = vpop.f32.mrb[0].mxu0
      %v2872 = vadd.f32 0.0, %v2871
      %v2873 = vpop.f32.mrb[0].mxu0
      %v2874 = vpop.f32.mrb[0].mxu0
      %v2875 = vadd.f32 0.0, %v2874
      %v2876 = vpop.f32.mrb[0].mxu0
      %2877 = vmatprep.mubr.bf16.mxu0 0
      %2878 = vmatmul.mubr.bf16.gmra.mrb[0].mxu0 %v2802
      %v2879 = vpop.f32.mrb[0].mxu0
      %v2880 = vadd.f32 0.0, %v2879
      %v2881 = vpop.f32.mrb[0].mxu0
      %v2882 = vpop.f32.mrb[0].mxu0
      %v2883 = vadd.f32 0.0, %v2882
      %v2884 = vpop.f32.mrb[0].mxu0
      %2885 = vmatprep.mubr.bf16.mxu0 0
      %2886 = vmatmul.mubr.bf16.gmra.mrb[0].mxu0 %v2805
      %v2887 = vpop.f32.mrb[0].mxu0
      %v2888 = vadd.f32 0.0, %v2887
      %v2889 = vpop.f32.mrb[0].mxu0
      %v2890 = vpop.f32.mrb[0].mxu0
      %v2891 = vadd.f32 0.0, %v2890
      %v2892 = vpop.f32.mrb[0].mxu0
      %2893 = vmatprep.mubr.bf16.mxu0 0
      %2894 = vmatmul.mubr.bf16.gmra.mrb[0].mxu0 %v2808
      %v2895 = vpop.f32.mrb[0].mxu0
      %v2896 = vadd.f32 0.0, %v2895
      %v2897 = vpop.f32.mrb[0].mxu0
      %v2898 = vpop.f32.mrb[0].mxu0
      %v2899 = vadd.f32 0.0, %v2898
      %v2900 = vpop.f32.mrb[0].mxu0
      %2901 = vmatprep.mubr.bf16.mxu0 0
      %2902 = vmatmul.mubr.bf16.gmra.mrb[0].mxu0 %v2811
      %v2903 = vpop.f32.mrb[0].mxu0
      %v2904 = vadd.f32 0.0, %v2903
      %v2905 = vpop.f32.mrb[0].mxu0
      %v2906 = vpop.f32.mrb[0].mxu0
      %v2907 = vadd.f32 0.0, %v2906
      %v2908 = vpop.f32.mrb[0].mxu0
      %2909 = vmatprep.mubr.bf16.mxu0 0
      %2910 = vmatmul.mubr.bf16.gmra.mrb[0].mxu0 %v2814
      %v2911 = vpop.f32.mrb[0].mxu0
      %v2912 = vadd.f32 0.0, %v2911
      %v2913 = vpop.f32.mrb[0].mxu0
      %v2914 = vpop.f32.mrb[0].mxu0
      %v2915 = vadd.f32 0.0, %v2914
      %v2916 = vpop.f32.mrb[0].mxu0
      %2917 = vmatprep.mubr.bf16.mxu0 0
      %2918 = vmatmul.mubr.bf16.gmra.mrb[0].mxu0 %v2817
      %v2919 = vpop.f32.mrb[0].mxu0
      %v2920 = vadd.f32 0.0, %v2919
      %v2921 = vpop.f32.mrb[0].mxu0
      %v2922 = vpop.f32.mrb[0].mxu0
      %v2923 = vadd.f32 0.0, %v2922
      %v2924 = vpop.f32.mrb[0].mxu0
      %2925 = vmatprep.mubr.bf16.mxu0 0
      %2926 = vmatmul.mubr.bf16.gmra.mrb[0].mxu0 %v2820
      %v2927 = vpop.f32.mrb[0].mxu0
      %v2928 = vadd.f32 0.0, %v2927
      %v2929 = vpop.f32.mrb[0].mxu0
      %v2930 = vpop.f32.mrb[0].mxu0
      %v2931 = vadd.f32 0.0, %v2930
      %v2932 = vpop.f32.mrb[0].mxu0
      %2933 = vmatprep.mubr.bf16.mxu0 0
      %2934 = vmatmul.mubr.bf16.gmra.mrb[0].mxu0 %v2823
      %v2935 = vpop.f32.mrb[0].mxu0
      %v2936 = vadd.f32 0.0, %v2935
      %v2937 = vpop.f32.mrb[0].mxu0
      %v2938 = vpop.f32.mrb[0].mxu0
      %v2939 = vadd.f32 0.0, %v2938
      %v2940 = vpop.f32.mrb[0].mxu0
      %2941 = vmatprep.mubr.bf16.mxu0 0
      %2942 = vmatmul.mubr.bf16.gmra.mrb[0].mxu0 %v2826
      %v2943 = vpop.f32.mrb[0].mxu0
      %v2944 = vadd.f32 0.0, %v2943
      %v2945 = vpop.f32.mrb[0].mxu0
      %v2946 = vpop.f32.mrb[0].mxu0
      %v2947 = vadd.f32 0.0, %v2946
      %v2948 = vpop.f32.mrb[0].mxu0
      %2949 = vmatprep.mubr.bf16.mxu0 0
      %2950 = vmatmul.mubr.bf16.gmra.mrb[0].mxu0 %v2829
      %v2951 = vpop.f32.mrb[0].mxu0
      %v2952 = vadd.f32 0.0, %v2951
      %v2953 = vpop.f32.mrb[0].mxu0
      %v2954 = vpop.f32.mrb[0].mxu0
      %v2955 = vadd.f32 0.0, %v2954
      %v2956 = vpop.f32.mrb[0].mxu0
      %2957 = vmatprep.mubr.bf16.mxu0 0
      %2958 = vmatmul.mubr.bf16.gmra.mrb[0].mxu0 %v2832
      %v2959 = vpop.f32.mrb[0].mxu0
      %v2960 = vadd.f32 0.0, %v2959
      %v2961 = vpop.f32.mrb[0].mxu0
      %v2962 = vpop.f32.mrb[0].mxu0
      %v2963 = vadd.f32 0.0, %v2962
      %v2964 = vpop.f32.mrb[0].mxu0
      %2965 = vmatprep.mubr.bf16.mxu0 0
      %2966 = vmatmul.mubr.bf16.gmra.mrb[0].mxu0 %v2835
      %v2967 = vpop.f32.mrb[0].mxu0
      %v2968 = vadd.f32 0.0, %v2967
      %v2969 = vpop.f32.mrb[0].mxu0
      %v2970 = vpop.f32.mrb[0].mxu0
      %v2971 = vpop.f32.mrb[0].mxu0
      %2972 = vdwg.mxu0
      %v2973 = vld [vmem:[%s150] sm:$0xff]
      %v2974 = vld [vmem:[%s150 + $0x8] sm:$0xff]
      %v2975 = vld [vmem:[%s150 + $0x10] sm:$0xff]
      %v2976 = vld [vmem:[%s150 + $0x18] sm:$0xff]
      %v2977 = vld [vmem:[%s150 + $0x20] sm:$0xff]
      %v2978 = vld [vmem:[%s150 + $0x28] sm:$0xff]
      %v2979 = vld [vmem:[%s150 + $0x30] sm:$0xff]
      %v2980 = vld [vmem:[%s150 + $0x38] sm:$0xff]
      %v2981 = vld [vmem:[%s150 + $0x40] sm:$0xff]
      %v2982 = vld [vmem:[%s150 + $0x48] sm:$0xff]
      %v2983 = vld [vmem:[%s150 + $0x50] sm:$0xff]
      %v2984 = vld [vmem:[%s150 + $0x58] sm:$0xff]
      %v2985 = vld [vmem:[%s150 + $0x60] sm:$0xff]
      %v2986 = vld [vmem:[%s150 + $0x68] sm:$0xff]
      %v2987 = vld [vmem:[%s150 + $0x70] sm:$0xff]
      %v2988 = vld [vmem:[%s150 + $0x78] sm:$0xff]
      %v2989 = vld [vmem:[%s150 + $0x80] sm:$0xff]
      %v2990 = vld [vmem:[%s150 + $0x88] sm:$0xff]
      %v2991 = vld [vmem:[%s150 + $0x90] sm:$0xff]
      %v2992 = vld [vmem:[%s150 + $0x98] sm:$0xff]
      %v2993 = vld [vmem:[%s150 + $0xa0] sm:$0xff]
      %v2994 = vld [vmem:[%s150 + $0xa8] sm:$0xff]
      %v2995 = vld [vmem:[%s150 + $0xb0] sm:$0xff]
      %v2996 = vld [vmem:[%s150 + $0xb8] sm:$0xff]
      %v2997 = vld [vmem:[%s150 + $0xc0] sm:$0xff]
      %v2998 = vadd.f32 %v2973, %v2872
      %v2999 = vadd.f32 %v2974, %v2875
      %v3000 = vadd.f32 %v2975, %v2880
      %v3001 = vadd.f32 %v2976, %v2883
      %v3002 = vadd.f32 %v2977, %v2888
      %v3003 = vadd.f32 %v2978, %v2891
      %v3004 = vadd.f32 %v2979, %v2896
      %v3005 = vadd.f32 %v2980, %v2899
      %v3006 = vadd.f32 %v2981, %v2904
      %v3007 = vadd.f32 %v2982, %v2907
      %v3008 = vadd.f32 %v2983, %v2912
      %v3009 = vadd.f32 %v2984, %v2915
      %v3010 = vadd.f32 %v2985, %v2920
      %v3011 = vadd.f32 %v2986, %v2923
      %v3012 = vadd.f32 %v2987, %v2928
      %v3013 = vadd.f32 %v2988, %v2931
      %v3014 = vadd.f32 %v2989, %v2936
      %v3015 = vadd.f32 %v2990, %v2939
      %v3016 = vadd.f32 %v2991, %v2944
      %v3017 = vadd.f32 %v2992, %v2947
      %v3018 = vadd.f32 %v2993, %v2952
      %v3019 = vadd.f32 %v2994, %v2955
      %v3020 = vadd.f32 %v2995, %v2960
      %v3021 = vadd.f32 %v2996, %v2963
      %v3022 = vadd.f32 %v2997, %v2968
      %3023 = vst [vmem:[%s150] sm:$0xff] %v2998
      %3024 = vst [vmem:[%s150 + $0x8] sm:$0xff] %v2999
      %3025 = vst [vmem:[%s150 + $0x10] sm:$0xff] %v3000
      %3026 = vst [vmem:[%s150 + $0x18] sm:$0xff] %v3001
      %3027 = vst [vmem:[%s150 + $0x20] sm:$0xff] %v3002
      %3028 = vst [vmem:[%s150 + $0x28] sm:$0xff] %v3003
      %3029 = vst [vmem:[%s150 + $0x30] sm:$0xff] %v3004
      %3030 = vst [vmem:[%s150 + $0x38] sm:$0xff] %v3005
      %3031 = vst [vmem:[%s150 + $0x40] sm:$0xff] %v3006
      %3032 = vst [vmem:[%s150 + $0x48] sm:$0xff] %v3007
      %3033 = vst [vmem:[%s150 + $0x50] sm:$0xff] %v3008
      %3034 = vst [vmem:[%s150 + $0x58] sm:$0xff] %v3009
      %3035 = vst [vmem:[%s150 + $0x60] sm:$0xff] %v3010
      %3036 = vst [vmem:[%s150 + $0x68] sm:$0xff] %v3011
      %3037 = vst [vmem:[%s150 + $0x70] sm:$0xff] %v3012
      %3038 = vst [vmem:[%s150 + $0x78] sm:$0xff] %v3013
      %3039 = vst [vmem:[%s150 + $0x80] sm:$0xff] %v3014
      %3040 = vst [vmem:[%s150 + $0x88] sm:$0xff] %v3015
      %3041 = vst [vmem:[%s150 + $0x90] sm:$0xff] %v3016
      %3042 = vst [vmem:[%s150 + $0x98] sm:$0xff] %v3017
      %3043 = vst [vmem:[%s150 + $0xa0] sm:$0xff] %v3018
      %3044 = vst [vmem:[%s150 + $0xa8] sm:$0xff] %v3019
      %3045 = vst [vmem:[%s150 + $0xb0] sm:$0xff] %v3020
      %3046 = vst [vmem:[%s150 + $0xb8] sm:$0xff] %v3021
      %3047 = vst [vmem:[%s150 + $0xc0] sm:$0xff] %v3022
      %v3048 = vld [vmem:[%s150] sm:$0xff]
      %v3049 = vld [vmem:[%s150 + $0x8] sm:$0xff]
      %v3050 = vld [vmem:[%s150 + $0x10] sm:$0xff]
      %v3051 = vld [vmem:[%s150 + $0x18] sm:$0xff]
      %v3052 = vld [vmem:[%s150 + $0x20] sm:$0xff]
      %v3053 = vld [vmem:[%s150 + $0x28] sm:$0xff]
      %v3054 = vld [vmem:[%s150 + $0x30] sm:$0xff]
      %v3055 = vld [vmem:[%s150 + $0x38] sm:$0xff]
      %v3056 = vld [vmem:[%s150 + $0x40] sm:$0xff]
      %v3057 = vld [vmem:[%s150 + $0x48] sm:$0xff]
      %v3058 = vld [vmem:[%s150 + $0x50] sm:$0xff]
      %v3059 = vld [vmem:[%s150 + $0x58] sm:$0xff]
      %v3060 = vld [vmem:[%s150 + $0x60] sm:$0xff]
      %v3061 = vld [vmem:[%s150 + $0x68] sm:$0xff]
      %v3062 = vld [vmem:[%s150 + $0x70] sm:$0xff]
      %v3063 = vld [vmem:[%s150 + $0x78] sm:$0xff]
      %v3064 = vld [vmem:[%s150 + $0x80] sm:$0xff]
      %v3065 = vld [vmem:[%s150 + $0x88] sm:$0xff]
      %v3066 = vld [vmem:[%s150 + $0x90] sm:$0xff]
      %v3067 = vld [vmem:[%s150 + $0x98] sm:$0xff]
      %v3068 = vld [vmem:[%s150 + $0xa0] sm:$0xff]
      %v3069 = vld [vmem:[%s150 + $0xa8] sm:$0xff]
      %v3070 = vld [vmem:[%s150 + $0xb0] sm:$0xff]
      %v3071 = vld [vmem:[%s150 + $0xb8] sm:$0xff]
      %v3072 = vld [vmem:[%s150 + $0xc0] sm:$0xff]
      %v3073 = vld [vmem:[%s2] sm:$0x1]
      %v3075 = vlaneseq
      %v3076 = vshrl.u32 %v3075, 7
      %v3077 = vsub.s32 0, %v3076
      %v3078 = vrot.slane %v3073, %v3077
      %v3080 = vadd.f32 %v3048, %v3078
      %v3081 = vadd.f32 %v3049, %v3078
      %v3082 = vadd.f32 %v3050, %v3078
      %v3083 = vadd.f32 %v3051, %v3078
      %v3084 = vadd.f32 %v3052, %v3078
      %v3085 = vadd.f32 %v3053, %v3078
      %v3086 = vadd.f32 %v3054, %v3078
      %v3087 = vadd.f32 %v3055, %v3078
      %v3088 = vadd.f32 %v3056, %v3078
      %v3089 = vadd.f32 %v3057, %v3078
      %v3090 = vadd.f32 %v3058, %v3078
      %v3091 = vadd.f32 %v3059, %v3078
      %v3092 = vadd.f32 %v3060, %v3078
      %v3093 = vadd.f32 %v3061, %v3078
      %v3094 = vadd.f32 %v3062, %v3078
      %v3095 = vadd.f32 %v3063, %v3078
      %v3096 = vadd.f32 %v3064, %v3078
      %v3097 = vadd.f32 %v3065, %v3078
      %v3098 = vadd.f32 %v3066, %v3078
      %v3099 = vadd.f32 %v3067, %v3078
      %v3100 = vadd.f32 %v3068, %v3078
      %v3101 = vadd.f32 %v3069, %v3078
      %v3102 = vadd.f32 %v3070, %v3078
      %v3103 = vadd.f32 %v3071, %v3078
      %v3104 = vadd.f32 %v3072, %v3078
      %v3105 = vmax.f32 %v3080, 0.0
      %v3106 = vmax.f32 %v3081, 0.0
      %v3107 = vmax.f32 %v3082, 0.0
      %v3108 = vmax.f32 %v3083, 0.0
      %v3109 = vmax.f32 %v3084, 0.0
      %v3110 = vmax.f32 %v3085, 0.0
      %v3111 = vmax.f32 %v3086, 0.0
      %v3112 = vmax.f32 %v3087, 0.0
      %v3113 = vmax.f32 %v3088, 0.0
      %v3114 = vmax.f32 %v3089, 0.0
      %v3115 = vmax.f32 %v3090, 0.0
      %v3116 = vmax.f32 %v3091, 0.0
      %v3117 = vmax.f32 %v3092, 0.0
      %v3118 = vmax.f32 %v3093, 0.0
      %v3119 = vmax.f32 %v3094, 0.0
      %v3120 = vmax.f32 %v3095, 0.0
      %v3121 = vmax.f32 %v3096, 0.0
      %v3122 = vmax.f32 %v3097, 0.0
      %v3123 = vmax.f32 %v3098, 0.0
      %v3124 = vmax.f32 %v3099, 0.0
      %v3125 = vmax.f32 %v3100, 0.0
      %v3126 = vmax.f32 %v3101, 0.0
      %v3127 = vmax.f32 %v3102, 0.0
      %v3128 = vmax.f32 %v3103, 0.0
      %v3129 = vmax.f32 %v3104, 0.0
      %3130 = vst [vmem:[%s150] sm:$0xff] %v3105
      %3131 = vst [vmem:[%s150 + $0x8] sm:$0xff] %v3106
      %3132 = vst [vmem:[%s150 + $0x10] sm:$0xff] %v3107
      %3133 = vst [vmem:[%s150 + $0x18] sm:$0xff] %v3108
      %3134 = vst [vmem:[%s150 + $0x20] sm:$0xff] %v3109
      %3135 = vst [vmem:[%s150 + $0x28] sm:$0xff] %v3110
      %3136 = vst [vmem:[%s150 + $0x30] sm:$0xff] %v3111
      %3137 = vst [vmem:[%s150 + $0x38] sm:$0xff] %v3112
      %3138 = vst [vmem:[%s150 + $0x40] sm:$0xff] %v3113
      %3139 = vst [vmem:[%s150 + $0x48] sm:$0xff] %v3114
      %3140 = vst [vmem:[%s150 + $0x50] sm:$0xff] %v3115
      %3141 = vst [vmem:[%s150 + $0x58] sm:$0xff] %v3116
      %3142 = vst [vmem:[%s150 + $0x60] sm:$0xff] %v3117
      %3143 = vst [vmem:[%s150 + $0x68] sm:$0xff] %v3118
      %3144 = vst [vmem:[%s150 + $0x70] sm:$0xff] %v3119
      %3145 = vst [vmem:[%s150 + $0x78] sm:$0xff] %v3120
      %3146 = vst [vmem:[%s150 + $0x80] sm:$0xff] %v3121
      %3147 = vst [vmem:[%s150 + $0x88] sm:$0xff] %v3122
      %3148 = vst [vmem:[%s150 + $0x90] sm:$0xff] %v3123
      %3149 = vst [vmem:[%s150 + $0x98] sm:$0xff] %v3124
      %3150 = vst [vmem:[%s150 + $0xa0] sm:$0xff] %v3125
      %3151 = vst [vmem:[%s150 + $0xa8] sm:$0xff] %v3126
      %3152 = vst [vmem:[%s150 + $0xb0] sm:$0xff] %v3127
      %3153 = vst [vmem:[%s150 + $0xb8] sm:$0xff] %v3128
      %3154 = vst [vmem:[%s150 + $0xc0] sm:$0xff] %v3129
      %s3155 = smul.u32 25, %s14
      %p3156 = scmp.lt.s32.totalorder %s3155, 99
      %s3157 = scalar_select %p3156, %s3155, 99
      %s3158 = smul.addr %s3157, 8
      %s3159 = scalar_lea.vmem %s3, %s3158
      // Predicated region
      $region33: #{emotion_cnn_forward.4} parent=31 // pred_check
        %p3160 = pneg %p95
      $region34: #{emotion_cnn_forward.4} parent=31 // pred_check_branch
        %3162 = sbr.rel (%p3160) target = $region36
      $region35: #{emotion_cnn_forward.4} parent=31 // pred_region
        %s3163 = smul.u32 25, %s14
      $region36: #{emotion_cnn_forward.4} parent=31 // pred_fallthru
        _
    $region32: #{emotion_cnn_forward.4} parent=5 // pred_fallthru
      _
    %p3164 = scmp.le.s32.totalorder 2, %s9
    // Predicated region
    $region37: #{emotion_cnn_forward.4} parent=5 // pred_check
      %p3165 = pneg %p3164
    $region38: #{emotion_cnn_forward.4} parent=5 // pred_check_branch
      %3167 = sbr.rel (%p3165) target = $region40
    $region39: #{emotion_cnn_forward.4} parent=5 // pred_region
      %s3168 = ssub.s32 %s9, 2
      // Predicated region
      $region41: #{emotion_cnn_forward.4} parent=39 // pred_check
        %p3169 = pneg %p101
      $region42: #{emotion_cnn_forward.4} parent=39 // pred_check_branch
        %3171 = sbr.rel (%p3169) target = $region44
      $region43: #{emotion_cnn_forward.4} parent=39 // pred_region
        %s3172 = smul.u32 25, %s15
        %p3173 = scmp.lt.s32.totalorder %s3172, 99
        %s3174 = scalar_select %p3173, %s3172, 99
        %s3175 = smul.addr %s3174, 8
        %s3176 = scalar_lea.vmem %s3, %s3175
      $region44: #{emotion_cnn_forward.4} parent=39 // pred_fallthru
        _
    $region40: #{emotion_cnn_forward.4} parent=5 // pred_fallthru
      _
  $region6: #{emotion_cnn_forward.4} parent=0 // loop_footer
    %s13 = sadd.s32 1, %s9
  $region7: #{emotion_cnn_forward.4} parent=0 // loop_footer_branch
    %8 = sbr.rel target = $region3
  $region8: #{emotion_cnn_forward.4} parent=0 // loop_exit
    _

// kernel: emotion_cnn_forward.5
$region0: #{emotion_cnn_forward.5}
  #allocation0 [shape = 'u32[]', space=smem, size = 0x4, offset = 0x4, fixed_abs, tag = 'smem constant byte address 0x4 - core index']
  #allocation1 [shape = 'u32[144,128]{1,0:T(1,128)}', space=vmem, size = 0x12000, scoped, tag = 'internal scratch']
  #allocation2 [shape = 'f32[8,128]{1,0:T(8,128)}', space=vmem, size = 0x1000, scoped, tag = 'scratch operand']
  %s0 = inlined_call_operand.vmem [shape: bf16[8,4096], index: 0, kind: input, shape index: {}]
  %s1 = inlined_call_operand.vmem [shape: bf16[4096,256], index: 1, kind: input, shape index: {}]
  %s2 = inlined_call_operand.vmem [shape: f32[1,256], index: 2, kind: input, shape index: {}]
  %s3 = inlined_call_operand.vmem [shape: bf16[256,128], index: 3, kind: input, shape index: {}]
  %s4 = inlined_call_operand.vmem [shape: f32[2,8,128], index: 4, kind: output, shape index: {}]
  %s5 = sld [smem:[#allocation0]]
  $region98: #{emotion_cnn_forward.5} parent=0
    _
  %s7 = ssub.s32 1, %s5
  %s8 = scalar_select 0, %s7, %s5
  $region1: #{emotion_cnn_forward.5} parent=0
    #allocation3 [shape = 'u8[262144]{0}', space=vmem, size = 0x40000, scoped, tag = 'input window, operand 1']
    loop: start=0, step=1, limit=18
    $region2: #{emotion_cnn_forward.5} parent=1 // loop_pre_header
      _
    $region3: #{emotion_cnn_forward.5} parent=1 // loop_header
      %s10 = sphi 0, %s14
      %p11 = scmp.ge.s32.totalorder %s10, 18
      %s17 = sphi 0, %s29
      %s18 = sphi 0, %s25
      %s19 = sphi 0, %s17
      %s20 = sphi 0, %s18
      %s21 = sphi 0, %s19
      %s22 = sphi 0, %s20
      %s32 = sphi 0, %s34
      %s35 = sphi 0, %s32
      %s36 = sphi 0, %s35
      %s52 = sphi 0, %s36
      %s60 = sphi 0, %s62
      %s63 = sphi 0, %s60
      %s64 = sphi 0, %s63
      %s80 = sphi 0, %s64
      %s86 = sphi 0, %s88
      %s89 = sphi 0, %s86
      %s90 = sphi 0, %s89
      %s106 = sphi 0, %s90
      %s112 = sphi 0, %s114
      %s115 = sphi 0, %s112
      %s116 = sphi 0, %s115
      %s132 = sphi 0, %s116
      %s138 = sphi 0, %s140
      %s141 = sphi 0, %s138
      %s142 = sphi 0, %s141
      %s158 = sphi 0, %s142
    $region4: #{emotion_cnn_forward.5} parent=1 // loop_header_branch
      %13 = sbr.rel (%p11) target = $region8
    $region5: #{emotion_cnn_forward.5} parent=1 // loop_body
      %s15 = ssub.s32 %s10, 1
      %s16 = ssub.s32 %s10, 2
      %s23 = sadd.s32 1, %s18
      %p24 = scmp.ge.s32.totalorder %s23, 8
      %s25 = scalar_select %p24, 0, %s23
      %s26 = sadd.s32 1, %s17
      %s27 = scalar_select %p24, %s26, %s17
      %p28 = scmp.ge.s32.totalorder %s27, 2
      %s29 = scalar_select %p28, 0, %s27
      %s30 = ssub.s32 %s18, %s25
      %p31 = scmp.eq.s32.totalorder %s30, 0
      %s33 = sadd.s32 %s32, 1
      %s34 = scalar_select %p31, %s32, %s33
      %p37 = pneg %p31
      %p38 = scmp.eq.s32.totalorder %s10, 15
      %p39 = por %p37, %p38
      %p40 = scmp.ne.s32.totalorder %s32, %s35
      %p41 = scmp.eq.s32.totalorder %s10, 0
      %p42 = por %p40, %p41
      %p43 = scmp.ne.s32.totalorder %s32, %s35
      %p44 = scmp.eq.s32.totalorder %s15, 15
      %p45 = por %p43, %p44
      %p46 = scmp.ne.s32.totalorder %s35, %s36
      %p47 = scmp.eq.s32.totalorder %s15, 0
      %p48 = por %p46, %p47
      %p49 = scmp.ne.s32.totalorder %s35, %s36
      %p50 = scmp.eq.s32.totalorder %s16, 15
      %p51 = por %p49, %p50
      %p53 = scmp.ne.s32.totalorder %s36, %s52
      %p54 = scmp.eq.s32.totalorder %s16, 0
      %p55 = por %p53, %p54
      %s56 = ssub.s32 %s18, %s25
      %s57 = ssub.s32 %s17, %s29
      %s58 = sor.u32 %s56, %s57
      %p59 = scmp.eq.s32.totalorder %s58, 0
      %s61 = sadd.s32 %s60, 1
      %s62 = scalar_select %p59, %s60, %s61
      %p65 = pneg %p59
      %p66 = scmp.eq.s32.totalorder %s10, 15
      %p67 = por %p65, %p66
      %p68 = scmp.ne.s32.totalorder %s60, %s63
      %p69 = scmp.eq.s32.totalorder %s10, 0
      %p70 = por %p68, %p69
      %p71 = scmp.ne.s32.totalorder %s60, %s63
      %p72 = scmp.eq.s32.totalorder %s15, 15
      %p73 = por %p71, %p72
      %p74 = scmp.ne.s32.totalorder %s63, %s64
      %p75 = scmp.eq.s32.totalorder %s15, 0
      %p76 = por %p74, %p75
      %p77 = scmp.ne.s32.totalorder %s63, %s64
      %p78 = scmp.eq.s32.totalorder %s16, 15
      %p79 = por %p77, %p78
      %p81 = scmp.ne.s32.totalorder %s64, %s80
      %p82 = scmp.eq.s32.totalorder %s16, 0
      %p83 = por %p81, %p82
      %s84 = ssub.s32 %s17, %s29
      %p85 = scmp.eq.s32.totalorder %s84, 0
      %s87 = sadd.s32 %s86, 1
      %s88 = scalar_select %p85, %s86, %s87
      %p91 = pneg %p85
      %p92 = scmp.eq.s32.totalorder %s10, 15
      %p93 = por %p91, %p92
      %p94 = scmp.ne.s32.totalorder %s86, %s89
      %p95 = scmp.eq.s32.totalorder %s10, 0
      %p96 = por %p94, %p95
      %p97 = scmp.ne.s32.totalorder %s86, %s89
      %p98 = scmp.eq.s32.totalorder %s15, 15
      %p99 = por %p97, %p98
      %p100 = scmp.ne.s32.totalorder %s89, %s90
      %p101 = scmp.eq.s32.totalorder %s15, 0
      %p102 = por %p100, %p101
      %p103 = scmp.ne.s32.totalorder %s89, %s90
      %p104 = scmp.eq.s32.totalorder %s16, 15
      %p105 = por %p103, %p104
      %p107 = scmp.ne.s32.totalorder %s90, %s106
      %p108 = scmp.eq.s32.totalorder %s16, 0
      %p109 = por %p107, %p108
      %s110 = ssub.s32 %s17, %s29
      %p111 = scmp.eq.s32.totalorder %s110, 0
      %s113 = sadd.s32 %s112, 1
      %s114 = scalar_select %p111, %s112, %s113
      %p117 = pneg %p111
      %p118 = scmp.eq.s32.totalorder %s10, 15
      %p119 = por %p117, %p118
      %p120 = scmp.ne.s32.totalorder %s112, %s115
      %p121 = scmp.eq.s32.totalorder %s10, 0
      %p122 = por %p120, %p121
      %p123 = scmp.ne.s32.totalorder %s112, %s115
      %p124 = scmp.eq.s32.totalorder %s15, 15
      %p125 = por %p123, %p124
      %p126 = scmp.ne.s32.totalorder %s115, %s116
      %p127 = scmp.eq.s32.totalorder %s15, 0
      %p128 = por %p126, %p127
      %p129 = scmp.ne.s32.totalorder %s115, %s116
      %p130 = scmp.eq.s32.totalorder %s16, 15
      %p131 = por %p129, %p130
      %p133 = scmp.ne.s32.totalorder %s116, %s132
      %p134 = scmp.eq.s32.totalorder %s16, 0
      %p135 = por %p133, %p134
      %s136 = ssub.s32 %s17, %s29
      %p137 = scmp.eq.s32.totalorder %s136, 0
      %s139 = sadd.s32 %s138, 1
      %s140 = scalar_select %p137, %s138, %s139
      %p143 = pneg %p137
      %p144 = scmp.eq.s32.totalorder %s10, 15
      %p145 = por %p143, %p144
      %p146 = scmp.ne.s32.totalorder %s138, %s141
      %p147 = scmp.eq.s32.totalorder %s10, 0
      %p148 = por %p146, %p147
      %p149 = scmp.ne.s32.totalorder %s138, %s141
      %p150 = scmp.eq.s32.totalorder %s15, 15
      %p151 = por %p149, %p150
      %p152 = scmp.ne.s32.totalorder %s141, %s142
      %p153 = scmp.eq.s32.totalorder %s15, 0
      %p154 = por %p152, %p153
      %p155 = scmp.ne.s32.totalorder %s141, %s142
      %p156 = scmp.eq.s32.totalorder %s16, 15
      %p157 = por %p155, %p156
      %p159 = scmp.ne.s32.totalorder %s142, %s158
      %p160 = scmp.eq.s32.totalorder %s16, 0
      %p161 = por %p159, %p160
      %p162 = scmp.le.s32.totalorder 1, %s10
      %p163 = scmp.lt.s32.totalorder %s10, 17
      %p164 = pnand %p162, %p163
      %p165 = pneg %p164
      // Predicated region
      $region9: #{emotion_cnn_forward.5} parent=5 // pred_check
        _
      $region10: #{emotion_cnn_forward.5} parent=5 // pred_check_branch
        %167 = sbr.rel (%p164) target = $region12
      $region11: #{emotion_cnn_forward.5} parent=5 // pred_region
        %s168 = ssub.s32 %s10, 1
      $region12: #{emotion_cnn_forward.5} parent=5 // pred_fallthru
        _
      %p169 = scmp.lt.s32.totalorder %s10, 16
      // Predicated region
      $region13: #{emotion_cnn_forward.5} parent=5 // pred_check
        %p170 = pneg %p169
      $region14: #{emotion_cnn_forward.5} parent=5 // pred_check_branch
        %172 = sbr.rel (%p170) target = $region16
      $region15: #{emotion_cnn_forward.5} parent=5 // pred_region
        // Predicated region
        $region17: #{emotion_cnn_forward.5} parent=15 // pred_check
          %p173 = pneg %p42
        $region18: #{emotion_cnn_forward.5} parent=15 // pred_check_branch
          %175 = sbr.rel (%p173) target = $region20
        $region19: #{emotion_cnn_forward.5} parent=15 // pred_region
          %s176 = smul.u32 4, %s18
          %p177 = scmp.lt.s32.totalorder %s176, 31
          %s178 = scalar_select %p177, %s176, 31
          %s179 = smul.addr %s178, 4
          %s180 = scalar_lea.vmem %s0, %s179
          %s181 = smul.u32 4, %s18
        $region20: #{emotion_cnn_forward.5} parent=15 // pred_fallthru
          _
        // Predicated region
        $region21: #{emotion_cnn_forward.5} parent=15 // pred_check
          %p182 = pneg %p70
        $region22: #{emotion_cnn_forward.5} parent=15 // pred_check_branch
          %184 = sbr.rel (%p182) target = $region24
        $region23: #{emotion_cnn_forward.5} parent=15 // pred_region
          %s185 = sand.u32 %s60, 1
          %s186 = sand.u32 %s60, 1
          %s187 = smul.addr %s186, 256
          %s188 = scalar_lea.vmem [#allocation3], %s187
          %s189 = smul.u32 64, %s18
          %s190 = smul.addr %s189, 2
          %s191 = sadd.s32 %s17, %s190
          %s192 = smul.addr %s191, 4
          %s193 = scalar_lea.vmem %s1, %s192
          // Predicated region
          $region25: #{emotion_cnn_forward.5} parent=23 // pred_check
            _
          $region26: #{emotion_cnn_forward.5} parent=23 // pred_check_branch
            %195 = sbr.rel (0) target = $region28
          $region27: #{emotion_cnn_forward.5} parent=23 // pred_region
            // Predicated region
            $region29: #{emotion_cnn_forward.5} parent=27 // pred_check
              _
            $region30: #{emotion_cnn_forward.5} parent=27 // pred_check_branch
              %197 = sbr.rel target = $region32
            $region31: #{emotion_cnn_forward.5} parent=27 // pred_region
              // Predicated region
              $region44: #{emotion_cnn_forward.5} parent=31 // pred_check
                _
              $region45: #{emotion_cnn_forward.5} parent=31 // pred_check_branch
                %338 = sbr.rel (0) target = $region47
              $region46: #{emotion_cnn_forward.5} parent=31 // pred_region
                loop: start=0, step=1, limit=1
                $region48: #{emotion_cnn_forward.5} parent=46 // loop_pre_header
                  _
                $region49: #{emotion_cnn_forward.5} parent=46 // loop_header
                  %s340 = sphi 0, %s344
                  %p341 = scmp.ge.s32.totalorder %s340, 1
                  %s345 = sphi %s193, %s193
                  %s346 = sphi %s188, %s188
                $region50: #{emotion_cnn_forward.5} parent=46 // loop_header_branch
                  %343 = sbr.rel (%p341) target = $region54
                $region51: #{emotion_cnn_forward.5} parent=46 // loop_body
                  _
                $region52: #{emotion_cnn_forward.5} parent=46 // loop_footer
                  %s344 = sadd.s32 1, %s340
                $region53: #{emotion_cnn_forward.5} parent=46 // loop_footer_branch
                  %339 = sbr.rel target = $region49
                $region54: #{emotion_cnn_forward.5} parent=46 // loop_exit
                  _
                loop: start=0, step=1, limit=1
                $region55: #{emotion_cnn_forward.5} parent=46 // loop_pre_header
                  _
                $region56: #{emotion_cnn_forward.5} parent=46 // loop_header
                  %s349 = sphi 0, %s353
                  %p350 = scmp.ge.s32.totalorder %s349, 1
                  %s354 = sphi %s193, %s193
                  %s355 = sphi %s188, %s188
                $region57: #{emotion_cnn_forward.5} parent=46 // loop_header_branch
                  %352 = sbr.rel (%p350) target = $region61
                $region58: #{emotion_cnn_forward.5} parent=46 // loop_body
                  %v356 = vld [vmem:[%s354] sm:$0xf]
                  %357 = vst [vmem:[%s355] sm:$0xf] %v356
                  %v358 = vld [vmem:[%s354 + $0x8] sm:$0xf]
                  %359 = vst [vmem:[%s355 + $0x4] sm:$0xf] %v358
                  %v360 = vld [vmem:[%s354 + $0x10] sm:$0xf]
                  %361 = vst [vmem:[%s355 + $0x8] sm:$0xf] %v360
                  %v362 = vld [vmem:[%s354 + $0x18] sm:$0xf]
                  %363 = vst [vmem:[%s355 + $0xc] sm:$0xf] %v362
                  %v364 = vld [vmem:[%s354 + $0x20] sm:$0xf]
                  %365 = vst [vmem:[%s355 + $0x10] sm:$0xf] %v364
                  %v366 = vld [vmem:[%s354 + $0x28] sm:$0xf]
                  %367 = vst [vmem:[%s355 + $0x14] sm:$0xf] %v366
                  %v368 = vld [vmem:[%s354 + $0x30] sm:$0xf]
                  %369 = vst [vmem:[%s355 + $0x18] sm:$0xf] %v368
                  %v370 = vld [vmem:[%s354 + $0x38] sm:$0xf]
                  %371 = vst [vmem:[%s355 + $0x1c] sm:$0xf] %v370
                  %v372 = vld [vmem:[%s354 + $0x40] sm:$0xf]
                  %373 = vst [vmem:[%s355 + $0x20] sm:$0xf] %v372
                  %v374 = vld [vmem:[%s354 + $0x48] sm:$0xf]
                  %375 = vst [vmem:[%s355 + $0x24] sm:$0xf] %v374
                  %v376 = vld [vmem:[%s354 + $0x50] sm:$0xf]
                  %377 = vst [vmem:[%s355 + $0x28] sm:$0xf] %v376
                  %v378 = vld [vmem:[%s354 + $0x58] sm:$0xf]
                  %379 = vst [vmem:[%s355 + $0x2c] sm:$0xf] %v378
                  %v380 = vld [vmem:[%s354 + $0x60] sm:$0xf]
                  %381 = vst [vmem:[%s355 + $0x30] sm:$0xf] %v380
                  %v382 = vld [vmem:[%s354 + $0x68] sm:$0xf]
                  %383 = vst [vmem:[%s355 + $0x34] sm:$0xf] %v382
                  %v384 = vld [vmem:[%s354 + $0x70] sm:$0xf]
                  %385 = vst [vmem:[%s355 + $0x38] sm:$0xf] %v384
                  %v386 = vld [vmem:[%s354 + $0x78] sm:$0xf]
                  %387 = vst [vmem:[%s355 + $0x3c] sm:$0xf] %v386
                  %v388 = vld [vmem:[%s354 + $0x80] sm:$0xf]
                  %389 = vst [vmem:[%s355 + $0x40] sm:$0xf] %v388
                  %v390 = vld [vmem:[%s354 + $0x88] sm:$0xf]
                  %391 = vst [vmem:[%s355 + $0x44] sm:$0xf] %v390
                  %v392 = vld [vmem:[%s354 + $0x90] sm:$0xf]
                  %393 = vst [vmem:[%s355 + $0x48] sm:$0xf] %v392
                  %v394 = vld [vmem:[%s354 + $0x98] sm:$0xf]
                  %395 = vst [vmem:[%s355 + $0x4c] sm:$0xf] %v394
                  %v396 = vld [vmem:[%s354 + $0xa0] sm:$0xf]
                  %397 = vst [vmem:[%s355 + $0x50] sm:$0xf] %v396
                  %v398 = vld [vmem:[%s354 + $0xa8] sm:$0xf]
                  %399 = vst [vmem:[%s355 + $0x54] sm:$0xf] %v398
                  %v400 = vld [vmem:[%s354 + $0xb0] sm:$0xf]
                  %401 = vst [vmem:[%s355 + $0x58] sm:$0xf] %v400
                  %v402 = vld [vmem:[%s354 + $0xb8] sm:$0xf]
                  %403 = vst [vmem:[%s355 + $0x5c] sm:$0xf] %v402
                  %v404 = vld [vmem:[%s354 + $0xc0] sm:$0xf]
                  %405 = vst [vmem:[%s355 + $0x60] sm:$0xf] %v404
                  %v406 = vld [vmem:[%s354 + $0xc8] sm:$0xf]
                  %407 = vst [vmem:[%s355 + $0x64] sm:$0xf] %v406
                  %v408 = vld [vmem:[%s354 + $0xd0] sm:$0xf]
                  %409 = vst [vmem:[%s355 + $0x68] sm:$0xf] %v408
                  %v410 = vld [vmem:[%s354 + $0xd8] sm:$0xf]
                  %411 = vst [vmem:[%s355 + $0x6c] sm:$0xf] %v410
                  %v412 = vld [vmem:[%s354 + $0xe0] sm:$0xf]
                  %413 = vst [vmem:[%s355 + $0x70] sm:$0xf] %v412
                  %v414 = vld [vmem:[%s354 + $0xe8] sm:$0xf]
                  %415 = vst [vmem:[%s355 + $0x74] sm:$0xf] %v414
                  %v416 = vld [vmem:[%s354 + $0xf0] sm:$0xf]
                  %417 = vst [vmem:[%s355 + $0x78] sm:$0xf] %v416
                  %v418 = vld [vmem:[%s354 + $0xf8] sm:$0xf]
                  %419 = vst [vmem:[%s355 + $0x7c] sm:$0xf] %v418
                  %v420 = vld [vmem:[%s354 + $0x100] sm:$0xf]
                  %421 = vst [vmem:[%s355 + $0x80] sm:$0xf] %v420
                  %v422 = vld [vmem:[%s354 + $0x108] sm:$0xf]
                  %423 = vst [vmem:[%s355 + $0x84] sm:$0xf] %v422
                  %v424 = vld [vmem:[%s354 + $0x110] sm:$0xf]
                  %425 = vst [vmem:[%s355 + $0x88] sm:$0xf] %v424
                  %v426 = vld [vmem:[%s354 + $0x118] sm:$0xf]
                  %427 = vst [vmem:[%s355 + $0x8c] sm:$0xf] %v426
                  %v428 = vld [vmem:[%s354 + $0x120] sm:$0xf]
                  %429 = vst [vmem:[%s355 + $0x90] sm:$0xf] %v428
                  %v430 = vld [vmem:[%s354 + $0x128] sm:$0xf]
                  %431 = vst [vmem:[%s355 + $0x94] sm:$0xf] %v430
                  %v432 = vld [vmem:[%s354 + $0x130] sm:$0xf]
                  %433 = vst [vmem:[%s355 + $0x98] sm:$0xf] %v432
                  %v434 = vld [vmem:[%s354 + $0x138] sm:$0xf]
                  %435 = vst [vmem:[%s355 + $0x9c] sm:$0xf] %v434
                  %v436 = vld [vmem:[%s354 + $0x140] sm:$0xf]
                  %437 = vst [vmem:[%s355 + $0xa0] sm:$0xf] %v436
                  %v438 = vld [vmem:[%s354 + $0x148] sm:$0xf]
                  %439 = vst [vmem:[%s355 + $0xa4] sm:$0xf] %v438
                  %v440 = vld [vmem:[%s354 + $0x150] sm:$0xf]
                  %441 = vst [vmem:[%s355 + $0xa8] sm:$0xf] %v440
                  %v442 = vld [vmem:[%s354 + $0x158] sm:$0xf]
                  %443 = vst [vmem:[%s355 + $0xac] sm:$0xf] %v442
                  %v444 = vld [vmem:[%s354 + $0x160] sm:$0xf]
                  %445 = vst [vmem:[%s355 + $0xb0] sm:$0xf] %v444
                  %v446 = vld [vmem:[%s354 + $0x168] sm:$0xf]
                  %447 = vst [vmem:[%s355 + $0xb4] sm:$0xf] %v446
                  %v448 = vld [vmem:[%s354 + $0x170] sm:$0xf]
                  %449 = vst [vmem:[%s355 + $0xb8] sm:$0xf] %v448
                  %v450 = vld [vmem:[%s354 + $0x178] sm:$0xf]
                  %451 = vst [vmem:[%s355 + $0xbc] sm:$0xf] %v450
                  %v452 = vld [vmem:[%s354 + $0x180] sm:$0xf]
                  %453 = vst [vmem:[%s355 + $0xc0] sm:$0xf] %v452
                  %v454 = vld [vmem:[%s354 + $0x188] sm:$0xf]
                  %455 = vst [vmem:[%s355 + $0xc4] sm:$0xf] %v454
                  %v456 = vld [vmem:[%s354 + $0x190] sm:$0xf]
                  %457 = vst [vmem:[%s355 + $0xc8] sm:$0xf] %v456
                  %v458 = vld [vmem:[%s354 + $0x198] sm:$0xf]
                  %459 = vst [vmem:[%s355 + $0xcc] sm:$0xf] %v458
                  %v460 = vld [vmem:[%s354 + $0x1a0] sm:$0xf]
                  %461 = vst [vmem:[%s355 + $0xd0] sm:$0xf] %v460
                  %v462 = vld [vmem:[%s354 + $0x1a8] sm:$0xf]
                  %463 = vst [vmem:[%s355 + $0xd4] sm:$0xf] %v462
                  %v464 = vld [vmem:[%s354 + $0x1b0] sm:$0xf]
                  %465 = vst [vmem:[%s355 + $0xd8] sm:$0xf] %v464
                  %v466 = vld [vmem:[%s354 + $0x1b8] sm:$0xf]
                  %467 = vst [vmem:[%s355 + $0xdc] sm:$0xf] %v466
                  %v468 = vld [vmem:[%s354 + $0x1c0] sm:$0xf]
                  %469 = vst [vmem:[%s355 + $0xe0] sm:$0xf] %v468
                  %v470 = vld [vmem:[%s354 + $0x1c8] sm:$0xf]
                  %471 = vst [vmem:[%s355 + $0xe4] sm:$0xf] %v470
                  %v472 = vld [vmem:[%s354 + $0x1d0] sm:$0xf]
                  %473 = vst [vmem:[%s355 + $0xe8] sm:$0xf] %v472
                  %v474 = vld [vmem:[%s354 + $0x1d8] sm:$0xf]
                  %475 = vst [vmem:[%s355 + $0xec] sm:$0xf] %v474
                  %v476 = vld [vmem:[%s354 + $0x1e0] sm:$0xf]
                  %477 = vst [vmem:[%s355 + $0xf0] sm:$0xf] %v476
                  %v478 = vld [vmem:[%s354 + $0x1e8] sm:$0xf]
                  %479 = vst [vmem:[%s355 + $0xf4] sm:$0xf] %v478
                  %v480 = vld [vmem:[%s354 + $0x1f0] sm:$0xf]
                  %481 = vst [vmem:[%s355 + $0xf8] sm:$0xf] %v480
                  %v482 = vld [vmem:[%s354 + $0x1f8] sm:$0xf]
                  %483 = vst [vmem:[%s355 + $0xfc] sm:$0xf] %v482
                $region59: #{emotion_cnn_forward.5} parent=46 // loop_footer
                  %s353 = sadd.s32 1, %s349
                $region60: #{emotion_cnn_forward.5} parent=46 // loop_footer_branch
                  %348 = sbr.rel target = $region56
                $region61: #{emotion_cnn_forward.5} parent=46 // loop_exit
                  _
              $region47: #{emotion_cnn_forward.5} parent=31 // pred_fallthru
                _
            $region32: #{emotion_cnn_forward.5} parent=27 // pred_fallthru
              _
            // Predicated region
            $region33: #{emotion_cnn_forward.5} parent=27 // pred_check
              _
            $region34: #{emotion_cnn_forward.5} parent=27 // pred_check_branch
              %199 = sbr.rel (0) target = $region36
            $region35: #{emotion_cnn_forward.5} parent=27 // pred_region
              loop: start=0, step=1, limit=1
              $region37: #{emotion_cnn_forward.5} parent=35 // loop_pre_header
                _
              $region38: #{emotion_cnn_forward.5} parent=35 // loop_header
                %s202 = sphi 0, %s206
                %p203 = scmp.ge.s32.totalorder %s202, 1
                %s207 = sphi %s193, %s193
                %s208 = sphi %s188, %s188
              $region39: #{emotion_cnn_forward.5} parent=35 // loop_header_branch
                %205 = sbr.rel (%p203) target = $region43
              $region40: #{emotion_cnn_forward.5} parent=35 // loop_body
                %v209 = vld [vmem:[%s207] sm:$0xf]
                %210 = vst [vmem:[%s208] sm:$0xf] %v209
                %v211 = vld [vmem:[%s207 + $0x8] sm:$0xf]
                %212 = vst [vmem:[%s208 + $0x4] sm:$0xf] %v211
                %v213 = vld [vmem:[%s207 + $0x10] sm:$0xf]
                %214 = vst [vmem:[%s208 + $0x8] sm:$0xf] %v213
                %v215 = vld [vmem:[%s207 + $0x18] sm:$0xf]
                %216 = vst [vmem:[%s208 + $0xc] sm:$0xf] %v215
                %v217 = vld [vmem:[%s207 + $0x20] sm:$0xf]
                %218 = vst [vmem:[%s208 + $0x10] sm:$0xf] %v217
                %v219 = vld [vmem:[%s207 + $0x28] sm:$0xf]
                %220 = vst [vmem:[%s208 + $0x14] sm:$0xf] %v219
                %v221 = vld [vmem:[%s207 + $0x30] sm:$0xf]
                %222 = vst [vmem:[%s208 + $0x18] sm:$0xf] %v221
                %v223 = vld [vmem:[%s207 + $0x38] sm:$0xf]
                %224 = vst [vmem:[%s208 + $0x1c] sm:$0xf] %v223
                %v225 = vld [vmem:[%s207 + $0x40] sm:$0xf]
                %226 = vst [vmem:[%s208 + $0x20] sm:$0xf] %v225
                %v227 = vld [vmem:[%s207 + $0x48] sm:$0xf]
                %228 = vst [vmem:[%s208 + $0x24] sm:$0xf] %v227
                %v229 = vld [vmem:[%s207 + $0x50] sm:$0xf]
                %230 = vst [vmem:[%s208 + $0x28] sm:$0xf] %v229
                %v231 = vld [vmem:[%s207 + $0x58] sm:$0xf]
                %232 = vst [vmem:[%s208 + $0x2c] sm:$0xf] %v231
                %v233 = vld [vmem:[%s207 + $0x60] sm:$0xf]
                %234 = vst [vmem:[%s208 + $0x30] sm:$0xf] %v233
                %v235 = vld [vmem:[%s207 + $0x68] sm:$0xf]
                %236 = vst [vmem:[%s208 + $0x34] sm:$0xf] %v235
                %v237 = vld [vmem:[%s207 + $0x70] sm:$0xf]
                %238 = vst [vmem:[%s208 + $0x38] sm:$0xf] %v237
                %v239 = vld [vmem:[%s207 + $0x78] sm:$0xf]
                %240 = vst [vmem:[%s208 + $0x3c] sm:$0xf] %v239
                %v241 = vld [vmem:[%s207 + $0x80] sm:$0xf]
                %242 = vst [vmem:[%s208 + $0x40] sm:$0xf] %v241
                %v243 = vld [vmem:[%s207 + $0x88] sm:$0xf]
                %244 = vst [vmem:[%s208 + $0x44] sm:$0xf] %v243
                %v245 = vld [vmem:[%s207 + $0x90] sm:$0xf]
                %246 = vst [vmem:[%s208 + $0x48] sm:$0xf] %v245
                %v247 = vld [vmem:[%s207 + $0x98] sm:$0xf]
                %248 = vst [vmem:[%s208 + $0x4c] sm:$0xf] %v247
                %v249 = vld [vmem:[%s207 + $0xa0] sm:$0xf]
                %250 = vst [vmem:[%s208 + $0x50] sm:$0xf] %v249
                %v251 = vld [vmem:[%s207 + $0xa8] sm:$0xf]
                %252 = vst [vmem:[%s208 + $0x54] sm:$0xf] %v251
                %v253 = vld [vmem:[%s207 + $0xb0] sm:$0xf]
                %254 = vst [vmem:[%s208 + $0x58] sm:$0xf] %v253
                %v255 = vld [vmem:[%s207 + $0xb8] sm:$0xf]
                %256 = vst [vmem:[%s208 + $0x5c] sm:$0xf] %v255
                %v257 = vld [vmem:[%s207 + $0xc0] sm:$0xf]
                %258 = vst [vmem:[%s208 + $0x60] sm:$0xf] %v257
                %v259 = vld [vmem:[%s207 + $0xc8] sm:$0xf]
                %260 = vst [vmem:[%s208 + $0x64] sm:$0xf] %v259
                %v261 = vld [vmem:[%s207 + $0xd0] sm:$0xf]
                %262 = vst [vmem:[%s208 + $0x68] sm:$0xf] %v261
                %v263 = vld [vmem:[%s207 + $0xd8] sm:$0xf]
                %264 = vst [vmem:[%s208 + $0x6c] sm:$0xf] %v263
                %v265 = vld [vmem:[%s207 + $0xe0] sm:$0xf]
                %266 = vst [vmem:[%s208 + $0x70] sm:$0xf] %v265
                %v267 = vld [vmem:[%s207 + $0xe8] sm:$0xf]
                %268 = vst [vmem:[%s208 + $0x74] sm:$0xf] %v267
                %v269 = vld [vmem:[%s207 + $0xf0] sm:$0xf]
                %270 = vst [vmem:[%s208 + $0x78] sm:$0xf] %v269
                %v271 = vld [vmem:[%s207 + $0xf8] sm:$0xf]
                %272 = vst [vmem:[%s208 + $0x7c] sm:$0xf] %v271
                %v273 = vld [vmem:[%s207 + $0x100] sm:$0xf]
                %274 = vst [vmem:[%s208 + $0x80] sm:$0xf] %v273
                %v275 = vld [vmem:[%s207 + $0x108] sm:$0xf]
                %276 = vst [vmem:[%s208 + $0x84] sm:$0xf] %v275
                %v277 = vld [vmem:[%s207 + $0x110] sm:$0xf]
                %278 = vst [vmem:[%s208 + $0x88] sm:$0xf] %v277
                %v279 = vld [vmem:[%s207 + $0x118] sm:$0xf]
                %280 = vst [vmem:[%s208 + $0x8c] sm:$0xf] %v279
                %v281 = vld [vmem:[%s207 + $0x120] sm:$0xf]
                %282 = vst [vmem:[%s208 + $0x90] sm:$0xf] %v281
                %v283 = vld [vmem:[%s207 + $0x128] sm:$0xf]
                %284 = vst [vmem:[%s208 + $0x94] sm:$0xf] %v283
                %v285 = vld [vmem:[%s207 + $0x130] sm:$0xf]
                %286 = vst [vmem:[%s208 + $0x98] sm:$0xf] %v285
                %v287 = vld [vmem:[%s207 + $0x138] sm:$0xf]
                %288 = vst [vmem:[%s208 + $0x9c] sm:$0xf] %v287
                %v289 = vld [vmem:[%s207 + $0x140] sm:$0xf]
                %290 = vst [vmem:[%s208 + $0xa0] sm:$0xf] %v289
                %v291 = vld [vmem:[%s207 + $0x148] sm:$0xf]
                %292 = vst [vmem:[%s208 + $0xa4] sm:$0xf] %v291
                %v293 = vld [vmem:[%s207 + $0x150] sm:$0xf]
                %294 = vst [vmem:[%s208 + $0xa8] sm:$0xf] %v293
                %v295 = vld [vmem:[%s207 + $0x158] sm:$0xf]
                %296 = vst [vmem:[%s208 + $0xac] sm:$0xf] %v295
                %v297 = vld [vmem:[%s207 + $0x160] sm:$0xf]
                %298 = vst [vmem:[%s208 + $0xb0] sm:$0xf] %v297
                %v299 = vld [vmem:[%s207 + $0x168] sm:$0xf]
                %300 = vst [vmem:[%s208 + $0xb4] sm:$0xf] %v299
                %v301 = vld [vmem:[%s207 + $0x170] sm:$0xf]
                %302 = vst [vmem:[%s208 + $0xb8] sm:$0xf] %v301
                %v303 = vld [vmem:[%s207 + $0x178] sm:$0xf]
                %304 = vst [vmem:[%s208 + $0xbc] sm:$0xf] %v303
                %v305 = vld [vmem:[%s207 + $0x180] sm:$0xf]
                %306 = vst [vmem:[%s208 + $0xc0] sm:$0xf] %v305
                %v307 = vld [vmem:[%s207 + $0x188] sm:$0xf]
                %308 = vst [vmem:[%s208 + $0xc4] sm:$0xf] %v307
                %v309 = vld [vmem:[%s207 + $0x190] sm:$0xf]
                %310 = vst [vmem:[%s208 + $0xc8] sm:$0xf] %v309
                %v311 = vld [vmem:[%s207 + $0x198] sm:$0xf]
                %312 = vst [vmem:[%s208 + $0xcc] sm:$0xf] %v311
                %v313 = vld [vmem:[%s207 + $0x1a0] sm:$0xf]
                %314 = vst [vmem:[%s208 + $0xd0] sm:$0xf] %v313
                %v315 = vld [vmem:[%s207 + $0x1a8] sm:$0xf]
                %316 = vst [vmem:[%s208 + $0xd4] sm:$0xf] %v315
                %v317 = vld [vmem:[%s207 + $0x1b0] sm:$0xf]
                %318 = vst [vmem:[%s208 + $0xd8] sm:$0xf] %v317
                %v319 = vld [vmem:[%s207 + $0x1b8] sm:$0xf]
                %320 = vst [vmem:[%s208 + $0xdc] sm:$0xf] %v319
                %v321 = vld [vmem:[%s207 + $0x1c0] sm:$0xf]
                %322 = vst [vmem:[%s208 + $0xe0] sm:$0xf] %v321
                %v323 = vld [vmem:[%s207 + $0x1c8] sm:$0xf]
                %324 = vst [vmem:[%s208 + $0xe4] sm:$0xf] %v323
                %v325 = vld [vmem:[%s207 + $0x1d0] sm:$0xf]
                %326 = vst [vmem:[%s208 + $0xe8] sm:$0xf] %v325
                %v327 = vld [vmem:[%s207 + $0x1d8] sm:$0xf]
                %328 = vst [vmem:[%s208 + $0xec] sm:$0xf] %v327
                %v329 = vld [vmem:[%s207 + $0x1e0] sm:$0xf]
                %330 = vst [vmem:[%s208 + $0xf0] sm:$0xf] %v329
                %v331 = vld [vmem:[%s207 + $0x1e8] sm:$0xf]
                %332 = vst [vmem:[%s208 + $0xf4] sm:$0xf] %v331
                %v333 = vld [vmem:[%s207 + $0x1f0] sm:$0xf]
                %334 = vst [vmem:[%s208 + $0xf8] sm:$0xf] %v333
                %v335 = vld [vmem:[%s207 + $0x1f8] sm:$0xf]
                %336 = vst [vmem:[%s208 + $0xfc] sm:$0xf] %v335
              $region41: #{emotion_cnn_forward.5} parent=35 // loop_footer
                %s206 = sadd.s32 1, %s202
              $region42: #{emotion_cnn_forward.5} parent=35 // loop_footer_branch
                %201 = sbr.rel target = $region38
              $region43: #{emotion_cnn_forward.5} parent=35 // loop_exit
                _
            $region36: #{emotion_cnn_forward.5} parent=27 // pred_fallthru
              _
          $region28: #{emotion_cnn_forward.5} parent=23 // pred_fallthru
            _
          %484 = vnop
        $region24: #{emotion_cnn_forward.5} parent=15 // pred_fallthru
          _
        // Predicated region
        $region62: #{emotion_cnn_forward.5} parent=15 // pred_check
          %p485 = pneg %p96
        $region63: #{emotion_cnn_forward.5} parent=15 // pred_check_branch
          %487 = sbr.rel (%p485) target = $region65
        $region64: #{emotion_cnn_forward.5} parent=15 // pred_region
          %p488 = scmp.lt.s32.totalorder %s17, 1
          %s489 = scalar_select %p488, %s17, 1
          %s490 = scalar_lea.vmem %s2, %s489
        $region65: #{emotion_cnn_forward.5} parent=15 // pred_fallthru
          _
        // Predicated region
        $region66: #{emotion_cnn_forward.5} parent=15 // pred_check
          %p491 = pneg %p122
        $region67: #{emotion_cnn_forward.5} parent=15 // pred_check_branch
          %493 = sbr.rel (%p491) target = $region69
        $region68: #{emotion_cnn_forward.5} parent=15 // pred_region
          %s494 = smul.u32 16, %s17
          %p495 = scmp.lt.s32.totalorder %s494, 31
          %s496 = scalar_select %p495, %s494, 31
          %s497 = smul.addr %s496, 4
          %s498 = scalar_lea.vmem %s3, %s497
          %s499 = smul.u32 16, %s17
        $region69: #{emotion_cnn_forward.5} parent=15 // pred_fallthru
          _
      $region16: #{emotion_cnn_forward.5} parent=5 // pred_fallthru
        _
      %p500 = scmp.le.s32.totalorder 1, %s10
      %p501 = scmp.lt.s32.totalorder %s10, 17
      %p502 = pnand %p500, %p501
      %p503 = pneg %p502
      // Predicated region
      $region70: #{emotion_cnn_forward.5} parent=5 // pred_check
        _
      $region71: #{emotion_cnn_forward.5} parent=5 // pred_check_branch
        %505 = sbr.rel (%p502) target = $region73
      $region72: #{emotion_cnn_forward.5} parent=5 // pred_region
        %s506 = ssub.s32 %s10, 1
        %s507 = sand.u32 %s63, 1
        %s508 = sand.u32 %s63, 1
        %s509 = smul.addr %s508, 256
        %s510 = scalar_lea.vmem [#allocation3], %s509
        // Predicated region
        $region74: #{emotion_cnn_forward.5} parent=72 // pred_check
          %p511 = pneg %p76
        $region75: #{emotion_cnn_forward.5} parent=72 // pred_check_branch
          %513 = sbr.rel (%p511) target = $region77
        $region76: #{emotion_cnn_forward.5} parent=72 // pred_region
          _
        $region77: #{emotion_cnn_forward.5} parent=72 // pred_fallthru
          _
        %s514 = smul.u32 4, %s20
        %p515 = scmp.lt.s32.totalorder %s514, 31
        %s516 = scalar_select %p515, %s514, 31
        %s517 = smul.addr %s516, 4
        %s518 = scalar_lea.vmem %s0, %s517
        %p519 = pneg %p48
        %p520 = pneg %p45
        %s521 = sand.u32 %s63, 1
        %s522 = sand.u32 %s63, 1
        %s523 = smul.addr %s522, 256
        %s524 = scalar_lea.vmem [#allocation3], %s523
        %p525 = pneg %p76
        %p526 = pneg %p73
        %p527 = scmp.lt.s32.totalorder %s19, 1
        %s528 = scalar_select %p527, %s19, 1
        %s529 = scalar_lea.vmem %s2, %s528
        %p530 = pneg %p102
        %p531 = pneg %p99
        %s532 = smul.u32 16, %s19
        %p533 = scmp.lt.s32.totalorder %s532, 31
        %s534 = scalar_select %p533, %s532, 31
        %s535 = smul.addr %s534, 4
        %s536 = scalar_lea.vmem %s3, %s535
        %p537 = pneg %p128
        %p538 = pneg %p125
        %p539 = pneg %p154
        %p540 = pneg %p151
        %p541 = scmp.lt.s32.totalorder %s19, 1
        %s542 = scalar_select %p541, %s19, 1
        %s543 = smul.addr %s542, 8
        %s544 = scalar_lea.vmem %s4, %s543
        %s545 = smul.u32 4, %s20
        %p546 = scmp.lt.s32.totalorder %s545, 31
        %s547 = scalar_select %p546, %s545, 31
        %s548 = smul.addr %s547, 4
        %s549 = scalar_lea.vmem %s0, %s548
        %s550 = smul.u32 4, %s20
        %s551 = smul.u32 64, %s20
        %p552 = scmp.lt.s32.totalorder %s19, 1
        %s553 = scalar_select %p552, %s19, 1
        %s554 = scalar_lea.vmem %s2, %s553
        %s555 = smul.u32 16, %s19
        %p556 = scmp.lt.s32.totalorder %s555, 31
        %s557 = scalar_select %p556, %s555, 31
        %s558 = smul.addr %s557, 4
        %s559 = scalar_lea.vmem %s3, %s558
        %s560 = smul.u32 16, %s19
        %p561 = scmp.lt.s32.totalorder %s19, 1
        %s562 = scalar_select %p561, %s19, 1
        %s563 = smul.addr %s562, 8
        %s564 = scalar_lea.vmem %s4, %s563
        %p566 = scmp.eq.s32.totalorder %s20, 0
        // Predicated region
        $region78: #{emotion_cnn_forward.5} parent=72 // pred_check
          %p567 = pneg %p566
        $region79: #{emotion_cnn_forward.5} parent=72 // pred_check_branch
          %569 = sbr.rel (%p567) target = $region81
        $region80: #{emotion_cnn_forward.5} parent=72 // pred_region
          %570 = vst [vmem:[#allocation2] sm:$0xff] 0.0
        $region81: #{emotion_cnn_forward.5} parent=72 // pred_fallthru
          _
        %v571 = vld [vmem:[#allocation2] sm:$0xff]
        %v572 = vld [vmem:[%s549] sm:$0xff]
        %v573 = vld [vmem:[%s549 + $0x8] sm:$0xff]
        %v574 = vld [vmem:[%s510] sm:$0xf]
        %v575 = vld [vmem:[%s510 + $0x4] sm:$0xf]
        %v576 = vld [vmem:[%s510 + $0x8] sm:$0xf]
        %v577 = vld [vmem:[%s510 + $0xc] sm:$0xf]
        %v578 = vld [vmem:[%s510 + $0x10] sm:$0xf]
        %v579 = vld [vmem:[%s510 + $0x14] sm:$0xf]
        %v580 = vld [vmem:[%s510 + $0x18] sm:$0xf]
        %v581 = vld [vmem:[%s510 + $0x1c] sm:$0xf]
        %v582 = vld [vmem:[%s510 + $0x20] sm:$0xf]
        %v583 = vld [vmem:[%s510 + $0x24] sm:$0xf]
        %v584 = vld [vmem:[%s510 + $0x28] sm:$0xf]
        %v585 = vld [vmem:[%s510 + $0x2c] sm:$0xf]
        %v586 = vld [vmem:[%s510 + $0x30] sm:$0xf]
        %v587 = vld [vmem:[%s510 + $0x34] sm:$0xf]
        %v588 = vld [vmem:[%s510 + $0x38] sm:$0xf]
        %v589 = vld [vmem:[%s510 + $0x3c] sm:$0xf]
        %v590 = vld [vmem:[%s510 + $0x40] sm:$0xf]
        %v591 = vld [vmem:[%s510 + $0x44] sm:$0xf]
        %v592 = vld [vmem:[%s510 + $0x48] sm:$0xf]
        %v593 = vld [vmem:[%s510 + $0x4c] sm:$0xf]
        %v594 = vld [vmem:[%s510 + $0x50] sm:$0xf]
        %v595 = vld [vmem:[%s510 + $0x54] sm:$0xf]
        %v596 = vld [vmem:[%s510 + $0x58] sm:$0xf]
        %v597 = vld [vmem:[%s510 + $0x5c] sm:$0xf]
        %v598 = vld [vmem:[%s510 + $0x60] sm:$0xf]
        %v599 = vld [vmem:[%s510 + $0x64] sm:$0xf]
        %v600 = vld [vmem:[%s510 + $0x68] sm:$0xf]
        %v601 = vld [vmem:[%s510 + $0x6c] sm:$0xf]
        %v602 = vld [vmem:[%s510 + $0x70] sm:$0xf]
        %v603 = vld [vmem:[%s510 + $0x74] sm:$0xf]
        %v604 = vld [vmem:[%s510 + $0x78] sm:$0xf]
        %v605 = vld [vmem:[%s510 + $0x7c] sm:$0xf]
        %v606 = vld [vmem:[%s510 + $0x80] sm:$0xf]
        %v607 = vld [vmem:[%s510 + $0x84] sm:$0xf]
        %v608 = vld [vmem:[%s510 + $0x88] sm:$0xf]
        %v609 = vld [vmem:[%s510 + $0x8c] sm:$0xf]
        %v610 = vld [vmem:[%s510 + $0x90] sm:$0xf]
        %v611 = vld [vmem:[%s510 + $0x94] sm:$0xf]
        %v612 = vld [vmem:[%s510 + $0x98] sm:$0xf]
        %v613 = vld [vmem:[%s510 + $0x9c] sm:$0xf]
        %v614 = vld [vmem:[%s510 + $0xa0] sm:$0xf]
        %v615 = vld [vmem:[%s510 + $0xa4] sm:$0xf]
        %v616 = vld [vmem:[%s510 + $0xa8] sm:$0xf]
        %v617 = vld [vmem:[%s510 + $0xac] sm:$0xf]
        %v618 = vld [vmem:[%s510 + $0xb0] sm:$0xf]
        %v619 = vld [vmem:[%s510 + $0xb4] sm:$0xf]
        %v620 = vld [vmem:[%s510 + $0xb8] sm:$0xf]
        %v621 = vld [vmem:[%s510 + $0xbc] sm:$0xf]
        %v622 = vld [vmem:[%s510 + $0xc0] sm:$0xf]
        %v623 = vld [vmem:[%s510 + $0xc4] sm:$0xf]
        %v624 = vld [vmem:[%s510 + $0xc8] sm:$0xf]
        %v625 = vld [vmem:[%s510 + $0xcc] sm:$0xf]
        %v626 = vld [vmem:[%s510 + $0xd0] sm:$0xf]
        %v627 = vld [vmem:[%s510 + $0xd4] sm:$0xf]
        %v628 = vld [vmem:[%s510 + $0xd8] sm:$0xf]
        %v629 = vld [vmem:[%s510 + $0xdc] sm:$0xf]
        %v630 = vld [vmem:[%s510 + $0xe0] sm:$0xf]
        %v631 = vld [vmem:[%s510 + $0xe4] sm:$0xf]
        %v632 = vld [vmem:[%s510 + $0xe8] sm:$0xf]
        %v633 = vld [vmem:[%s510 + $0xec] sm:$0xf]
        %v634 = vld [vmem:[%s510 + $0xf0] sm:$0xf]
        %v635 = vld [vmem:[%s510 + $0xf4] sm:$0xf]
        %v636 = vld [vmem:[%s510 + $0xf8] sm:$0xf]
        %v637 = vld [vmem:[%s510 + $0xfc] sm:$0xf]
        %v640 = vunpack.c.l.b16 %v572
        %v641 = vunpack.c.h.b16 %v572
        %v642 = vunpack.c.l.b16 %v573
        %v643 = vunpack.c.h.b16 %v573
        %v644 = vpack.c.b16 %v640, %v640
        %v645 = vpack.c.b16 %v641, %v641
        %v646 = vpack.c.b16 %v642, %v642
        %v647 = vpack.c.b16 %v643, %v643
        %v716 = vunpack.c.l.b16 %v574
        %v717 = vunpack.c.l.b16 %v575
        %v718 = vunpack.c.l.b16 %v576
        %v719 = vunpack.c.l.b16 %v577
        %v720 = vunpack.c.l.b16 %v578
        %v721 = vunpack.c.l.b16 %v579
        %v722 = vunpack.c.l.b16 %v580
        %v723 = vunpack.c.l.b16 %v581
        %v724 = vunpack.c.l.b16 %v582
        %v725 = vunpack.c.l.b16 %v583
        %v726 = vunpack.c.l.b16 %v584
        %v727 = vunpack.c.l.b16 %v585
        %v728 = vunpack.c.l.b16 %v586
        %v729 = vunpack.c.l.b16 %v587
        %v730 = vunpack.c.l.b16 %v588
        %v731 = vunpack.c.l.b16 %v589
        %v732 = vunpack.c.l.b16 %v590
        %v733 = vunpack.c.l.b16 %v591
        %v734 = vunpack.c.l.b16 %v592
        %v735 = vunpack.c.l.b16 %v593
        %v736 = vunpack.c.l.b16 %v594
        %v737 = vunpack.c.l.b16 %v595
        %v738 = vunpack.c.l.b16 %v596
        %v739 = vunpack.c.l.b16 %v597
        %v740 = vunpack.c.l.b16 %v598
        %v741 = vunpack.c.l.b16 %v599
        %v742 = vunpack.c.l.b16 %v600
        %v743 = vunpack.c.l.b16 %v601
        %v744 = vunpack.c.l.b16 %v602
        %v745 = vunpack.c.l.b16 %v603
        %v746 = vunpack.c.l.b16 %v604
        %v747 = vunpack.c.l.b16 %v605
        %v748 = vunpack.c.l.b16 %v606
        %v749 = vunpack.c.l.b16 %v607
        %v750 = vunpack.c.l.b16 %v608
        %v751 = vunpack.c.l.b16 %v609
        %v752 = vunpack.c.l.b16 %v610
        %v753 = vunpack.c.l.b16 %v611
        %v754 = vunpack.c.l.b16 %v612
        %v755 = vunpack.c.l.b16 %v613
        %v756 = vunpack.c.l.b16 %v614
        %v757 = vunpack.c.l.b16 %v615
        %v758 = vunpack.c.l.b16 %v616
        %v759 = vunpack.c.l.b16 %v617
        %v760 = vunpack.c.l.b16 %v618
        %v761 = vunpack.c.l.b16 %v619
        %v762 = vunpack.c.l.b16 %v620
        %v763 = vunpack.c.l.b16 %v621
        %v764 = vunpack.c.l.b16 %v622
        %v765 = vunpack.c.l.b16 %v623
        %v766 = vunpack.c.l.b16 %v624
        %v767 = vunpack.c.l.b16 %v625
        %v768 = vunpack.c.l.b16 %v626
        %v769 = vunpack.c.l.b16 %v627
        %v770 = vunpack.c.l.b16 %v628
        %v771 = vunpack.c.l.b16 %v629
        %v772 = vunpack.c.l.b16 %v630
        %v773 = vunpack.c.l.b16 %v631
        %v774 = vunpack.c.l.b16 %v632
        %v775 = vunpack.c.l.b16 %v633
        %v776 = vunpack.c.l.b16 %v634
        %v777 = vunpack.c.l.b16 %v635
        %v778 = vunpack.c.l.b16 %v636
        %v779 = vunpack.c.l.b16 %v637
        %v780 = vpack.c.b16 %v717, %v716
        %v781 = vpack.c.b16 %v719, %v718
        %v782 = vpack.c.b16 %v721, %v720
        %v783 = vpack.c.b16 %v723, %v722
        %v784 = vpack.c.b16 %v725, %v724
        %v785 = vpack.c.b16 %v727, %v726
        %v786 = vpack.c.b16 %v729, %v728
        %v787 = vpack.c.b16 %v731, %v730
        %v788 = vpack.c.b16 %v733, %v732
        %v789 = vpack.c.b16 %v735, %v734
        %v790 = vpack.c.b16 %v737, %v736
        %v791 = vpack.c.b16 %v739, %v738
        %v792 = vpack.c.b16 %v741, %v740
        %v793 = vpack.c.b16 %v743, %v742
        %v794 = vpack.c.b16 %v745, %v744
        %v795 = vpack.c.b16 %v747, %v746
        %v796 = vpack.c.b16 %v749, %v748
        %v797 = vpack.c.b16 %v751, %v750
        %v798 = vpack.c.b16 %v753, %v752
        %v799 = vpack.c.b16 %v755, %v754
        %v800 = vpack.c.b16 %v757, %v756
        %v801 = vpack.c.b16 %v759, %v758
        %v802 = vpack.c.b16 %v761, %v760
        %v803 = vpack.c.b16 %v763, %v762
        %v804 = vpack.c.b16 %v765, %v764
        %v805 = vpack.c.b16 %v767, %v766
        %v806 = vpack.c.b16 %v769, %v768
        %v807 = vpack.c.b16 %v771, %v770
        %v808 = vpack.c.b16 %v773, %v772
        %v809 = vpack.c.b16 %v775, %v774
        %v810 = vpack.c.b16 %v777, %v776
        %v811 = vpack.c.b16 %v779, %v778
        %844 = vmatprep.subr.bf16.mxu0 0
        %845 = vmatpush1.bf16.msra.mxu0 %v780
        %846 = vmatprep.subr.bf16.mxu0 0
        %847 = vmatpush1.bf16.msra.mxu0 %v781
        %848 = vmatprep.subr.bf16.mxu0 0
        %849 = vmatpush1.bf16.msra.mxu0 %v782
        %850 = vmatprep.subr.bf16.mxu0 0
        %851 = vmatpush1.bf16.msra.mxu0 %v783
        %852 = vmatprep.subr.bf16.mxu0 0
        %853 = vmatpush1.bf16.msra.mxu0 %v784
        %854 = vmatprep.subr.bf16.mxu0 0
        %855 = vmatpush1.bf16.msra.mxu0 %v785
        %856 = vmatprep.subr.bf16.mxu0 0
        %857 = vmatpush1.bf16.msra.mxu0 %v786
        %858 = vmatprep.subr.bf16.mxu0 0
        %859 = vmatpush1.bf16.msra.mxu0 %v787
        %860 = vmatprep.subr.bf16.mxu0 0
        %861 = vmatpush1.bf16.msra.mxu0 %v788
        %862 = vmatprep.subr.bf16.mxu0 0
        %863 = vmatpush1.bf16.msra.mxu0 %v789
        %864 = vmatprep.subr.bf16.mxu0 0
        %865 = vmatpush1.bf16.msra.mxu0 %v790
        %866 = vmatprep.subr.bf16.mxu0 0
        %867 = vmatpush1.bf16.msra.mxu0 %v791
        %868 = vmatprep.subr.bf16.mxu0 0
        %869 = vmatpush1.bf16.msra.mxu0 %v792
        %870 = vmatprep.subr.bf16.mxu0 0
        %871 = vmatpush1.bf16.msra.mxu0 %v793
        %872 = vmatprep.subr.bf16.mxu0 0
        %873 = vmatpush1.bf16.msra.mxu0 %v794
        %874 = vmatprep.subr.bf16.mxu0 0
        %875 = vmatpush1.bf16.msra.mxu0 %v795
        %876 = vmatprep.mubr.bf16.mxu0 %v645
        %877 = vmatmul.mubr.bf16.gmra.mrb[0].mxu0 %v644
        %v878 = vpop.f32.mrb[0].mxu0
        %v879 = vadd.f32 0.0, %v878
        %v880 = vpop.f32.mrb[0].mxu0
        %v881 = vpop.f32.mrb[0].mxu0
        %v882 = vpop.f32.mrb[0].mxu0
        %883 = vdwg.mxu0
        %884 = vmatprep.subr.bf16.mxu0 0
        %885 = vmatpush1.bf16.msra.mxu0 %v796
        %886 = vmatprep.subr.bf16.mxu0 0
        %887 = vmatpush1.bf16.msra.mxu0 %v797
        %888 = vmatprep.subr.bf16.mxu0 0
        %889 = vmatpush1.bf16.msra.mxu0 %v798
        %890 = vmatprep.subr.bf16.mxu0 0
        %891 = vmatpush1.bf16.msra.mxu0 %v799
        %892 = vmatprep.subr.bf16.mxu0 0
        %893 = vmatpush1.bf16.msra.mxu0 %v800
        %894 = vmatprep.subr.bf16.mxu0 0
        %895 = vmatpush1.bf16.msra.mxu0 %v801
        %896 = vmatprep.subr.bf16.mxu0 0
        %897 = vmatpush1.bf16.msra.mxu0 %v802
        %898 = vmatprep.subr.bf16.mxu0 0
        %899 = vmatpush1.bf16.msra.mxu0 %v803
        %900 = vmatprep.subr.bf16.mxu0 0
        %901 = vmatpush1.bf16.msra.mxu0 %v804
        %902 = vmatprep.subr.bf16.mxu0 0
        %903 = vmatpush1.bf16.msra.mxu0 %v805
        %904 = vmatprep.subr.bf16.mxu0 0
        %905 = vmatpush1.bf16.msra.mxu0 %v806
        %906 = vmatprep.subr.bf16.mxu0 0
        %907 = vmatpush1.bf16.msra.mxu0 %v807
        %908 = vmatprep.subr.bf16.mxu0 0
        %909 = vmatpush1.bf16.msra.mxu0 %v808
        %910 = vmatprep.subr.bf16.mxu0 0
        %911 = vmatpush1.bf16.msra.mxu0 %v809
        %912 = vmatprep.subr.bf16.mxu0 0
        %913 = vmatpush1.bf16.msra.mxu0 %v810
        %914 = vmatprep.subr.bf16.mxu0 0
        %915 = vmatpush1.bf16.msra.mxu0 %v811
        %916 = vmatprep.mubr.bf16.mxu0 %v647
        %917 = vmatmul.mubr.bf16.gmra.mrb[0].mxu0 %v646
        %v918 = vpop.f32.mrb[0].mxu0
        %v919 = vadd.f32 %v879, %v918
        %v920 = vpop.f32.mrb[0].mxu0
        %v921 = vpop.f32.mrb[0].mxu0
        %v922 = vpop.f32.mrb[0].mxu0
        %923 = vdwg.mxu0
        %v924 = vadd.f32 %v571, %v919
        %925 = vst [vmem:[#allocation2] sm:$0xff] %v924
        %p926 = scmp.eq.s32.totalorder %s20, 7
        // Predicated region
        $region82: #{emotion_cnn_forward.5} parent=72 // pred_check
          %p927 = pneg %p926
        $region83: #{emotion_cnn_forward.5} parent=72 // pred_check_branch
          %929 = sbr.rel (%p927) target = $region85
        $region84: #{emotion_cnn_forward.5} parent=72 // pred_region
          %v930 = vld [vmem:[#allocation2] sm:$0xff]
          %v931 = vld [vmem:[%s554] sm:$0x1]
          %v933 = vlaneseq
          %v934 = vshrl.u32 %v933, 7
          %v935 = vsub.s32 0, %v934
          %v936 = vrot.slane %v931, %v935
          %v938 = vadd.f32 %v930, %v936
          %v939 = vmax.f32 %v938, 0.0
          %v940 = vpack.c.bf16 %v939, %v939
          %v941 = vld [vmem:[%s559] sm:$0xf]
          %v942 = vld [vmem:[%s559 + $0x4] sm:$0xf]
          %v943 = vld [vmem:[%s559 + $0x8] sm:$0xf]
          %v944 = vld [vmem:[%s559 + $0xc] sm:$0xf]
          %v945 = vld [vmem:[%s559 + $0x10] sm:$0xf]
          %v946 = vld [vmem:[%s559 + $0x14] sm:$0xf]
          %v947 = vld [vmem:[%s559 + $0x18] sm:$0xf]
          %v948 = vld [vmem:[%s559 + $0x1c] sm:$0xf]
          %v949 = vld [vmem:[%s559 + $0x20] sm:$0xf]
          %v950 = vld [vmem:[%s559 + $0x24] sm:$0xf]
          %v951 = vld [vmem:[%s559 + $0x28] sm:$0xf]
          %v952 = vld [vmem:[%s559 + $0x2c] sm:$0xf]
          %v953 = vld [vmem:[%s559 + $0x30] sm:$0xf]
          %v954 = vld [vmem:[%s559 + $0x34] sm:$0xf]
          %v955 = vld [vmem:[%s559 + $0x38] sm:$0xf]
          %v956 = vld [vmem:[%s559 + $0x3c] sm:$0xf]
          %v973 = vunpack.c.l.b16 %v941
          %v974 = vunpack.c.l.b16 %v942
          %v975 = vunpack.c.l.b16 %v943
          %v976 = vunpack.c.l.b16 %v944
          %v977 = vunpack.c.l.b16 %v945
          %v978 = vunpack.c.l.b16 %v946
          %v979 = vunpack.c.l.b16 %v947
          %v980 = vunpack.c.l.b16 %v948
          %v981 = vunpack.c.l.b16 %v949
          %v982 = vunpack.c.l.b16 %v950
          %v983 = vunpack.c.l.b16 %v951
          %v984 = vunpack.c.l.b16 %v952
          %v985 = vunpack.c.l.b16 %v953
          %v986 = vunpack.c.l.b16 %v954
          %v987 = vunpack.c.l.b16 %v955
          %v988 = vunpack.c.l.b16 %v956
          %v989 = vpack.c.b16 %v974, %v973
          %v990 = vpack.c.b16 %v976, %v975
          %v991 = vpack.c.b16 %v978, %v977
          %v992 = vpack.c.b16 %v980, %v979
          %v993 = vpack.c.b16 %v982, %v981
          %v994 = vpack.c.b16 %v984, %v983
          %v995 = vpack.c.b16 %v986, %v985
          %v996 = vpack.c.b16 %v988, %v987
          %1005 = vmatprep.subr.bf16.mxu0 0
          %1006 = vmatpush1.bf16.msra.mxu0 %v989
          %1007 = vmatprep.subr.bf16.mxu0 0
          %1008 = vmatpush1.bf16.msra.mxu0 %v990
          %1009 = vmatprep.subr.bf16.mxu0 0
          %1010 = vmatpush1.bf16.msra.mxu0 %v991
          %1011 = vmatprep.subr.bf16.mxu0 0
          %1012 = vmatpush1.bf16.msra.mxu0 %v992
          %1013 = vmatprep.subr.bf16.mxu0 0
          %1014 = vmatpush1.bf16.msra.mxu0 %v993
          %1015 = vmatprep.subr.bf16.mxu0 0
          %1016 = vmatpush1.bf16.msra.mxu0 %v994
          %1017 = vmatprep.subr.bf16.mxu0 0
          %1018 = vmatpush1.bf16.msra.mxu0 %v995
          %1019 = vmatprep.subr.bf16.mxu0 0
          %1020 = vmatpush1.bf16.msra.mxu0 %v996
          %1021 = vmatprep.subr.bf16.mxu0 0
          %1022 = vmatpush1.bf16.msra.mxu0 0
          %1023 = vmatprep.subr.bf16.mxu0 0
          %1024 = vmatpush1.bf16.msra.mxu0 0
          %1025 = vmatprep.subr.bf16.mxu0 0
          %1026 = vmatpush1.bf16.msra.mxu0 0
          %1027 = vmatprep.subr.bf16.mxu0 0
          %1028 = vmatpush1.bf16.msra.mxu0 0
          %1029 = vmatprep.subr.bf16.mxu0 0
          %1030 = vmatpush1.bf16.msra.mxu0 0
          %1031 = vmatprep.subr.bf16.mxu0 0
          %1032 = vmatpush1.bf16.msra.mxu0 0
          %1033 = vmatprep.subr.bf16.mxu0 0
          %1034 = vmatpush1.bf16.msra.mxu0 0
          %1035 = vmatprep.subr.bf16.mxu0 0
          %1036 = vmatpush1.bf16.msra.mxu0 0
          %1037 = vmatprep.mubr.bf16.mxu0 0
          %1038 = vmatmul.mubr.bf16.gmra.mrb[0].mxu0 %v940
          %v1039 = vpop.f32.mrb[0].mxu0
          %v1040 = vadd.f32 0.0, %v1039
          %v1041 = vpop.f32.mrb[0].mxu0
          %v1042 = vpop.f32.mrb[0].mxu0
          %v1043 = vpop.f32.mrb[0].mxu0
          %1044 = vdwg.mxu0
          %1045 = vst [vmem:[%s564] sm:$0xff] %v1040
        $region85: #{emotion_cnn_forward.5} parent=72 // pred_fallthru
          _
        %p1046 = scmp.lt.s32.totalorder %s19, 1
        %s1047 = scalar_select %p1046, %s19, 1
        %s1048 = smul.addr %s1047, 8
        %s1049 = scalar_lea.vmem %s4, %s1048
        // Predicated region
        $region86: #{emotion_cnn_forward.5} parent=72 // pred_check
          %p1050 = pneg %p151
        $region87: #{emotion_cnn_forward.5} parent=72 // pred_check_branch
          %1052 = sbr.rel (%p1050) target = $region89
        $region88: #{emotion_cnn_forward.5} parent=72 // pred_region
          _
        $region89: #{emotion_cnn_forward.5} parent=72 // pred_fallthru
          _
      $region73: #{emotion_cnn_forward.5} parent=5 // pred_fallthru
        _
      %p1053 = scmp.le.s32.totalorder 2, %s10
      // Predicated region
      $region90: #{emotion_cnn_forward.5} parent=5 // pred_check
        %p1054 = pneg %p1053
      $region91: #{emotion_cnn_forward.5} parent=5 // pred_check_branch
        %1056 = sbr.rel (%p1054) target = $region93
      $region92: #{emotion_cnn_forward.5} parent=5 // pred_region
        %s1057 = ssub.s32 %s10, 2
        // Predicated region
        $region94: #{emotion_cnn_forward.5} parent=92 // pred_check
          %p1058 = pneg %p157
        $region95: #{emotion_cnn_forward.5} parent=92 // pred_check_branch
          %1060 = sbr.rel (%p1058) target = $region97
        $region96: #{emotion_cnn_forward.5} parent=92 // pred_region
          %p1061 = scmp.lt.s32.totalorder %s21, 1
          %s1062 = scalar_select %p1061, %s21, 1
          %s1063 = smul.addr %s1062, 8
          %s1064 = scalar_lea.vmem %s4, %s1063
        $region97: #{emotion_cnn_forward.5} parent=92 // pred_fallthru
          _
      $region93: #{emotion_cnn_forward.5} parent=5 // pred_fallthru
        _
    $region6: #{emotion_cnn_forward.5} parent=1 // loop_footer
      %s14 = sadd.s32 1, %s10
    $region7: #{emotion_cnn_forward.5} parent=1 // loop_footer_branch
      %9 = sbr.rel target = $region3
    $region8: #{emotion_cnn_forward.5} parent=1 // loop_exit
      _

</llo_original>
